<compile_context>
chip_gen: v6e
topology: v6e:2x2x1
jax: 0.10.0
libtpu: 0.0.40
codegen_flags: <defaults>
</compile_context>

<pallas_src>
import jax
import jax.numpy as jnp
from jax.experimental import pallas as pl
from jax.experimental.pallas import tpu as pltpu


CP = 128                          # channel padding -> lane-dense (x, 128) tiles
_VMEM_LIMIT = 16 * 1024 * 1024    # generous for these tiles; safe on v5e/v6e/v7x


# ----------------------------------------------------------------------------
# Fused Conv3x3(pad=1, stride=1) + bias + ReLU kernel
#   - 9 shifted tap matmuls accumulated in an f32 VMEM scratch (no HBM im2col)
#   - channel dim padded to CP=128 -> lane-dense output stores
# ----------------------------------------------------------------------------
def conv3x3_bias_relu(x, w9, b_row, *, out_dtype):
    """x:     (N, H, W, Cin) bf16 NHWC activations.
       w9:    (9, Cin, CP)   bf16 weights, tap-major (t = di*3 + dj), zero-padded.
       b_row: (1, CP)        f32 bias, zero-padded.
       returns (N, H, W, CP) `out_dtype` (padded channels are exactly 0)."""
    N, H, W, Cin = x.shape
    assert w9.shape[1] == Cin and w9.shape[2] == CP
    # Spatial halo (pad=1) in the wrapper: tiny compared to the im2col blow-up
    # this kernel avoids.
    xp = jnp.pad(x, ((0, 0), (1, 1), (1, 1), (0, 0)))
    Hp, Wp = H + 2, W + 2

    def kernel(x_ref, w_ref, b_ref, o_ref, acc_ref, xf_ref):
        # Stage the padded image once as unpacked f32 in VMEM so the nine
        # shifted tap windows below are plain (unaligned) f32 ref slices.
        xf_ref[...] = x_ref[0].astype(jnp.float32)
        for t in range(9):
            di, dj = divmod(t, 3)
            xt = xf_ref[di:di + H, dj:dj + W, :].reshape(H * W, Cin)
            contrib = jnp.dot(xt.astype(jnp.bfloat16), w_ref[t],
                              preferred_element_type=jnp.float32)
            if t == 0:
                acc_ref[...] = contrib
            else:
                acc_ref[...] += contrib
        # Bias broadcast + ReLU once, hoisted out of the tap loop.
        o_ref[0] = jnp.maximum(acc_ref[...] + b_ref[...], 0.0).astype(o_ref.dtype)

    out = pl.pallas_call(
        kernel,
        out_shape=jax.ShapeDtypeStruct((N, H * W, CP), out_dtype),
        grid=(N,),
        in_specs=[
            pl.BlockSpec((1, Hp, Wp, Cin), lambda n: (n, 0, 0, 0)),
            pl.BlockSpec((9, Cin, CP), lambda n: (0, 0, 0)),
            pl.BlockSpec((1, CP), lambda n: (0, 0)),
        ],
        out_specs=pl.BlockSpec((1, H * W, CP), lambda n: (n, 0, 0)),
        scratch_shapes=[
            pltpu.VMEM((H * W, CP), jnp.float32),    # f32 accumulator
            pltpu.VMEM((Hp, Wp, Cin), jnp.float32),  # f32 staged padded image
        ],
        compiler_params=pltpu.CompilerParams(
            dimension_semantics=("parallel",),
            vmem_limit_bytes=_VMEM_LIMIT),
    )(xp, w9, b_row)
    return out.reshape(N, H, W, CP)          # free metadata reshape


# ----------------------------------------------------------------------------
# 2x2 max-pool (stride 2): single input, taps reduced in-kernel
# ----------------------------------------------------------------------------
def maxpool2x2(x, *, out_dtype):
    """x: (N, H, W, C) with C a multiple of 128 -> (N, H//2, W//2, C)."""
    N, H, W, C = x.shape
    assert H % 2 == 0 and W % 2 == 0, "maxpool2x2 requires even spatial dims"
    Ho, Wo = H // 2, W // 2
    x6 = x.reshape(N, Ho, 2, Wo, 2, C)       # free metadata reshape: taps -> dims

    def kernel(x_ref, o_ref):
        v = x_ref[0].astype(jnp.float32)                    # (Ho, 2, Wo, 2, C)
        m = jnp.maximum(v[:, 0], v[:, 1])                   # rows: (Ho, Wo, 2, C)
        m = jnp.maximum(m[:, :, 0:1, :], m[:, :, 1:2, :])   # cols: (Ho, Wo, 1, C)
        o_ref[0] = m.astype(o_ref.dtype)

    out = pl.pallas_call(
        kernel,
        out_shape=jax.ShapeDtypeStruct((N, Ho, Wo, 1, C), out_dtype),
        grid=(N,),
        in_specs=[pl.BlockSpec((1, Ho, 2, Wo, 2, C),
                               lambda n: (n, 0, 0, 0, 0, 0))],
        out_specs=pl.BlockSpec((1, Ho, Wo, 1, C), lambda n: (n, 0, 0, 0, 0)),
        compiler_params=pltpu.CompilerParams(
            dimension_semantics=("parallel",),
            vmem_limit_bytes=_VMEM_LIMIT),
    )(x6)
    return out.reshape(N, Ho, Wo, C)


# ----------------------------------------------------------------------------
# Parameter preparation (torch layout -> kernel layout)
# ----------------------------------------------------------------------------
def _prep_conv_weight(w, cin_pad, cout_pad):
    """torch (Cout, Cin, 3, 3) -> (9, cin_pad, cout_pad) bf16, tap-major (di, dj)."""
    cout, cin, kh, kw = w.shape
    wt = jnp.transpose(w, (2, 3, 1, 0)).reshape(kh * kw, cin, cout)
    wt = jnp.pad(wt, ((0, 0), (0, cin_pad - cin), (0, cout_pad - cout)))
    return wt.astype(jnp.bfloat16)


def _prep_conv_bias(b, cout_pad):
    return jnp.pad(b, (0, cout_pad - b.shape[0])).reshape(1, cout_pad).astype(jnp.float32)


# ----------------------------------------------------------------------------
# FeatExtractor wrapper (VGG-style "features" stack, truncated)
# ----------------------------------------------------------------------------
class FeatExtractorPallas:
    def __init__(self, key, c_in=4, c1=16, c2=32):
        k1, k2, k3, k4 = jax.random.split(key, 4)
        self.c_in, self.c1, self.c2 = c_in, c1, c2
        self.w1 = jax.random.normal(k1, (c1, c_in, 3, 3), jnp.float32) * (
            2.0 / (c_in * 9)) ** 0.5
        self.b1 = 0.01 * jax.random.normal(k2, (c1,), jnp.float32)
        self.w2 = jax.random.normal(k3, (c2, c1, 3, 3), jnp.float32) * (
            2.0 / (c1 * 9)) ** 0.5
        self.b2 = 0.01 * jax.random.normal(k4, (c2,), jnp.float32)
        # Kernel-ready params: tap-major weights, channels zero-padded to CP=128.
        self.w1k = _prep_conv_weight(self.w1, cin_pad=c_in, cout_pad=CP)
        self.b1k = _prep_conv_bias(self.b1, CP)
        # Layer-2 activations arrive already padded to 128 channels (zeros > c1),
        # so its weight Cin is padded to 128 too (extra rows are zero).
        self.w2k = _prep_conv_weight(self.w2, cin_pad=CP, cout_pad=CP)
        self.b2k = _prep_conv_bias(self.b2, CP)

    def __call__(self, x_nchw):
        # PyTorch NCHW -> kernel NHWC; bf16 activation stream, f32 accumulation.
        x = jnp.transpose(x_nchw, (0, 2, 3, 1)).astype(jnp.bfloat16)
        y = conv3x3_bias_relu(x, self.w1k, self.b1k, out_dtype=jnp.bfloat16)
        y = maxpool2x2(y, out_dtype=jnp.bfloat16)             # (N, H/2, W/2, 128)
        y = conv3x3_bias_relu(y, self.w2k, self.b2k, out_dtype=jnp.float32)
        y = maxpool2x2(y, out_dtype=jnp.float32)              # (N, H/4, W/4, 128)
        y = y[..., : self.c2]                                 # drop zero-padded channels
        # Return feature maps in NCHW, matching the PyTorch module's convention.
        return jnp.transpose(y, (0, 3, 1, 2))


# ----------------------------------------------------------------------------
# Pure-JAX (XLA) reference with the same bf16 rounding points as the kernels
# ----------------------------------------------------------------------------
def _reference_forward(x_nchw, w1, b1, w2, b2):
    def conv_relu(x, w, b):
        y = jax.lax.conv_general_dilated(
            x, jnp.transpose(w, (2, 3, 1, 0)).astype(jnp.bfloat16),
            window_strides=(1, 1), padding="SAME",
            dimension_numbers=("NHWC", "HWIO", "NHWC"),
            preferred_element_type=jnp.float32)
        return jnp.maximum(y + b.reshape(1, 1, 1, -1), 0.0)

    def pool(x):
        n, h, w, c = x.shape
        return x.reshape(n, h // 2, 2, w // 2, 2, c).max(axis=(2, 4))

    x = jnp.transpose(x_nchw, (0, 2, 3, 1)).astype(jnp.bfloat16)
    y = pool(conv_relu(x, w1, b1).astype(jnp.bfloat16))
    y = pool(conv_relu(y, w2, b2))
    return jnp.transpose(y, (0, 3, 1, 2))


if __name__ == "__main__":
    key = jax.random.PRNGKey(0)
    k_param, k_x = jax.random.split(key)

    model = FeatExtractorPallas(k_param, c_in=4, c1=16, c2=32)

    x = jax.random.normal(k_x, (2, 4, 16, 16), jnp.float32)   # NCHW input
    fwd = jax.jit(lambda inp: model(inp))
    feats = jax.block_until_ready(fwd(x))

    assert feats.shape == (2, 32, 4, 4), feats.shape
    assert jnp.all(jnp.isfinite(feats))

    ref = _reference_forward(x, model.w1, model.b1, model.w2, model.b2)
    max_err = float(jnp.max(jnp.abs(feats - ref)))
    assert max_err < 5e-2, max_err

    print("KERNEL_OK")
</pallas_src>

<mosaic_0001>
module attributes {stable_mosaic.version = 11 : i64} {
  func.func @kernel(%arg0: i32, %arg1: memref<1x18x18x4xbf16, #tpu.memory_space<vmem>>, %arg2: memref<9x4x128xbf16, #tpu.memory_space<vmem>>, %arg3: memref<1x128xf32, #tpu.memory_space<vmem>>, %arg4: memref<1x256x128xbf16, #tpu.memory_space<vmem>>, %arg5: memref<256x128xf32, #tpu.memory_space<vmem>>, %arg6: memref<18x18x4xf32, #tpu.memory_space<vmem>>) attributes {dimension_semantics = [#tpu.dimension_semantics<parallel>], iteration_bounds = array<i64: 2>, scalar_prefetch = 0 : i64, scratch_operands = 2 : i64, tpu.core_type = #tpu.core_type<tc>, window_params = [{transform_indices = @transform_0, window_bounds = array<i64: 1, 18, 18, 4>}, {pipeline_mode = #tpu.pipeline_mode<synchronous>, transform_indices = @transform_1, window_bounds = array<i64: 9, 4, 128>}, {pipeline_mode = #tpu.pipeline_mode<synchronous>, transform_indices = @transform_2, window_bounds = array<i64: 1, 128>}, {transform_indices = @transform_3, window_bounds = array<i64: 1, 256, 128>}]} {
    %c0 = arith.constant 0 : index
    %c0_0 = arith.constant 0 : index
    %c0_1 = arith.constant 0 : index
    %c0_2 = arith.constant 0 : index
    %0 = vector.load %arg1[%c0, %c0_0, %c0_1, %c0_2] : memref<1x18x18x4xbf16, #tpu.memory_space<vmem>>, vector<1x18x18x4xbf16>
    %1 = vector.shape_cast %0 : vector<1x18x18x4xbf16> to vector<18x18x4xbf16>
    %2 = arith.extf %1 : vector<18x18x4xbf16> to vector<18x18x4xf32>
    %c0_3 = arith.constant 0 : index
    %c0_4 = arith.constant 0 : index
    %c0_5 = arith.constant 0 : index
    %3 = vector.load %arg6[%c0_3, %c0_4, %c0_5] : memref<18x18x4xf32, #tpu.memory_space<vmem>>, vector<18x18x4xf32>
    tpu.vector_store %arg6[%c0_3, %c0_4, %c0_5], %2 {strides = array<i32>} : memref<18x18x4xf32, #tpu.memory_space<vmem>>, vector<18x18x4xf32>,
    %c0_6 = arith.constant 0 : index
    %c0_7 = arith.constant 0 : index
    %c0_8 = arith.constant 0 : index
    %4 = vector.load %arg6[%c0_6, %c0_7, %c0_8] : memref<18x18x4xf32, #tpu.memory_space<vmem>>, vector<16x16x4xf32>
    %5 = vector.shape_cast %4 : vector<16x16x4xf32> to vector<256x4xf32>
    %6 = arith.truncf %5 : vector<256x4xf32> to vector<256x4xbf16>
    %c0_9 = arith.constant 0 : index
    %c0_10 = arith.constant 0 : index
    %c0_11 = arith.constant 0 : index
    %7 = vector.load %arg2[%c0_9, %c0_10, %c0_11] : memref<9x4x128xbf16, #tpu.memory_space<vmem>>, vector<1x4x128xbf16>
    %8 = vector.shape_cast %7 : vector<1x4x128xbf16> to vector<4x128xbf16>
    %cst = arith.constant dense<0.000000e+00> : vector<256x128xf32>
    %9 = tpu.matmul %6, %8, %cst {dimension_numbers = #tpu.dot_dimension_numbers<[1], [0], [0], [1], [0, 0, 1, 1], [], []>} : vector<256x4xbf16>, vector<4x128xbf16>, vector<256x128xf32> -> vector<256x128xf32>
    %c0_12 = arith.constant 0 : index
    %c0_13 = arith.constant 0 : index
    %10 = vector.load %arg5[%c0_12, %c0_13] : memref<256x128xf32, #tpu.memory_space<vmem>>, vector<256x128xf32>
    tpu.vector_store %arg5[%c0_12, %c0_13], %9 {strides = array<i32>} : memref<256x128xf32, #tpu.memory_space<vmem>>, vector<256x128xf32>,
    %c0_14 = arith.constant 0 : index
    %c1 = arith.constant 1 : index
    %c0_15 = arith.constant 0 : index
    %11 = vector.load %arg6[%c0_14, %c1, %c0_15] : memref<18x18x4xf32, #tpu.memory_space<vmem>>, vector<16x16x4xf32>
    %12 = vector.shape_cast %11 : vector<16x16x4xf32> to vector<256x4xf32>
    %13 = arith.truncf %12 : vector<256x4xf32> to vector<256x4xbf16>
    %c1_16 = arith.constant 1 : index
    %c0_17 = arith.constant 0 : index
    %c0_18 = arith.constant 0 : index
    %14 = vector.load %arg2[%c1_16, %c0_17, %c0_18] : memref<9x4x128xbf16, #tpu.memory_space<vmem>>, vector<1x4x128xbf16>
    %15 = vector.shape_cast %14 : vector<1x4x128xbf16> to vector<4x128xbf16>
    %cst_19 = arith.constant dense<0.000000e+00> : vector<256x128xf32>
    %16 = tpu.matmul %13, %15, %cst_19 {dimension_numbers = #tpu.dot_dimension_numbers<[1], [0], [0], [1], [0, 0, 1, 1], [], []>} : vector<256x4xbf16>, vector<4x128xbf16>, vector<256x128xf32> -> vector<256x128xf32>
    %c0_20 = arith.constant 0 : index
    %c0_21 = arith.constant 0 : index
    %17 = vector.load %arg5[%c0_20, %c0_21] : memref<256x128xf32, #tpu.memory_space<vmem>>, vector<256x128xf32>
    %18 = arith.addf %17, %16 : vector<256x128xf32>
    %c0_22 = arith.constant 0 : index
    %c0_23 = arith.constant 0 : index
    %19 = vector.load %arg5[%c0_22, %c0_23] : memref<256x128xf32, #tpu.memory_space<vmem>>, vector<256x128xf32>
    tpu.vector_store %arg5[%c0_22, %c0_23], %18 {strides = array<i32>} : memref<256x128xf32, #tpu.memory_space<vmem>>, vector<256x128xf32>,
    %c0_24 = arith.constant 0 : index
    %c2 = arith.constant 2 : index
    %c0_25 = arith.constant 0 : index
    %20 = vector.load %arg6[%c0_24, %c2, %c0_25] : memref<18x18x4xf32, #tpu.memory_space<vmem>>, vector<16x16x4xf32>
    %21 = vector.shape_cast %20 : vector<16x16x4xf32> to vector<256x4xf32>
    %22 = arith.truncf %21 : vector<256x4xf32> to vector<256x4xbf16>
    %c2_26 = arith.constant 2 : index
    %c0_27 = arith.constant 0 : index
    %c0_28 = arith.constant 0 : index
    %23 = vector.load %arg2[%c2_26, %c0_27, %c0_28] : memref<9x4x128xbf16, #tpu.memory_space<vmem>>, vector<1x4x128xbf16>
    %24 = vector.shape_cast %23 : vector<1x4x128xbf16> to vector<4x128xbf16>
    %cst_29 = arith.constant dense<0.000000e+00> : vector<256x128xf32>
    %25 = tpu.matmul %22, %24, %cst_29 {dimension_numbers = #tpu.dot_dimension_numbers<[1], [0], [0], [1], [0, 0, 1, 1], [], []>} : vector<256x4xbf16>, vector<4x128xbf16>, vector<256x128xf32> -> vector<256x128xf32>
    %c0_30 = arith.constant 0 : index
    %c0_31 = arith.constant 0 : index
    %26 = vector.load %arg5[%c0_30, %c0_31] : memref<256x128xf32, #tpu.memory_space<vmem>>, vector<256x128xf32>
    %27 = arith.addf %26, %25 : vector<256x128xf32>
    %c0_32 = arith.constant 0 : index
    %c0_33 = arith.constant 0 : index
    %28 = vector.load %arg5[%c0_32, %c0_33] : memref<256x128xf32, #tpu.memory_space<vmem>>, vector<256x128xf32>
    tpu.vector_store %arg5[%c0_32, %c0_33], %27 {strides = array<i32>} : memref<256x128xf32, #tpu.memory_space<vmem>>, vector<256x128xf32>,
    %c1_34 = arith.constant 1 : index
    %c0_35 = arith.constant 0 : index
    %c0_36 = arith.constant 0 : index
    %29 = vector.load %arg6[%c1_34, %c0_35, %c0_36] : memref<18x18x4xf32, #tpu.memory_space<vmem>>, vector<16x16x4xf32>
    %30 = vector.shape_cast %29 : vector<16x16x4xf32> to vector<256x4xf32>
    %31 = arith.truncf %30 : vector<256x4xf32> to vector<256x4xbf16>
    %c3 = arith.constant 3 : index
    %c0_37 = arith.constant 0 : index
    %c0_38 = arith.constant 0 : index
    %32 = vector.load %arg2[%c3, %c0_37, %c0_38] : memref<9x4x128xbf16, #tpu.memory_space<vmem>>, vector<1x4x128xbf16>
    %33 = vector.shape_cast %32 : vector<1x4x128xbf16> to vector<4x128xbf16>
    %cst_39 = arith.constant dense<0.000000e+00> : vector<256x128xf32>
    %34 = tpu.matmul %31, %33, %cst_39 {dimension_numbers = #tpu.dot_dimension_numbers<[1], [0], [0], [1], [0, 0, 1, 1], [], []>} : vector<256x4xbf16>, vector<4x128xbf16>, vector<256x128xf32> -> vector<256x128xf32>
    %c0_40 = arith.constant 0 : index
    %c0_41 = arith.constant 0 : index
    %35 = vector.load %arg5[%c0_40, %c0_41] : memref<256x128xf32, #tpu.memory_space<vmem>>, vector<256x128xf32>
    %36 = arith.addf %35, %34 : vector<256x128xf32>
    %c0_42 = arith.constant 0 : index
    %c0_43 = arith.constant 0 : index
    %37 = vector.load %arg5[%c0_42, %c0_43] : memref<256x128xf32, #tpu.memory_space<vmem>>, vector<256x128xf32>
    tpu.vector_store %arg5[%c0_42, %c0_43], %36 {strides = array<i32>} : memref<256x128xf32, #tpu.memory_space<vmem>>, vector<256x128xf32>,
    %c1_44 = arith.constant 1 : index
    %c1_45 = arith.constant 1 : index
    %c0_46 = arith.constant 0 : index
    %38 = vector.load %arg6[%c1_44, %c1_45, %c0_46] : memref<18x18x4xf32, #tpu.memory_space<vmem>>, vector<16x16x4xf32>
    %39 = vector.shape_cast %38 : vector<16x16x4xf32> to vector<256x4xf32>
    %40 = arith.truncf %39 : vector<256x4xf32> to vector<256x4xbf16>
    %c4 = arith.constant 4 : index
    %c0_47 = arith.constant 0 : index
    %c0_48 = arith.constant 0 : index
    %41 = vector.load %arg2[%c4, %c0_47, %c0_48] : memref<9x4x128xbf16, #tpu.memory_space<vmem>>, vector<1x4x128xbf16>
    %42 = vector.shape_cast %41 : vector<1x4x128xbf16> to vector<4x128xbf16>
    %cst_49 = arith.constant dense<0.000000e+00> : vector<256x128xf32>
    %43 = tpu.matmul %40, %42, %cst_49 {dimension_numbers = #tpu.dot_dimension_numbers<[1], [0], [0], [1], [0, 0, 1, 1], [], []>} : vector<256x4xbf16>, vector<4x128xbf16>, vector<256x128xf32> -> vector<256x128xf32>
    %c0_50 = arith.constant 0 : index
    %c0_51 = arith.constant 0 : index
    %44 = vector.load %arg5[%c0_50, %c0_51] : memref<256x128xf32, #tpu.memory_space<vmem>>, vector<256x128xf32>
    %45 = arith.addf %44, %43 : vector<256x128xf32>
    %c0_52 = arith.constant 0 : index
    %c0_53 = arith.constant 0 : index
    %46 = vector.load %arg5[%c0_52, %c0_53] : memref<256x128xf32, #tpu.memory_space<vmem>>, vector<256x128xf32>
    tpu.vector_store %arg5[%c0_52, %c0_53], %45 {strides = array<i32>} : memref<256x128xf32, #tpu.memory_space<vmem>>, vector<256x128xf32>,
    %c1_54 = arith.constant 1 : index
    %c2_55 = arith.constant 2 : index
    %c0_56 = arith.constant 0 : index
    %47 = vector.load %arg6[%c1_54, %c2_55, %c0_56] : memref<18x18x4xf32, #tpu.memory_space<vmem>>, vector<16x16x4xf32>
    %48 = vector.shape_cast %47 : vector<16x16x4xf32> to vector<256x4xf32>
    %49 = arith.truncf %48 : vector<256x4xf32> to vector<256x4xbf16>
    %c5 = arith.constant 5 : index
    %c0_57 = arith.constant 0 : index
    %c0_58 = arith.constant 0 : index
    %50 = vector.load %arg2[%c5, %c0_57, %c0_58] : memref<9x4x128xbf16, #tpu.memory_space<vmem>>, vector<1x4x128xbf16>
    %51 = vector.shape_cast %50 : vector<1x4x128xbf16> to vector<4x128xbf16>
    %cst_59 = arith.constant dense<0.000000e+00> : vector<256x128xf32>
    %52 = tpu.matmul %49, %51, %cst_59 {dimension_numbers = #tpu.dot_dimension_numbers<[1], [0], [0], [1], [0, 0, 1, 1], [], []>} : vector<256x4xbf16>, vector<4x128xbf16>, vector<256x128xf32> -> vector<256x128xf32>
    %c0_60 = arith.constant 0 : index
    %c0_61 = arith.constant 0 : index
    %53 = vector.load %arg5[%c0_60, %c0_61] : memref<256x128xf32, #tpu.memory_space<vmem>>, vector<256x128xf32>
    %54 = arith.addf %53, %52 : vector<256x128xf32>
    %c0_62 = arith.constant 0 : index
    %c0_63 = arith.constant 0 : index
    %55 = vector.load %arg5[%c0_62, %c0_63] : memref<256x128xf32, #tpu.memory_space<vmem>>, vector<256x128xf32>
    tpu.vector_store %arg5[%c0_62, %c0_63], %54 {strides = array<i32>} : memref<256x128xf32, #tpu.memory_space<vmem>>, vector<256x128xf32>,
    %c2_64 = arith.constant 2 : index
    %c0_65 = arith.constant 0 : index
    %c0_66 = arith.constant 0 : index
    %56 = vector.load %arg6[%c2_64, %c0_65, %c0_66] : memref<18x18x4xf32, #tpu.memory_space<vmem>>, vector<16x16x4xf32>
    %57 = vector.shape_cast %56 : vector<16x16x4xf32> to vector<256x4xf32>
    %58 = arith.truncf %57 : vector<256x4xf32> to vector<256x4xbf16>
    %c6 = arith.constant 6 : index
    %c0_67 = arith.constant 0 : index
    %c0_68 = arith.constant 0 : index
    %59 = vector.load %arg2[%c6, %c0_67, %c0_68] : memref<9x4x128xbf16, #tpu.memory_space<vmem>>, vector<1x4x128xbf16>
    %60 = vector.shape_cast %59 : vector<1x4x128xbf16> to vector<4x128xbf16>
    %cst_69 = arith.constant dense<0.000000e+00> : vector<256x128xf32>
    %61 = tpu.matmul %58, %60, %cst_69 {dimension_numbers = #tpu.dot_dimension_numbers<[1], [0], [0], [1], [0, 0, 1, 1], [], []>} : vector<256x4xbf16>, vector<4x128xbf16>, vector<256x128xf32> -> vector<256x128xf32>
    %c0_70 = arith.constant 0 : index
    %c0_71 = arith.constant 0 : index
    %62 = vector.load %arg5[%c0_70, %c0_71] : memref<256x128xf32, #tpu.memory_space<vmem>>, vector<256x128xf32>
    %63 = arith.addf %62, %61 : vector<256x128xf32>
    %c0_72 = arith.constant 0 : index
    %c0_73 = arith.constant 0 : index
    %64 = vector.load %arg5[%c0_72, %c0_73] : memref<256x128xf32, #tpu.memory_space<vmem>>, vector<256x128xf32>
    tpu.vector_store %arg5[%c0_72, %c0_73], %63 {strides = array<i32>} : memref<256x128xf32, #tpu.memory_space<vmem>>, vector<256x128xf32>,
    %c2_74 = arith.constant 2 : index
    %c1_75 = arith.constant 1 : index
    %c0_76 = arith.constant 0 : index
    %65 = vector.load %arg6[%c2_74, %c1_75, %c0_76] : memref<18x18x4xf32, #tpu.memory_space<vmem>>, vector<16x16x4xf32>
    %66 = vector.shape_cast %65 : vector<16x16x4xf32> to vector<256x4xf32>
    %67 = arith.truncf %66 : vector<256x4xf32> to vector<256x4xbf16>
    %c7 = arith.constant 7 : index
    %c0_77 = arith.constant 0 : index
    %c0_78 = arith.constant 0 : index
    %68 = vector.load %arg2[%c7, %c0_77, %c0_78] : memref<9x4x128xbf16, #tpu.memory_space<vmem>>, vector<1x4x128xbf16>
    %69 = vector.shape_cast %68 : vector<1x4x128xbf16> to vector<4x128xbf16>
    %cst_79 = arith.constant dense<0.000000e+00> : vector<256x128xf32>
    %70 = tpu.matmul %67, %69, %cst_79 {dimension_numbers = #tpu.dot_dimension_numbers<[1], [0], [0], [1], [0, 0, 1, 1], [], []>} : vector<256x4xbf16>, vector<4x128xbf16>, vector<256x128xf32> -> vector<256x128xf32>
    %c0_80 = arith.constant 0 : index
    %c0_81 = arith.constant 0 : index
    %71 = vector.load %arg5[%c0_80, %c0_81] : memref<256x128xf32, #tpu.memory_space<vmem>>, vector<256x128xf32>
    %72 = arith.addf %71, %70 : vector<256x128xf32>
    %c0_82 = arith.constant 0 : index
    %c0_83 = arith.constant 0 : index
    %73 = vector.load %arg5[%c0_82, %c0_83] : memref<256x128xf32, #tpu.memory_space<vmem>>, vector<256x128xf32>
    tpu.vector_store %arg5[%c0_82, %c0_83], %72 {strides = array<i32>} : memref<256x128xf32, #tpu.memory_space<vmem>>, vector<256x128xf32>,
    %c2_84 = arith.constant 2 : index
    %c2_85 = arith.constant 2 : index
    %c0_86 = arith.constant 0 : index
    %74 = vector.load %arg6[%c2_84, %c2_85, %c0_86] : memref<18x18x4xf32, #tpu.memory_space<vmem>>, vector<16x16x4xf32>
    %75 = vector.shape_cast %74 : vector<16x16x4xf32> to vector<256x4xf32>
    %76 = arith.truncf %75 : vector<256x4xf32> to vector<256x4xbf16>
    %c8 = arith.constant 8 : index
    %c0_87 = arith.constant 0 : index
    %c0_88 = arith.constant 0 : index
    %77 = vector.load %arg2[%c8, %c0_87, %c0_88] : memref<9x4x128xbf16, #tpu.memory_space<vmem>>, vector<1x4x128xbf16>
    %78 = vector.shape_cast %77 : vector<1x4x128xbf16> to vector<4x128xbf16>
    %cst_89 = arith.constant dense<0.000000e+00> : vector<256x128xf32>
    %79 = tpu.matmul %76, %78, %cst_89 {dimension_numbers = #tpu.dot_dimension_numbers<[1], [0], [0], [1], [0, 0, 1, 1], [], []>} : vector<256x4xbf16>, vector<4x128xbf16>, vector<256x128xf32> -> vector<256x128xf32>
    %c0_90 = arith.constant 0 : index
    %c0_91 = arith.constant 0 : index
    %80 = vector.load %arg5[%c0_90, %c0_91] : memref<256x128xf32, #tpu.memory_space<vmem>>, vector<256x128xf32>
    %81 = arith.addf %80, %79 : vector<256x128xf32>
    %c0_92 = arith.constant 0 : index
    %c0_93 = arith.constant 0 : index
    %82 = vector.load %arg5[%c0_92, %c0_93] : memref<256x128xf32, #tpu.memory_space<vmem>>, vector<256x128xf32>
    tpu.vector_store %arg5[%c0_92, %c0_93], %81 {strides = array<i32>} : memref<256x128xf32, #tpu.memory_space<vmem>>, vector<256x128xf32>,
    %c0_94 = arith.constant 0 : index
    %c0_95 = arith.constant 0 : index
    %83 = vector.load %arg5[%c0_94, %c0_95] : memref<256x128xf32, #tpu.memory_space<vmem>>, vector<256x128xf32>
    %c0_96 = arith.constant 0 : index
    %c0_97 = arith.constant 0 : index
    %84 = vector.load %arg3[%c0_96, %c0_97] : memref<1x128xf32, #tpu.memory_space<vmem>>, vector<1x128xf32>
    %85 = vector.broadcast %84 : vector<1x128xf32> to vector<256x128xf32>
    %86 = arith.addf %83, %85 : vector<256x128xf32>
    %cst_98 = arith.constant 0.000000e+00 : f32
    %87 = vector.broadcast %cst_98 : f32 to vector<256x128xf32>
    %88 = arith.maximumf %86, %87 : vector<256x128xf32>
    %89 = arith.truncf %88 : vector<256x128xf32> to vector<256x128xbf16>
    %c0_99 = arith.constant 0 : index
    %c0_100 = arith.constant 0 : index
    %c0_101 = arith.constant 0 : index
    %90 = vector.load %arg4[%c0_99, %c0_100, %c0_101] : memref<1x256x128xbf16, #tpu.memory_space<vmem>>, vector<1x256x128xbf16>
    %91 = vector.shape_cast %90 : vector<1x256x128xbf16> to vector<256x128xbf16>
    %92 = vector.shape_cast %89 : vector<256x128xbf16> to vector<1x256x128xbf16>
    tpu.vector_store %arg4[%c0_99, %c0_100, %c0_101], %92 {strides = array<i32>} : memref<1x256x128xbf16, #tpu.memory_space<vmem>>, vector<1x256x128xbf16>,
    return
  }
  func.func @transform_0(%arg0: i32) -> (i32, i32, i32, i32) {
    %c0_i32 = arith.constant 0 : i32
    %c0_i32_0 = arith.constant 0 : i32
    %c0_i32_1 = arith.constant 0 : i32
    %c0_i32_2 = arith.constant 0 : i32
    return %arg0, %c0_i32, %c0_i32_0, %c0_i32_1 : i32, i32, i32, i32
  }
  func.func @transform_1(%arg0: i32) -> (i32, i32, i32) {
    %c0_i32 = arith.constant 0 : i32
    %c0_i32_0 = arith.constant 0 : i32
    %c0_i32_1 = arith.constant 0 : i32
    %c0_i32_2 = arith.constant 0 : i32
    return %c0_i32, %c0_i32_0, %c0_i32_1 : i32, i32, i32
  }
  func.func @transform_2(%arg0: i32) -> (i32, i32) {
    %c0_i32 = arith.constant 0 : i32
    %c0_i32_0 = arith.constant 0 : i32
    %c0_i32_1 = arith.constant 0 : i32
    return %c0_i32, %c0_i32_0 : i32, i32
  }
  func.func @transform_3(%arg0: i32) -> (i32, i32, i32) {
    %c0_i32 = arith.constant 0 : i32
    %c0_i32_0 = arith.constant 0 : i32
    %c0_i32_1 = arith.constant 0 : i32
    return %arg0, %c0_i32, %c0_i32_0 : i32, i32, i32
  }
}

module attributes {stable_mosaic.version = 11 : i64} {
  func.func @kernel(%arg0: i32, %arg1: memref<1x8x2x8x2x128xbf16, #tpu.memory_space<vmem>>, %arg2: memref<1x8x8x1x128xbf16, #tpu.memory_space<vmem>>) attributes {dimension_semantics = [#tpu.dimension_semantics<parallel>], iteration_bounds = array<i64: 2>, scalar_prefetch = 0 : i64, scratch_operands = 0 : i64, tpu.core_type = #tpu.core_type<tc>, window_params = [{transform_indices = @transform_0, window_bounds = array<i64: 1, 8, 2, 8, 2, 128>}, {transform_indices = @transform_1, window_bounds = array<i64: 1, 8, 8, 1, 128>}]} {
    %c0 = arith.constant 0 : index
    %c0_0 = arith.constant 0 : index
    %c0_1 = arith.constant 0 : index
    %c0_2 = arith.constant 0 : index
    %c0_3 = arith.constant 0 : index
    %c0_4 = arith.constant 0 : index
    %0 = vector.load %arg1[%c0, %c0_0, %c0_1, %c0_2, %c0_3, %c0_4] : memref<1x8x2x8x2x128xbf16, #tpu.memory_space<vmem>>, vector<1x8x2x8x2x128xbf16>
    %1 = vector.shape_cast %0 : vector<1x8x2x8x2x128xbf16> to vector<8x2x8x2x128xbf16>
    %2 = arith.extf %1 : vector<8x2x8x2x128xbf16> to vector<8x2x8x2x128xf32>
    %3 = vector.extract_strided_slice %2 {offsets = [0, 0, 0, 0, 0], sizes = [8, 1, 8, 2, 128], strides = [1, 1, 1, 1, 1]} : vector<8x2x8x2x128xf32> to vector<8x1x8x2x128xf32>
    %4 = vector.shape_cast %3 : vector<8x1x8x2x128xf32> to vector<8x8x2x128xf32>
    %5 = vector.extract_strided_slice %2 {offsets = [0, 1, 0, 0, 0], sizes = [8, 1, 8, 2, 128], strides = [1, 1, 1, 1, 1]} : vector<8x2x8x2x128xf32> to vector<8x1x8x2x128xf32>
    %6 = vector.shape_cast %5 : vector<8x1x8x2x128xf32> to vector<8x8x2x128xf32>
    %7 = arith.maximumf %4, %6 : vector<8x8x2x128xf32>
    %8 = vector.extract_strided_slice %7 {offsets = [0, 0, 0, 0], sizes = [8, 8, 1, 128], strides = [1, 1, 1, 1]} : vector<8x8x2x128xf32> to vector<8x8x1x128xf32>
    %9 = vector.extract_strided_slice %7 {offsets = [0, 0, 1, 0], sizes = [8, 8, 1, 128], strides = [1, 1, 1, 1]} : vector<8x8x2x128xf32> to vector<8x8x1x128xf32>
    %10 = arith.maximumf %8, %9 : vector<8x8x1x128xf32>
    %11 = arith.truncf %10 : vector<8x8x1x128xf32> to vector<8x8x1x128xbf16>
    %c0_5 = arith.constant 0 : index
    %c0_6 = arith.constant 0 : index
    %c0_7 = arith.constant 0 : index
    %c0_8 = arith.constant 0 : index
    %c0_9 = arith.constant 0 : index
    %12 = vector.load %arg2[%c0_5, %c0_6, %c0_7, %c0_8, %c0_9] : memref<1x8x8x1x128xbf16, #tpu.memory_space<vmem>>, vector<1x8x8x1x128xbf16>
    %13 = vector.shape_cast %12 : vector<1x8x8x1x128xbf16> to vector<8x8x1x128xbf16>
    %14 = vector.shape_cast %11 : vector<8x8x1x128xbf16> to vector<1x8x8x1x128xbf16>
    tpu.vector_store %arg2[%c0_5, %c0_6, %c0_7, %c0_8, %c0_9], %14 {strides = array<i32>} : memref<1x8x8x1x128xbf16, #tpu.memory_space<vmem>>, vector<1x8x8x1x128xbf16>,
    return
  }
  func.func @transform_0(%arg0: i32) -> (i32, i32, i32, i32, i32, i32) {
    %c0_i32 = arith.constant 0 : i32
    %c0_i32_0 = arith.constant 0 : i32
    %c0_i32_1 = arith.constant 0 : i32
    %c0_i32_2 = arith.constant 0 : i32
    %c0_i32_3 = arith.constant 0 : i32
    %c0_i32_4 = arith.constant 0 : i32
    return %arg0, %c0_i32, %c0_i32_0, %c0_i32_1, %c0_i32_2, %c0_i32_3 : i32, i32, i32, i32, i32, i32
  }
  func.func @transform_1(%arg0: i32) -> (i32, i32, i32, i32, i32) {
    %c0_i32 = arith.constant 0 : i32
    %c0_i32_0 = arith.constant 0 : i32
    %c0_i32_1 = arith.constant 0 : i32
    %c0_i32_2 = arith.constant 0 : i32
    %c0_i32_3 = arith.constant 0 : i32
    return %arg0, %c0_i32, %c0_i32_0, %c0_i32_1, %c0_i32_2 : i32, i32, i32, i32, i32
  }
}

module attributes {stable_mosaic.version = 11 : i64} {
  func.func @kernel(%arg0: i32, %arg1: memref<1x10x10x128xbf16, #tpu.memory_space<vmem>>, %arg2: memref<9x128x128xbf16, #tpu.memory_space<vmem>>, %arg3: memref<1x128xf32, #tpu.memory_space<vmem>>, %arg4: memref<1x64x128xf32, #tpu.memory_space<vmem>>, %arg5: memref<64x128xf32, #tpu.memory_space<vmem>>, %arg6: memref<10x10x128xf32, #tpu.memory_space<vmem>>) attributes {dimension_semantics = [#tpu.dimension_semantics<parallel>], iteration_bounds = array<i64: 2>, scalar_prefetch = 0 : i64, scratch_operands = 2 : i64, tpu.core_type = #tpu.core_type<tc>, window_params = [{transform_indices = @transform_0, window_bounds = array<i64: 1, 10, 10, 128>}, {pipeline_mode = #tpu.pipeline_mode<synchronous>, transform_indices = @transform_1, window_bounds = array<i64: 9, 128, 128>}, {pipeline_mode = #tpu.pipeline_mode<synchronous>, transform_indices = @transform_2, window_bounds = array<i64: 1, 128>}, {transform_indices = @transform_3, window_bounds = array<i64: 1, 64, 128>}]} {
    %c0 = arith.constant 0 : index
    %c0_0 = arith.constant 0 : index
    %c0_1 = arith.constant 0 : index
    %c0_2 = arith.constant 0 : index
    %0 = vector.load %arg1[%c0, %c0_0, %c0_1, %c0_2] : memref<1x10x10x128xbf16, #tpu.memory_space<vmem>>, vector<1x10x10x128xbf16>
    %1 = vector.shape_cast %0 : vector<1x10x10x128xbf16> to vector<10x10x128xbf16>
    %2 = arith.extf %1 : vector<10x10x128xbf16> to vector<10x10x128xf32>
    %c0_3 = arith.constant 0 : index
    %c0_4 = arith.constant 0 : index
    %c0_5 = arith.constant 0 : index
    %3 = vector.load %arg6[%c0_3, %c0_4, %c0_5] : memref<10x10x128xf32, #tpu.memory_space<vmem>>, vector<10x10x128xf32>
    tpu.vector_store %arg6[%c0_3, %c0_4, %c0_5], %2 {strides = array<i32>} : memref<10x10x128xf32, #tpu.memory_space<vmem>>, vector<10x10x128xf32>,
    %c0_6 = arith.constant 0 : index
    %c0_7 = arith.constant 0 : index
    %c0_8 = arith.constant 0 : index
    %4 = vector.load %arg6[%c0_6, %c0_7, %c0_8] : memref<10x10x128xf32, #tpu.memory_space<vmem>>, vector<8x8x128xf32>
    %5 = vector.shape_cast %4 : vector<8x8x128xf32> to vector<64x128xf32>
    %6 = arith.truncf %5 : vector<64x128xf32> to vector<64x128xbf16>
    %c0_9 = arith.constant 0 : index
    %c0_10 = arith.constant 0 : index
    %c0_11 = arith.constant 0 : index
    %7 = vector.load %arg2[%c0_9, %c0_10, %c0_11] : memref<9x128x128xbf16, #tpu.memory_space<vmem>>, vector<1x128x128xbf16>
    %8 = vector.shape_cast %7 : vector<1x128x128xbf16> to vector<128x128xbf16>
    %cst = arith.constant dense<0.000000e+00> : vector<64x128xf32>
    %9 = tpu.matmul %6, %8, %cst {dimension_numbers = #tpu.dot_dimension_numbers<[1], [0], [0], [1], [0, 0, 1, 1], [], []>} : vector<64x128xbf16>, vector<128x128xbf16>, vector<64x128xf32> -> vector<64x128xf32>
    %c0_12 = arith.constant 0 : index
    %c0_13 = arith.constant 0 : index
    %10 = vector.load %arg5[%c0_12, %c0_13] : memref<64x128xf32, #tpu.memory_space<vmem>>, vector<64x128xf32>
    tpu.vector_store %arg5[%c0_12, %c0_13], %9 {strides = array<i32>} : memref<64x128xf32, #tpu.memory_space<vmem>>, vector<64x128xf32>,
    %c0_14 = arith.constant 0 : index
    %c1 = arith.constant 1 : index
    %c0_15 = arith.constant 0 : index
    %11 = vector.load %arg6[%c0_14, %c1, %c0_15] : memref<10x10x128xf32, #tpu.memory_space<vmem>>, vector<8x8x128xf32>
    %12 = vector.shape_cast %11 : vector<8x8x128xf32> to vector<64x128xf32>
    %13 = arith.truncf %12 : vector<64x128xf32> to vector<64x128xbf16>
    %c1_16 = arith.constant 1 : index
    %c0_17 = arith.constant 0 : index
    %c0_18 = arith.constant 0 : index
    %14 = vector.load %arg2[%c1_16, %c0_17, %c0_18] : memref<9x128x128xbf16, #tpu.memory_space<vmem>>, vector<1x128x128xbf16>
    %15 = vector.shape_cast %14 : vector<1x128x128xbf16> to vector<128x128xbf16>
    %cst_19 = arith.constant dense<0.000000e+00> : vector<64x128xf32>
    %16 = tpu.matmul %13, %15, %cst_19 {dimension_numbers = #tpu.dot_dimension_numbers<[1], [0], [0], [1], [0, 0, 1, 1], [], []>} : vector<64x128xbf16>, vector<128x128xbf16>, vector<64x128xf32> -> vector<64x128xf32>
    %c0_20 = arith.constant 0 : index
    %c0_21 = arith.constant 0 : index
    %17 = vector.load %arg5[%c0_20, %c0_21] : memref<64x128xf32, #tpu.memory_space<vmem>>, vector<64x128xf32>
    %18 = arith.addf %17, %16 : vector<64x128xf32>
    %c0_22 = arith.constant 0 : index
    %c0_23 = arith.constant 0 : index
    %19 = vector.load %arg5[%c0_22, %c0_23] : memref<64x128xf32, #tpu.memory_space<vmem>>, vector<64x128xf32>
    tpu.vector_store %arg5[%c0_22, %c0_23], %18 {strides = array<i32>} : memref<64x128xf32, #tpu.memory_space<vmem>>, vector<64x128xf32>,
    %c0_24 = arith.constant 0 : index
    %c2 = arith.constant 2 : index
    %c0_25 = arith.constant 0 : index
    %20 = vector.load %arg6[%c0_24, %c2, %c0_25] : memref<10x10x128xf32, #tpu.memory_space<vmem>>, vector<8x8x128xf32>
    %21 = vector.shape_cast %20 : vector<8x8x128xf32> to vector<64x128xf32>
    %22 = arith.truncf %21 : vector<64x128xf32> to vector<64x128xbf16>
    %c2_26 = arith.constant 2 : index
    %c0_27 = arith.constant 0 : index
    %c0_28 = arith.constant 0 : index
    %23 = vector.load %arg2[%c2_26, %c0_27, %c0_28] : memref<9x128x128xbf16, #tpu.memory_space<vmem>>, vector<1x128x128xbf16>
    %24 = vector.shape_cast %23 : vector<1x128x128xbf16> to vector<128x128xbf16>
    %cst_29 = arith.constant dense<0.000000e+00> : vector<64x128xf32>
    %25 = tpu.matmul %22, %24, %cst_29 {dimension_numbers = #tpu.dot_dimension_numbers<[1], [0], [0], [1], [0, 0, 1, 1], [], []>} : vector<64x128xbf16>, vector<128x128xbf16>, vector<64x128xf32> -> vector<64x128xf32>
    %c0_30 = arith.constant 0 : index
    %c0_31 = arith.constant 0 : index
    %26 = vector.load %arg5[%c0_30, %c0_31] : memref<64x128xf32, #tpu.memory_space<vmem>>, vector<64x128xf32>
    %27 = arith.addf %26, %25 : vector<64x128xf32>
    %c0_32 = arith.constant 0 : index
    %c0_33 = arith.constant 0 : index
    %28 = vector.load %arg5[%c0_32, %c0_33] : memref<64x128xf32, #tpu.memory_space<vmem>>, vector<64x128xf32>
    tpu.vector_store %arg5[%c0_32, %c0_33], %27 {strides = array<i32>} : memref<64x128xf32, #tpu.memory_space<vmem>>, vector<64x128xf32>,
    %c1_34 = arith.constant 1 : index
    %c0_35 = arith.constant 0 : index
    %c0_36 = arith.constant 0 : index
    %29 = vector.load %arg6[%c1_34, %c0_35, %c0_36] : memref<10x10x128xf32, #tpu.memory_space<vmem>>, vector<8x8x128xf32>
    %30 = vector.shape_cast %29 : vector<8x8x128xf32> to vector<64x128xf32>
    %31 = arith.truncf %30 : vector<64x128xf32> to vector<64x128xbf16>
    %c3 = arith.constant 3 : index
    %c0_37 = arith.constant 0 : index
    %c0_38 = arith.constant 0 : index
    %32 = vector.load %arg2[%c3, %c0_37, %c0_38] : memref<9x128x128xbf16, #tpu.memory_space<vmem>>, vector<1x128x128xbf16>
    %33 = vector.shape_cast %32 : vector<1x128x128xbf16> to vector<128x128xbf16>
    %cst_39 = arith.constant dense<0.000000e+00> : vector<64x128xf32>
    %34 = tpu.matmul %31, %33, %cst_39 {dimension_numbers = #tpu.dot_dimension_numbers<[1], [0], [0], [1], [0, 0, 1, 1], [], []>} : vector<64x128xbf16>, vector<128x128xbf16>, vector<64x128xf32> -> vector<64x128xf32>
    %c0_40 = arith.constant 0 : index
    %c0_41 = arith.constant 0 : index
    %35 = vector.load %arg5[%c0_40, %c0_41] : memref<64x128xf32, #tpu.memory_space<vmem>>, vector<64x128xf32>
    %36 = arith.addf %35, %34 : vector<64x128xf32>
    %c0_42 = arith.constant 0 : index
    %c0_43 = arith.constant 0 : index
    %37 = vector.load %arg5[%c0_42, %c0_43] : memref<64x128xf32, #tpu.memory_space<vmem>>, vector<64x128xf32>
    tpu.vector_store %arg5[%c0_42, %c0_43], %36 {strides = array<i32>} : memref<64x128xf32, #tpu.memory_space<vmem>>, vector<64x128xf32>,
    %c1_44 = arith.constant 1 : index
    %c1_45 = arith.constant 1 : index
    %c0_46 = arith.constant 0 : index
    %38 = vector.load %arg6[%c1_44, %c1_45, %c0_46] : memref<10x10x128xf32, #tpu.memory_space<vmem>>, vector<8x8x128xf32>
    %39 = vector.shape_cast %38 : vector<8x8x128xf32> to vector<64x128xf32>
    %40 = arith.truncf %39 : vector<64x128xf32> to vector<64x128xbf16>
    %c4 = arith.constant 4 : index
    %c0_47 = arith.constant 0 : index
    %c0_48 = arith.constant 0 : index
    %41 = vector.load %arg2[%c4, %c0_47, %c0_48] : memref<9x128x128xbf16, #tpu.memory_space<vmem>>, vector<1x128x128xbf16>
    %42 = vector.shape_cast %41 : vector<1x128x128xbf16> to vector<128x128xbf16>
    %cst_49 = arith.constant dense<0.000000e+00> : vector<64x128xf32>
    %43 = tpu.matmul %40, %42, %cst_49 {dimension_numbers = #tpu.dot_dimension_numbers<[1], [0], [0], [1], [0, 0, 1, 1], [], []>} : vector<64x128xbf16>, vector<128x128xbf16>, vector<64x128xf32> -> vector<64x128xf32>
    %c0_50 = arith.constant 0 : index
    %c0_51 = arith.constant 0 : index
    %44 = vector.load %arg5[%c0_50, %c0_51] : memref<64x128xf32, #tpu.memory_space<vmem>>, vector<64x128xf32>
    %45 = arith.addf %44, %43 : vector<64x128xf32>
    %c0_52 = arith.constant 0 : index
    %c0_53 = arith.constant 0 : index
    %46 = vector.load %arg5[%c0_52, %c0_53] : memref<64x128xf32, #tpu.memory_space<vmem>>, vector<64x128xf32>
    tpu.vector_store %arg5[%c0_52, %c0_53], %45 {strides = array<i32>} : memref<64x128xf32, #tpu.memory_space<vmem>>, vector<64x128xf32>,
    %c1_54 = arith.constant 1 : index
    %c2_55 = arith.constant 2 : index
    %c0_56 = arith.constant 0 : index
    %47 = vector.load %arg6[%c1_54, %c2_55, %c0_56] : memref<10x10x128xf32, #tpu.memory_space<vmem>>, vector<8x8x128xf32>
    %48 = vector.shape_cast %47 : vector<8x8x128xf32> to vector<64x128xf32>
    %49 = arith.truncf %48 : vector<64x128xf32> to vector<64x128xbf16>
    %c5 = arith.constant 5 : index
    %c0_57 = arith.constant 0 : index
    %c0_58 = arith.constant 0 : index
    %50 = vector.load %arg2[%c5, %c0_57, %c0_58] : memref<9x128x128xbf16, #tpu.memory_space<vmem>>, vector<1x128x128xbf16>
    %51 = vector.shape_cast %50 : vector<1x128x128xbf16> to vector<128x128xbf16>
    %cst_59 = arith.constant dense<0.000000e+00> : vector<64x128xf32>
    %52 = tpu.matmul %49, %51, %cst_59 {dimension_numbers = #tpu.dot_dimension_numbers<[1], [0], [0], [1], [0, 0, 1, 1], [], []>} : vector<64x128xbf16>, vector<128x128xbf16>, vector<64x128xf32> -> vector<64x128xf32>
    %c0_60 = arith.constant 0 : index
    %c0_61 = arith.constant 0 : index
    %53 = vector.load %arg5[%c0_60, %c0_61] : memref<64x128xf32, #tpu.memory_space<vmem>>, vector<64x128xf32>
    %54 = arith.addf %53, %52 : vector<64x128xf32>
    %c0_62 = arith.constant 0 : index
    %c0_63 = arith.constant 0 : index
    %55 = vector.load %arg5[%c0_62, %c0_63] : memref<64x128xf32, #tpu.memory_space<vmem>>, vector<64x128xf32>
    tpu.vector_store %arg5[%c0_62, %c0_63], %54 {strides = array<i32>} : memref<64x128xf32, #tpu.memory_space<vmem>>, vector<64x128xf32>,
    %c2_64 = arith.constant 2 : index
    %c0_65 = arith.constant 0 : index
    %c0_66 = arith.constant 0 : index
    %56 = vector.load %arg6[%c2_64, %c0_65, %c0_66] : memref<10x10x128xf32, #tpu.memory_space<vmem>>, vector<8x8x128xf32>
    %57 = vector.shape_cast %56 : vector<8x8x128xf32> to vector<64x128xf32>
    %58 = arith.truncf %57 : vector<64x128xf32> to vector<64x128xbf16>
    %c6 = arith.constant 6 : index
    %c0_67 = arith.constant 0 : index
    %c0_68 = arith.constant 0 : index
    %59 = vector.load %arg2[%c6, %c0_67, %c0_68] : memref<9x128x128xbf16, #tpu.memory_space<vmem>>, vector<1x128x128xbf16>
    %60 = vector.shape_cast %59 : vector<1x128x128xbf16> to vector<128x128xbf16>
    %cst_69 = arith.constant dense<0.000000e+00> : vector<64x128xf32>
    %61 = tpu.matmul %58, %60, %cst_69 {dimension_numbers = #tpu.dot_dimension_numbers<[1], [0], [0], [1], [0, 0, 1, 1], [], []>} : vector<64x128xbf16>, vector<128x128xbf16>, vector<64x128xf32> -> vector<64x128xf32>
    %c0_70 = arith.constant 0 : index
    %c0_71 = arith.constant 0 : index
    %62 = vector.load %arg5[%c0_70, %c0_71] : memref<64x128xf32, #tpu.memory_space<vmem>>, vector<64x128xf32>
    %63 = arith.addf %62, %61 : vector<64x128xf32>
    %c0_72 = arith.constant 0 : index
    %c0_73 = arith.constant 0 : index
    %64 = vector.load %arg5[%c0_72, %c0_73] : memref<64x128xf32, #tpu.memory_space<vmem>>, vector<64x128xf32>
    tpu.vector_store %arg5[%c0_72, %c0_73], %63 {strides = array<i32>} : memref<64x128xf32, #tpu.memory_space<vmem>>, vector<64x128xf32>,
    %c2_74 = arith.constant 2 : index
    %c1_75 = arith.constant 1 : index
    %c0_76 = arith.constant 0 : index
    %65 = vector.load %arg6[%c2_74, %c1_75, %c0_76] : memref<10x10x128xf32, #tpu.memory_space<vmem>>, vector<8x8x128xf32>
    %66 = vector.shape_cast %65 : vector<8x8x128xf32> to vector<64x128xf32>
    %67 = arith.truncf %66 : vector<64x128xf32> to vector<64x128xbf16>
    %c7 = arith.constant 7 : index
    %c0_77 = arith.constant 0 : index
    %c0_78 = arith.constant 0 : index
    %68 = vector.load %arg2[%c7, %c0_77, %c0_78] : memref<9x128x128xbf16, #tpu.memory_space<vmem>>, vector<1x128x128xbf16>
    %69 = vector.shape_cast %68 : vector<1x128x128xbf16> to vector<128x128xbf16>
    %cst_79 = arith.constant dense<0.000000e+00> : vector<64x128xf32>
    %70 = tpu.matmul %67, %69, %cst_79 {dimension_numbers = #tpu.dot_dimension_numbers<[1], [0], [0], [1], [0, 0, 1, 1], [], []>} : vector<64x128xbf16>, vector<128x128xbf16>, vector<64x128xf32> -> vector<64x128xf32>
    %c0_80 = arith.constant 0 : index
    %c0_81 = arith.constant 0 : index
    %71 = vector.load %arg5[%c0_80, %c0_81] : memref<64x128xf32, #tpu.memory_space<vmem>>, vector<64x128xf32>
    %72 = arith.addf %71, %70 : vector<64x128xf32>
    %c0_82 = arith.constant 0 : index
    %c0_83 = arith.constant 0 : index
    %73 = vector.load %arg5[%c0_82, %c0_83] : memref<64x128xf32, #tpu.memory_space<vmem>>, vector<64x128xf32>
    tpu.vector_store %arg5[%c0_82, %c0_83], %72 {strides = array<i32>} : memref<64x128xf32, #tpu.memory_space<vmem>>, vector<64x128xf32>,
    %c2_84 = arith.constant 2 : index
    %c2_85 = arith.constant 2 : index
    %c0_86 = arith.constant 0 : index
    %74 = vector.load %arg6[%c2_84, %c2_85, %c0_86] : memref<10x10x128xf32, #tpu.memory_space<vmem>>, vector<8x8x128xf32>
    %75 = vector.shape_cast %74 : vector<8x8x128xf32> to vector<64x128xf32>
    %76 = arith.truncf %75 : vector<64x128xf32> to vector<64x128xbf16>
    %c8 = arith.constant 8 : index
    %c0_87 = arith.constant 0 : index
    %c0_88 = arith.constant 0 : index
    %77 = vector.load %arg2[%c8, %c0_87, %c0_88] : memref<9x128x128xbf16, #tpu.memory_space<vmem>>, vector<1x128x128xbf16>
    %78 = vector.shape_cast %77 : vector<1x128x128xbf16> to vector<128x128xbf16>
    %cst_89 = arith.constant dense<0.000000e+00> : vector<64x128xf32>
    %79 = tpu.matmul %76, %78, %cst_89 {dimension_numbers = #tpu.dot_dimension_numbers<[1], [0], [0], [1], [0, 0, 1, 1], [], []>} : vector<64x128xbf16>, vector<128x128xbf16>, vector<64x128xf32> -> vector<64x128xf32>
    %c0_90 = arith.constant 0 : index
    %c0_91 = arith.constant 0 : index
    %80 = vector.load %arg5[%c0_90, %c0_91] : memref<64x128xf32, #tpu.memory_space<vmem>>, vector<64x128xf32>
    %81 = arith.addf %80, %79 : vector<64x128xf32>
    %c0_92 = arith.constant 0 : index
    %c0_93 = arith.constant 0 : index
    %82 = vector.load %arg5[%c0_92, %c0_93] : memref<64x128xf32, #tpu.memory_space<vmem>>, vector<64x128xf32>
    tpu.vector_store %arg5[%c0_92, %c0_93], %81 {strides = array<i32>} : memref<64x128xf32, #tpu.memory_space<vmem>>, vector<64x128xf32>,
    %c0_94 = arith.constant 0 : index
    %c0_95 = arith.constant 0 : index
    %83 = vector.load %arg5[%c0_94, %c0_95] : memref<64x128xf32, #tpu.memory_space<vmem>>, vector<64x128xf32>
    %c0_96 = arith.constant 0 : index
    %c0_97 = arith.constant 0 : index
    %84 = vector.load %arg3[%c0_96, %c0_97] : memref<1x128xf32, #tpu.memory_space<vmem>>, vector<1x128xf32>
    %85 = vector.broadcast %84 : vector<1x128xf32> to vector<64x128xf32>
    %86 = arith.addf %83, %85 : vector<64x128xf32>
    %cst_98 = arith.constant 0.000000e+00 : f32
    %87 = vector.broadcast %cst_98 : f32 to vector<64x128xf32>
    %88 = arith.maximumf %86, %87 : vector<64x128xf32>
    %c0_99 = arith.constant 0 : index
    %c0_100 = arith.constant 0 : index
    %c0_101 = arith.constant 0 : index
    %89 = vector.load %arg4[%c0_99, %c0_100, %c0_101] : memref<1x64x128xf32, #tpu.memory_space<vmem>>, vector<1x64x128xf32>
    %90 = vector.shape_cast %89 : vector<1x64x128xf32> to vector<64x128xf32>
    %91 = vector.shape_cast %88 : vector<64x128xf32> to vector<1x64x128xf32>
    tpu.vector_store %arg4[%c0_99, %c0_100, %c0_101], %91 {strides = array<i32>} : memref<1x64x128xf32, #tpu.memory_space<vmem>>, vector<1x64x128xf32>,
    return
  }
  func.func @transform_0(%arg0: i32) -> (i32, i32, i32, i32) {
    %c0_i32 = arith.constant 0 : i32
    %c0_i32_0 = arith.constant 0 : i32
    %c0_i32_1 = arith.constant 0 : i32
    %c0_i32_2 = arith.constant 0 : i32
    return %arg0, %c0_i32, %c0_i32_0, %c0_i32_1 : i32, i32, i32, i32
  }
  func.func @transform_1(%arg0: i32) -> (i32, i32, i32) {
    %c0_i32 = arith.constant 0 : i32
    %c0_i32_0 = arith.constant 0 : i32
    %c0_i32_1 = arith.constant 0 : i32
    %c0_i32_2 = arith.constant 0 : i32
    return %c0_i32, %c0_i32_0, %c0_i32_1 : i32, i32, i32
  }
  func.func @transform_2(%arg0: i32) -> (i32, i32) {
    %c0_i32 = arith.constant 0 : i32
    %c0_i32_0 = arith.constant 0 : i32
    %c0_i32_1 = arith.constant 0 : i32
    return %c0_i32, %c0_i32_0 : i32, i32
  }
  func.func @transform_3(%arg0: i32) -> (i32, i32, i32) {
    %c0_i32 = arith.constant 0 : i32
    %c0_i32_0 = arith.constant 0 : i32
    %c0_i32_1 = arith.constant 0 : i32
    return %arg0, %c0_i32, %c0_i32_0 : i32, i32, i32
  }
}

module attributes {stable_mosaic.version = 11 : i64} {
  func.func @kernel(%arg0: i32, %arg1: memref<1x4x2x4x2x128xf32, #tpu.memory_space<vmem>>, %arg2: memref<1x4x4x1x128xf32, #tpu.memory_space<vmem>>) attributes {dimension_semantics = [#tpu.dimension_semantics<parallel>], iteration_bounds = array<i64: 2>, scalar_prefetch = 0 : i64, scratch_operands = 0 : i64, tpu.core_type = #tpu.core_type<tc>, window_params = [{transform_indices = @transform_0, window_bounds = array<i64: 1, 4, 2, 4, 2, 128>}, {transform_indices = @transform_1, window_bounds = array<i64: 1, 4, 4, 1, 128>}]} {
    %c0 = arith.constant 0 : index
    %c0_0 = arith.constant 0 : index
    %c0_1 = arith.constant 0 : index
    %c0_2 = arith.constant 0 : index
    %c0_3 = arith.constant 0 : index
    %c0_4 = arith.constant 0 : index
    %0 = vector.load %arg1[%c0, %c0_0, %c0_1, %c0_2, %c0_3, %c0_4] : memref<1x4x2x4x2x128xf32, #tpu.memory_space<vmem>>, vector<1x4x2x4x2x128xf32>
    %1 = vector.shape_cast %0 : vector<1x4x2x4x2x128xf32> to vector<4x2x4x2x128xf32>
    %2 = vector.extract_strided_slice %1 {offsets = [0, 0, 0, 0, 0], sizes = [4, 1, 4, 2, 128], strides = [1, 1, 1, 1, 1]} : vector<4x2x4x2x128xf32> to vector<4x1x4x2x128xf32>
    %3 = vector.shape_cast %2 : vector<4x1x4x2x128xf32> to vector<4x4x2x128xf32>
    %4 = vector.extract_strided_slice %1 {offsets = [0, 1, 0, 0, 0], sizes = [4, 1, 4, 2, 128], strides = [1, 1, 1, 1, 1]} : vector<4x2x4x2x128xf32> to vector<4x1x4x2x128xf32>
    %5 = vector.shape_cast %4 : vector<4x1x4x2x128xf32> to vector<4x4x2x128xf32>
    %6 = arith.maximumf %3, %5 : vector<4x4x2x128xf32>
    %7 = vector.extract_strided_slice %6 {offsets = [0, 0, 0, 0], sizes = [4, 4, 1, 128], strides = [1, 1, 1, 1]} : vector<4x4x2x128xf32> to vector<4x4x1x128xf32>
    %8 = vector.extract_strided_slice %6 {offsets = [0, 0, 1, 0], sizes = [4, 4, 1, 128], strides = [1, 1, 1, 1]} : vector<4x4x2x128xf32> to vector<4x4x1x128xf32>
    %9 = arith.maximumf %7, %8 : vector<4x4x1x128xf32>
    %c0_5 = arith.constant 0 : index
    %c0_6 = arith.constant 0 : index
    %c0_7 = arith.constant 0 : index
    %c0_8 = arith.constant 0 : index
    %c0_9 = arith.constant 0 : index
    %10 = vector.load %arg2[%c0_5, %c0_6, %c0_7, %c0_8, %c0_9] : memref<1x4x4x1x128xf32, #tpu.memory_space<vmem>>, vector<1x4x4x1x128xf32>
    %11 = vector.shape_cast %10 : vector<1x4x4x1x128xf32> to vector<4x4x1x128xf32>
    %12 = vector.shape_cast %9 : vector<4x4x1x128xf32> to vector<1x4x4x1x128xf32>
    tpu.vector_store %arg2[%c0_5, %c0_6, %c0_7, %c0_8, %c0_9], %12 {strides = array<i32>} : memref<1x4x4x1x128xf32, #tpu.memory_space<vmem>>, vector<1x4x4x1x128xf32>,
    return
  }
  func.func @transform_0(%arg0: i32) -> (i32, i32, i32, i32, i32, i32) {
    %c0_i32 = arith.constant 0 : i32
    %c0_i32_0 = arith.constant 0 : i32
    %c0_i32_1 = arith.constant 0 : i32
    %c0_i32_2 = arith.constant 0 : i32
    %c0_i32_3 = arith.constant 0 : i32
    %c0_i32_4 = arith.constant 0 : i32
    return %arg0, %c0_i32, %c0_i32_0, %c0_i32_1, %c0_i32_2, %c0_i32_3 : i32, i32, i32, i32, i32, i32
  }
  func.func @transform_1(%arg0: i32) -> (i32, i32, i32, i32, i32) {
    %c0_i32 = arith.constant 0 : i32
    %c0_i32_0 = arith.constant 0 : i32
    %c0_i32_1 = arith.constant 0 : i32
    %c0_i32_2 = arith.constant 0 : i32
    %c0_i32_3 = arith.constant 0 : i32
    return %arg0, %c0_i32, %c0_i32_0, %c0_i32_1, %c0_i32_2 : i32, i32, i32, i32, i32
  }
}

</mosaic_0001>

<llo_original>
// kernel: _lambda_.7
$region0: #{_lambda_.7}
  #allocation0 [shape = 'u32[]', space=smem, size = 0x4, offset = 0x4, fixed_abs, tag = 'smem constant byte address 0x4 - core index']
  #allocation1 [shape = 'u32[144,128]{1,0:T(1,128)}', space=vmem, size = 0x12000, scoped, tag = 'internal scratch']
  %s0 = inlined_call_operand.vmem [shape: f32[2,4,2,4,2,128], index: 0, kind: input, shape index: {}]
  %s1 = inlined_call_operand.vmem [shape: f32[2,4,4,1,128], index: 1, kind: output, shape index: {}]
  %s2 = sld [smem:[#allocation0]]
  $region37: #{_lambda_.7} parent=0
    _
  %s4 = ssub.s32 1, %s2
  %s5 = scalar_select 0, %s4, %s2
  loop: start=0, step=1, limit=4
  $region2: #{_lambda_.7} parent=0 // loop_pre_header
    _
  $region3: #{_lambda_.7} parent=0 // loop_header
    %s7 = sphi 0, %s11
    %p8 = scmp.ge.s32.totalorder %s7, 4
    %s17 = sphi 0, %s19
    %s20 = sphi 0, %s17
    %s21 = sphi 0, %s20
    %s37 = sphi 0, %s21
    %s43 = sphi 0, %s45
    %s46 = sphi 0, %s43
    %s47 = sphi 0, %s46
    %s63 = sphi 0, %s47
  $region4: #{_lambda_.7} parent=0 // loop_header_branch
    %10 = sbr.rel (%p8) target = $region8
  $region5: #{_lambda_.7} parent=0 // loop_body
    %s12 = ssub.s32 %s7, 1
    %s13 = ssub.s32 %s7, 2
    %s14 = sadd.s32 %s7, 1
    %s15 = ssub.s32 %s7, %s14
    %p16 = scmp.eq.s32.totalorder %s15, 0
    %s18 = sadd.s32 %s17, 1
    %s19 = scalar_select %p16, %s17, %s18
    %p22 = pneg %p16
    %p23 = scmp.eq.s32.totalorder %s7, 1
    %p24 = por %p22, %p23
    %p25 = scmp.ne.s32.totalorder %s17, %s20
    %p26 = scmp.eq.s32.totalorder %s7, 0
    %p27 = por %p25, %p26
    %p28 = scmp.ne.s32.totalorder %s17, %s20
    %p29 = scmp.eq.s32.totalorder %s12, 1
    %p30 = por %p28, %p29
    %p31 = scmp.ne.s32.totalorder %s20, %s21
    %p32 = scmp.eq.s32.totalorder %s12, 0
    %p33 = por %p31, %p32
    %p34 = scmp.ne.s32.totalorder %s20, %s21
    %p35 = scmp.eq.s32.totalorder %s13, 1
    %p36 = por %p34, %p35
    %p38 = scmp.ne.s32.totalorder %s21, %s37
    %p39 = scmp.eq.s32.totalorder %s13, 0
    %p40 = por %p38, %p39
    %s41 = ssub.s32 %s7, %s14
    %p42 = scmp.eq.s32.totalorder %s41, 0
    %s44 = sadd.s32 %s43, 1
    %s45 = scalar_select %p42, %s43, %s44
    %p48 = pneg %p42
    %p49 = scmp.eq.s32.totalorder %s7, 1
    %p50 = por %p48, %p49
    %p51 = scmp.ne.s32.totalorder %s43, %s46
    %p52 = scmp.eq.s32.totalorder %s7, 0
    %p53 = por %p51, %p52
    %p54 = scmp.ne.s32.totalorder %s43, %s46
    %p55 = scmp.eq.s32.totalorder %s12, 1
    %p56 = por %p54, %p55
    %p57 = scmp.ne.s32.totalorder %s46, %s47
    %p58 = scmp.eq.s32.totalorder %s12, 0
    %p59 = por %p57, %p58
    %p60 = scmp.ne.s32.totalorder %s46, %s47
    %p61 = scmp.eq.s32.totalorder %s13, 1
    %p62 = por %p60, %p61
    %p64 = scmp.ne.s32.totalorder %s47, %s63
    %p65 = scmp.eq.s32.totalorder %s13, 0
    %p66 = por %p64, %p65
    %p67 = scmp.le.s32.totalorder 1, %s7
    %p68 = scmp.lt.s32.totalorder %s7, 3
    %p69 = pnand %p67, %p68
    %p70 = pneg %p69
    // Predicated region
    $region9: #{_lambda_.7} parent=5 // pred_check
      _
    $region10: #{_lambda_.7} parent=5 // pred_check_branch
      %72 = sbr.rel (%p69) target = $region12
    $region11: #{_lambda_.7} parent=5 // pred_region
      %s73 = ssub.s32 %s7, 1
    $region12: #{_lambda_.7} parent=5 // pred_fallthru
      _
    %p74 = scmp.lt.s32.totalorder %s7, 2
    // Predicated region
    $region13: #{_lambda_.7} parent=5 // pred_check
      %p75 = pneg %p74
    $region14: #{_lambda_.7} parent=5 // pred_check_branch
      %77 = sbr.rel (%p75) target = $region16
    $region15: #{_lambda_.7} parent=5 // pred_region
      // Predicated region
      $region17: #{_lambda_.7} parent=15 // pred_check
        %p78 = pneg %p27
      $region18: #{_lambda_.7} parent=15 // pred_check_branch
        %80 = sbr.rel (%p78) target = $region20
      $region19: #{_lambda_.7} parent=15 // pred_region
        %p81 = scmp.lt.s32.totalorder %s7, 1
        %s82 = scalar_select %p81, %s7, 1
        %s83 = smul.addr %s82, 32
        %s84 = smul.addr %s83, 2
        %s85 = scalar_lea.vmem %s0, %s84
      $region20: #{_lambda_.7} parent=15 // pred_fallthru
        _
    $region16: #{_lambda_.7} parent=5 // pred_fallthru
      _
    %p86 = scmp.le.s32.totalorder 1, %s7
    %p87 = scmp.lt.s32.totalorder %s7, 3
    %p88 = pnand %p86, %p87
    %p89 = pneg %p88
    // Predicated region
    $region21: #{_lambda_.7} parent=5 // pred_check
      _
    $region22: #{_lambda_.7} parent=5 // pred_check_branch
      %91 = sbr.rel (%p88) target = $region24
    $region23: #{_lambda_.7} parent=5 // pred_region
      %s92 = ssub.s32 %s7, 1
      %p93 = scmp.lt.s32.totalorder %s12, 1
      %s94 = scalar_select %p93, %s12, 1
      %s95 = smul.addr %s94, 32
      %s96 = smul.addr %s95, 2
      %s97 = scalar_lea.vmem %s0, %s96
      %p98 = pneg %p33
      %p99 = pneg %p30
      %p100 = pneg %p59
      %p101 = pneg %p56
      %p102 = scmp.lt.s32.totalorder %s12, 1
      %s103 = scalar_select %p102, %s12, 1
      %s104 = smul.addr %s103, 16
      %s105 = scalar_lea.vmem %s1, %s104
      %p106 = scmp.lt.s32.totalorder %s12, 1
      %s107 = scalar_select %p106, %s12, 1
      %s108 = smul.addr %s107, 32
      %s109 = smul.addr %s108, 2
      %s110 = scalar_lea.vmem %s0, %s109
      %p111 = scmp.lt.s32.totalorder %s12, 1
      %s112 = scalar_select %p111, %s12, 1
      %s113 = smul.addr %s112, 16
      %s114 = scalar_lea.vmem %s1, %s113
      %v115 = vld [vmem:[%s110] sm:$0x3]
      %v116 = vld [vmem:[%s110 + $0x2] sm:$0x3]
      %v117 = vld [vmem:[%s110 + $0x4] sm:$0x3]
      %v118 = vld [vmem:[%s110 + $0x6] sm:$0x3]
      %v119 = vld [vmem:[%s110 + $0x8] sm:$0x3]
      %v120 = vld [vmem:[%s110 + $0xa] sm:$0x3]
      %v121 = vld [vmem:[%s110 + $0xc] sm:$0x3]
      %v122 = vld [vmem:[%s110 + $0xe] sm:$0x3]
      %v123 = vld [vmem:[%s110 + $0x10] sm:$0x3]
      %v124 = vld [vmem:[%s110 + $0x12] sm:$0x3]
      %v125 = vld [vmem:[%s110 + $0x14] sm:$0x3]
      %v126 = vld [vmem:[%s110 + $0x16] sm:$0x3]
      %v127 = vld [vmem:[%s110 + $0x18] sm:$0x3]
      %v128 = vld [vmem:[%s110 + $0x1a] sm:$0x3]
      %v129 = vld [vmem:[%s110 + $0x1c] sm:$0x3]
      %v130 = vld [vmem:[%s110 + $0x1e] sm:$0x3]
      %v131 = vld [vmem:[%s110 + $0x20] sm:$0x3]
      %v132 = vld [vmem:[%s110 + $0x22] sm:$0x3]
      %v133 = vld [vmem:[%s110 + $0x24] sm:$0x3]
      %v134 = vld [vmem:[%s110 + $0x26] sm:$0x3]
      %v135 = vld [vmem:[%s110 + $0x28] sm:$0x3]
      %v136 = vld [vmem:[%s110 + $0x2a] sm:$0x3]
      %v137 = vld [vmem:[%s110 + $0x2c] sm:$0x3]
      %v138 = vld [vmem:[%s110 + $0x2e] sm:$0x3]
      %v139 = vld [vmem:[%s110 + $0x30] sm:$0x3]
      %v140 = vld [vmem:[%s110 + $0x32] sm:$0x3]
      %v141 = vld [vmem:[%s110 + $0x34] sm:$0x3]
      %v142 = vld [vmem:[%s110 + $0x36] sm:$0x3]
      %v143 = vld [vmem:[%s110 + $0x38] sm:$0x3]
      %v144 = vld [vmem:[%s110 + $0x3a] sm:$0x3]
      %v145 = vld [vmem:[%s110 + $0x3c] sm:$0x3]
      %v146 = vld [vmem:[%s110 + $0x3e] sm:$0x3]
      %v147 = vmax.f32 %v115, %v119
      %v148 = vmax.f32 %v116, %v120
      %v149 = vmax.f32 %v117, %v121
      %v150 = vmax.f32 %v118, %v122
      %v151 = vmax.f32 %v123, %v127
      %v152 = vmax.f32 %v124, %v128
      %v153 = vmax.f32 %v125, %v129
      %v154 = vmax.f32 %v126, %v130
      %v155 = vmax.f32 %v131, %v135
      %v156 = vmax.f32 %v132, %v136
      %v157 = vmax.f32 %v133, %v137
      %v158 = vmax.f32 %v134, %v138
      %v159 = vmax.f32 %v139, %v143
      %v160 = vmax.f32 %v140, %v144
      %v161 = vmax.f32 %v141, %v145
      %v162 = vmax.f32 %v142, %v146
      %v179 = vrot.slane %v147, 1
      %v180 = vrot.slane %v148, 1
      %v181 = vrot.slane %v149, 1
      %v182 = vrot.slane %v150, 1
      %v183 = vrot.slane %v151, 1
      %v184 = vrot.slane %v152, 1
      %v185 = vrot.slane %v153, 1
      %v186 = vrot.slane %v154, 1
      %v187 = vrot.slane %v155, 1
      %v188 = vrot.slane %v156, 1
      %v189 = vrot.slane %v157, 1
      %v190 = vrot.slane %v158, 1
      %v191 = vrot.slane %v159, 1
      %v192 = vrot.slane %v160, 1
      %v193 = vrot.slane %v161, 1
      %v194 = vrot.slane %v162, 1
      %v211 = vmax.f32 %v147, %v179
      %v212 = vmax.f32 %v148, %v180
      %v213 = vmax.f32 %v149, %v181
      %v214 = vmax.f32 %v150, %v182
      %v215 = vmax.f32 %v151, %v183
      %v216 = vmax.f32 %v152, %v184
      %v217 = vmax.f32 %v153, %v185
      %v218 = vmax.f32 %v154, %v186
      %v219 = vmax.f32 %v155, %v187
      %v220 = vmax.f32 %v156, %v188
      %v221 = vmax.f32 %v157, %v189
      %v222 = vmax.f32 %v158, %v190
      %v223 = vmax.f32 %v159, %v191
      %v224 = vmax.f32 %v160, %v192
      %v225 = vmax.f32 %v161, %v193
      %v226 = vmax.f32 %v162, %v194
      %227 = vst [vmem:[%s114] sm:$0x1] %v211
      %228 = vst [vmem:[%s114 + $0x1] sm:$0x1] %v212
      %229 = vst [vmem:[%s114 + $0x2] sm:$0x1] %v213
      %230 = vst [vmem:[%s114 + $0x3] sm:$0x1] %v214
      %231 = vst [vmem:[%s114 + $0x4] sm:$0x1] %v215
      %232 = vst [vmem:[%s114 + $0x5] sm:$0x1] %v216
      %233 = vst [vmem:[%s114 + $0x6] sm:$0x1] %v217
      %234 = vst [vmem:[%s114 + $0x7] sm:$0x1] %v218
      %235 = vst [vmem:[%s114 + $0x8] sm:$0x1] %v219
      %236 = vst [vmem:[%s114 + $0x9] sm:$0x1] %v220
      %237 = vst [vmem:[%s114 + $0xa] sm:$0x1] %v221
      %238 = vst [vmem:[%s114 + $0xb] sm:$0x1] %v222
      %239 = vst [vmem:[%s114 + $0xc] sm:$0x1] %v223
      %240 = vst [vmem:[%s114 + $0xd] sm:$0x1] %v224
      %241 = vst [vmem:[%s114 + $0xe] sm:$0x1] %v225
      %242 = vst [vmem:[%s114 + $0xf] sm:$0x1] %v226
      %p243 = scmp.lt.s32.totalorder %s12, 1
      %s244 = scalar_select %p243, %s12, 1
      %s245 = smul.addr %s244, 16
      %s246 = scalar_lea.vmem %s1, %s245
      // Predicated region
      $region25: #{_lambda_.7} parent=23 // pred_check
        %p247 = pneg %p56
      $region26: #{_lambda_.7} parent=23 // pred_check_branch
        %249 = sbr.rel (%p247) target = $region28
      $region27: #{_lambda_.7} parent=23 // pred_region
        _
      $region28: #{_lambda_.7} parent=23 // pred_fallthru
        _
    $region24: #{_lambda_.7} parent=5 // pred_fallthru
      _
    %p250 = scmp.le.s32.totalorder 2, %s7
    // Predicated region
    $region29: #{_lambda_.7} parent=5 // pred_check
      %p251 = pneg %p250
    $region30: #{_lambda_.7} parent=5 // pred_check_branch
      %253 = sbr.rel (%p251) target = $region32
    $region31: #{_lambda_.7} parent=5 // pred_region
      %s254 = ssub.s32 %s7, 2
      // Predicated region
      $region33: #{_lambda_.7} parent=31 // pred_check
        %p255 = pneg %p62
      $region34: #{_lambda_.7} parent=31 // pred_check_branch
        %257 = sbr.rel (%p255) target = $region36
      $region35: #{_lambda_.7} parent=31 // pred_region
        %p258 = scmp.lt.s32.totalorder %s13, 1
        %s259 = scalar_select %p258, %s13, 1
        %s260 = smul.addr %s259, 16
        %s261 = scalar_lea.vmem %s1, %s260
      $region36: #{_lambda_.7} parent=31 // pred_fallthru
        _
    $region32: #{_lambda_.7} parent=5 // pred_fallthru
      _
  $region6: #{_lambda_.7} parent=0 // loop_footer
    %s11 = sadd.s32 1, %s7
  $region7: #{_lambda_.7} parent=0 // loop_footer_branch
    %6 = sbr.rel target = $region3
  $region8: #{_lambda_.7} parent=0 // loop_exit
    _

// kernel: _lambda_.5
$region0: #{_lambda_.5}
  #allocation0 [shape = 'u32[]', space=smem, size = 0x4, offset = 0x4, fixed_abs, tag = 'smem constant byte address 0x4 - core index']
  #allocation1 [shape = 'u32[144,128]{1,0:T(1,128)}', space=vmem, size = 0x12000, scoped, tag = 'internal scratch']
  %s0 = inlined_call_operand.vmem [shape: bf16[2,8,2,8,2,128], index: 0, kind: input, shape index: {}]
  %s1 = inlined_call_operand.vmem [shape: bf16[2,8,8,1,128], index: 1, kind: output, shape index: {}]
  %s2 = sld [smem:[#allocation0]]
  $region37: #{_lambda_.5} parent=0
    _
  %s4 = ssub.s32 1, %s2
  %s5 = scalar_select 0, %s4, %s2
  loop: start=0, step=1, limit=4
  $region2: #{_lambda_.5} parent=0 // loop_pre_header
    _
  $region3: #{_lambda_.5} parent=0 // loop_header
    %s7 = sphi 0, %s11
    %p8 = scmp.ge.s32.totalorder %s7, 4
    %s17 = sphi 0, %s19
    %s20 = sphi 0, %s17
    %s21 = sphi 0, %s20
    %s37 = sphi 0, %s21
    %s43 = sphi 0, %s45
    %s46 = sphi 0, %s43
    %s47 = sphi 0, %s46
    %s63 = sphi 0, %s47
  $region4: #{_lambda_.5} parent=0 // loop_header_branch
    %10 = sbr.rel (%p8) target = $region8
  $region5: #{_lambda_.5} parent=0 // loop_body
    %s12 = ssub.s32 %s7, 1
    %s13 = ssub.s32 %s7, 2
    %s14 = sadd.s32 %s7, 1
    %s15 = ssub.s32 %s7, %s14
    %p16 = scmp.eq.s32.totalorder %s15, 0
    %s18 = sadd.s32 %s17, 1
    %s19 = scalar_select %p16, %s17, %s18
    %p22 = pneg %p16
    %p23 = scmp.eq.s32.totalorder %s7, 1
    %p24 = por %p22, %p23
    %p25 = scmp.ne.s32.totalorder %s17, %s20
    %p26 = scmp.eq.s32.totalorder %s7, 0
    %p27 = por %p25, %p26
    %p28 = scmp.ne.s32.totalorder %s17, %s20
    %p29 = scmp.eq.s32.totalorder %s12, 1
    %p30 = por %p28, %p29
    %p31 = scmp.ne.s32.totalorder %s20, %s21
    %p32 = scmp.eq.s32.totalorder %s12, 0
    %p33 = por %p31, %p32
    %p34 = scmp.ne.s32.totalorder %s20, %s21
    %p35 = scmp.eq.s32.totalorder %s13, 1
    %p36 = por %p34, %p35
    %p38 = scmp.ne.s32.totalorder %s21, %s37
    %p39 = scmp.eq.s32.totalorder %s13, 0
    %p40 = por %p38, %p39
    %s41 = ssub.s32 %s7, %s14
    %p42 = scmp.eq.s32.totalorder %s41, 0
    %s44 = sadd.s32 %s43, 1
    %s45 = scalar_select %p42, %s43, %s44
    %p48 = pneg %p42
    %p49 = scmp.eq.s32.totalorder %s7, 1
    %p50 = por %p48, %p49
    %p51 = scmp.ne.s32.totalorder %s43, %s46
    %p52 = scmp.eq.s32.totalorder %s7, 0
    %p53 = por %p51, %p52
    %p54 = scmp.ne.s32.totalorder %s43, %s46
    %p55 = scmp.eq.s32.totalorder %s12, 1
    %p56 = por %p54, %p55
    %p57 = scmp.ne.s32.totalorder %s46, %s47
    %p58 = scmp.eq.s32.totalorder %s12, 0
    %p59 = por %p57, %p58
    %p60 = scmp.ne.s32.totalorder %s46, %s47
    %p61 = scmp.eq.s32.totalorder %s13, 1
    %p62 = por %p60, %p61
    %p64 = scmp.ne.s32.totalorder %s47, %s63
    %p65 = scmp.eq.s32.totalorder %s13, 0
    %p66 = por %p64, %p65
    %p67 = scmp.le.s32.totalorder 1, %s7
    %p68 = scmp.lt.s32.totalorder %s7, 3
    %p69 = pnand %p67, %p68
    %p70 = pneg %p69
    // Predicated region
    $region9: #{_lambda_.5} parent=5 // pred_check
      _
    $region10: #{_lambda_.5} parent=5 // pred_check_branch
      %72 = sbr.rel (%p69) target = $region12
    $region11: #{_lambda_.5} parent=5 // pred_region
      %s73 = ssub.s32 %s7, 1
    $region12: #{_lambda_.5} parent=5 // pred_fallthru
      _
    %p74 = scmp.lt.s32.totalorder %s7, 2
    // Predicated region
    $region13: #{_lambda_.5} parent=5 // pred_check
      %p75 = pneg %p74
    $region14: #{_lambda_.5} parent=5 // pred_check_branch
      %77 = sbr.rel (%p75) target = $region16
    $region15: #{_lambda_.5} parent=5 // pred_region
      // Predicated region
      $region17: #{_lambda_.5} parent=15 // pred_check
        %p78 = pneg %p27
      $region18: #{_lambda_.5} parent=15 // pred_check_branch
        %80 = sbr.rel (%p78) target = $region20
      $region19: #{_lambda_.5} parent=15 // pred_region
        %p81 = scmp.lt.s32.totalorder %s7, 1
        %s82 = scalar_select %p81, %s7, 1
        %s83 = smul.addr %s82, 128
        %s84 = scalar_lea.vmem %s0, %s83
      $region20: #{_lambda_.5} parent=15 // pred_fallthru
        _
    $region16: #{_lambda_.5} parent=5 // pred_fallthru
      _
    %p85 = scmp.le.s32.totalorder 1, %s7
    %p86 = scmp.lt.s32.totalorder %s7, 3
    %p87 = pnand %p85, %p86
    %p88 = pneg %p87
    // Predicated region
    $region21: #{_lambda_.5} parent=5 // pred_check
      _
    $region22: #{_lambda_.5} parent=5 // pred_check_branch
      %90 = sbr.rel (%p87) target = $region24
    $region23: #{_lambda_.5} parent=5 // pred_region
      %s91 = ssub.s32 %s7, 1
      %p92 = scmp.lt.s32.totalorder %s12, 1
      %s93 = scalar_select %p92, %s12, 1
      %s94 = smul.addr %s93, 128
      %s95 = scalar_lea.vmem %s0, %s94
      %p96 = pneg %p33
      %p97 = pneg %p30
      %p98 = pneg %p59
      %p99 = pneg %p56
      %p100 = scmp.lt.s32.totalorder %s12, 1
      %s101 = scalar_select %p100, %s12, 1
      %s102 = smul.addr %s101, 64
      %s103 = scalar_lea.vmem %s1, %s102
      %p104 = scmp.lt.s32.totalorder %s12, 1
      %s105 = scalar_select %p104, %s12, 1
      %s106 = smul.addr %s105, 128
      %s107 = scalar_lea.vmem %s0, %s106
      %p108 = scmp.lt.s32.totalorder %s12, 1
      %s109 = scalar_select %p108, %s12, 1
      %s110 = smul.addr %s109, 64
      %s111 = scalar_lea.vmem %s1, %s110
      %v112 = vld [vmem:[%s107] sm:$0x1]
      %v113 = vld [vmem:[%s107 + $0x1] sm:$0x1]
      %v114 = vld [vmem:[%s107 + $0x2] sm:$0x1]
      %v115 = vld [vmem:[%s107 + $0x3] sm:$0x1]
      %v116 = vld [vmem:[%s107 + $0x4] sm:$0x1]
      %v117 = vld [vmem:[%s107 + $0x5] sm:$0x1]
      %v118 = vld [vmem:[%s107 + $0x6] sm:$0x1]
      %v119 = vld [vmem:[%s107 + $0x7] sm:$0x1]
      %v120 = vld [vmem:[%s107 + $0x8] sm:$0x1]
      %v121 = vld [vmem:[%s107 + $0x9] sm:$0x1]
      %v122 = vld [vmem:[%s107 + $0xa] sm:$0x1]
      %v123 = vld [vmem:[%s107 + $0xb] sm:$0x1]
      %v124 = vld [vmem:[%s107 + $0xc] sm:$0x1]
      %v125 = vld [vmem:[%s107 + $0xd] sm:$0x1]
      %v126 = vld [vmem:[%s107 + $0xe] sm:$0x1]
      %v127 = vld [vmem:[%s107 + $0xf] sm:$0x1]
      %v128 = vld [vmem:[%s107 + $0x10] sm:$0x1]
      %v129 = vld [vmem:[%s107 + $0x11] sm:$0x1]
      %v130 = vld [vmem:[%s107 + $0x12] sm:$0x1]
      %v131 = vld [vmem:[%s107 + $0x13] sm:$0x1]
      %v132 = vld [vmem:[%s107 + $0x14] sm:$0x1]
      %v133 = vld [vmem:[%s107 + $0x15] sm:$0x1]
      %v134 = vld [vmem:[%s107 + $0x16] sm:$0x1]
      %v135 = vld [vmem:[%s107 + $0x17] sm:$0x1]
      %v136 = vld [vmem:[%s107 + $0x18] sm:$0x1]
      %v137 = vld [vmem:[%s107 + $0x19] sm:$0x1]
      %v138 = vld [vmem:[%s107 + $0x1a] sm:$0x1]
      %v139 = vld [vmem:[%s107 + $0x1b] sm:$0x1]
      %v140 = vld [vmem:[%s107 + $0x1c] sm:$0x1]
      %v141 = vld [vmem:[%s107 + $0x1d] sm:$0x1]
      %v142 = vld [vmem:[%s107 + $0x1e] sm:$0x1]
      %v143 = vld [vmem:[%s107 + $0x1f] sm:$0x1]
      %v144 = vld [vmem:[%s107 + $0x20] sm:$0x1]
      %v145 = vld [vmem:[%s107 + $0x21] sm:$0x1]
      %v146 = vld [vmem:[%s107 + $0x22] sm:$0x1]
      %v147 = vld [vmem:[%s107 + $0x23] sm:$0x1]
      %v148 = vld [vmem:[%s107 + $0x24] sm:$0x1]
      %v149 = vld [vmem:[%s107 + $0x25] sm:$0x1]
      %v150 = vld [vmem:[%s107 + $0x26] sm:$0x1]
      %v151 = vld [vmem:[%s107 + $0x27] sm:$0x1]
      %v152 = vld [vmem:[%s107 + $0x28] sm:$0x1]
      %v153 = vld [vmem:[%s107 + $0x29] sm:$0x1]
      %v154 = vld [vmem:[%s107 + $0x2a] sm:$0x1]
      %v155 = vld [vmem:[%s107 + $0x2b] sm:$0x1]
      %v156 = vld [vmem:[%s107 + $0x2c] sm:$0x1]
      %v157 = vld [vmem:[%s107 + $0x2d] sm:$0x1]
      %v158 = vld [vmem:[%s107 + $0x2e] sm:$0x1]
      %v159 = vld [vmem:[%s107 + $0x2f] sm:$0x1]
      %v160 = vld [vmem:[%s107 + $0x30] sm:$0x1]
      %v161 = vld [vmem:[%s107 + $0x31] sm:$0x1]
      %v162 = vld [vmem:[%s107 + $0x32] sm:$0x1]
      %v163 = vld [vmem:[%s107 + $0x33] sm:$0x1]
      %v164 = vld [vmem:[%s107 + $0x34] sm:$0x1]
      %v165 = vld [vmem:[%s107 + $0x35] sm:$0x1]
      %v166 = vld [vmem:[%s107 + $0x36] sm:$0x1]
      %v167 = vld [vmem:[%s107 + $0x37] sm:$0x1]
      %v168 = vld [vmem:[%s107 + $0x38] sm:$0x1]
      %v169 = vld [vmem:[%s107 + $0x39] sm:$0x1]
      %v170 = vld [vmem:[%s107 + $0x3a] sm:$0x1]
      %v171 = vld [vmem:[%s107 + $0x3b] sm:$0x1]
      %v172 = vld [vmem:[%s107 + $0x3c] sm:$0x1]
      %v173 = vld [vmem:[%s107 + $0x3d] sm:$0x1]
      %v174 = vld [vmem:[%s107 + $0x3e] sm:$0x1]
      %v175 = vld [vmem:[%s107 + $0x3f] sm:$0x1]
      %v176 = vld [vmem:[%s107 + $0x40] sm:$0x1]
      %v177 = vld [vmem:[%s107 + $0x41] sm:$0x1]
      %v178 = vld [vmem:[%s107 + $0x42] sm:$0x1]
      %v179 = vld [vmem:[%s107 + $0x43] sm:$0x1]
      %v180 = vld [vmem:[%s107 + $0x44] sm:$0x1]
      %v181 = vld [vmem:[%s107 + $0x45] sm:$0x1]
      %v182 = vld [vmem:[%s107 + $0x46] sm:$0x1]
      %v183 = vld [vmem:[%s107 + $0x47] sm:$0x1]
      %v184 = vld [vmem:[%s107 + $0x48] sm:$0x1]
      %v185 = vld [vmem:[%s107 + $0x49] sm:$0x1]
      %v186 = vld [vmem:[%s107 + $0x4a] sm:$0x1]
      %v187 = vld [vmem:[%s107 + $0x4b] sm:$0x1]
      %v188 = vld [vmem:[%s107 + $0x4c] sm:$0x1]
      %v189 = vld [vmem:[%s107 + $0x4d] sm:$0x1]
      %v190 = vld [vmem:[%s107 + $0x4e] sm:$0x1]
      %v191 = vld [vmem:[%s107 + $0x4f] sm:$0x1]
      %v192 = vld [vmem:[%s107 + $0x50] sm:$0x1]
      %v193 = vld [vmem:[%s107 + $0x51] sm:$0x1]
      %v194 = vld [vmem:[%s107 + $0x52] sm:$0x1]
      %v195 = vld [vmem:[%s107 + $0x53] sm:$0x1]
      %v196 = vld [vmem:[%s107 + $0x54] sm:$0x1]
      %v197 = vld [vmem:[%s107 + $0x55] sm:$0x1]
      %v198 = vld [vmem:[%s107 + $0x56] sm:$0x1]
      %v199 = vld [vmem:[%s107 + $0x57] sm:$0x1]
      %v200 = vld [vmem:[%s107 + $0x58] sm:$0x1]
      %v201 = vld [vmem:[%s107 + $0x59] sm:$0x1]
      %v202 = vld [vmem:[%s107 + $0x5a] sm:$0x1]
      %v203 = vld [vmem:[%s107 + $0x5b] sm:$0x1]
      %v204 = vld [vmem:[%s107 + $0x5c] sm:$0x1]
      %v205 = vld [vmem:[%s107 + $0x5d] sm:$0x1]
      %v206 = vld [vmem:[%s107 + $0x5e] sm:$0x1]
      %v207 = vld [vmem:[%s107 + $0x5f] sm:$0x1]
      %v208 = vld [vmem:[%s107 + $0x60] sm:$0x1]
      %v209 = vld [vmem:[%s107 + $0x61] sm:$0x1]
      %v210 = vld [vmem:[%s107 + $0x62] sm:$0x1]
      %v211 = vld [vmem:[%s107 + $0x63] sm:$0x1]
      %v212 = vld [vmem:[%s107 + $0x64] sm:$0x1]
      %v213 = vld [vmem:[%s107 + $0x65] sm:$0x1]
      %v214 = vld [vmem:[%s107 + $0x66] sm:$0x1]
      %v215 = vld [vmem:[%s107 + $0x67] sm:$0x1]
      %v216 = vld [vmem:[%s107 + $0x68] sm:$0x1]
      %v217 = vld [vmem:[%s107 + $0x69] sm:$0x1]
      %v218 = vld [vmem:[%s107 + $0x6a] sm:$0x1]
      %v219 = vld [vmem:[%s107 + $0x6b] sm:$0x1]
      %v220 = vld [vmem:[%s107 + $0x6c] sm:$0x1]
      %v221 = vld [vmem:[%s107 + $0x6d] sm:$0x1]
      %v222 = vld [vmem:[%s107 + $0x6e] sm:$0x1]
      %v223 = vld [vmem:[%s107 + $0x6f] sm:$0x1]
      %v224 = vld [vmem:[%s107 + $0x70] sm:$0x1]
      %v225 = vld [vmem:[%s107 + $0x71] sm:$0x1]
      %v226 = vld [vmem:[%s107 + $0x72] sm:$0x1]
      %v227 = vld [vmem:[%s107 + $0x73] sm:$0x1]
      %v228 = vld [vmem:[%s107 + $0x74] sm:$0x1]
      %v229 = vld [vmem:[%s107 + $0x75] sm:$0x1]
      %v230 = vld [vmem:[%s107 + $0x76] sm:$0x1]
      %v231 = vld [vmem:[%s107 + $0x77] sm:$0x1]
      %v232 = vld [vmem:[%s107 + $0x78] sm:$0x1]
      %v233 = vld [vmem:[%s107 + $0x79] sm:$0x1]
      %v234 = vld [vmem:[%s107 + $0x7a] sm:$0x1]
      %v235 = vld [vmem:[%s107 + $0x7b] sm:$0x1]
      %v236 = vld [vmem:[%s107 + $0x7c] sm:$0x1]
      %v237 = vld [vmem:[%s107 + $0x7d] sm:$0x1]
      %v238 = vld [vmem:[%s107 + $0x7e] sm:$0x1]
      %v239 = vld [vmem:[%s107 + $0x7f] sm:$0x1]
      %v240 = vunpack.c.l.bf16 %v112
      %v241 = vunpack.c.l.bf16 %v113
      %v242 = vunpack.c.l.bf16 %v114
      %v243 = vunpack.c.l.bf16 %v115
      %v244 = vunpack.c.l.bf16 %v116
      %v245 = vunpack.c.l.bf16 %v117
      %v246 = vunpack.c.l.bf16 %v118
      %v247 = vunpack.c.l.bf16 %v119
      %v248 = vunpack.c.l.bf16 %v120
      %v249 = vunpack.c.l.bf16 %v121
      %v250 = vunpack.c.l.bf16 %v122
      %v251 = vunpack.c.l.bf16 %v123
      %v252 = vunpack.c.l.bf16 %v124
      %v253 = vunpack.c.l.bf16 %v125
      %v254 = vunpack.c.l.bf16 %v126
      %v255 = vunpack.c.l.bf16 %v127
      %v256 = vunpack.c.l.bf16 %v128
      %v257 = vunpack.c.l.bf16 %v129
      %v258 = vunpack.c.l.bf16 %v130
      %v259 = vunpack.c.l.bf16 %v131
      %v260 = vunpack.c.l.bf16 %v132
      %v261 = vunpack.c.l.bf16 %v133
      %v262 = vunpack.c.l.bf16 %v134
      %v263 = vunpack.c.l.bf16 %v135
      %v264 = vunpack.c.l.bf16 %v136
      %v265 = vunpack.c.l.bf16 %v137
      %v266 = vunpack.c.l.bf16 %v138
      %v267 = vunpack.c.l.bf16 %v139
      %v268 = vunpack.c.l.bf16 %v140
      %v269 = vunpack.c.l.bf16 %v141
      %v270 = vunpack.c.l.bf16 %v142
      %v271 = vunpack.c.l.bf16 %v143
      %v272 = vunpack.c.l.bf16 %v144
      %v273 = vunpack.c.l.bf16 %v145
      %v274 = vunpack.c.l.bf16 %v146
      %v275 = vunpack.c.l.bf16 %v147
      %v276 = vunpack.c.l.bf16 %v148
      %v277 = vunpack.c.l.bf16 %v149
      %v278 = vunpack.c.l.bf16 %v150
      %v279 = vunpack.c.l.bf16 %v151
      %v280 = vunpack.c.l.bf16 %v152
      %v281 = vunpack.c.l.bf16 %v153
      %v282 = vunpack.c.l.bf16 %v154
      %v283 = vunpack.c.l.bf16 %v155
      %v284 = vunpack.c.l.bf16 %v156
      %v285 = vunpack.c.l.bf16 %v157
      %v286 = vunpack.c.l.bf16 %v158
      %v287 = vunpack.c.l.bf16 %v159
      %v288 = vunpack.c.l.bf16 %v160
      %v289 = vunpack.c.l.bf16 %v161
      %v290 = vunpack.c.l.bf16 %v162
      %v291 = vunpack.c.l.bf16 %v163
      %v292 = vunpack.c.l.bf16 %v164
      %v293 = vunpack.c.l.bf16 %v165
      %v294 = vunpack.c.l.bf16 %v166
      %v295 = vunpack.c.l.bf16 %v167
      %v296 = vunpack.c.l.bf16 %v168
      %v297 = vunpack.c.l.bf16 %v169
      %v298 = vunpack.c.l.bf16 %v170
      %v299 = vunpack.c.l.bf16 %v171
      %v300 = vunpack.c.l.bf16 %v172
      %v301 = vunpack.c.l.bf16 %v173
      %v302 = vunpack.c.l.bf16 %v174
      %v303 = vunpack.c.l.bf16 %v175
      %v304 = vunpack.c.l.bf16 %v176
      %v305 = vunpack.c.l.bf16 %v177
      %v306 = vunpack.c.l.bf16 %v178
      %v307 = vunpack.c.l.bf16 %v179
      %v308 = vunpack.c.l.bf16 %v180
      %v309 = vunpack.c.l.bf16 %v181
      %v310 = vunpack.c.l.bf16 %v182
      %v311 = vunpack.c.l.bf16 %v183
      %v312 = vunpack.c.l.bf16 %v184
      %v313 = vunpack.c.l.bf16 %v185
      %v314 = vunpack.c.l.bf16 %v186
      %v315 = vunpack.c.l.bf16 %v187
      %v316 = vunpack.c.l.bf16 %v188
      %v317 = vunpack.c.l.bf16 %v189
      %v318 = vunpack.c.l.bf16 %v190
      %v319 = vunpack.c.l.bf16 %v191
      %v320 = vunpack.c.l.bf16 %v192
      %v321 = vunpack.c.l.bf16 %v193
      %v322 = vunpack.c.l.bf16 %v194
      %v323 = vunpack.c.l.bf16 %v195
      %v324 = vunpack.c.l.bf16 %v196
      %v325 = vunpack.c.l.bf16 %v197
      %v326 = vunpack.c.l.bf16 %v198
      %v327 = vunpack.c.l.bf16 %v199
      %v328 = vunpack.c.l.bf16 %v200
      %v329 = vunpack.c.l.bf16 %v201
      %v330 = vunpack.c.l.bf16 %v202
      %v331 = vunpack.c.l.bf16 %v203
      %v332 = vunpack.c.l.bf16 %v204
      %v333 = vunpack.c.l.bf16 %v205
      %v334 = vunpack.c.l.bf16 %v206
      %v335 = vunpack.c.l.bf16 %v207
      %v336 = vunpack.c.l.bf16 %v208
      %v337 = vunpack.c.l.bf16 %v209
      %v338 = vunpack.c.l.bf16 %v210
      %v339 = vunpack.c.l.bf16 %v211
      %v340 = vunpack.c.l.bf16 %v212
      %v341 = vunpack.c.l.bf16 %v213
      %v342 = vunpack.c.l.bf16 %v214
      %v343 = vunpack.c.l.bf16 %v215
      %v344 = vunpack.c.l.bf16 %v216
      %v345 = vunpack.c.l.bf16 %v217
      %v346 = vunpack.c.l.bf16 %v218
      %v347 = vunpack.c.l.bf16 %v219
      %v348 = vunpack.c.l.bf16 %v220
      %v349 = vunpack.c.l.bf16 %v221
      %v350 = vunpack.c.l.bf16 %v222
      %v351 = vunpack.c.l.bf16 %v223
      %v352 = vunpack.c.l.bf16 %v224
      %v353 = vunpack.c.l.bf16 %v225
      %v354 = vunpack.c.l.bf16 %v226
      %v355 = vunpack.c.l.bf16 %v227
      %v356 = vunpack.c.l.bf16 %v228
      %v357 = vunpack.c.l.bf16 %v229
      %v358 = vunpack.c.l.bf16 %v230
      %v359 = vunpack.c.l.bf16 %v231
      %v360 = vunpack.c.l.bf16 %v232
      %v361 = vunpack.c.l.bf16 %v233
      %v362 = vunpack.c.l.bf16 %v234
      %v363 = vunpack.c.l.bf16 %v235
      %v364 = vunpack.c.l.bf16 %v236
      %v365 = vunpack.c.l.bf16 %v237
      %v366 = vunpack.c.l.bf16 %v238
      %v367 = vunpack.c.l.bf16 %v239
      %v368 = vmax.f32 %v240, %v248
      %v369 = vmax.f32 %v241, %v249
      %v370 = vmax.f32 %v242, %v250
      %v371 = vmax.f32 %v243, %v251
      %v372 = vmax.f32 %v244, %v252
      %v373 = vmax.f32 %v245, %v253
      %v374 = vmax.f32 %v246, %v254
      %v375 = vmax.f32 %v247, %v255
      %v376 = vmax.f32 %v256, %v264
      %v377 = vmax.f32 %v257, %v265
      %v378 = vmax.f32 %v258, %v266
      %v379 = vmax.f32 %v259, %v267
      %v380 = vmax.f32 %v260, %v268
      %v381 = vmax.f32 %v261, %v269
      %v382 = vmax.f32 %v262, %v270
      %v383 = vmax.f32 %v263, %v271
      %v384 = vmax.f32 %v272, %v280
      %v385 = vmax.f32 %v273, %v281
      %v386 = vmax.f32 %v274, %v282
      %v387 = vmax.f32 %v275, %v283
      %v388 = vmax.f32 %v276, %v284
      %v389 = vmax.f32 %v277, %v285
      %v390 = vmax.f32 %v278, %v286
      %v391 = vmax.f32 %v279, %v287
      %v392 = vmax.f32 %v288, %v296
      %v393 = vmax.f32 %v289, %v297
      %v394 = vmax.f32 %v290, %v298
      %v395 = vmax.f32 %v291, %v299
      %v396 = vmax.f32 %v292, %v300
      %v397 = vmax.f32 %v293, %v301
      %v398 = vmax.f32 %v294, %v302
      %v399 = vmax.f32 %v295, %v303
      %v400 = vmax.f32 %v304, %v312
      %v401 = vmax.f32 %v305, %v313
      %v402 = vmax.f32 %v306, %v314
      %v403 = vmax.f32 %v307, %v315
      %v404 = vmax.f32 %v308, %v316
      %v405 = vmax.f32 %v309, %v317
      %v406 = vmax.f32 %v310, %v318
      %v407 = vmax.f32 %v311, %v319
      %v408 = vmax.f32 %v320, %v328
      %v409 = vmax.f32 %v321, %v329
      %v410 = vmax.f32 %v322, %v330
      %v411 = vmax.f32 %v323, %v331
      %v412 = vmax.f32 %v324, %v332
      %v413 = vmax.f32 %v325, %v333
      %v414 = vmax.f32 %v326, %v334
      %v415 = vmax.f32 %v327, %v335
      %v416 = vmax.f32 %v336, %v344
      %v417 = vmax.f32 %v337, %v345
      %v418 = vmax.f32 %v338, %v346
      %v419 = vmax.f32 %v339, %v347
      %v420 = vmax.f32 %v340, %v348
      %v421 = vmax.f32 %v341, %v349
      %v422 = vmax.f32 %v342, %v350
      %v423 = vmax.f32 %v343, %v351
      %v424 = vmax.f32 %v352, %v360
      %v425 = vmax.f32 %v353, %v361
      %v426 = vmax.f32 %v354, %v362
      %v427 = vmax.f32 %v355, %v363
      %v428 = vmax.f32 %v356, %v364
      %v429 = vmax.f32 %v357, %v365
      %v430 = vmax.f32 %v358, %v366
      %v431 = vmax.f32 %v359, %v367
      %v496 = vrot.slane %v368, 7
      %v497 = vrot.slane %v496, 2
      %v498 = vrot.slane %v369, 7
      %v499 = vrot.slane %v498, 2
      %v500 = vrot.slane %v370, 7
      %v501 = vrot.slane %v500, 2
      %v502 = vrot.slane %v371, 7
      %v503 = vrot.slane %v502, 2
      %v504 = vrot.slane %v372, 7
      %v505 = vrot.slane %v504, 2
      %v506 = vrot.slane %v373, 7
      %v507 = vrot.slane %v506, 2
      %v508 = vrot.slane %v374, 7
      %v509 = vrot.slane %v508, 2
      %v510 = vrot.slane %v375, 7
      %v511 = vrot.slane %v510, 2
      %v512 = vrot.slane %v376, 7
      %v513 = vrot.slane %v512, 2
      %v514 = vrot.slane %v377, 7
      %v515 = vrot.slane %v514, 2
      %v516 = vrot.slane %v378, 7
      %v517 = vrot.slane %v516, 2
      %v518 = vrot.slane %v379, 7
      %v519 = vrot.slane %v518, 2
      %v520 = vrot.slane %v380, 7
      %v521 = vrot.slane %v520, 2
      %v522 = vrot.slane %v381, 7
      %v523 = vrot.slane %v522, 2
      %v524 = vrot.slane %v382, 7
      %v525 = vrot.slane %v524, 2
      %v526 = vrot.slane %v383, 7
      %v527 = vrot.slane %v526, 2
      %v528 = vrot.slane %v384, 7
      %v529 = vrot.slane %v528, 2
      %v530 = vrot.slane %v385, 7
      %v531 = vrot.slane %v530, 2
      %v532 = vrot.slane %v386, 7
      %v533 = vrot.slane %v532, 2
      %v534 = vrot.slane %v387, 7
      %v535 = vrot.slane %v534, 2
      %v536 = vrot.slane %v388, 7
      %v537 = vrot.slane %v536, 2
      %v538 = vrot.slane %v389, 7
      %v539 = vrot.slane %v538, 2
      %v540 = vrot.slane %v390, 7
      %v541 = vrot.slane %v540, 2
      %v542 = vrot.slane %v391, 7
      %v543 = vrot.slane %v542, 2
      %v544 = vrot.slane %v392, 7
      %v545 = vrot.slane %v544, 2
      %v546 = vrot.slane %v393, 7
      %v547 = vrot.slane %v546, 2
      %v548 = vrot.slane %v394, 7
      %v549 = vrot.slane %v548, 2
      %v550 = vrot.slane %v395, 7
      %v551 = vrot.slane %v550, 2
      %v552 = vrot.slane %v396, 7
      %v553 = vrot.slane %v552, 2
      %v554 = vrot.slane %v397, 7
      %v555 = vrot.slane %v554, 2
      %v556 = vrot.slane %v398, 7
      %v557 = vrot.slane %v556, 2
      %v558 = vrot.slane %v399, 7
      %v559 = vrot.slane %v558, 2
      %v560 = vrot.slane %v400, 7
      %v561 = vrot.slane %v560, 2
      %v562 = vrot.slane %v401, 7
      %v563 = vrot.slane %v562, 2
      %v564 = vrot.slane %v402, 7
      %v565 = vrot.slane %v564, 2
      %v566 = vrot.slane %v403, 7
      %v567 = vrot.slane %v566, 2
      %v568 = vrot.slane %v404, 7
      %v569 = vrot.slane %v568, 2
      %v570 = vrot.slane %v405, 7
      %v571 = vrot.slane %v570, 2
      %v572 = vrot.slane %v406, 7
      %v573 = vrot.slane %v572, 2
      %v574 = vrot.slane %v407, 7
      %v575 = vrot.slane %v574, 2
      %v576 = vrot.slane %v408, 7
      %v577 = vrot.slane %v576, 2
      %v578 = vrot.slane %v409, 7
      %v579 = vrot.slane %v578, 2
      %v580 = vrot.slane %v410, 7
      %v581 = vrot.slane %v580, 2
      %v582 = vrot.slane %v411, 7
      %v583 = vrot.slane %v582, 2
      %v584 = vrot.slane %v412, 7
      %v585 = vrot.slane %v584, 2
      %v586 = vrot.slane %v413, 7
      %v587 = vrot.slane %v586, 2
      %v588 = vrot.slane %v414, 7
      %v589 = vrot.slane %v588, 2
      %v590 = vrot.slane %v415, 7
      %v591 = vrot.slane %v590, 2
      %v592 = vrot.slane %v416, 7
      %v593 = vrot.slane %v592, 2
      %v594 = vrot.slane %v417, 7
      %v595 = vrot.slane %v594, 2
      %v596 = vrot.slane %v418, 7
      %v597 = vrot.slane %v596, 2
      %v598 = vrot.slane %v419, 7
      %v599 = vrot.slane %v598, 2
      %v600 = vrot.slane %v420, 7
      %v601 = vrot.slane %v600, 2
      %v602 = vrot.slane %v421, 7
      %v603 = vrot.slane %v602, 2
      %v604 = vrot.slane %v422, 7
      %v605 = vrot.slane %v604, 2
      %v606 = vrot.slane %v423, 7
      %v607 = vrot.slane %v606, 2
      %v608 = vrot.slane %v424, 7
      %v609 = vrot.slane %v608, 2
      %v610 = vrot.slane %v425, 7
      %v611 = vrot.slane %v610, 2
      %v612 = vrot.slane %v426, 7
      %v613 = vrot.slane %v612, 2
      %v614 = vrot.slane %v427, 7
      %v615 = vrot.slane %v614, 2
      %v616 = vrot.slane %v428, 7
      %v617 = vrot.slane %v616, 2
      %v618 = vrot.slane %v429, 7
      %v619 = vrot.slane %v618, 2
      %v620 = vrot.slane %v430, 7
      %v621 = vrot.slane %v620, 2
      %v622 = vrot.slane %v431, 7
      %v623 = vrot.slane %v622, 2
      %v688 = vmax.f32 %v368, %v497
      %v689 = vmax.f32 %v369, %v499
      %v690 = vmax.f32 %v370, %v501
      %v691 = vmax.f32 %v371, %v503
      %v692 = vmax.f32 %v372, %v505
      %v693 = vmax.f32 %v373, %v507
      %v694 = vmax.f32 %v374, %v509
      %v695 = vmax.f32 %v375, %v511
      %v696 = vmax.f32 %v376, %v513
      %v697 = vmax.f32 %v377, %v515
      %v698 = vmax.f32 %v378, %v517
      %v699 = vmax.f32 %v379, %v519
      %v700 = vmax.f32 %v380, %v521
      %v701 = vmax.f32 %v381, %v523
      %v702 = vmax.f32 %v382, %v525
      %v703 = vmax.f32 %v383, %v527
      %v704 = vmax.f32 %v384, %v529
      %v705 = vmax.f32 %v385, %v531
      %v706 = vmax.f32 %v386, %v533
      %v707 = vmax.f32 %v387, %v535
      %v708 = vmax.f32 %v388, %v537
      %v709 = vmax.f32 %v389, %v539
      %v710 = vmax.f32 %v390, %v541
      %v711 = vmax.f32 %v391, %v543
      %v712 = vmax.f32 %v392, %v545
      %v713 = vmax.f32 %v393, %v547
      %v714 = vmax.f32 %v394, %v549
      %v715 = vmax.f32 %v395, %v551
      %v716 = vmax.f32 %v396, %v553
      %v717 = vmax.f32 %v397, %v555
      %v718 = vmax.f32 %v398, %v557
      %v719 = vmax.f32 %v399, %v559
      %v720 = vmax.f32 %v400, %v561
      %v721 = vmax.f32 %v401, %v563
      %v722 = vmax.f32 %v402, %v565
      %v723 = vmax.f32 %v403, %v567
      %v724 = vmax.f32 %v404, %v569
      %v725 = vmax.f32 %v405, %v571
      %v726 = vmax.f32 %v406, %v573
      %v727 = vmax.f32 %v407, %v575
      %v728 = vmax.f32 %v408, %v577
      %v729 = vmax.f32 %v409, %v579
      %v730 = vmax.f32 %v410, %v581
      %v731 = vmax.f32 %v411, %v583
      %v732 = vmax.f32 %v412, %v585
      %v733 = vmax.f32 %v413, %v587
      %v734 = vmax.f32 %v414, %v589
      %v735 = vmax.f32 %v415, %v591
      %v736 = vmax.f32 %v416, %v593
      %v737 = vmax.f32 %v417, %v595
      %v738 = vmax.f32 %v418, %v597
      %v739 = vmax.f32 %v419, %v599
      %v740 = vmax.f32 %v420, %v601
      %v741 = vmax.f32 %v421, %v603
      %v742 = vmax.f32 %v422, %v605
      %v743 = vmax.f32 %v423, %v607
      %v744 = vmax.f32 %v424, %v609
      %v745 = vmax.f32 %v425, %v611
      %v746 = vmax.f32 %v426, %v613
      %v747 = vmax.f32 %v427, %v615
      %v748 = vmax.f32 %v428, %v617
      %v749 = vmax.f32 %v429, %v619
      %v750 = vmax.f32 %v430, %v621
      %v751 = vmax.f32 %v431, %v623
      %v752 = vpack.c.bf16 %v688, %v688
      %v753 = vpack.c.bf16 %v689, %v689
      %v754 = vpack.c.bf16 %v690, %v690
      %v755 = vpack.c.bf16 %v691, %v691
      %v756 = vpack.c.bf16 %v692, %v692
      %v757 = vpack.c.bf16 %v693, %v693
      %v758 = vpack.c.bf16 %v694, %v694
      %v759 = vpack.c.bf16 %v695, %v695
      %v760 = vpack.c.bf16 %v696, %v696
      %v761 = vpack.c.bf16 %v697, %v697
      %v762 = vpack.c.bf16 %v698, %v698
      %v763 = vpack.c.bf16 %v699, %v699
      %v764 = vpack.c.bf16 %v700, %v700
      %v765 = vpack.c.bf16 %v701, %v701
      %v766 = vpack.c.bf16 %v702, %v702
      %v767 = vpack.c.bf16 %v703, %v703
      %v768 = vpack.c.bf16 %v704, %v704
      %v769 = vpack.c.bf16 %v705, %v705
      %v770 = vpack.c.bf16 %v706, %v706
      %v771 = vpack.c.bf16 %v707, %v707
      %v772 = vpack.c.bf16 %v708, %v708
      %v773 = vpack.c.bf16 %v709, %v709
      %v774 = vpack.c.bf16 %v710, %v710
      %v775 = vpack.c.bf16 %v711, %v711
      %v776 = vpack.c.bf16 %v712, %v712
      %v777 = vpack.c.bf16 %v713, %v713
      %v778 = vpack.c.bf16 %v714, %v714
      %v779 = vpack.c.bf16 %v715, %v715
      %v780 = vpack.c.bf16 %v716, %v716
      %v781 = vpack.c.bf16 %v717, %v717
      %v782 = vpack.c.bf16 %v718, %v718
      %v783 = vpack.c.bf16 %v719, %v719
      %v784 = vpack.c.bf16 %v720, %v720
      %v785 = vpack.c.bf16 %v721, %v721
      %v786 = vpack.c.bf16 %v722, %v722
      %v787 = vpack.c.bf16 %v723, %v723
      %v788 = vpack.c.bf16 %v724, %v724
      %v789 = vpack.c.bf16 %v725, %v725
      %v790 = vpack.c.bf16 %v726, %v726
      %v791 = vpack.c.bf16 %v727, %v727
      %v792 = vpack.c.bf16 %v728, %v728
      %v793 = vpack.c.bf16 %v729, %v729
      %v794 = vpack.c.bf16 %v730, %v730
      %v795 = vpack.c.bf16 %v731, %v731
      %v796 = vpack.c.bf16 %v732, %v732
      %v797 = vpack.c.bf16 %v733, %v733
      %v798 = vpack.c.bf16 %v734, %v734
      %v799 = vpack.c.bf16 %v735, %v735
      %v800 = vpack.c.bf16 %v736, %v736
      %v801 = vpack.c.bf16 %v737, %v737
      %v802 = vpack.c.bf16 %v738, %v738
      %v803 = vpack.c.bf16 %v739, %v739
      %v804 = vpack.c.bf16 %v740, %v740
      %v805 = vpack.c.bf16 %v741, %v741
      %v806 = vpack.c.bf16 %v742, %v742
      %v807 = vpack.c.bf16 %v743, %v743
      %v808 = vpack.c.bf16 %v744, %v744
      %v809 = vpack.c.bf16 %v745, %v745
      %v810 = vpack.c.bf16 %v746, %v746
      %v811 = vpack.c.bf16 %v747, %v747
      %v812 = vpack.c.bf16 %v748, %v748
      %v813 = vpack.c.bf16 %v749, %v749
      %v814 = vpack.c.bf16 %v750, %v750
      %v815 = vpack.c.bf16 %v751, %v751
      %vm816 = vcmask 1040384
      %vm817 = vsmask.f32 256
      %vm818 = vmand %vm816, %vm817
      %v819 = vld [vmem:[%s111] sm:$0x1]
      %v820 = vsel %vm818, %v752, %v819
      %821 = vst [vmem:[%s111] sm:$0x1] %v820
      %v822 = vld [vmem:[%s111 + $0x1] sm:$0x1]
      %v823 = vsel %vm818, %v753, %v822
      %824 = vst [vmem:[%s111 + $0x1] sm:$0x1] %v823
      %v825 = vld [vmem:[%s111 + $0x2] sm:$0x1]
      %v826 = vsel %vm818, %v754, %v825
      %827 = vst [vmem:[%s111 + $0x2] sm:$0x1] %v826
      %v828 = vld [vmem:[%s111 + $0x3] sm:$0x1]
      %v829 = vsel %vm818, %v755, %v828
      %830 = vst [vmem:[%s111 + $0x3] sm:$0x1] %v829
      %v831 = vld [vmem:[%s111 + $0x4] sm:$0x1]
      %v832 = vsel %vm818, %v756, %v831
      %833 = vst [vmem:[%s111 + $0x4] sm:$0x1] %v832
      %v834 = vld [vmem:[%s111 + $0x5] sm:$0x1]
      %v835 = vsel %vm818, %v757, %v834
      %836 = vst [vmem:[%s111 + $0x5] sm:$0x1] %v835
      %v837 = vld [vmem:[%s111 + $0x6] sm:$0x1]
      %v838 = vsel %vm818, %v758, %v837
      %839 = vst [vmem:[%s111 + $0x6] sm:$0x1] %v838
      %v840 = vld [vmem:[%s111 + $0x7] sm:$0x1]
      %v841 = vsel %vm818, %v759, %v840
      %842 = vst [vmem:[%s111 + $0x7] sm:$0x1] %v841
      %v843 = vld [vmem:[%s111 + $0x8] sm:$0x1]
      %v844 = vsel %vm818, %v760, %v843
      %845 = vst [vmem:[%s111 + $0x8] sm:$0x1] %v844
      %v846 = vld [vmem:[%s111 + $0x9] sm:$0x1]
      %v847 = vsel %vm818, %v761, %v846
      %848 = vst [vmem:[%s111 + $0x9] sm:$0x1] %v847
      %v849 = vld [vmem:[%s111 + $0xa] sm:$0x1]
      %v850 = vsel %vm818, %v762, %v849
      %851 = vst [vmem:[%s111 + $0xa] sm:$0x1] %v850
      %v852 = vld [vmem:[%s111 + $0xb] sm:$0x1]
      %v853 = vsel %vm818, %v763, %v852
      %854 = vst [vmem:[%s111 + $0xb] sm:$0x1] %v853
      %v855 = vld [vmem:[%s111 + $0xc] sm:$0x1]
      %v856 = vsel %vm818, %v764, %v855
      %857 = vst [vmem:[%s111 + $0xc] sm:$0x1] %v856
      %v858 = vld [vmem:[%s111 + $0xd] sm:$0x1]
      %v859 = vsel %vm818, %v765, %v858
      %860 = vst [vmem:[%s111 + $0xd] sm:$0x1] %v859
      %v861 = vld [vmem:[%s111 + $0xe] sm:$0x1]
      %v862 = vsel %vm818, %v766, %v861
      %863 = vst [vmem:[%s111 + $0xe] sm:$0x1] %v862
      %v864 = vld [vmem:[%s111 + $0xf] sm:$0x1]
      %v865 = vsel %vm818, %v767, %v864
      %866 = vst [vmem:[%s111 + $0xf] sm:$0x1] %v865
      %v867 = vld [vmem:[%s111 + $0x10] sm:$0x1]
      %v868 = vsel %vm818, %v768, %v867
      %869 = vst [vmem:[%s111 + $0x10] sm:$0x1] %v868
      %v870 = vld [vmem:[%s111 + $0x11] sm:$0x1]
      %v871 = vsel %vm818, %v769, %v870
      %872 = vst [vmem:[%s111 + $0x11] sm:$0x1] %v871
      %v873 = vld [vmem:[%s111 + $0x12] sm:$0x1]
      %v874 = vsel %vm818, %v770, %v873
      %875 = vst [vmem:[%s111 + $0x12] sm:$0x1] %v874
      %v876 = vld [vmem:[%s111 + $0x13] sm:$0x1]
      %v877 = vsel %vm818, %v771, %v876
      %878 = vst [vmem:[%s111 + $0x13] sm:$0x1] %v877
      %v879 = vld [vmem:[%s111 + $0x14] sm:$0x1]
      %v880 = vsel %vm818, %v772, %v879
      %881 = vst [vmem:[%s111 + $0x14] sm:$0x1] %v880
      %v882 = vld [vmem:[%s111 + $0x15] sm:$0x1]
      %v883 = vsel %vm818, %v773, %v882
      %884 = vst [vmem:[%s111 + $0x15] sm:$0x1] %v883
      %v885 = vld [vmem:[%s111 + $0x16] sm:$0x1]
      %v886 = vsel %vm818, %v774, %v885
      %887 = vst [vmem:[%s111 + $0x16] sm:$0x1] %v886
      %v888 = vld [vmem:[%s111 + $0x17] sm:$0x1]
      %v889 = vsel %vm818, %v775, %v888
      %890 = vst [vmem:[%s111 + $0x17] sm:$0x1] %v889
      %v891 = vld [vmem:[%s111 + $0x18] sm:$0x1]
      %v892 = vsel %vm818, %v776, %v891
      %893 = vst [vmem:[%s111 + $0x18] sm:$0x1] %v892
      %v894 = vld [vmem:[%s111 + $0x19] sm:$0x1]
      %v895 = vsel %vm818, %v777, %v894
      %896 = vst [vmem:[%s111 + $0x19] sm:$0x1] %v895
      %v897 = vld [vmem:[%s111 + $0x1a] sm:$0x1]
      %v898 = vsel %vm818, %v778, %v897
      %899 = vst [vmem:[%s111 + $0x1a] sm:$0x1] %v898
      %v900 = vld [vmem:[%s111 + $0x1b] sm:$0x1]
      %v901 = vsel %vm818, %v779, %v900
      %902 = vst [vmem:[%s111 + $0x1b] sm:$0x1] %v901
      %v903 = vld [vmem:[%s111 + $0x1c] sm:$0x1]
      %v904 = vsel %vm818, %v780, %v903
      %905 = vst [vmem:[%s111 + $0x1c] sm:$0x1] %v904
      %v906 = vld [vmem:[%s111 + $0x1d] sm:$0x1]
      %v907 = vsel %vm818, %v781, %v906
      %908 = vst [vmem:[%s111 + $0x1d] sm:$0x1] %v907
      %v909 = vld [vmem:[%s111 + $0x1e] sm:$0x1]
      %v910 = vsel %vm818, %v782, %v909
      %911 = vst [vmem:[%s111 + $0x1e] sm:$0x1] %v910
      %v912 = vld [vmem:[%s111 + $0x1f] sm:$0x1]
      %v913 = vsel %vm818, %v783, %v912
      %914 = vst [vmem:[%s111 + $0x1f] sm:$0x1] %v913
      %v915 = vld [vmem:[%s111 + $0x20] sm:$0x1]
      %v916 = vsel %vm818, %v784, %v915
      %917 = vst [vmem:[%s111 + $0x20] sm:$0x1] %v916
      %v918 = vld [vmem:[%s111 + $0x21] sm:$0x1]
      %v919 = vsel %vm818, %v785, %v918
      %920 = vst [vmem:[%s111 + $0x21] sm:$0x1] %v919
      %v921 = vld [vmem:[%s111 + $0x22] sm:$0x1]
      %v922 = vsel %vm818, %v786, %v921
      %923 = vst [vmem:[%s111 + $0x22] sm:$0x1] %v922
      %v924 = vld [vmem:[%s111 + $0x23] sm:$0x1]
      %v925 = vsel %vm818, %v787, %v924
      %926 = vst [vmem:[%s111 + $0x23] sm:$0x1] %v925
      %v927 = vld [vmem:[%s111 + $0x24] sm:$0x1]
      %v928 = vsel %vm818, %v788, %v927
      %929 = vst [vmem:[%s111 + $0x24] sm:$0x1] %v928
      %v930 = vld [vmem:[%s111 + $0x25] sm:$0x1]
      %v931 = vsel %vm818, %v789, %v930
      %932 = vst [vmem:[%s111 + $0x25] sm:$0x1] %v931
      %v933 = vld [vmem:[%s111 + $0x26] sm:$0x1]
      %v934 = vsel %vm818, %v790, %v933
      %935 = vst [vmem:[%s111 + $0x26] sm:$0x1] %v934
      %v936 = vld [vmem:[%s111 + $0x27] sm:$0x1]
      %v937 = vsel %vm818, %v791, %v936
      %938 = vst [vmem:[%s111 + $0x27] sm:$0x1] %v937
      %v939 = vld [vmem:[%s111 + $0x28] sm:$0x1]
      %v940 = vsel %vm818, %v792, %v939
      %941 = vst [vmem:[%s111 + $0x28] sm:$0x1] %v940
      %v942 = vld [vmem:[%s111 + $0x29] sm:$0x1]
      %v943 = vsel %vm818, %v793, %v942
      %944 = vst [vmem:[%s111 + $0x29] sm:$0x1] %v943
      %v945 = vld [vmem:[%s111 + $0x2a] sm:$0x1]
      %v946 = vsel %vm818, %v794, %v945
      %947 = vst [vmem:[%s111 + $0x2a] sm:$0x1] %v946
      %v948 = vld [vmem:[%s111 + $0x2b] sm:$0x1]
      %v949 = vsel %vm818, %v795, %v948
      %950 = vst [vmem:[%s111 + $0x2b] sm:$0x1] %v949
      %v951 = vld [vmem:[%s111 + $0x2c] sm:$0x1]
      %v952 = vsel %vm818, %v796, %v951
      %953 = vst [vmem:[%s111 + $0x2c] sm:$0x1] %v952
      %v954 = vld [vmem:[%s111 + $0x2d] sm:$0x1]
      %v955 = vsel %vm818, %v797, %v954
      %956 = vst [vmem:[%s111 + $0x2d] sm:$0x1] %v955
      %v957 = vld [vmem:[%s111 + $0x2e] sm:$0x1]
      %v958 = vsel %vm818, %v798, %v957
      %959 = vst [vmem:[%s111 + $0x2e] sm:$0x1] %v958
      %v960 = vld [vmem:[%s111 + $0x2f] sm:$0x1]
      %v961 = vsel %vm818, %v799, %v960
      %962 = vst [vmem:[%s111 + $0x2f] sm:$0x1] %v961
      %v963 = vld [vmem:[%s111 + $0x30] sm:$0x1]
      %v964 = vsel %vm818, %v800, %v963
      %965 = vst [vmem:[%s111 + $0x30] sm:$0x1] %v964
      %v966 = vld [vmem:[%s111 + $0x31] sm:$0x1]
      %v967 = vsel %vm818, %v801, %v966
      %968 = vst [vmem:[%s111 + $0x31] sm:$0x1] %v967
      %v969 = vld [vmem:[%s111 + $0x32] sm:$0x1]
      %v970 = vsel %vm818, %v802, %v969
      %971 = vst [vmem:[%s111 + $0x32] sm:$0x1] %v970
      %v972 = vld [vmem:[%s111 + $0x33] sm:$0x1]
      %v973 = vsel %vm818, %v803, %v972
      %974 = vst [vmem:[%s111 + $0x33] sm:$0x1] %v973
      %v975 = vld [vmem:[%s111 + $0x34] sm:$0x1]
      %v976 = vsel %vm818, %v804, %v975
      %977 = vst [vmem:[%s111 + $0x34] sm:$0x1] %v976
      %v978 = vld [vmem:[%s111 + $0x35] sm:$0x1]
      %v979 = vsel %vm818, %v805, %v978
      %980 = vst [vmem:[%s111 + $0x35] sm:$0x1] %v979
      %v981 = vld [vmem:[%s111 + $0x36] sm:$0x1]
      %v982 = vsel %vm818, %v806, %v981
      %983 = vst [vmem:[%s111 + $0x36] sm:$0x1] %v982
      %v984 = vld [vmem:[%s111 + $0x37] sm:$0x1]
      %v985 = vsel %vm818, %v807, %v984
      %986 = vst [vmem:[%s111 + $0x37] sm:$0x1] %v985
      %v987 = vld [vmem:[%s111 + $0x38] sm:$0x1]
      %v988 = vsel %vm818, %v808, %v987
      %989 = vst [vmem:[%s111 + $0x38] sm:$0x1] %v988
      %v990 = vld [vmem:[%s111 + $0x39] sm:$0x1]
      %v991 = vsel %vm818, %v809, %v990
      %992 = vst [vmem:[%s111 + $0x39] sm:$0x1] %v991
      %v993 = vld [vmem:[%s111 + $0x3a] sm:$0x1]
      %v994 = vsel %vm818, %v810, %v993
      %995 = vst [vmem:[%s111 + $0x3a] sm:$0x1] %v994
      %v996 = vld [vmem:[%s111 + $0x3b] sm:$0x1]
      %v997 = vsel %vm818, %v811, %v996
      %998 = vst [vmem:[%s111 + $0x3b] sm:$0x1] %v997
      %v999 = vld [vmem:[%s111 + $0x3c] sm:$0x1]
      %v1000 = vsel %vm818, %v812, %v999
      %1001 = vst [vmem:[%s111 + $0x3c] sm:$0x1] %v1000
      %v1002 = vld [vmem:[%s111 + $0x3d] sm:$0x1]
      %v1003 = vsel %vm818, %v813, %v1002
      %1004 = vst [vmem:[%s111 + $0x3d] sm:$0x1] %v1003
      %v1005 = vld [vmem:[%s111 + $0x3e] sm:$0x1]
      %v1006 = vsel %vm818, %v814, %v1005
      %1007 = vst [vmem:[%s111 + $0x3e] sm:$0x1] %v1006
      %v1008 = vld [vmem:[%s111 + $0x3f] sm:$0x1]
      %v1009 = vsel %vm818, %v815, %v1008
      %1010 = vst [vmem:[%s111 + $0x3f] sm:$0x1] %v1009
      %p1011 = scmp.lt.s32.totalorder %s12, 1
      %s1012 = scalar_select %p1011, %s12, 1
      %s1013 = smul.addr %s1012, 64
      %s1014 = scalar_lea.vmem %s1, %s1013
      // Predicated region
      $region25: #{_lambda_.5} parent=23 // pred_check
        %p1015 = pneg %p56
      $region26: #{_lambda_.5} parent=23 // pred_check_branch
        %1017 = sbr.rel (%p1015) target = $region28
      $region27: #{_lambda_.5} parent=23 // pred_region
        _
      $region28: #{_lambda_.5} parent=23 // pred_fallthru
        _
    $region24: #{_lambda_.5} parent=5 // pred_fallthru
      _
    %p1018 = scmp.le.s32.totalorder 2, %s7
    // Predicated region
    $region29: #{_lambda_.5} parent=5 // pred_check
      %p1019 = pneg %p1018
    $region30: #{_lambda_.5} parent=5 // pred_check_branch
      %1021 = sbr.rel (%p1019) target = $region32
    $region31: #{_lambda_.5} parent=5 // pred_region
      %s1022 = ssub.s32 %s7, 2
      // Predicated region
      $region33: #{_lambda_.5} parent=31 // pred_check
        %p1023 = pneg %p62
      $region34: #{_lambda_.5} parent=31 // pred_check_branch
        %1025 = sbr.rel (%p1023) target = $region36
      $region35: #{_lambda_.5} parent=31 // pred_region
        %p1026 = scmp.lt.s32.totalorder %s13, 1
        %s1027 = scalar_select %p1026, %s13, 1
        %s1028 = smul.addr %s1027, 64
        %s1029 = scalar_lea.vmem %s1, %s1028
      $region36: #{_lambda_.5} parent=31 // pred_fallthru
        _
    $region32: #{_lambda_.5} parent=5 // pred_fallthru
      _
  $region6: #{_lambda_.5} parent=0 // loop_footer
    %s11 = sadd.s32 1, %s7
  $region7: #{_lambda_.5} parent=0 // loop_footer_branch
    %6 = sbr.rel target = $region3
  $region8: #{_lambda_.5} parent=0 // loop_exit
    _

// kernel: _lambda_.6
$region0: #{_lambda_.6}
  #allocation0 [shape = 'u32[]', space=smem, size = 0x4, offset = 0x4, fixed_abs, tag = 'smem constant byte address 0x4 - core index']
  #allocation1 [shape = 'u32[144,128]{1,0:T(1,128)}', space=vmem, size = 0x12000, scoped, tag = 'internal scratch']
  #allocation2 [shape = 'f32[64,128]{1,0:T(8,128)}', space=vmem, size = 0x8000, scoped, tag = 'scratch operand']
  #allocation3 [shape = 'f32[10,10,128]{2,1,0:T(8,128)}', space=vmem, size = 0x14000, scoped, tag = 'scratch operand']
  %s0 = inlined_call_operand.vmem [shape: bf16[2,10,10,128], index: 0, kind: input, shape index: {}]
  %s1 = inlined_call_operand.vmem [shape: bf16[9,128,128], index: 1, kind: input, shape index: {}]
  %s2 = inlined_call_operand.vmem [shape: f32[1,128], index: 2, kind: input, shape index: {}]
  %s3 = inlined_call_operand.vmem [shape: f32[2,64,128], index: 3, kind: output, shape index: {}]
  %s4 = sld [smem:[#allocation0]]
  $region45: #{_lambda_.6} parent=0
    _
  %s6 = ssub.s32 1, %s4
  %s7 = scalar_select 0, %s6, %s4
  loop: start=0, step=1, limit=4
  $region2: #{_lambda_.6} parent=0 // loop_pre_header
    _
  $region3: #{_lambda_.6} parent=0 // loop_header
    %s9 = sphi 0, %s13
    %p10 = scmp.ge.s32.totalorder %s9, 4
    %s19 = sphi 0, %s21
    %s22 = sphi 0, %s19
    %s23 = sphi 0, %s22
    %s39 = sphi 0, %s23
    %s43 = sphi 0, %s43
    %s45 = sphi 0, %s43
    %s46 = sphi 0, %s45
    %s60 = sphi 0, %s46
    %s64 = sphi 0, %s64
    %s66 = sphi 0, %s64
    %s67 = sphi 0, %s66
    %s81 = sphi 0, %s67
    %s87 = sphi 0, %s89
    %s90 = sphi 0, %s87
    %s91 = sphi 0, %s90
    %s107 = sphi 0, %s91
  $region4: #{_lambda_.6} parent=0 // loop_header_branch
    %12 = sbr.rel (%p10) target = $region8
  $region5: #{_lambda_.6} parent=0 // loop_body
    %s14 = ssub.s32 %s9, 1
    %s15 = ssub.s32 %s9, 2
    %s16 = sadd.s32 %s9, 1
    %s17 = ssub.s32 %s9, %s16
    %p18 = scmp.eq.s32.totalorder %s17, 0
    %s20 = sadd.s32 %s19, 1
    %s21 = scalar_select %p18, %s19, %s20
    %p24 = pneg %p18
    %p25 = scmp.eq.s32.totalorder %s9, 1
    %p26 = por %p24, %p25
    %p27 = scmp.ne.s32.totalorder %s19, %s22
    %p28 = scmp.eq.s32.totalorder %s9, 0
    %p29 = por %p27, %p28
    %p30 = scmp.ne.s32.totalorder %s19, %s22
    %p31 = scmp.eq.s32.totalorder %s14, 1
    %p32 = por %p30, %p31
    %p33 = scmp.ne.s32.totalorder %s22, %s23
    %p34 = scmp.eq.s32.totalorder %s14, 0
    %p35 = por %p33, %p34
    %p36 = scmp.ne.s32.totalorder %s22, %s23
    %p37 = scmp.eq.s32.totalorder %s15, 1
    %p38 = por %p36, %p37
    %p40 = scmp.ne.s32.totalorder %s23, %s39
    %p41 = scmp.eq.s32.totalorder %s15, 0
    %p42 = por %p40, %p41
    %s44 = sadd.s32 %s43, 1
    %p47 = scmp.eq.s32.totalorder %s9, 1
    %p48 = scmp.ne.s32.totalorder %s43, %s45
    %p49 = scmp.eq.s32.totalorder %s9, 0
    %p50 = por %p48, %p49
    %p51 = scmp.ne.s32.totalorder %s43, %s45
    %p52 = scmp.eq.s32.totalorder %s14, 1
    %p53 = por %p51, %p52
    %p54 = scmp.ne.s32.totalorder %s45, %s46
    %p55 = scmp.eq.s32.totalorder %s14, 0
    %p56 = por %p54, %p55
    %p57 = scmp.ne.s32.totalorder %s45, %s46
    %p58 = scmp.eq.s32.totalorder %s15, 1
    %p59 = por %p57, %p58
    %p61 = scmp.ne.s32.totalorder %s46, %s60
    %p62 = scmp.eq.s32.totalorder %s15, 0
    %p63 = por %p61, %p62
    %s65 = sadd.s32 %s64, 1
    %p68 = scmp.eq.s32.totalorder %s9, 1
    %p69 = scmp.ne.s32.totalorder %s64, %s66
    %p70 = scmp.eq.s32.totalorder %s9, 0
    %p71 = por %p69, %p70
    %p72 = scmp.ne.s32.totalorder %s64, %s66
    %p73 = scmp.eq.s32.totalorder %s14, 1
    %p74 = por %p72, %p73
    %p75 = scmp.ne.s32.totalorder %s66, %s67
    %p76 = scmp.eq.s32.totalorder %s14, 0
    %p77 = por %p75, %p76
    %p78 = scmp.ne.s32.totalorder %s66, %s67
    %p79 = scmp.eq.s32.totalorder %s15, 1
    %p80 = por %p78, %p79
    %p82 = scmp.ne.s32.totalorder %s67, %s81
    %p83 = scmp.eq.s32.totalorder %s15, 0
    %p84 = por %p82, %p83
    %s85 = ssub.s32 %s9, %s16
    %p86 = scmp.eq.s32.totalorder %s85, 0
    %s88 = sadd.s32 %s87, 1
    %s89 = scalar_select %p86, %s87, %s88
    %p92 = pneg %p86
    %p93 = scmp.eq.s32.totalorder %s9, 1
    %p94 = por %p92, %p93
    %p95 = scmp.ne.s32.totalorder %s87, %s90
    %p96 = scmp.eq.s32.totalorder %s9, 0
    %p97 = por %p95, %p96
    %p98 = scmp.ne.s32.totalorder %s87, %s90
    %p99 = scmp.eq.s32.totalorder %s14, 1
    %p100 = por %p98, %p99
    %p101 = scmp.ne.s32.totalorder %s90, %s91
    %p102 = scmp.eq.s32.totalorder %s14, 0
    %p103 = por %p101, %p102
    %p104 = scmp.ne.s32.totalorder %s90, %s91
    %p105 = scmp.eq.s32.totalorder %s15, 1
    %p106 = por %p104, %p105
    %p108 = scmp.ne.s32.totalorder %s91, %s107
    %p109 = scmp.eq.s32.totalorder %s15, 0
    %p110 = por %p108, %p109
    %p111 = scmp.le.s32.totalorder 1, %s9
    %p112 = scmp.lt.s32.totalorder %s9, 3
    %p113 = pnand %p111, %p112
    %p114 = pneg %p113
    // Predicated region
    $region9: #{_lambda_.6} parent=5 // pred_check
      _
    $region10: #{_lambda_.6} parent=5 // pred_check_branch
      %116 = sbr.rel (%p113) target = $region12
    $region11: #{_lambda_.6} parent=5 // pred_region
      %s117 = ssub.s32 %s9, 1
      // Predicated region
      $region13: #{_lambda_.6} parent=11 // pred_check
        %p118 = pneg %p56
      $region14: #{_lambda_.6} parent=11 // pred_check_branch
        %120 = sbr.rel (%p118) target = $region16
      $region15: #{_lambda_.6} parent=11 // pred_region
        _
      $region16: #{_lambda_.6} parent=11 // pred_fallthru
        _
      // Predicated region
      $region17: #{_lambda_.6} parent=11 // pred_check
        %p121 = pneg %p77
      $region18: #{_lambda_.6} parent=11 // pred_check_branch
        %123 = sbr.rel (%p121) target = $region20
      $region19: #{_lambda_.6} parent=11 // pred_region
        _
      $region20: #{_lambda_.6} parent=11 // pred_fallthru
        _
    $region12: #{_lambda_.6} parent=5 // pred_fallthru
      _
    %p124 = scmp.lt.s32.totalorder %s9, 2
    // Predicated region
    $region21: #{_lambda_.6} parent=5 // pred_check
      %p125 = pneg %p124
    $region22: #{_lambda_.6} parent=5 // pred_check_branch
      %127 = sbr.rel (%p125) target = $region24
    $region23: #{_lambda_.6} parent=5 // pred_region
      // Predicated region
      $region25: #{_lambda_.6} parent=23 // pred_check
        %p128 = pneg %p29
      $region26: #{_lambda_.6} parent=23 // pred_check_branch
        %130 = sbr.rel (%p128) target = $region28
      $region27: #{_lambda_.6} parent=23 // pred_region
        %p131 = scmp.lt.s32.totalorder %s9, 1
        %s132 = scalar_select %p131, %s9, 1
        %s133 = smul.addr %s132, 20
        %s134 = smul.addr %s133, 4
        %s135 = scalar_lea.vmem %s0, %s134
      $region28: #{_lambda_.6} parent=23 // pred_fallthru
        _
    $region24: #{_lambda_.6} parent=5 // pred_fallthru
      _
    %p136 = scmp.le.s32.totalorder 1, %s9
    %p137 = scmp.lt.s32.totalorder %s9, 3
    %p138 = pnand %p136, %p137
    %p139 = pneg %p138
    // Predicated region
    $region29: #{_lambda_.6} parent=5 // pred_check
      _
    $region30: #{_lambda_.6} parent=5 // pred_check_branch
      %141 = sbr.rel (%p138) target = $region32
    $region31: #{_lambda_.6} parent=5 // pred_region
      %s142 = ssub.s32 %s9, 1
      %p143 = scmp.lt.s32.totalorder %s14, 1
      %s144 = scalar_select %p143, %s14, 1
      %s145 = smul.addr %s144, 20
      %s146 = smul.addr %s145, 4
      %s147 = scalar_lea.vmem %s0, %s146
      %p148 = pneg %p35
      %p149 = pneg %p32
      %p150 = pneg %p56
      %p151 = pneg %p53
      %p152 = pneg %p77
      %p153 = pneg %p74
      %p154 = pneg %p103
      %p155 = pneg %p100
      %p156 = scmp.lt.s32.totalorder %s14, 1
      %s157 = scalar_select %p156, %s14, 1
      %s158 = smul.addr %s157, 8
      %s159 = smul.addr %s158, 8
      %s160 = scalar_lea.vmem %s3, %s159
      %p161 = scmp.lt.s32.totalorder %s14, 1
      %s162 = scalar_select %p161, %s14, 1
      %s163 = smul.addr %s162, 20
      %s164 = smul.addr %s163, 4
      %s165 = scalar_lea.vmem %s0, %s164
      %p166 = scmp.lt.s32.totalorder %s14, 1
      %s167 = scalar_select %p166, %s14, 1
      %s168 = smul.addr %s167, 8
      %s169 = smul.addr %s168, 8
      %s170 = scalar_lea.vmem %s3, %s169
      %v172 = vld [vmem:[%s165] sm:$0xf]
      %v173 = vld [vmem:[%s165 + $0x4] sm:$0x1]
      %v174 = vld [vmem:[%s165 + $0x8] sm:$0xf]
      %v175 = vld [vmem:[%s165 + $0xc] sm:$0x1]
      %v176 = vld [vmem:[%s165 + $0x10] sm:$0xf]
      %v177 = vld [vmem:[%s165 + $0x14] sm:$0x1]
      %v178 = vld [vmem:[%s165 + $0x18] sm:$0xf]
      %v179 = vld [vmem:[%s165 + $0x1c] sm:$0x1]
      %v180 = vld [vmem:[%s165 + $0x20] sm:$0xf]
      %v181 = vld [vmem:[%s165 + $0x24] sm:$0x1]
      %v182 = vld [vmem:[%s165 + $0x28] sm:$0xf]
      %v183 = vld [vmem:[%s165 + $0x2c] sm:$0x1]
      %v184 = vld [vmem:[%s165 + $0x30] sm:$0xf]
      %v185 = vld [vmem:[%s165 + $0x34] sm:$0x1]
      %v186 = vld [vmem:[%s165 + $0x38] sm:$0xf]
      %v187 = vld [vmem:[%s165 + $0x3c] sm:$0x1]
      %v188 = vld [vmem:[%s165 + $0x40] sm:$0xf]
      %v189 = vld [vmem:[%s165 + $0x44] sm:$0x1]
      %v190 = vld [vmem:[%s165 + $0x48] sm:$0xf]
      %v191 = vld [vmem:[%s165 + $0x4c] sm:$0x1]
      %v192 = vunpack.c.l.bf16 %v172
      %v193 = vunpack.c.l.bf16 %v173
      %v194 = vunpack.c.l.bf16 %v174
      %v195 = vunpack.c.l.bf16 %v175
      %v196 = vunpack.c.l.bf16 %v176
      %v197 = vunpack.c.l.bf16 %v177
      %v198 = vunpack.c.l.bf16 %v178
      %v199 = vunpack.c.l.bf16 %v179
      %v200 = vunpack.c.l.bf16 %v180
      %v201 = vunpack.c.l.bf16 %v181
      %v202 = vunpack.c.l.bf16 %v182
      %v203 = vunpack.c.l.bf16 %v183
      %v204 = vunpack.c.l.bf16 %v184
      %v205 = vunpack.c.l.bf16 %v185
      %v206 = vunpack.c.l.bf16 %v186
      %v207 = vunpack.c.l.bf16 %v187
      %v208 = vunpack.c.l.bf16 %v188
      %v209 = vunpack.c.l.bf16 %v189
      %v210 = vunpack.c.l.bf16 %v190
      %v211 = vunpack.c.l.bf16 %v191
      %212 = vst [vmem:[#allocation3] sm:$0xff] %v192
      %213 = vst [vmem:[#allocation3 + $0x8] sm:$0x3] %v193
      %214 = vst [vmem:[#allocation3 + $0x10] sm:$0xff] %v194
      %215 = vst [vmem:[#allocation3 + $0x18] sm:$0x3] %v195
      %216 = vst [vmem:[#allocation3 + $0x20] sm:$0xff] %v196
      %217 = vst [vmem:[#allocation3 + $0x28] sm:$0x3] %v197
      %218 = vst [vmem:[#allocation3 + $0x30] sm:$0xff] %v198
      %219 = vst [vmem:[#allocation3 + $0x38] sm:$0x3] %v199
      %220 = vst [vmem:[#allocation3 + $0x40] sm:$0xff] %v200
      %221 = vst [vmem:[#allocation3 + $0x48] sm:$0x3] %v201
      %222 = vst [vmem:[#allocation3 + $0x50] sm:$0xff] %v202
      %223 = vst [vmem:[#allocation3 + $0x58] sm:$0x3] %v203
      %224 = vst [vmem:[#allocation3 + $0x60] sm:$0xff] %v204
      %225 = vst [vmem:[#allocation3 + $0x68] sm:$0x3] %v205
      %226 = vst [vmem:[#allocation3 + $0x70] sm:$0xff] %v206
      %227 = vst [vmem:[#allocation3 + $0x78] sm:$0x3] %v207
      %228 = vst [vmem:[#allocation3 + $0x80] sm:$0xff] %v208
      %229 = vst [vmem:[#allocation3 + $0x88] sm:$0x3] %v209
      %230 = vst [vmem:[#allocation3 + $0x90] sm:$0xff] %v210
      %231 = vst [vmem:[#allocation3 + $0x98] sm:$0x3] %v211
      %v232 = vld [vmem:[#allocation3] sm:$0xff]
      %v233 = vld [vmem:[#allocation3 + $0x10] sm:$0xff]
      %v234 = vld [vmem:[#allocation3 + $0x20] sm:$0xff]
      %v235 = vld [vmem:[#allocation3 + $0x30] sm:$0xff]
      %v236 = vld [vmem:[#allocation3 + $0x40] sm:$0xff]
      %v237 = vld [vmem:[#allocation3 + $0x50] sm:$0xff]
      %v238 = vld [vmem:[#allocation3 + $0x60] sm:$0xff]
      %v239 = vld [vmem:[#allocation3 + $0x70] sm:$0xff]
      %v240 = vpack.c.bf16 %v233, %v232
      %v241 = vpack.c.bf16 %v235, %v234
      %v242 = vpack.c.bf16 %v237, %v236
      %v243 = vpack.c.bf16 %v239, %v238
      %v244 = vld [vmem:[%s1] sm:$0xf]
      %v245 = vld [vmem:[%s1 + $0x4] sm:$0xf]
      %v246 = vld [vmem:[%s1 + $0x8] sm:$0xf]
      %v247 = vld [vmem:[%s1 + $0xc] sm:$0xf]
      %v248 = vld [vmem:[%s1 + $0x10] sm:$0xf]
      %v249 = vld [vmem:[%s1 + $0x14] sm:$0xf]
      %v250 = vld [vmem:[%s1 + $0x18] sm:$0xf]
      %v251 = vld [vmem:[%s1 + $0x1c] sm:$0xf]
      %v252 = vld [vmem:[%s1 + $0x20] sm:$0xf]
      %v253 = vld [vmem:[%s1 + $0x24] sm:$0xf]
      %v254 = vld [vmem:[%s1 + $0x28] sm:$0xf]
      %v255 = vld [vmem:[%s1 + $0x2c] sm:$0xf]
      %v256 = vld [vmem:[%s1 + $0x30] sm:$0xf]
      %v257 = vld [vmem:[%s1 + $0x34] sm:$0xf]
      %v258 = vld [vmem:[%s1 + $0x38] sm:$0xf]
      %v259 = vld [vmem:[%s1 + $0x3c] sm:$0xf]
      %v276 = vunpack.c.l.b16 %v244
      %v277 = vunpack.c.l.b16 %v245
      %v278 = vunpack.c.l.b16 %v246
      %v279 = vunpack.c.l.b16 %v247
      %v280 = vunpack.c.l.b16 %v248
      %v281 = vunpack.c.l.b16 %v249
      %v282 = vunpack.c.l.b16 %v250
      %v283 = vunpack.c.l.b16 %v251
      %v284 = vunpack.c.l.b16 %v252
      %v285 = vunpack.c.l.b16 %v253
      %v286 = vunpack.c.l.b16 %v254
      %v287 = vunpack.c.l.b16 %v255
      %v288 = vunpack.c.l.b16 %v256
      %v289 = vunpack.c.l.b16 %v257
      %v290 = vunpack.c.l.b16 %v258
      %v291 = vunpack.c.l.b16 %v259
      %v292 = vpack.c.b16 %v277, %v276
      %v293 = vpack.c.b16 %v279, %v278
      %v294 = vpack.c.b16 %v281, %v280
      %v295 = vpack.c.b16 %v283, %v282
      %v296 = vpack.c.b16 %v285, %v284
      %v297 = vpack.c.b16 %v287, %v286
      %v298 = vpack.c.b16 %v289, %v288
      %v299 = vpack.c.b16 %v291, %v290
      %308 = vmatprep.subr.bf16.mxu0 0
      %309 = vmatpush1.bf16.msra.mxu0 %v299
      %310 = vmatprep.subr.bf16.mxu0 0
      %311 = vmatpush1.bf16.msra.mxu0 %v298
      %312 = vmatprep.subr.bf16.mxu0 0
      %313 = vmatpush1.bf16.msra.mxu0 %v297
      %314 = vmatprep.subr.bf16.mxu0 0
      %315 = vmatpush1.bf16.msra.mxu0 %v296
      %316 = vmatprep.subr.bf16.mxu0 0
      %317 = vmatpush1.bf16.msra.mxu0 %v295
      %318 = vmatprep.subr.bf16.mxu0 0
      %319 = vmatpush1.bf16.msra.mxu0 %v294
      %320 = vmatprep.subr.bf16.mxu0 0
      %321 = vmatpush1.bf16.msra.mxu0 %v293
      %322 = vmatprep.subr.bf16.mxu0 0
      %323 = vmatpush1.bf16.msra.mxu0 %v292
      %324 = vmatprep.subr.bf16.mxu0 0
      %325 = vmatpush2.bf16.msra.mxu0 0
      %326 = vmatprep.subr.bf16.mxu0 0
      %327 = vmatpush2.bf16.msra.mxu0 0
      %328 = vmatprep.subr.bf16.mxu0 0
      %329 = vmatpush2.bf16.msra.mxu0 0
      %330 = vmatprep.subr.bf16.mxu0 0
      %331 = vmatpush2.bf16.msra.mxu0 0
      %332 = vmatprep.subr.bf16.mxu0 0
      %333 = vmatpush2.bf16.msra.mxu0 0
      %334 = vmatprep.subr.bf16.mxu0 0
      %335 = vmatpush2.bf16.msra.mxu0 0
      %336 = vmatprep.subr.bf16.mxu0 0
      %337 = vmatpush2.bf16.msra.mxu0 0
      %338 = vmatprep.subr.bf16.mxu0 0
      %339 = vmatpush2.bf16.msra.mxu0 0
      %340 = vmatprep.mubr.bf16.mxu0 0
      %341 = vmatmul.mubr.bf16.gmra.mxu0 %v240
      %v342 = vpop.f32.mrf.mxu0
      %v343 = vadd.f32 0.0, %v342
      %v344 = vpop.f32.mrf.mxu0
      %v345 = vpop.f32.mrf.mxu0
      %v346 = vadd.f32 0.0, %v345
      %v347 = vpop.f32.mrf.mxu0
      %348 = vmatprep.mubr.bf16.mxu0 0
      %349 = vmatmul.mubr.bf16.gmra.mxu0 %v241
      %v350 = vpop.f32.mrf.mxu0
      %v351 = vadd.f32 0.0, %v350
      %v352 = vpop.f32.mrf.mxu0
      %v353 = vpop.f32.mrf.mxu0
      %v354 = vadd.f32 0.0, %v353
      %v355 = vpop.f32.mrf.mxu0
      %356 = vmatprep.mubr.bf16.mxu0 0
      %357 = vmatmul.mubr.bf16.gmra.mxu0 %v242
      %v358 = vpop.f32.mrf.mxu0
      %v359 = vadd.f32 0.0, %v358
      %v360 = vpop.f32.mrf.mxu0
      %v361 = vpop.f32.mrf.mxu0
      %v362 = vadd.f32 0.0, %v361
      %v363 = vpop.f32.mrf.mxu0
      %364 = vmatprep.mubr.bf16.mxu0 0
      %365 = vmatmul.mubr.bf16.gmra.mxu0 %v243
      %v366 = vpop.f32.mrf.mxu0
      %v367 = vadd.f32 0.0, %v366
      %v368 = vpop.f32.mrf.mxu0
      %v369 = vpop.f32.mrf.mxu0
      %v370 = vadd.f32 0.0, %v369
      %v371 = vpop.f32.mrf.mxu0
      %372 = vdwg.mxu0
      %373 = vst [vmem:[#allocation2] sm:$0xff] %v343
      %374 = vst [vmem:[#allocation2 + $0x8] sm:$0xff] %v346
      %375 = vst [vmem:[#allocation2 + $0x10] sm:$0xff] %v351
      %376 = vst [vmem:[#allocation2 + $0x18] sm:$0xff] %v354
      %377 = vst [vmem:[#allocation2 + $0x20] sm:$0xff] %v359
      %378 = vst [vmem:[#allocation2 + $0x28] sm:$0xff] %v362
      %379 = vst [vmem:[#allocation2 + $0x30] sm:$0xff] %v367
      %380 = vst [vmem:[#allocation2 + $0x38] sm:$0xff] %v370
      %v381 = vld [vmem:[#allocation3 + $0x1] sm:$0xff]
      %v382 = vld [vmem:[#allocation3 + $0x11] sm:$0xff]
      %v383 = vld [vmem:[#allocation3 + $0x21] sm:$0xff]
      %v384 = vld [vmem:[#allocation3 + $0x31] sm:$0xff]
      %v385 = vld [vmem:[#allocation3 + $0x41] sm:$0xff]
      %v386 = vld [vmem:[#allocation3 + $0x51] sm:$0xff]
      %v387 = vld [vmem:[#allocation3 + $0x61] sm:$0xff]
      %v388 = vld [vmem:[#allocation3 + $0x71] sm:$0xff]
      %v389 = vpack.c.bf16 %v382, %v381
      %v390 = vpack.c.bf16 %v384, %v383
      %v391 = vpack.c.bf16 %v386, %v385
      %v392 = vpack.c.bf16 %v388, %v387
      %s393 = scalar_lea.vmem %s1, 64
      %v394 = vld [vmem:[%s393] sm:$0xf]
      %v395 = vld [vmem:[%s393 + $0x4] sm:$0xf]
      %v396 = vld [vmem:[%s393 + $0x8] sm:$0xf]
      %v397 = vld [vmem:[%s393 + $0xc] sm:$0xf]
      %v398 = vld [vmem:[%s393 + $0x10] sm:$0xf]
      %v399 = vld [vmem:[%s393 + $0x14] sm:$0xf]
      %v400 = vld [vmem:[%s393 + $0x18] sm:$0xf]
      %v401 = vld [vmem:[%s393 + $0x1c] sm:$0xf]
      %v402 = vld [vmem:[%s393 + $0x20] sm:$0xf]
      %v403 = vld [vmem:[%s393 + $0x24] sm:$0xf]
      %v404 = vld [vmem:[%s393 + $0x28] sm:$0xf]
      %v405 = vld [vmem:[%s393 + $0x2c] sm:$0xf]
      %v406 = vld [vmem:[%s393 + $0x30] sm:$0xf]
      %v407 = vld [vmem:[%s393 + $0x34] sm:$0xf]
      %v408 = vld [vmem:[%s393 + $0x38] sm:$0xf]
      %v409 = vld [vmem:[%s393 + $0x3c] sm:$0xf]
      %v426 = vunpack.c.l.b16 %v394
      %v427 = vunpack.c.l.b16 %v395
      %v428 = vunpack.c.l.b16 %v396
      %v429 = vunpack.c.l.b16 %v397
      %v430 = vunpack.c.l.b16 %v398
      %v431 = vunpack.c.l.b16 %v399
      %v432 = vunpack.c.l.b16 %v400
      %v433 = vunpack.c.l.b16 %v401
      %v434 = vunpack.c.l.b16 %v402
      %v435 = vunpack.c.l.b16 %v403
      %v436 = vunpack.c.l.b16 %v404
      %v437 = vunpack.c.l.b16 %v405
      %v438 = vunpack.c.l.b16 %v406
      %v439 = vunpack.c.l.b16 %v407
      %v440 = vunpack.c.l.b16 %v408
      %v441 = vunpack.c.l.b16 %v409
      %v442 = vpack.c.b16 %v427, %v426
      %v443 = vpack.c.b16 %v429, %v428
      %v444 = vpack.c.b16 %v431, %v430
      %v445 = vpack.c.b16 %v433, %v432
      %v446 = vpack.c.b16 %v435, %v434
      %v447 = vpack.c.b16 %v437, %v436
      %v448 = vpack.c.b16 %v439, %v438
      %v449 = vpack.c.b16 %v441, %v440
      %458 = vmatprep.subr.bf16.mxu0 0
      %459 = vmatpush1.bf16.msra.mxu0 %v449
      %460 = vmatprep.subr.bf16.mxu0 0
      %461 = vmatpush1.bf16.msra.mxu0 %v448
      %462 = vmatprep.subr.bf16.mxu0 0
      %463 = vmatpush1.bf16.msra.mxu0 %v447
      %464 = vmatprep.subr.bf16.mxu0 0
      %465 = vmatpush1.bf16.msra.mxu0 %v446
      %466 = vmatprep.subr.bf16.mxu0 0
      %467 = vmatpush1.bf16.msra.mxu0 %v445
      %468 = vmatprep.subr.bf16.mxu0 0
      %469 = vmatpush1.bf16.msra.mxu0 %v444
      %470 = vmatprep.subr.bf16.mxu0 0
      %471 = vmatpush1.bf16.msra.mxu0 %v443
      %472 = vmatprep.subr.bf16.mxu0 0
      %473 = vmatpush1.bf16.msra.mxu0 %v442
      %474 = vmatprep.subr.bf16.mxu0 0
      %475 = vmatpush2.bf16.msra.mxu0 0
      %476 = vmatprep.subr.bf16.mxu0 0
      %477 = vmatpush2.bf16.msra.mxu0 0
      %478 = vmatprep.subr.bf16.mxu0 0
      %479 = vmatpush2.bf16.msra.mxu0 0
      %480 = vmatprep.subr.bf16.mxu0 0
      %481 = vmatpush2.bf16.msra.mxu0 0
      %482 = vmatprep.subr.bf16.mxu0 0
      %483 = vmatpush2.bf16.msra.mxu0 0
      %484 = vmatprep.subr.bf16.mxu0 0
      %485 = vmatpush2.bf16.msra.mxu0 0
      %486 = vmatprep.subr.bf16.mxu0 0
      %487 = vmatpush2.bf16.msra.mxu0 0
      %488 = vmatprep.subr.bf16.mxu0 0
      %489 = vmatpush2.bf16.msra.mxu0 0
      %490 = vmatprep.mubr.bf16.mxu0 0
      %491 = vmatmul.mubr.bf16.gmra.mxu0 %v389
      %v492 = vpop.f32.mrf.mxu0
      %v493 = vadd.f32 0.0, %v492
      %v494 = vpop.f32.mrf.mxu0
      %v495 = vpop.f32.mrf.mxu0
      %v496 = vadd.f32 0.0, %v495
      %v497 = vpop.f32.mrf.mxu0
      %498 = vmatprep.mubr.bf16.mxu0 0
      %499 = vmatmul.mubr.bf16.gmra.mxu0 %v390
      %v500 = vpop.f32.mrf.mxu0
      %v501 = vadd.f32 0.0, %v500
      %v502 = vpop.f32.mrf.mxu0
      %v503 = vpop.f32.mrf.mxu0
      %v504 = vadd.f32 0.0, %v503
      %v505 = vpop.f32.mrf.mxu0
      %506 = vmatprep.mubr.bf16.mxu0 0
      %507 = vmatmul.mubr.bf16.gmra.mxu0 %v391
      %v508 = vpop.f32.mrf.mxu0
      %v509 = vadd.f32 0.0, %v508
      %v510 = vpop.f32.mrf.mxu0
      %v511 = vpop.f32.mrf.mxu0
      %v512 = vadd.f32 0.0, %v511
      %v513 = vpop.f32.mrf.mxu0
      %514 = vmatprep.mubr.bf16.mxu0 0
      %515 = vmatmul.mubr.bf16.gmra.mxu0 %v392
      %v516 = vpop.f32.mrf.mxu0
      %v517 = vadd.f32 0.0, %v516
      %v518 = vpop.f32.mrf.mxu0
      %v519 = vpop.f32.mrf.mxu0
      %v520 = vadd.f32 0.0, %v519
      %v521 = vpop.f32.mrf.mxu0
      %522 = vdwg.mxu0
      %v523 = vld [vmem:[#allocation2] sm:$0xff]
      %v524 = vld [vmem:[#allocation2 + $0x8] sm:$0xff]
      %v525 = vld [vmem:[#allocation2 + $0x10] sm:$0xff]
      %v526 = vld [vmem:[#allocation2 + $0x18] sm:$0xff]
      %v527 = vld [vmem:[#allocation2 + $0x20] sm:$0xff]
      %v528 = vld [vmem:[#allocation2 + $0x28] sm:$0xff]
      %v529 = vld [vmem:[#allocation2 + $0x30] sm:$0xff]
      %v530 = vld [vmem:[#allocation2 + $0x38] sm:$0xff]
      %v531 = vadd.f32 %v523, %v493
      %v532 = vadd.f32 %v524, %v496
      %v533 = vadd.f32 %v525, %v501
      %v534 = vadd.f32 %v526, %v504
      %v535 = vadd.f32 %v527, %v509
      %v536 = vadd.f32 %v528, %v512
      %v537 = vadd.f32 %v529, %v517
      %v538 = vadd.f32 %v530, %v520
      %539 = vst [vmem:[#allocation2] sm:$0xff] %v531
      %540 = vst [vmem:[#allocation2 + $0x8] sm:$0xff] %v532
      %541 = vst [vmem:[#allocation2 + $0x10] sm:$0xff] %v533
      %542 = vst [vmem:[#allocation2 + $0x18] sm:$0xff] %v534
      %543 = vst [vmem:[#allocation2 + $0x20] sm:$0xff] %v535
      %544 = vst [vmem:[#allocation2 + $0x28] sm:$0xff] %v536
      %545 = vst [vmem:[#allocation2 + $0x30] sm:$0xff] %v537
      %546 = vst [vmem:[#allocation2 + $0x38] sm:$0xff] %v538
      %v547 = vld [vmem:[#allocation3 + $0x2] sm:$0xff]
      %v548 = vld [vmem:[#allocation3 + $0x12] sm:$0xff]
      %v549 = vld [vmem:[#allocation3 + $0x22] sm:$0xff]
      %v550 = vld [vmem:[#allocation3 + $0x32] sm:$0xff]
      %v551 = vld [vmem:[#allocation3 + $0x42] sm:$0xff]
      %v552 = vld [vmem:[#allocation3 + $0x52] sm:$0xff]
      %v553 = vld [vmem:[#allocation3 + $0x62] sm:$0xff]
      %v554 = vld [vmem:[#allocation3 + $0x72] sm:$0xff]
      %v555 = vpack.c.bf16 %v548, %v547
      %v556 = vpack.c.bf16 %v550, %v549
      %v557 = vpack.c.bf16 %v552, %v551
      %v558 = vpack.c.bf16 %v554, %v553
      %s559 = scalar_lea.vmem %s1, 128
      %v560 = vld [vmem:[%s559] sm:$0xf]
      %v561 = vld [vmem:[%s559 + $0x4] sm:$0xf]
      %v562 = vld [vmem:[%s559 + $0x8] sm:$0xf]
      %v563 = vld [vmem:[%s559 + $0xc] sm:$0xf]
      %v564 = vld [vmem:[%s559 + $0x10] sm:$0xf]
      %v565 = vld [vmem:[%s559 + $0x14] sm:$0xf]
      %v566 = vld [vmem:[%s559 + $0x18] sm:$0xf]
      %v567 = vld [vmem:[%s559 + $0x1c] sm:$0xf]
      %v568 = vld [vmem:[%s559 + $0x20] sm:$0xf]
      %v569 = vld [vmem:[%s559 + $0x24] sm:$0xf]
      %v570 = vld [vmem:[%s559 + $0x28] sm:$0xf]
      %v571 = vld [vmem:[%s559 + $0x2c] sm:$0xf]
      %v572 = vld [vmem:[%s559 + $0x30] sm:$0xf]
      %v573 = vld [vmem:[%s559 + $0x34] sm:$0xf]
      %v574 = vld [vmem:[%s559 + $0x38] sm:$0xf]
      %v575 = vld [vmem:[%s559 + $0x3c] sm:$0xf]
      %v592 = vunpack.c.l.b16 %v560
      %v593 = vunpack.c.l.b16 %v561
      %v594 = vunpack.c.l.b16 %v562
      %v595 = vunpack.c.l.b16 %v563
      %v596 = vunpack.c.l.b16 %v564
      %v597 = vunpack.c.l.b16 %v565
      %v598 = vunpack.c.l.b16 %v566
      %v599 = vunpack.c.l.b16 %v567
      %v600 = vunpack.c.l.b16 %v568
      %v601 = vunpack.c.l.b16 %v569
      %v602 = vunpack.c.l.b16 %v570
      %v603 = vunpack.c.l.b16 %v571
      %v604 = vunpack.c.l.b16 %v572
      %v605 = vunpack.c.l.b16 %v573
      %v606 = vunpack.c.l.b16 %v574
      %v607 = vunpack.c.l.b16 %v575
      %v608 = vpack.c.b16 %v593, %v592
      %v609 = vpack.c.b16 %v595, %v594
      %v610 = vpack.c.b16 %v597, %v596
      %v611 = vpack.c.b16 %v599, %v598
      %v612 = vpack.c.b16 %v601, %v600
      %v613 = vpack.c.b16 %v603, %v602
      %v614 = vpack.c.b16 %v605, %v604
      %v615 = vpack.c.b16 %v607, %v606
      %624 = vmatprep.subr.bf16.mxu0 0
      %625 = vmatpush1.bf16.msra.mxu0 %v615
      %626 = vmatprep.subr.bf16.mxu0 0
      %627 = vmatpush1.bf16.msra.mxu0 %v614
      %628 = vmatprep.subr.bf16.mxu0 0
      %629 = vmatpush1.bf16.msra.mxu0 %v613
      %630 = vmatprep.subr.bf16.mxu0 0
      %631 = vmatpush1.bf16.msra.mxu0 %v612
      %632 = vmatprep.subr.bf16.mxu0 0
      %633 = vmatpush1.bf16.msra.mxu0 %v611
      %634 = vmatprep.subr.bf16.mxu0 0
      %635 = vmatpush1.bf16.msra.mxu0 %v610
      %636 = vmatprep.subr.bf16.mxu0 0
      %637 = vmatpush1.bf16.msra.mxu0 %v609
      %638 = vmatprep.subr.bf16.mxu0 0
      %639 = vmatpush1.bf16.msra.mxu0 %v608
      %640 = vmatprep.subr.bf16.mxu0 0
      %641 = vmatpush2.bf16.msra.mxu0 0
      %642 = vmatprep.subr.bf16.mxu0 0
      %643 = vmatpush2.bf16.msra.mxu0 0
      %644 = vmatprep.subr.bf16.mxu0 0
      %645 = vmatpush2.bf16.msra.mxu0 0
      %646 = vmatprep.subr.bf16.mxu0 0
      %647 = vmatpush2.bf16.msra.mxu0 0
      %648 = vmatprep.subr.bf16.mxu0 0
      %649 = vmatpush2.bf16.msra.mxu0 0
      %650 = vmatprep.subr.bf16.mxu0 0
      %651 = vmatpush2.bf16.msra.mxu0 0
      %652 = vmatprep.subr.bf16.mxu0 0
      %653 = vmatpush2.bf16.msra.mxu0 0
      %654 = vmatprep.subr.bf16.mxu0 0
      %655 = vmatpush2.bf16.msra.mxu0 0
      %656 = vmatprep.mubr.bf16.mxu0 0
      %657 = vmatmul.mubr.bf16.gmra.mxu0 %v555
      %v658 = vpop.f32.mrf.mxu0
      %v659 = vadd.f32 0.0, %v658
      %v660 = vpop.f32.mrf.mxu0
      %v661 = vpop.f32.mrf.mxu0
      %v662 = vadd.f32 0.0, %v661
      %v663 = vpop.f32.mrf.mxu0
      %664 = vmatprep.mubr.bf16.mxu0 0
      %665 = vmatmul.mubr.bf16.gmra.mxu0 %v556
      %v666 = vpop.f32.mrf.mxu0
      %v667 = vadd.f32 0.0, %v666
      %v668 = vpop.f32.mrf.mxu0
      %v669 = vpop.f32.mrf.mxu0
      %v670 = vadd.f32 0.0, %v669
      %v671 = vpop.f32.mrf.mxu0
      %672 = vmatprep.mubr.bf16.mxu0 0
      %673 = vmatmul.mubr.bf16.gmra.mxu0 %v557
      %v674 = vpop.f32.mrf.mxu0
      %v675 = vadd.f32 0.0, %v674
      %v676 = vpop.f32.mrf.mxu0
      %v677 = vpop.f32.mrf.mxu0
      %v678 = vadd.f32 0.0, %v677
      %v679 = vpop.f32.mrf.mxu0
      %680 = vmatprep.mubr.bf16.mxu0 0
      %681 = vmatmul.mubr.bf16.gmra.mxu0 %v558
      %v682 = vpop.f32.mrf.mxu0
      %v683 = vadd.f32 0.0, %v682
      %v684 = vpop.f32.mrf.mxu0
      %v685 = vpop.f32.mrf.mxu0
      %v686 = vadd.f32 0.0, %v685
      %v687 = vpop.f32.mrf.mxu0
      %688 = vdwg.mxu0
      %v689 = vld [vmem:[#allocation2] sm:$0xff]
      %v690 = vld [vmem:[#allocation2 + $0x8] sm:$0xff]
      %v691 = vld [vmem:[#allocation2 + $0x10] sm:$0xff]
      %v692 = vld [vmem:[#allocation2 + $0x18] sm:$0xff]
      %v693 = vld [vmem:[#allocation2 + $0x20] sm:$0xff]
      %v694 = vld [vmem:[#allocation2 + $0x28] sm:$0xff]
      %v695 = vld [vmem:[#allocation2 + $0x30] sm:$0xff]
      %v696 = vld [vmem:[#allocation2 + $0x38] sm:$0xff]
      %v697 = vadd.f32 %v689, %v659
      %v698 = vadd.f32 %v690, %v662
      %v699 = vadd.f32 %v691, %v667
      %v700 = vadd.f32 %v692, %v670
      %v701 = vadd.f32 %v693, %v675
      %v702 = vadd.f32 %v694, %v678
      %v703 = vadd.f32 %v695, %v683
      %v704 = vadd.f32 %v696, %v686
      %705 = vst [vmem:[#allocation2] sm:$0xff] %v697
      %706 = vst [vmem:[#allocation2 + $0x8] sm:$0xff] %v698
      %707 = vst [vmem:[#allocation2 + $0x10] sm:$0xff] %v699
      %708 = vst [vmem:[#allocation2 + $0x18] sm:$0xff] %v700
      %709 = vst [vmem:[#allocation2 + $0x20] sm:$0xff] %v701
      %710 = vst [vmem:[#allocation2 + $0x28] sm:$0xff] %v702
      %711 = vst [vmem:[#allocation2 + $0x30] sm:$0xff] %v703
      %712 = vst [vmem:[#allocation2 + $0x38] sm:$0xff] %v704
      %s713 = scalar_lea.vmem [#allocation3], 16
      %v714 = vld [vmem:[%s713] sm:$0xff]
      %v715 = vld [vmem:[%s713 + $0x10] sm:$0xff]
      %v716 = vld [vmem:[%s713 + $0x20] sm:$0xff]
      %v717 = vld [vmem:[%s713 + $0x30] sm:$0xff]
      %v718 = vld [vmem:[%s713 + $0x40] sm:$0xff]
      %v719 = vld [vmem:[%s713 + $0x50] sm:$0xff]
      %v720 = vld [vmem:[%s713 + $0x60] sm:$0xff]
      %v721 = vld [vmem:[%s713 + $0x70] sm:$0xff]
      %v722 = vpack.c.bf16 %v715, %v714
      %v723 = vpack.c.bf16 %v717, %v716
      %v724 = vpack.c.bf16 %v719, %v718
      %v725 = vpack.c.bf16 %v721, %v720
      %s726 = scalar_lea.vmem %s1, 192
      %v727 = vld [vmem:[%s726] sm:$0xf]
      %v728 = vld [vmem:[%s726 + $0x4] sm:$0xf]
      %v729 = vld [vmem:[%s726 + $0x8] sm:$0xf]
      %v730 = vld [vmem:[%s726 + $0xc] sm:$0xf]
      %v731 = vld [vmem:[%s726 + $0x10] sm:$0xf]
      %v732 = vld [vmem:[%s726 + $0x14] sm:$0xf]
      %v733 = vld [vmem:[%s726 + $0x18] sm:$0xf]
      %v734 = vld [vmem:[%s726 + $0x1c] sm:$0xf]
      %v735 = vld [vmem:[%s726 + $0x20] sm:$0xf]
      %v736 = vld [vmem:[%s726 + $0x24] sm:$0xf]
      %v737 = vld [vmem:[%s726 + $0x28] sm:$0xf]
      %v738 = vld [vmem:[%s726 + $0x2c] sm:$0xf]
      %v739 = vld [vmem:[%s726 + $0x30] sm:$0xf]
      %v740 = vld [vmem:[%s726 + $0x34] sm:$0xf]
      %v741 = vld [vmem:[%s726 + $0x38] sm:$0xf]
      %v742 = vld [vmem:[%s726 + $0x3c] sm:$0xf]
      %v759 = vunpack.c.l.b16 %v727
      %v760 = vunpack.c.l.b16 %v728
      %v761 = vunpack.c.l.b16 %v729
      %v762 = vunpack.c.l.b16 %v730
      %v763 = vunpack.c.l.b16 %v731
      %v764 = vunpack.c.l.b16 %v732
      %v765 = vunpack.c.l.b16 %v733
      %v766 = vunpack.c.l.b16 %v734
      %v767 = vunpack.c.l.b16 %v735
      %v768 = vunpack.c.l.b16 %v736
      %v769 = vunpack.c.l.b16 %v737
      %v770 = vunpack.c.l.b16 %v738
      %v771 = vunpack.c.l.b16 %v739
      %v772 = vunpack.c.l.b16 %v740
      %v773 = vunpack.c.l.b16 %v741
      %v774 = vunpack.c.l.b16 %v742
      %v775 = vpack.c.b16 %v760, %v759
      %v776 = vpack.c.b16 %v762, %v761
      %v777 = vpack.c.b16 %v764, %v763
      %v778 = vpack.c.b16 %v766, %v765
      %v779 = vpack.c.b16 %v768, %v767
      %v780 = vpack.c.b16 %v770, %v769
      %v781 = vpack.c.b16 %v772, %v771
      %v782 = vpack.c.b16 %v774, %v773
      %791 = vmatprep.subr.bf16.mxu0 0
      %792 = vmatpush1.bf16.msra.mxu0 %v782
      %793 = vmatprep.subr.bf16.mxu0 0
      %794 = vmatpush1.bf16.msra.mxu0 %v781
      %795 = vmatprep.subr.bf16.mxu0 0
      %796 = vmatpush1.bf16.msra.mxu0 %v780
      %797 = vmatprep.subr.bf16.mxu0 0
      %798 = vmatpush1.bf16.msra.mxu0 %v779
      %799 = vmatprep.subr.bf16.mxu0 0
      %800 = vmatpush1.bf16.msra.mxu0 %v778
      %801 = vmatprep.subr.bf16.mxu0 0
      %802 = vmatpush1.bf16.msra.mxu0 %v777
      %803 = vmatprep.subr.bf16.mxu0 0
      %804 = vmatpush1.bf16.msra.mxu0 %v776
      %805 = vmatprep.subr.bf16.mxu0 0
      %806 = vmatpush1.bf16.msra.mxu0 %v775
      %807 = vmatprep.subr.bf16.mxu0 0
      %808 = vmatpush2.bf16.msra.mxu0 0
      %809 = vmatprep.subr.bf16.mxu0 0
      %810 = vmatpush2.bf16.msra.mxu0 0
      %811 = vmatprep.subr.bf16.mxu0 0
      %812 = vmatpush2.bf16.msra.mxu0 0
      %813 = vmatprep.subr.bf16.mxu0 0
      %814 = vmatpush2.bf16.msra.mxu0 0
      %815 = vmatprep.subr.bf16.mxu0 0
      %816 = vmatpush2.bf16.msra.mxu0 0
      %817 = vmatprep.subr.bf16.mxu0 0
      %818 = vmatpush2.bf16.msra.mxu0 0
      %819 = vmatprep.subr.bf16.mxu0 0
      %820 = vmatpush2.bf16.msra.mxu0 0
      %821 = vmatprep.subr.bf16.mxu0 0
      %822 = vmatpush2.bf16.msra.mxu0 0
      %823 = vmatprep.mubr.bf16.mxu0 0
      %824 = vmatmul.mubr.bf16.gmra.mxu0 %v722
      %v825 = vpop.f32.mrf.mxu0
      %v826 = vadd.f32 0.0, %v825
      %v827 = vpop.f32.mrf.mxu0
      %v828 = vpop.f32.mrf.mxu0
      %v829 = vadd.f32 0.0, %v828
      %v830 = vpop.f32.mrf.mxu0
      %831 = vmatprep.mubr.bf16.mxu0 0
      %832 = vmatmul.mubr.bf16.gmra.mxu0 %v723
      %v833 = vpop.f32.mrf.mxu0
      %v834 = vadd.f32 0.0, %v833
      %v835 = vpop.f32.mrf.mxu0
      %v836 = vpop.f32.mrf.mxu0
      %v837 = vadd.f32 0.0, %v836
      %v838 = vpop.f32.mrf.mxu0
      %839 = vmatprep.mubr.bf16.mxu0 0
      %840 = vmatmul.mubr.bf16.gmra.mxu0 %v724
      %v841 = vpop.f32.mrf.mxu0
      %v842 = vadd.f32 0.0, %v841
      %v843 = vpop.f32.mrf.mxu0
      %v844 = vpop.f32.mrf.mxu0
      %v845 = vadd.f32 0.0, %v844
      %v846 = vpop.f32.mrf.mxu0
      %847 = vmatprep.mubr.bf16.mxu0 0
      %848 = vmatmul.mubr.bf16.gmra.mxu0 %v725
      %v849 = vpop.f32.mrf.mxu0
      %v850 = vadd.f32 0.0, %v849
      %v851 = vpop.f32.mrf.mxu0
      %v852 = vpop.f32.mrf.mxu0
      %v853 = vadd.f32 0.0, %v852
      %v854 = vpop.f32.mrf.mxu0
      %855 = vdwg.mxu0
      %v856 = vld [vmem:[#allocation2] sm:$0xff]
      %v857 = vld [vmem:[#allocation2 + $0x8] sm:$0xff]
      %v858 = vld [vmem:[#allocation2 + $0x10] sm:$0xff]
      %v859 = vld [vmem:[#allocation2 + $0x18] sm:$0xff]
      %v860 = vld [vmem:[#allocation2 + $0x20] sm:$0xff]
      %v861 = vld [vmem:[#allocation2 + $0x28] sm:$0xff]
      %v862 = vld [vmem:[#allocation2 + $0x30] sm:$0xff]
      %v863 = vld [vmem:[#allocation2 + $0x38] sm:$0xff]
      %v864 = vadd.f32 %v856, %v826
      %v865 = vadd.f32 %v857, %v829
      %v866 = vadd.f32 %v858, %v834
      %v867 = vadd.f32 %v859, %v837
      %v868 = vadd.f32 %v860, %v842
      %v869 = vadd.f32 %v861, %v845
      %v870 = vadd.f32 %v862, %v850
      %v871 = vadd.f32 %v863, %v853
      %872 = vst [vmem:[#allocation2] sm:$0xff] %v864
      %873 = vst [vmem:[#allocation2 + $0x8] sm:$0xff] %v865
      %874 = vst [vmem:[#allocation2 + $0x10] sm:$0xff] %v866
      %875 = vst [vmem:[#allocation2 + $0x18] sm:$0xff] %v867
      %876 = vst [vmem:[#allocation2 + $0x20] sm:$0xff] %v868
      %877 = vst [vmem:[#allocation2 + $0x28] sm:$0xff] %v869
      %878 = vst [vmem:[#allocation2 + $0x30] sm:$0xff] %v870
      %879 = vst [vmem:[#allocation2 + $0x38] sm:$0xff] %v871
      %v880 = vld [vmem:[%s713 + $0x1] sm:$0xff]
      %v881 = vld [vmem:[%s713 + $0x11] sm:$0xff]
      %v882 = vld [vmem:[%s713 + $0x21] sm:$0xff]
      %v883 = vld [vmem:[%s713 + $0x31] sm:$0xff]
      %v884 = vld [vmem:[%s713 + $0x41] sm:$0xff]
      %v885 = vld [vmem:[%s713 + $0x51] sm:$0xff]
      %v886 = vld [vmem:[%s713 + $0x61] sm:$0xff]
      %v887 = vld [vmem:[%s713 + $0x71] sm:$0xff]
      %v888 = vpack.c.bf16 %v881, %v880
      %v889 = vpack.c.bf16 %v883, %v882
      %v890 = vpack.c.bf16 %v885, %v884
      %v891 = vpack.c.bf16 %v887, %v886
      %s892 = scalar_lea.vmem %s1, 256
      %v893 = vld [vmem:[%s892] sm:$0xf]
      %v894 = vld [vmem:[%s892 + $0x4] sm:$0xf]
      %v895 = vld [vmem:[%s892 + $0x8] sm:$0xf]
      %v896 = vld [vmem:[%s892 + $0xc] sm:$0xf]
      %v897 = vld [vmem:[%s892 + $0x10] sm:$0xf]
      %v898 = vld [vmem:[%s892 + $0x14] sm:$0xf]
      %v899 = vld [vmem:[%s892 + $0x18] sm:$0xf]
      %v900 = vld [vmem:[%s892 + $0x1c] sm:$0xf]
      %v901 = vld [vmem:[%s892 + $0x20] sm:$0xf]
      %v902 = vld [vmem:[%s892 + $0x24] sm:$0xf]
      %v903 = vld [vmem:[%s892 + $0x28] sm:$0xf]
      %v904 = vld [vmem:[%s892 + $0x2c] sm:$0xf]
      %v905 = vld [vmem:[%s892 + $0x30] sm:$0xf]
      %v906 = vld [vmem:[%s892 + $0x34] sm:$0xf]
      %v907 = vld [vmem:[%s892 + $0x38] sm:$0xf]
      %v908 = vld [vmem:[%s892 + $0x3c] sm:$0xf]
      %v925 = vunpack.c.l.b16 %v893
      %v926 = vunpack.c.l.b16 %v894
      %v927 = vunpack.c.l.b16 %v895
      %v928 = vunpack.c.l.b16 %v896
      %v929 = vunpack.c.l.b16 %v897
      %v930 = vunpack.c.l.b16 %v898
      %v931 = vunpack.c.l.b16 %v899
      %v932 = vunpack.c.l.b16 %v900
      %v933 = vunpack.c.l.b16 %v901
      %v934 = vunpack.c.l.b16 %v902
      %v935 = vunpack.c.l.b16 %v903
      %v936 = vunpack.c.l.b16 %v904
      %v937 = vunpack.c.l.b16 %v905
      %v938 = vunpack.c.l.b16 %v906
      %v939 = vunpack.c.l.b16 %v907
      %v940 = vunpack.c.l.b16 %v908
      %v941 = vpack.c.b16 %v926, %v925
      %v942 = vpack.c.b16 %v928, %v927
      %v943 = vpack.c.b16 %v930, %v929
      %v944 = vpack.c.b16 %v932, %v931
      %v945 = vpack.c.b16 %v934, %v933
      %v946 = vpack.c.b16 %v936, %v935
      %v947 = vpack.c.b16 %v938, %v937
      %v948 = vpack.c.b16 %v940, %v939
      %957 = vmatprep.subr.bf16.mxu0 0
      %958 = vmatpush1.bf16.msra.mxu0 %v948
      %959 = vmatprep.subr.bf16.mxu0 0
      %960 = vmatpush1.bf16.msra.mxu0 %v947
      %961 = vmatprep.subr.bf16.mxu0 0
      %962 = vmatpush1.bf16.msra.mxu0 %v946
      %963 = vmatprep.subr.bf16.mxu0 0
      %964 = vmatpush1.bf16.msra.mxu0 %v945
      %965 = vmatprep.subr.bf16.mxu0 0
      %966 = vmatpush1.bf16.msra.mxu0 %v944
      %967 = vmatprep.subr.bf16.mxu0 0
      %968 = vmatpush1.bf16.msra.mxu0 %v943
      %969 = vmatprep.subr.bf16.mxu0 0
      %970 = vmatpush1.bf16.msra.mxu0 %v942
      %971 = vmatprep.subr.bf16.mxu0 0
      %972 = vmatpush1.bf16.msra.mxu0 %v941
      %973 = vmatprep.subr.bf16.mxu0 0
      %974 = vmatpush2.bf16.msra.mxu0 0
      %975 = vmatprep.subr.bf16.mxu0 0
      %976 = vmatpush2.bf16.msra.mxu0 0
      %977 = vmatprep.subr.bf16.mxu0 0
      %978 = vmatpush2.bf16.msra.mxu0 0
      %979 = vmatprep.subr.bf16.mxu0 0
      %980 = vmatpush2.bf16.msra.mxu0 0
      %981 = vmatprep.subr.bf16.mxu0 0
      %982 = vmatpush2.bf16.msra.mxu0 0
      %983 = vmatprep.subr.bf16.mxu0 0
      %984 = vmatpush2.bf16.msra.mxu0 0
      %985 = vmatprep.subr.bf16.mxu0 0
      %986 = vmatpush2.bf16.msra.mxu0 0
      %987 = vmatprep.subr.bf16.mxu0 0
      %988 = vmatpush2.bf16.msra.mxu0 0
      %989 = vmatprep.mubr.bf16.mxu0 0
      %990 = vmatmul.mubr.bf16.gmra.mxu0 %v888
      %v991 = vpop.f32.mrf.mxu0
      %v992 = vadd.f32 0.0, %v991
      %v993 = vpop.f32.mrf.mxu0
      %v994 = vpop.f32.mrf.mxu0
      %v995 = vadd.f32 0.0, %v994
      %v996 = vpop.f32.mrf.mxu0
      %997 = vmatprep.mubr.bf16.mxu0 0
      %998 = vmatmul.mubr.bf16.gmra.mxu0 %v889
      %v999 = vpop.f32.mrf.mxu0
      %v1000 = vadd.f32 0.0, %v999
      %v1001 = vpop.f32.mrf.mxu0
      %v1002 = vpop.f32.mrf.mxu0
      %v1003 = vadd.f32 0.0, %v1002
      %v1004 = vpop.f32.mrf.mxu0
      %1005 = vmatprep.mubr.bf16.mxu0 0
      %1006 = vmatmul.mubr.bf16.gmra.mxu0 %v890
      %v1007 = vpop.f32.mrf.mxu0
      %v1008 = vadd.f32 0.0, %v1007
      %v1009 = vpop.f32.mrf.mxu0
      %v1010 = vpop.f32.mrf.mxu0
      %v1011 = vadd.f32 0.0, %v1010
      %v1012 = vpop.f32.mrf.mxu0
      %1013 = vmatprep.mubr.bf16.mxu0 0
      %1014 = vmatmul.mubr.bf16.gmra.mxu0 %v891
      %v1015 = vpop.f32.mrf.mxu0
      %v1016 = vadd.f32 0.0, %v1015
      %v1017 = vpop.f32.mrf.mxu0
      %v1018 = vpop.f32.mrf.mxu0
      %v1019 = vadd.f32 0.0, %v1018
      %v1020 = vpop.f32.mrf.mxu0
      %1021 = vdwg.mxu0
      %v1022 = vld [vmem:[#allocation2] sm:$0xff]
      %v1023 = vld [vmem:[#allocation2 + $0x8] sm:$0xff]
      %v1024 = vld [vmem:[#allocation2 + $0x10] sm:$0xff]
      %v1025 = vld [vmem:[#allocation2 + $0x18] sm:$0xff]
      %v1026 = vld [vmem:[#allocation2 + $0x20] sm:$0xff]
      %v1027 = vld [vmem:[#allocation2 + $0x28] sm:$0xff]
      %v1028 = vld [vmem:[#allocation2 + $0x30] sm:$0xff]
      %v1029 = vld [vmem:[#allocation2 + $0x38] sm:$0xff]
      %v1030 = vadd.f32 %v1022, %v992
      %v1031 = vadd.f32 %v1023, %v995
      %v1032 = vadd.f32 %v1024, %v1000
      %v1033 = vadd.f32 %v1025, %v1003
      %v1034 = vadd.f32 %v1026, %v1008
      %v1035 = vadd.f32 %v1027, %v1011
      %v1036 = vadd.f32 %v1028, %v1016
      %v1037 = vadd.f32 %v1029, %v1019
      %1038 = vst [vmem:[#allocation2] sm:$0xff] %v1030
      %1039 = vst [vmem:[#allocation2 + $0x8] sm:$0xff] %v1031
      %1040 = vst [vmem:[#allocation2 + $0x10] sm:$0xff] %v1032
      %1041 = vst [vmem:[#allocation2 + $0x18] sm:$0xff] %v1033
      %1042 = vst [vmem:[#allocation2 + $0x20] sm:$0xff] %v1034
      %1043 = vst [vmem:[#allocation2 + $0x28] sm:$0xff] %v1035
      %1044 = vst [vmem:[#allocation2 + $0x30] sm:$0xff] %v1036
      %1045 = vst [vmem:[#allocation2 + $0x38] sm:$0xff] %v1037
      %v1046 = vld [vmem:[%s713 + $0x2] sm:$0xff]
      %v1047 = vld [vmem:[%s713 + $0x12] sm:$0xff]
      %v1048 = vld [vmem:[%s713 + $0x22] sm:$0xff]
      %v1049 = vld [vmem:[%s713 + $0x32] sm:$0xff]
      %v1050 = vld [vmem:[%s713 + $0x42] sm:$0xff]
      %v1051 = vld [vmem:[%s713 + $0x52] sm:$0xff]
      %v1052 = vld [vmem:[%s713 + $0x62] sm:$0xff]
      %v1053 = vld [vmem:[%s713 + $0x72] sm:$0xff]
      %v1054 = vpack.c.bf16 %v1047, %v1046
      %v1055 = vpack.c.bf16 %v1049, %v1048
      %v1056 = vpack.c.bf16 %v1051, %v1050
      %v1057 = vpack.c.bf16 %v1053, %v1052
      %s1058 = scalar_lea.vmem %s1, 320
      %v1059 = vld [vmem:[%s1058] sm:$0xf]
      %v1060 = vld [vmem:[%s1058 + $0x4] sm:$0xf]
      %v1061 = vld [vmem:[%s1058 + $0x8] sm:$0xf]
      %v1062 = vld [vmem:[%s1058 + $0xc] sm:$0xf]
      %v1063 = vld [vmem:[%s1058 + $0x10] sm:$0xf]
      %v1064 = vld [vmem:[%s1058 + $0x14] sm:$0xf]
      %v1065 = vld [vmem:[%s1058 + $0x18] sm:$0xf]
      %v1066 = vld [vmem:[%s1058 + $0x1c] sm:$0xf]
      %v1067 = vld [vmem:[%s1058 + $0x20] sm:$0xf]
      %v1068 = vld [vmem:[%s1058 + $0x24] sm:$0xf]
      %v1069 = vld [vmem:[%s1058 + $0x28] sm:$0xf]
      %v1070 = vld [vmem:[%s1058 + $0x2c] sm:$0xf]
      %v1071 = vld [vmem:[%s1058 + $0x30] sm:$0xf]
      %v1072 = vld [vmem:[%s1058 + $0x34] sm:$0xf]
      %v1073 = vld [vmem:[%s1058 + $0x38] sm:$0xf]
      %v1074 = vld [vmem:[%s1058 + $0x3c] sm:$0xf]
      %v1091 = vunpack.c.l.b16 %v1059
      %v1092 = vunpack.c.l.b16 %v1060
      %v1093 = vunpack.c.l.b16 %v1061
      %v1094 = vunpack.c.l.b16 %v1062
      %v1095 = vunpack.c.l.b16 %v1063
      %v1096 = vunpack.c.l.b16 %v1064
      %v1097 = vunpack.c.l.b16 %v1065
      %v1098 = vunpack.c.l.b16 %v1066
      %v1099 = vunpack.c.l.b16 %v1067
      %v1100 = vunpack.c.l.b16 %v1068
      %v1101 = vunpack.c.l.b16 %v1069
      %v1102 = vunpack.c.l.b16 %v1070
      %v1103 = vunpack.c.l.b16 %v1071
      %v1104 = vunpack.c.l.b16 %v1072
      %v1105 = vunpack.c.l.b16 %v1073
      %v1106 = vunpack.c.l.b16 %v1074
      %v1107 = vpack.c.b16 %v1092, %v1091
      %v1108 = vpack.c.b16 %v1094, %v1093
      %v1109 = vpack.c.b16 %v1096, %v1095
      %v1110 = vpack.c.b16 %v1098, %v1097
      %v1111 = vpack.c.b16 %v1100, %v1099
      %v1112 = vpack.c.b16 %v1102, %v1101
      %v1113 = vpack.c.b16 %v1104, %v1103
      %v1114 = vpack.c.b16 %v1106, %v1105
      %1123 = vmatprep.subr.bf16.mxu0 0
      %1124 = vmatpush1.bf16.msra.mxu0 %v1114
      %1125 = vmatprep.subr.bf16.mxu0 0
      %1126 = vmatpush1.bf16.msra.mxu0 %v1113
      %1127 = vmatprep.subr.bf16.mxu0 0
      %1128 = vmatpush1.bf16.msra.mxu0 %v1112
      %1129 = vmatprep.subr.bf16.mxu0 0
      %1130 = vmatpush1.bf16.msra.mxu0 %v1111
      %1131 = vmatprep.subr.bf16.mxu0 0
      %1132 = vmatpush1.bf16.msra.mxu0 %v1110
      %1133 = vmatprep.subr.bf16.mxu0 0
      %1134 = vmatpush1.bf16.msra.mxu0 %v1109
      %1135 = vmatprep.subr.bf16.mxu0 0
      %1136 = vmatpush1.bf16.msra.mxu0 %v1108
      %1137 = vmatprep.subr.bf16.mxu0 0
      %1138 = vmatpush1.bf16.msra.mxu0 %v1107
      %1139 = vmatprep.subr.bf16.mxu0 0
      %1140 = vmatpush2.bf16.msra.mxu0 0
      %1141 = vmatprep.subr.bf16.mxu0 0
      %1142 = vmatpush2.bf16.msra.mxu0 0
      %1143 = vmatprep.subr.bf16.mxu0 0
      %1144 = vmatpush2.bf16.msra.mxu0 0
      %1145 = vmatprep.subr.bf16.mxu0 0
      %1146 = vmatpush2.bf16.msra.mxu0 0
      %1147 = vmatprep.subr.bf16.mxu0 0
      %1148 = vmatpush2.bf16.msra.mxu0 0
      %1149 = vmatprep.subr.bf16.mxu0 0
      %1150 = vmatpush2.bf16.msra.mxu0 0
      %1151 = vmatprep.subr.bf16.mxu0 0
      %1152 = vmatpush2.bf16.msra.mxu0 0
      %1153 = vmatprep.subr.bf16.mxu0 0
      %1154 = vmatpush2.bf16.msra.mxu0 0
      %1155 = vmatprep.mubr.bf16.mxu0 0
      %1156 = vmatmul.mubr.bf16.gmra.mxu0 %v1054
      %v1157 = vpop.f32.mrf.mxu0
      %v1158 = vadd.f32 0.0, %v1157
      %v1159 = vpop.f32.mrf.mxu0
      %v1160 = vpop.f32.mrf.mxu0
      %v1161 = vadd.f32 0.0, %v1160
      %v1162 = vpop.f32.mrf.mxu0
      %1163 = vmatprep.mubr.bf16.mxu0 0
      %1164 = vmatmul.mubr.bf16.gmra.mxu0 %v1055
      %v1165 = vpop.f32.mrf.mxu0
      %v1166 = vadd.f32 0.0, %v1165
      %v1167 = vpop.f32.mrf.mxu0
      %v1168 = vpop.f32.mrf.mxu0
      %v1169 = vadd.f32 0.0, %v1168
      %v1170 = vpop.f32.mrf.mxu0
      %1171 = vmatprep.mubr.bf16.mxu0 0
      %1172 = vmatmul.mubr.bf16.gmra.mxu0 %v1056
      %v1173 = vpop.f32.mrf.mxu0
      %v1174 = vadd.f32 0.0, %v1173
      %v1175 = vpop.f32.mrf.mxu0
      %v1176 = vpop.f32.mrf.mxu0
      %v1177 = vadd.f32 0.0, %v1176
      %v1178 = vpop.f32.mrf.mxu0
      %1179 = vmatprep.mubr.bf16.mxu0 0
      %1180 = vmatmul.mubr.bf16.gmra.mxu0 %v1057
      %v1181 = vpop.f32.mrf.mxu0
      %v1182 = vadd.f32 0.0, %v1181
      %v1183 = vpop.f32.mrf.mxu0
      %v1184 = vpop.f32.mrf.mxu0
      %v1185 = vadd.f32 0.0, %v1184
      %v1186 = vpop.f32.mrf.mxu0
      %1187 = vdwg.mxu0
      %v1188 = vld [vmem:[#allocation2] sm:$0xff]
      %v1189 = vld [vmem:[#allocation2 + $0x8] sm:$0xff]
      %v1190 = vld [vmem:[#allocation2 + $0x10] sm:$0xff]
      %v1191 = vld [vmem:[#allocation2 + $0x18] sm:$0xff]
      %v1192 = vld [vmem:[#allocation2 + $0x20] sm:$0xff]
      %v1193 = vld [vmem:[#allocation2 + $0x28] sm:$0xff]
      %v1194 = vld [vmem:[#allocation2 + $0x30] sm:$0xff]
      %v1195 = vld [vmem:[#allocation2 + $0x38] sm:$0xff]
      %v1196 = vadd.f32 %v1188, %v1158
      %v1197 = vadd.f32 %v1189, %v1161
      %v1198 = vadd.f32 %v1190, %v1166
      %v1199 = vadd.f32 %v1191, %v1169
      %v1200 = vadd.f32 %v1192, %v1174
      %v1201 = vadd.f32 %v1193, %v1177
      %v1202 = vadd.f32 %v1194, %v1182
      %v1203 = vadd.f32 %v1195, %v1185
      %1204 = vst [vmem:[#allocation2] sm:$0xff] %v1196
      %1205 = vst [vmem:[#allocation2 + $0x8] sm:$0xff] %v1197
      %1206 = vst [vmem:[#allocation2 + $0x10] sm:$0xff] %v1198
      %1207 = vst [vmem:[#allocation2 + $0x18] sm:$0xff] %v1199
      %1208 = vst [vmem:[#allocation2 + $0x20] sm:$0xff] %v1200
      %1209 = vst [vmem:[#allocation2 + $0x28] sm:$0xff] %v1201
      %1210 = vst [vmem:[#allocation2 + $0x30] sm:$0xff] %v1202
      %1211 = vst [vmem:[#allocation2 + $0x38] sm:$0xff] %v1203
      %s1212 = scalar_lea.vmem [#allocation3], 32
      %v1213 = vld [vmem:[%s1212] sm:$0xff]
      %v1214 = vld [vmem:[%s1212 + $0x10] sm:$0xff]
      %v1215 = vld [vmem:[%s1212 + $0x20] sm:$0xff]
      %v1216 = vld [vmem:[%s1212 + $0x30] sm:$0xff]
      %v1217 = vld [vmem:[%s1212 + $0x40] sm:$0xff]
      %v1218 = vld [vmem:[%s1212 + $0x50] sm:$0xff]
      %v1219 = vld [vmem:[%s1212 + $0x60] sm:$0xff]
      %v1220 = vld [vmem:[%s1212 + $0x70] sm:$0xff]
      %v1221 = vpack.c.bf16 %v1214, %v1213
      %v1222 = vpack.c.bf16 %v1216, %v1215
      %v1223 = vpack.c.bf16 %v1218, %v1217
      %v1224 = vpack.c.bf16 %v1220, %v1219
      %s1225 = scalar_lea.vmem %s1, 384
      %v1226 = vld [vmem:[%s1225] sm:$0xf]
      %v1227 = vld [vmem:[%s1225 + $0x4] sm:$0xf]
      %v1228 = vld [vmem:[%s1225 + $0x8] sm:$0xf]
      %v1229 = vld [vmem:[%s1225 + $0xc] sm:$0xf]
      %v1230 = vld [vmem:[%s1225 + $0x10] sm:$0xf]
      %v1231 = vld [vmem:[%s1225 + $0x14] sm:$0xf]
      %v1232 = vld [vmem:[%s1225 + $0x18] sm:$0xf]
      %v1233 = vld [vmem:[%s1225 + $0x1c] sm:$0xf]
      %v1234 = vld [vmem:[%s1225 + $0x20] sm:$0xf]
      %v1235 = vld [vmem:[%s1225 + $0x24] sm:$0xf]
      %v1236 = vld [vmem:[%s1225 + $0x28] sm:$0xf]
      %v1237 = vld [vmem:[%s1225 + $0x2c] sm:$0xf]
      %v1238 = vld [vmem:[%s1225 + $0x30] sm:$0xf]
      %v1239 = vld [vmem:[%s1225 + $0x34] sm:$0xf]
      %v1240 = vld [vmem:[%s1225 + $0x38] sm:$0xf]
      %v1241 = vld [vmem:[%s1225 + $0x3c] sm:$0xf]
      %v1258 = vunpack.c.l.b16 %v1226
      %v1259 = vunpack.c.l.b16 %v1227
      %v1260 = vunpack.c.l.b16 %v1228
      %v1261 = vunpack.c.l.b16 %v1229
      %v1262 = vunpack.c.l.b16 %v1230
      %v1263 = vunpack.c.l.b16 %v1231
      %v1264 = vunpack.c.l.b16 %v1232
      %v1265 = vunpack.c.l.b16 %v1233
      %v1266 = vunpack.c.l.b16 %v1234
      %v1267 = vunpack.c.l.b16 %v1235
      %v1268 = vunpack.c.l.b16 %v1236
      %v1269 = vunpack.c.l.b16 %v1237
      %v1270 = vunpack.c.l.b16 %v1238
      %v1271 = vunpack.c.l.b16 %v1239
      %v1272 = vunpack.c.l.b16 %v1240
      %v1273 = vunpack.c.l.b16 %v1241
      %v1274 = vpack.c.b16 %v1259, %v1258
      %v1275 = vpack.c.b16 %v1261, %v1260
      %v1276 = vpack.c.b16 %v1263, %v1262
      %v1277 = vpack.c.b16 %v1265, %v1264
      %v1278 = vpack.c.b16 %v1267, %v1266
      %v1279 = vpack.c.b16 %v1269, %v1268
      %v1280 = vpack.c.b16 %v1271, %v1270
      %v1281 = vpack.c.b16 %v1273, %v1272
      %1290 = vmatprep.subr.bf16.mxu0 0
      %1291 = vmatpush1.bf16.msra.mxu0 %v1281
      %1292 = vmatprep.subr.bf16.mxu0 0
      %1293 = vmatpush1.bf16.msra.mxu0 %v1280
      %1294 = vmatprep.subr.bf16.mxu0 0
      %1295 = vmatpush1.bf16.msra.mxu0 %v1279
      %1296 = vmatprep.subr.bf16.mxu0 0
      %1297 = vmatpush1.bf16.msra.mxu0 %v1278
      %1298 = vmatprep.subr.bf16.mxu0 0
      %1299 = vmatpush1.bf16.msra.mxu0 %v1277
      %1300 = vmatprep.subr.bf16.mxu0 0
      %1301 = vmatpush1.bf16.msra.mxu0 %v1276
      %1302 = vmatprep.subr.bf16.mxu0 0
      %1303 = vmatpush1.bf16.msra.mxu0 %v1275
      %1304 = vmatprep.subr.bf16.mxu0 0
      %1305 = vmatpush1.bf16.msra.mxu0 %v1274
      %1306 = vmatprep.subr.bf16.mxu0 0
      %1307 = vmatpush2.bf16.msra.mxu0 0
      %1308 = vmatprep.subr.bf16.mxu0 0
      %1309 = vmatpush2.bf16.msra.mxu0 0
      %1310 = vmatprep.subr.bf16.mxu0 0
      %1311 = vmatpush2.bf16.msra.mxu0 0
      %1312 = vmatprep.subr.bf16.mxu0 0
      %1313 = vmatpush2.bf16.msra.mxu0 0
      %1314 = vmatprep.subr.bf16.mxu0 0
      %1315 = vmatpush2.bf16.msra.mxu0 0
      %1316 = vmatprep.subr.bf16.mxu0 0
      %1317 = vmatpush2.bf16.msra.mxu0 0
      %1318 = vmatprep.subr.bf16.mxu0 0
      %1319 = vmatpush2.bf16.msra.mxu0 0
      %1320 = vmatprep.subr.bf16.mxu0 0
      %1321 = vmatpush2.bf16.msra.mxu0 0
      %1322 = vmatprep.mubr.bf16.mxu0 0
      %1323 = vmatmul.mubr.bf16.gmra.mxu0 %v1221
      %v1324 = vpop.f32.mrf.mxu0
      %v1325 = vadd.f32 0.0, %v1324
      %v1326 = vpop.f32.mrf.mxu0
      %v1327 = vpop.f32.mrf.mxu0
      %v1328 = vadd.f32 0.0, %v1327
      %v1329 = vpop.f32.mrf.mxu0
      %1330 = vmatprep.mubr.bf16.mxu0 0
      %1331 = vmatmul.mubr.bf16.gmra.mxu0 %v1222
      %v1332 = vpop.f32.mrf.mxu0
      %v1333 = vadd.f32 0.0, %v1332
      %v1334 = vpop.f32.mrf.mxu0
      %v1335 = vpop.f32.mrf.mxu0
      %v1336 = vadd.f32 0.0, %v1335
      %v1337 = vpop.f32.mrf.mxu0
      %1338 = vmatprep.mubr.bf16.mxu0 0
      %1339 = vmatmul.mubr.bf16.gmra.mxu0 %v1223
      %v1340 = vpop.f32.mrf.mxu0
      %v1341 = vadd.f32 0.0, %v1340
      %v1342 = vpop.f32.mrf.mxu0
      %v1343 = vpop.f32.mrf.mxu0
      %v1344 = vadd.f32 0.0, %v1343
      %v1345 = vpop.f32.mrf.mxu0
      %1346 = vmatprep.mubr.bf16.mxu0 0
      %1347 = vmatmul.mubr.bf16.gmra.mxu0 %v1224
      %v1348 = vpop.f32.mrf.mxu0
      %v1349 = vadd.f32 0.0, %v1348
      %v1350 = vpop.f32.mrf.mxu0
      %v1351 = vpop.f32.mrf.mxu0
      %v1352 = vadd.f32 0.0, %v1351
      %v1353 = vpop.f32.mrf.mxu0
      %1354 = vdwg.mxu0
      %v1355 = vld [vmem:[#allocation2] sm:$0xff]
      %v1356 = vld [vmem:[#allocation2 + $0x8] sm:$0xff]
      %v1357 = vld [vmem:[#allocation2 + $0x10] sm:$0xff]
      %v1358 = vld [vmem:[#allocation2 + $0x18] sm:$0xff]
      %v1359 = vld [vmem:[#allocation2 + $0x20] sm:$0xff]
      %v1360 = vld [vmem:[#allocation2 + $0x28] sm:$0xff]
      %v1361 = vld [vmem:[#allocation2 + $0x30] sm:$0xff]
      %v1362 = vld [vmem:[#allocation2 + $0x38] sm:$0xff]
      %v1363 = vadd.f32 %v1355, %v1325
      %v1364 = vadd.f32 %v1356, %v1328
      %v1365 = vadd.f32 %v1357, %v1333
      %v1366 = vadd.f32 %v1358, %v1336
      %v1367 = vadd.f32 %v1359, %v1341
      %v1368 = vadd.f32 %v1360, %v1344
      %v1369 = vadd.f32 %v1361, %v1349
      %v1370 = vadd.f32 %v1362, %v1352
      %1371 = vst [vmem:[#allocation2] sm:$0xff] %v1363
      %1372 = vst [vmem:[#allocation2 + $0x8] sm:$0xff] %v1364
      %1373 = vst [vmem:[#allocation2 + $0x10] sm:$0xff] %v1365
      %1374 = vst [vmem:[#allocation2 + $0x18] sm:$0xff] %v1366
      %1375 = vst [vmem:[#allocation2 + $0x20] sm:$0xff] %v1367
      %1376 = vst [vmem:[#allocation2 + $0x28] sm:$0xff] %v1368
      %1377 = vst [vmem:[#allocation2 + $0x30] sm:$0xff] %v1369
      %1378 = vst [vmem:[#allocation2 + $0x38] sm:$0xff] %v1370
      %v1379 = vld [vmem:[%s1212 + $0x1] sm:$0xff]
      %v1380 = vld [vmem:[%s1212 + $0x11] sm:$0xff]
      %v1381 = vld [vmem:[%s1212 + $0x21] sm:$0xff]
      %v1382 = vld [vmem:[%s1212 + $0x31] sm:$0xff]
      %v1383 = vld [vmem:[%s1212 + $0x41] sm:$0xff]
      %v1384 = vld [vmem:[%s1212 + $0x51] sm:$0xff]
      %v1385 = vld [vmem:[%s1212 + $0x61] sm:$0xff]
      %v1386 = vld [vmem:[%s1212 + $0x71] sm:$0xff]
      %v1387 = vpack.c.bf16 %v1380, %v1379
      %v1388 = vpack.c.bf16 %v1382, %v1381
      %v1389 = vpack.c.bf16 %v1384, %v1383
      %v1390 = vpack.c.bf16 %v1386, %v1385
      %s1391 = scalar_lea.vmem %s1, 448
      %v1392 = vld [vmem:[%s1391] sm:$0xf]
      %v1393 = vld [vmem:[%s1391 + $0x4] sm:$0xf]
      %v1394 = vld [vmem:[%s1391 + $0x8] sm:$0xf]
      %v1395 = vld [vmem:[%s1391 + $0xc] sm:$0xf]
      %v1396 = vld [vmem:[%s1391 + $0x10] sm:$0xf]
      %v1397 = vld [vmem:[%s1391 + $0x14] sm:$0xf]
      %v1398 = vld [vmem:[%s1391 + $0x18] sm:$0xf]
      %v1399 = vld [vmem:[%s1391 + $0x1c] sm:$0xf]
      %v1400 = vld [vmem:[%s1391 + $0x20] sm:$0xf]
      %v1401 = vld [vmem:[%s1391 + $0x24] sm:$0xf]
      %v1402 = vld [vmem:[%s1391 + $0x28] sm:$0xf]
      %v1403 = vld [vmem:[%s1391 + $0x2c] sm:$0xf]
      %v1404 = vld [vmem:[%s1391 + $0x30] sm:$0xf]
      %v1405 = vld [vmem:[%s1391 + $0x34] sm:$0xf]
      %v1406 = vld [vmem:[%s1391 + $0x38] sm:$0xf]
      %v1407 = vld [vmem:[%s1391 + $0x3c] sm:$0xf]
      %v1424 = vunpack.c.l.b16 %v1392
      %v1425 = vunpack.c.l.b16 %v1393
      %v1426 = vunpack.c.l.b16 %v1394
      %v1427 = vunpack.c.l.b16 %v1395
      %v1428 = vunpack.c.l.b16 %v1396
      %v1429 = vunpack.c.l.b16 %v1397
      %v1430 = vunpack.c.l.b16 %v1398
      %v1431 = vunpack.c.l.b16 %v1399
      %v1432 = vunpack.c.l.b16 %v1400
      %v1433 = vunpack.c.l.b16 %v1401
      %v1434 = vunpack.c.l.b16 %v1402
      %v1435 = vunpack.c.l.b16 %v1403
      %v1436 = vunpack.c.l.b16 %v1404
      %v1437 = vunpack.c.l.b16 %v1405
      %v1438 = vunpack.c.l.b16 %v1406
      %v1439 = vunpack.c.l.b16 %v1407
      %v1440 = vpack.c.b16 %v1425, %v1424
      %v1441 = vpack.c.b16 %v1427, %v1426
      %v1442 = vpack.c.b16 %v1429, %v1428
      %v1443 = vpack.c.b16 %v1431, %v1430
      %v1444 = vpack.c.b16 %v1433, %v1432
      %v1445 = vpack.c.b16 %v1435, %v1434
      %v1446 = vpack.c.b16 %v1437, %v1436
      %v1447 = vpack.c.b16 %v1439, %v1438
      %1456 = vmatprep.subr.bf16.mxu0 0
      %1457 = vmatpush1.bf16.msra.mxu0 %v1447
      %1458 = vmatprep.subr.bf16.mxu0 0
      %1459 = vmatpush1.bf16.msra.mxu0 %v1446
      %1460 = vmatprep.subr.bf16.mxu0 0
      %1461 = vmatpush1.bf16.msra.mxu0 %v1445
      %1462 = vmatprep.subr.bf16.mxu0 0
      %1463 = vmatpush1.bf16.msra.mxu0 %v1444
      %1464 = vmatprep.subr.bf16.mxu0 0
      %1465 = vmatpush1.bf16.msra.mxu0 %v1443
      %1466 = vmatprep.subr.bf16.mxu0 0
      %1467 = vmatpush1.bf16.msra.mxu0 %v1442
      %1468 = vmatprep.subr.bf16.mxu0 0
      %1469 = vmatpush1.bf16.msra.mxu0 %v1441
      %1470 = vmatprep.subr.bf16.mxu0 0
      %1471 = vmatpush1.bf16.msra.mxu0 %v1440
      %1472 = vmatprep.subr.bf16.mxu0 0
      %1473 = vmatpush2.bf16.msra.mxu0 0
      %1474 = vmatprep.subr.bf16.mxu0 0
      %1475 = vmatpush2.bf16.msra.mxu0 0
      %1476 = vmatprep.subr.bf16.mxu0 0
      %1477 = vmatpush2.bf16.msra.mxu0 0
      %1478 = vmatprep.subr.bf16.mxu0 0
      %1479 = vmatpush2.bf16.msra.mxu0 0
      %1480 = vmatprep.subr.bf16.mxu0 0
      %1481 = vmatpush2.bf16.msra.mxu0 0
      %1482 = vmatprep.subr.bf16.mxu0 0
      %1483 = vmatpush2.bf16.msra.mxu0 0
      %1484 = vmatprep.subr.bf16.mxu0 0
      %1485 = vmatpush2.bf16.msra.mxu0 0
      %1486 = vmatprep.subr.bf16.mxu0 0
      %1487 = vmatpush2.bf16.msra.mxu0 0
      %1488 = vmatprep.mubr.bf16.mxu0 0
      %1489 = vmatmul.mubr.bf16.gmra.mxu0 %v1387
      %v1490 = vpop.f32.mrf.mxu0
      %v1491 = vadd.f32 0.0, %v1490
      %v1492 = vpop.f32.mrf.mxu0
      %v1493 = vpop.f32.mrf.mxu0
      %v1494 = vadd.f32 0.0, %v1493
      %v1495 = vpop.f32.mrf.mxu0
      %1496 = vmatprep.mubr.bf16.mxu0 0
      %1497 = vmatmul.mubr.bf16.gmra.mxu0 %v1388
      %v1498 = vpop.f32.mrf.mxu0
      %v1499 = vadd.f32 0.0, %v1498
      %v1500 = vpop.f32.mrf.mxu0
      %v1501 = vpop.f32.mrf.mxu0
      %v1502 = vadd.f32 0.0, %v1501
      %v1503 = vpop.f32.mrf.mxu0
      %1504 = vmatprep.mubr.bf16.mxu0 0
      %1505 = vmatmul.mubr.bf16.gmra.mxu0 %v1389
      %v1506 = vpop.f32.mrf.mxu0
      %v1507 = vadd.f32 0.0, %v1506
      %v1508 = vpop.f32.mrf.mxu0
      %v1509 = vpop.f32.mrf.mxu0
      %v1510 = vadd.f32 0.0, %v1509
      %v1511 = vpop.f32.mrf.mxu0
      %1512 = vmatprep.mubr.bf16.mxu0 0
      %1513 = vmatmul.mubr.bf16.gmra.mxu0 %v1390
      %v1514 = vpop.f32.mrf.mxu0
      %v1515 = vadd.f32 0.0, %v1514
      %v1516 = vpop.f32.mrf.mxu0
      %v1517 = vpop.f32.mrf.mxu0
      %v1518 = vadd.f32 0.0, %v1517
      %v1519 = vpop.f32.mrf.mxu0
      %1520 = vdwg.mxu0
      %v1521 = vld [vmem:[#allocation2] sm:$0xff]
      %v1522 = vld [vmem:[#allocation2 + $0x8] sm:$0xff]
      %v1523 = vld [vmem:[#allocation2 + $0x10] sm:$0xff]
      %v1524 = vld [vmem:[#allocation2 + $0x18] sm:$0xff]
      %v1525 = vld [vmem:[#allocation2 + $0x20] sm:$0xff]
      %v1526 = vld [vmem:[#allocation2 + $0x28] sm:$0xff]
      %v1527 = vld [vmem:[#allocation2 + $0x30] sm:$0xff]
      %v1528 = vld [vmem:[#allocation2 + $0x38] sm:$0xff]
      %v1529 = vadd.f32 %v1521, %v1491
      %v1530 = vadd.f32 %v1522, %v1494
      %v1531 = vadd.f32 %v1523, %v1499
      %v1532 = vadd.f32 %v1524, %v1502
      %v1533 = vadd.f32 %v1525, %v1507
      %v1534 = vadd.f32 %v1526, %v1510
      %v1535 = vadd.f32 %v1527, %v1515
      %v1536 = vadd.f32 %v1528, %v1518
      %1537 = vst [vmem:[#allocation2] sm:$0xff] %v1529
      %1538 = vst [vmem:[#allocation2 + $0x8] sm:$0xff] %v1530
      %1539 = vst [vmem:[#allocation2 + $0x10] sm:$0xff] %v1531
      %1540 = vst [vmem:[#allocation2 + $0x18] sm:$0xff] %v1532
      %1541 = vst [vmem:[#allocation2 + $0x20] sm:$0xff] %v1533
      %1542 = vst [vmem:[#allocation2 + $0x28] sm:$0xff] %v1534
      %1543 = vst [vmem:[#allocation2 + $0x30] sm:$0xff] %v1535
      %1544 = vst [vmem:[#allocation2 + $0x38] sm:$0xff] %v1536
      %v1545 = vld [vmem:[%s1212 + $0x2] sm:$0xff]
      %v1546 = vld [vmem:[%s1212 + $0x12] sm:$0xff]
      %v1547 = vld [vmem:[%s1212 + $0x22] sm:$0xff]
      %v1548 = vld [vmem:[%s1212 + $0x32] sm:$0xff]
      %v1549 = vld [vmem:[%s1212 + $0x42] sm:$0xff]
      %v1550 = vld [vmem:[%s1212 + $0x52] sm:$0xff]
      %v1551 = vld [vmem:[%s1212 + $0x62] sm:$0xff]
      %v1552 = vld [vmem:[%s1212 + $0x72] sm:$0xff]
      %v1553 = vpack.c.bf16 %v1546, %v1545
      %v1554 = vpack.c.bf16 %v1548, %v1547
      %v1555 = vpack.c.bf16 %v1550, %v1549
      %v1556 = vpack.c.bf16 %v1552, %v1551
      %s1557 = scalar_lea.vmem %s1, 512
      %v1558 = vld [vmem:[%s1557] sm:$0xf]
      %v1559 = vld [vmem:[%s1557 + $0x4] sm:$0xf]
      %v1560 = vld [vmem:[%s1557 + $0x8] sm:$0xf]
      %v1561 = vld [vmem:[%s1557 + $0xc] sm:$0xf]
      %v1562 = vld [vmem:[%s1557 + $0x10] sm:$0xf]
      %v1563 = vld [vmem:[%s1557 + $0x14] sm:$0xf]
      %v1564 = vld [vmem:[%s1557 + $0x18] sm:$0xf]
      %v1565 = vld [vmem:[%s1557 + $0x1c] sm:$0xf]
      %v1566 = vld [vmem:[%s1557 + $0x20] sm:$0xf]
      %v1567 = vld [vmem:[%s1557 + $0x24] sm:$0xf]
      %v1568 = vld [vmem:[%s1557 + $0x28] sm:$0xf]
      %v1569 = vld [vmem:[%s1557 + $0x2c] sm:$0xf]
      %v1570 = vld [vmem:[%s1557 + $0x30] sm:$0xf]
      %v1571 = vld [vmem:[%s1557 + $0x34] sm:$0xf]
      %v1572 = vld [vmem:[%s1557 + $0x38] sm:$0xf]
      %v1573 = vld [vmem:[%s1557 + $0x3c] sm:$0xf]
      %v1590 = vunpack.c.l.b16 %v1558
      %v1591 = vunpack.c.l.b16 %v1559
      %v1592 = vunpack.c.l.b16 %v1560
      %v1593 = vunpack.c.l.b16 %v1561
      %v1594 = vunpack.c.l.b16 %v1562
      %v1595 = vunpack.c.l.b16 %v1563
      %v1596 = vunpack.c.l.b16 %v1564
      %v1597 = vunpack.c.l.b16 %v1565
      %v1598 = vunpack.c.l.b16 %v1566
      %v1599 = vunpack.c.l.b16 %v1567
      %v1600 = vunpack.c.l.b16 %v1568
      %v1601 = vunpack.c.l.b16 %v1569
      %v1602 = vunpack.c.l.b16 %v1570
      %v1603 = vunpack.c.l.b16 %v1571
      %v1604 = vunpack.c.l.b16 %v1572
      %v1605 = vunpack.c.l.b16 %v1573
      %v1606 = vpack.c.b16 %v1591, %v1590
      %v1607 = vpack.c.b16 %v1593, %v1592
      %v1608 = vpack.c.b16 %v1595, %v1594
      %v1609 = vpack.c.b16 %v1597, %v1596
      %v1610 = vpack.c.b16 %v1599, %v1598
      %v1611 = vpack.c.b16 %v1601, %v1600
      %v1612 = vpack.c.b16 %v1603, %v1602
      %v1613 = vpack.c.b16 %v1605, %v1604
      %1622 = vmatprep.subr.bf16.mxu0 0
      %1623 = vmatpush1.bf16.msra.mxu0 %v1613
      %1624 = vmatprep.subr.bf16.mxu0 0
      %1625 = vmatpush1.bf16.msra.mxu0 %v1612
      %1626 = vmatprep.subr.bf16.mxu0 0
      %1627 = vmatpush1.bf16.msra.mxu0 %v1611
      %1628 = vmatprep.subr.bf16.mxu0 0
      %1629 = vmatpush1.bf16.msra.mxu0 %v1610
      %1630 = vmatprep.subr.bf16.mxu0 0
      %1631 = vmatpush1.bf16.msra.mxu0 %v1609
      %1632 = vmatprep.subr.bf16.mxu0 0
      %1633 = vmatpush1.bf16.msra.mxu0 %v1608
      %1634 = vmatprep.subr.bf16.mxu0 0
      %1635 = vmatpush1.bf16.msra.mxu0 %v1607
      %1636 = vmatprep.subr.bf16.mxu0 0
      %1637 = vmatpush1.bf16.msra.mxu0 %v1606
      %1638 = vmatprep.subr.bf16.mxu0 0
      %1639 = vmatpush2.bf16.msra.mxu0 0
      %1640 = vmatprep.subr.bf16.mxu0 0
      %1641 = vmatpush2.bf16.msra.mxu0 0
      %1642 = vmatprep.subr.bf16.mxu0 0
      %1643 = vmatpush2.bf16.msra.mxu0 0
      %1644 = vmatprep.subr.bf16.mxu0 0
      %1645 = vmatpush2.bf16.msra.mxu0 0
      %1646 = vmatprep.subr.bf16.mxu0 0
      %1647 = vmatpush2.bf16.msra.mxu0 0
      %1648 = vmatprep.subr.bf16.mxu0 0
      %1649 = vmatpush2.bf16.msra.mxu0 0
      %1650 = vmatprep.subr.bf16.mxu0 0
      %1651 = vmatpush2.bf16.msra.mxu0 0
      %1652 = vmatprep.subr.bf16.mxu0 0
      %1653 = vmatpush2.bf16.msra.mxu0 0
      %1654 = vmatprep.mubr.bf16.mxu0 0
      %1655 = vmatmul.mubr.bf16.gmra.mxu0 %v1553
      %v1656 = vpop.f32.mrf.mxu0
      %v1657 = vadd.f32 0.0, %v1656
      %v1658 = vpop.f32.mrf.mxu0
      %v1659 = vpop.f32.mrf.mxu0
      %v1660 = vadd.f32 0.0, %v1659
      %v1661 = vpop.f32.mrf.mxu0
      %1662 = vmatprep.mubr.bf16.mxu0 0
      %1663 = vmatmul.mubr.bf16.gmra.mxu0 %v1554
      %v1664 = vpop.f32.mrf.mxu0
      %v1665 = vadd.f32 0.0, %v1664
      %v1666 = vpop.f32.mrf.mxu0
      %v1667 = vpop.f32.mrf.mxu0
      %v1668 = vadd.f32 0.0, %v1667
      %v1669 = vpop.f32.mrf.mxu0
      %1670 = vmatprep.mubr.bf16.mxu0 0
      %1671 = vmatmul.mubr.bf16.gmra.mxu0 %v1555
      %v1672 = vpop.f32.mrf.mxu0
      %v1673 = vadd.f32 0.0, %v1672
      %v1674 = vpop.f32.mrf.mxu0
      %v1675 = vpop.f32.mrf.mxu0
      %v1676 = vadd.f32 0.0, %v1675
      %v1677 = vpop.f32.mrf.mxu0
      %1678 = vmatprep.mubr.bf16.mxu0 0
      %1679 = vmatmul.mubr.bf16.gmra.mxu0 %v1556
      %v1680 = vpop.f32.mrf.mxu0
      %v1681 = vadd.f32 0.0, %v1680
      %v1682 = vpop.f32.mrf.mxu0
      %v1683 = vpop.f32.mrf.mxu0
      %v1684 = vadd.f32 0.0, %v1683
      %v1685 = vpop.f32.mrf.mxu0
      %1686 = vdwg.mxu0
      %v1687 = vld [vmem:[#allocation2] sm:$0xff]
      %v1688 = vld [vmem:[#allocation2 + $0x8] sm:$0xff]
      %v1689 = vld [vmem:[#allocation2 + $0x10] sm:$0xff]
      %v1690 = vld [vmem:[#allocation2 + $0x18] sm:$0xff]
      %v1691 = vld [vmem:[#allocation2 + $0x20] sm:$0xff]
      %v1692 = vld [vmem:[#allocation2 + $0x28] sm:$0xff]
      %v1693 = vld [vmem:[#allocation2 + $0x30] sm:$0xff]
      %v1694 = vld [vmem:[#allocation2 + $0x38] sm:$0xff]
      %v1695 = vadd.f32 %v1687, %v1657
      %v1696 = vadd.f32 %v1688, %v1660
      %v1697 = vadd.f32 %v1689, %v1665
      %v1698 = vadd.f32 %v1690, %v1668
      %v1699 = vadd.f32 %v1691, %v1673
      %v1700 = vadd.f32 %v1692, %v1676
      %v1701 = vadd.f32 %v1693, %v1681
      %v1702 = vadd.f32 %v1694, %v1684
      %1703 = vst [vmem:[#allocation2] sm:$0xff] %v1695
      %1704 = vst [vmem:[#allocation2 + $0x8] sm:$0xff] %v1696
      %1705 = vst [vmem:[#allocation2 + $0x10] sm:$0xff] %v1697
      %1706 = vst [vmem:[#allocation2 + $0x18] sm:$0xff] %v1698
      %1707 = vst [vmem:[#allocation2 + $0x20] sm:$0xff] %v1699
      %1708 = vst [vmem:[#allocation2 + $0x28] sm:$0xff] %v1700
      %1709 = vst [vmem:[#allocation2 + $0x30] sm:$0xff] %v1701
      %1710 = vst [vmem:[#allocation2 + $0x38] sm:$0xff] %v1702
      %v1711 = vld [vmem:[#allocation2] sm:$0xff]
      %v1712 = vld [vmem:[#allocation2 + $0x8] sm:$0xff]
      %v1713 = vld [vmem:[#allocation2 + $0x10] sm:$0xff]
      %v1714 = vld [vmem:[#allocation2 + $0x18] sm:$0xff]
      %v1715 = vld [vmem:[#allocation2 + $0x20] sm:$0xff]
      %v1716 = vld [vmem:[#allocation2 + $0x28] sm:$0xff]
      %v1717 = vld [vmem:[#allocation2 + $0x30] sm:$0xff]
      %v1718 = vld [vmem:[#allocation2 + $0x38] sm:$0xff]
      %v1719 = vld [vmem:[%s2] sm:$0x1]
      %v1721 = vlaneseq
      %v1722 = vshrl.u32 %v1721, 7
      %v1723 = vsub.s32 0, %v1722
      %v1724 = vrot.slane %v1719, %v1723
      %v1726 = vadd.f32 %v1711, %v1724
      %v1727 = vadd.f32 %v1712, %v1724
      %v1728 = vadd.f32 %v1713, %v1724
      %v1729 = vadd.f32 %v1714, %v1724
      %v1730 = vadd.f32 %v1715, %v1724
      %v1731 = vadd.f32 %v1716, %v1724
      %v1732 = vadd.f32 %v1717, %v1724
      %v1733 = vadd.f32 %v1718, %v1724
      %v1734 = vmax.f32 %v1726, 0.0
      %v1735 = vmax.f32 %v1727, 0.0
      %v1736 = vmax.f32 %v1728, 0.0
      %v1737 = vmax.f32 %v1729, 0.0
      %v1738 = vmax.f32 %v1730, 0.0
      %v1739 = vmax.f32 %v1731, 0.0
      %v1740 = vmax.f32 %v1732, 0.0
      %v1741 = vmax.f32 %v1733, 0.0
      %1742 = vst [vmem:[%s170] sm:$0xff] %v1734
      %1743 = vst [vmem:[%s170 + $0x8] sm:$0xff] %v1735
      %1744 = vst [vmem:[%s170 + $0x10] sm:$0xff] %v1736
      %1745 = vst [vmem:[%s170 + $0x18] sm:$0xff] %v1737
      %1746 = vst [vmem:[%s170 + $0x20] sm:$0xff] %v1738
      %1747 = vst [vmem:[%s170 + $0x28] sm:$0xff] %v1739
      %1748 = vst [vmem:[%s170 + $0x30] sm:$0xff] %v1740
      %1749 = vst [vmem:[%s170 + $0x38] sm:$0xff] %v1741
      %p1750 = scmp.lt.s32.totalorder %s14, 1
      %s1751 = scalar_select %p1750, %s14, 1
      %s1752 = smul.addr %s1751, 8
      %s1753 = smul.addr %s1752, 8
      %s1754 = scalar_lea.vmem %s3, %s1753
      // Predicated region
      $region33: #{_lambda_.6} parent=31 // pred_check
        %p1755 = pneg %p100
      $region34: #{_lambda_.6} parent=31 // pred_check_branch
        %1757 = sbr.rel (%p1755) target = $region36
      $region35: #{_lambda_.6} parent=31 // pred_region
        _
      $region36: #{_lambda_.6} parent=31 // pred_fallthru
        _
    $region32: #{_lambda_.6} parent=5 // pred_fallthru
      _
    %p1758 = scmp.le.s32.totalorder 2, %s9
    // Predicated region
    $region37: #{_lambda_.6} parent=5 // pred_check
      %p1759 = pneg %p1758
    $region38: #{_lambda_.6} parent=5 // pred_check_branch
      %1761 = sbr.rel (%p1759) target = $region40
    $region39: #{_lambda_.6} parent=5 // pred_region
      %s1762 = ssub.s32 %s9, 2
      // Predicated region
      $region41: #{_lambda_.6} parent=39 // pred_check
        %p1763 = pneg %p106
      $region42: #{_lambda_.6} parent=39 // pred_check_branch
        %1765 = sbr.rel (%p1763) target = $region44
      $region43: #{_lambda_.6} parent=39 // pred_region
        %p1766 = scmp.lt.s32.totalorder %s15, 1
        %s1767 = scalar_select %p1766, %s15, 1
        %s1768 = smul.addr %s1767, 8
        %s1769 = smul.addr %s1768, 8
        %s1770 = scalar_lea.vmem %s3, %s1769
      $region44: #{_lambda_.6} parent=39 // pred_fallthru
        _
    $region40: #{_lambda_.6} parent=5 // pred_fallthru
      _
  $region6: #{_lambda_.6} parent=0 // loop_footer
    %s13 = sadd.s32 1, %s9
  $region7: #{_lambda_.6} parent=0 // loop_footer_branch
    %8 = sbr.rel target = $region3
  $region8: #{_lambda_.6} parent=0 // loop_exit
    _

// kernel: _lambda_.4
$region0: #{_lambda_.4}
  #allocation0 [shape = 'u32[]', space=smem, size = 0x4, offset = 0x4, fixed_abs, tag = 'smem constant byte address 0x4 - core index']
  #allocation1 [shape = 'u32[144,128]{1,0:T(1,128)}', space=vmem, size = 0x12000, scoped, tag = 'internal scratch']
  #allocation2 [shape = 'f32[256,128]{1,0:T(8,128)}', space=vmem, size = 0x20000, scoped, tag = 'scratch operand']
  #allocation3 [shape = 'f32[18,18,4]{2,1,0:T(8,128)}', space=vmem, size = 0x36000, scoped, tag = 'scratch operand']
  %s0 = inlined_call_operand.vmem [shape: bf16[2,18,18,4], index: 0, kind: input, shape index: {}]
  %s1 = inlined_call_operand.vmem [shape: bf16[9,4,128], index: 1, kind: input, shape index: {}]
  %s2 = inlined_call_operand.vmem [shape: f32[1,128], index: 2, kind: input, shape index: {}]
  %s3 = inlined_call_operand.vmem [shape: bf16[2,256,128], index: 3, kind: output, shape index: {}]
  %s4 = sld [smem:[#allocation0]]
  $region45: #{_lambda_.4} parent=0
    _
  %s6 = ssub.s32 1, %s4
  %s7 = scalar_select 0, %s6, %s4
  loop: start=0, step=1, limit=4
  $region2: #{_lambda_.4} parent=0 // loop_pre_header
    _
  $region3: #{_lambda_.4} parent=0 // loop_header
    %s9 = sphi 0, %s13
    %p10 = scmp.ge.s32.totalorder %s9, 4
    %s19 = sphi 0, %s21
    %s22 = sphi 0, %s19
    %s23 = sphi 0, %s22
    %s39 = sphi 0, %s23
    %s43 = sphi 0, %s43
    %s45 = sphi 0, %s43
    %s46 = sphi 0, %s45
    %s60 = sphi 0, %s46
    %s64 = sphi 0, %s64
    %s66 = sphi 0, %s64
    %s67 = sphi 0, %s66
    %s81 = sphi 0, %s67
    %s87 = sphi 0, %s89
    %s90 = sphi 0, %s87
    %s91 = sphi 0, %s90
    %s107 = sphi 0, %s91
  $region4: #{_lambda_.4} parent=0 // loop_header_branch
    %12 = sbr.rel (%p10) target = $region8
  $region5: #{_lambda_.4} parent=0 // loop_body
    %s14 = ssub.s32 %s9, 1
    %s15 = ssub.s32 %s9, 2
    %s16 = sadd.s32 %s9, 1
    %s17 = ssub.s32 %s9, %s16
    %p18 = scmp.eq.s32.totalorder %s17, 0
    %s20 = sadd.s32 %s19, 1
    %s21 = scalar_select %p18, %s19, %s20
    %p24 = pneg %p18
    %p25 = scmp.eq.s32.totalorder %s9, 1
    %p26 = por %p24, %p25
    %p27 = scmp.ne.s32.totalorder %s19, %s22
    %p28 = scmp.eq.s32.totalorder %s9, 0
    %p29 = por %p27, %p28
    %p30 = scmp.ne.s32.totalorder %s19, %s22
    %p31 = scmp.eq.s32.totalorder %s14, 1
    %p32 = por %p30, %p31
    %p33 = scmp.ne.s32.totalorder %s22, %s23
    %p34 = scmp.eq.s32.totalorder %s14, 0
    %p35 = por %p33, %p34
    %p36 = scmp.ne.s32.totalorder %s22, %s23
    %p37 = scmp.eq.s32.totalorder %s15, 1
    %p38 = por %p36, %p37
    %p40 = scmp.ne.s32.totalorder %s23, %s39
    %p41 = scmp.eq.s32.totalorder %s15, 0
    %p42 = por %p40, %p41
    %s44 = sadd.s32 %s43, 1
    %p47 = scmp.eq.s32.totalorder %s9, 1
    %p48 = scmp.ne.s32.totalorder %s43, %s45
    %p49 = scmp.eq.s32.totalorder %s9, 0
    %p50 = por %p48, %p49
    %p51 = scmp.ne.s32.totalorder %s43, %s45
    %p52 = scmp.eq.s32.totalorder %s14, 1
    %p53 = por %p51, %p52
    %p54 = scmp.ne.s32.totalorder %s45, %s46
    %p55 = scmp.eq.s32.totalorder %s14, 0
    %p56 = por %p54, %p55
    %p57 = scmp.ne.s32.totalorder %s45, %s46
    %p58 = scmp.eq.s32.totalorder %s15, 1
    %p59 = por %p57, %p58
    %p61 = scmp.ne.s32.totalorder %s46, %s60
    %p62 = scmp.eq.s32.totalorder %s15, 0
    %p63 = por %p61, %p62
    %s65 = sadd.s32 %s64, 1
    %p68 = scmp.eq.s32.totalorder %s9, 1
    %p69 = scmp.ne.s32.totalorder %s64, %s66
    %p70 = scmp.eq.s32.totalorder %s9, 0
    %p71 = por %p69, %p70
    %p72 = scmp.ne.s32.totalorder %s64, %s66
    %p73 = scmp.eq.s32.totalorder %s14, 1
    %p74 = por %p72, %p73
    %p75 = scmp.ne.s32.totalorder %s66, %s67
    %p76 = scmp.eq.s32.totalorder %s14, 0
    %p77 = por %p75, %p76
    %p78 = scmp.ne.s32.totalorder %s66, %s67
    %p79 = scmp.eq.s32.totalorder %s15, 1
    %p80 = por %p78, %p79
    %p82 = scmp.ne.s32.totalorder %s67, %s81
    %p83 = scmp.eq.s32.totalorder %s15, 0
    %p84 = por %p82, %p83
    %s85 = ssub.s32 %s9, %s16
    %p86 = scmp.eq.s32.totalorder %s85, 0
    %s88 = sadd.s32 %s87, 1
    %s89 = scalar_select %p86, %s87, %s88
    %p92 = pneg %p86
    %p93 = scmp.eq.s32.totalorder %s9, 1
    %p94 = por %p92, %p93
    %p95 = scmp.ne.s32.totalorder %s87, %s90
    %p96 = scmp.eq.s32.totalorder %s9, 0
    %p97 = por %p95, %p96
    %p98 = scmp.ne.s32.totalorder %s87, %s90
    %p99 = scmp.eq.s32.totalorder %s14, 1
    %p100 = por %p98, %p99
    %p101 = scmp.ne.s32.totalorder %s90, %s91
    %p102 = scmp.eq.s32.totalorder %s14, 0
    %p103 = por %p101, %p102
    %p104 = scmp.ne.s32.totalorder %s90, %s91
    %p105 = scmp.eq.s32.totalorder %s15, 1
    %p106 = por %p104, %p105
    %p108 = scmp.ne.s32.totalorder %s91, %s107
    %p109 = scmp.eq.s32.totalorder %s15, 0
    %p110 = por %p108, %p109
    %p111 = scmp.le.s32.totalorder 1, %s9
    %p112 = scmp.lt.s32.totalorder %s9, 3
    %p113 = pnand %p111, %p112
    %p114 = pneg %p113
    // Predicated region
    $region9: #{_lambda_.4} parent=5 // pred_check
      _
    $region10: #{_lambda_.4} parent=5 // pred_check_branch
      %116 = sbr.rel (%p113) target = $region12
    $region11: #{_lambda_.4} parent=5 // pred_region
      %s117 = ssub.s32 %s9, 1
      // Predicated region
      $region13: #{_lambda_.4} parent=11 // pred_check
        %p118 = pneg %p56
      $region14: #{_lambda_.4} parent=11 // pred_check_branch
        %120 = sbr.rel (%p118) target = $region16
      $region15: #{_lambda_.4} parent=11 // pred_region
        _
      $region16: #{_lambda_.4} parent=11 // pred_fallthru
        _
      // Predicated region
      $region17: #{_lambda_.4} parent=11 // pred_check
        %p121 = pneg %p77
      $region18: #{_lambda_.4} parent=11 // pred_check_branch
        %123 = sbr.rel (%p121) target = $region20
      $region19: #{_lambda_.4} parent=11 // pred_region
        _
      $region20: #{_lambda_.4} parent=11 // pred_fallthru
        _
    $region12: #{_lambda_.4} parent=5 // pred_fallthru
      _
    %p124 = scmp.lt.s32.totalorder %s9, 2
    // Predicated region
    $region21: #{_lambda_.4} parent=5 // pred_check
      %p125 = pneg %p124
    $region22: #{_lambda_.4} parent=5 // pred_check_branch
      %127 = sbr.rel (%p125) target = $region24
    $region23: #{_lambda_.4} parent=5 // pred_region
      // Predicated region
      $region25: #{_lambda_.4} parent=23 // pred_check
        %p128 = pneg %p29
      $region26: #{_lambda_.4} parent=23 // pred_check_branch
        %130 = sbr.rel (%p128) target = $region28
      $region27: #{_lambda_.4} parent=23 // pred_region
        %p131 = scmp.lt.s32.totalorder %s9, 1
        %s132 = scalar_select %p131, %s9, 1
        %s133 = smul.addr %s132, 54
        %s134 = smul.addr %s133, 4
        %s135 = scalar_lea.vmem %s0, %s134
      $region28: #{_lambda_.4} parent=23 // pred_fallthru
        _
    $region24: #{_lambda_.4} parent=5 // pred_fallthru
      _
    %p136 = scmp.le.s32.totalorder 1, %s9
    %p137 = scmp.lt.s32.totalorder %s9, 3
    %p138 = pnand %p136, %p137
    %p139 = pneg %p138
    // Predicated region
    $region29: #{_lambda_.4} parent=5 // pred_check
      _
    $region30: #{_lambda_.4} parent=5 // pred_check_branch
      %141 = sbr.rel (%p138) target = $region32
    $region31: #{_lambda_.4} parent=5 // pred_region
      %s142 = ssub.s32 %s9, 1
      %p143 = scmp.lt.s32.totalorder %s14, 1
      %s144 = scalar_select %p143, %s14, 1
      %s145 = smul.addr %s144, 54
      %s146 = smul.addr %s145, 4
      %s147 = scalar_lea.vmem %s0, %s146
      %p148 = pneg %p35
      %p149 = pneg %p32
      %p150 = pneg %p56
      %p151 = pneg %p53
      %p152 = pneg %p77
      %p153 = pneg %p74
      %p154 = pneg %p103
      %p155 = pneg %p100
      %p156 = scmp.lt.s32.totalorder %s14, 1
      %s157 = scalar_select %p156, %s14, 1
      %s158 = smul.addr %s157, 32
      %s159 = smul.addr %s158, 4
      %s160 = scalar_lea.vmem %s3, %s159
      %p161 = scmp.lt.s32.totalorder %s14, 1
      %s162 = scalar_select %p161, %s14, 1
      %s163 = smul.addr %s162, 54
      %s164 = smul.addr %s163, 4
      %s165 = scalar_lea.vmem %s0, %s164
      %p166 = scmp.lt.s32.totalorder %s14, 1
      %s167 = scalar_select %p166, %s14, 1
      %s168 = smul.addr %s167, 32
      %s169 = smul.addr %s168, 4
      %s170 = scalar_lea.vmem %s3, %s169
      %v172 = vld [vmem:[%s165] sm:$0xf]
      %v173 = vld [vmem:[%s165 + $0x4] sm:$0xf]
      %v174 = vld [vmem:[%s165 + $0x8] sm:$0x1]
      %v175 = vld [vmem:[%s165 + $0xc] sm:$0xf]
      %v176 = vld [vmem:[%s165 + $0x10] sm:$0xf]
      %v177 = vld [vmem:[%s165 + $0x14] sm:$0x1]
      %v178 = vld [vmem:[%s165 + $0x18] sm:$0xf]
      %v179 = vld [vmem:[%s165 + $0x1c] sm:$0xf]
      %v180 = vld [vmem:[%s165 + $0x20] sm:$0x1]
      %v181 = vld [vmem:[%s165 + $0x24] sm:$0xf]
      %v182 = vld [vmem:[%s165 + $0x28] sm:$0xf]
      %v183 = vld [vmem:[%s165 + $0x2c] sm:$0x1]
      %v184 = vld [vmem:[%s165 + $0x30] sm:$0xf]
      %v185 = vld [vmem:[%s165 + $0x34] sm:$0xf]
      %v186 = vld [vmem:[%s165 + $0x38] sm:$0x1]
      %v187 = vld [vmem:[%s165 + $0x3c] sm:$0xf]
      %v188 = vld [vmem:[%s165 + $0x40] sm:$0xf]
      %v189 = vld [vmem:[%s165 + $0x44] sm:$0x1]
      %v190 = vld [vmem:[%s165 + $0x48] sm:$0xf]
      %v191 = vld [vmem:[%s165 + $0x4c] sm:$0xf]
      %v192 = vld [vmem:[%s165 + $0x50] sm:$0x1]
      %v193 = vld [vmem:[%s165 + $0x54] sm:$0xf]
      %v194 = vld [vmem:[%s165 + $0x58] sm:$0xf]
      %v195 = vld [vmem:[%s165 + $0x5c] sm:$0x1]
      %v196 = vld [vmem:[%s165 + $0x60] sm:$0xf]
      %v197 = vld [vmem:[%s165 + $0x64] sm:$0xf]
      %v198 = vld [vmem:[%s165 + $0x68] sm:$0x1]
      %v199 = vld [vmem:[%s165 + $0x6c] sm:$0xf]
      %v200 = vld [vmem:[%s165 + $0x70] sm:$0xf]
      %v201 = vld [vmem:[%s165 + $0x74] sm:$0x1]
      %v202 = vld [vmem:[%s165 + $0x78] sm:$0xf]
      %v203 = vld [vmem:[%s165 + $0x7c] sm:$0xf]
      %v204 = vld [vmem:[%s165 + $0x80] sm:$0x1]
      %v205 = vld [vmem:[%s165 + $0x84] sm:$0xf]
      %v206 = vld [vmem:[%s165 + $0x88] sm:$0xf]
      %v207 = vld [vmem:[%s165 + $0x8c] sm:$0x1]
      %v208 = vld [vmem:[%s165 + $0x90] sm:$0xf]
      %v209 = vld [vmem:[%s165 + $0x94] sm:$0xf]
      %v210 = vld [vmem:[%s165 + $0x98] sm:$0x1]
      %v211 = vld [vmem:[%s165 + $0x9c] sm:$0xf]
      %v212 = vld [vmem:[%s165 + $0xa0] sm:$0xf]
      %v213 = vld [vmem:[%s165 + $0xa4] sm:$0x1]
      %v214 = vld [vmem:[%s165 + $0xa8] sm:$0xf]
      %v215 = vld [vmem:[%s165 + $0xac] sm:$0xf]
      %v216 = vld [vmem:[%s165 + $0xb0] sm:$0x1]
      %v217 = vld [vmem:[%s165 + $0xb4] sm:$0xf]
      %v218 = vld [vmem:[%s165 + $0xb8] sm:$0xf]
      %v219 = vld [vmem:[%s165 + $0xbc] sm:$0x1]
      %v220 = vld [vmem:[%s165 + $0xc0] sm:$0xf]
      %v221 = vld [vmem:[%s165 + $0xc4] sm:$0xf]
      %v222 = vld [vmem:[%s165 + $0xc8] sm:$0x1]
      %v223 = vld [vmem:[%s165 + $0xcc] sm:$0xf]
      %v224 = vld [vmem:[%s165 + $0xd0] sm:$0xf]
      %v225 = vld [vmem:[%s165 + $0xd4] sm:$0x1]
      %v226 = vunpack.c.l.bf16 %v172
      %v227 = vunpack.c.l.bf16 %v173
      %v228 = vunpack.c.l.bf16 %v174
      %v229 = vunpack.c.l.bf16 %v175
      %v230 = vunpack.c.l.bf16 %v176
      %v231 = vunpack.c.l.bf16 %v177
      %v232 = vunpack.c.l.bf16 %v178
      %v233 = vunpack.c.l.bf16 %v179
      %v234 = vunpack.c.l.bf16 %v180
      %v235 = vunpack.c.l.bf16 %v181
      %v236 = vunpack.c.l.bf16 %v182
      %v237 = vunpack.c.l.bf16 %v183
      %v238 = vunpack.c.l.bf16 %v184
      %v239 = vunpack.c.l.bf16 %v185
      %v240 = vunpack.c.l.bf16 %v186
      %v241 = vunpack.c.l.bf16 %v187
      %v242 = vunpack.c.l.bf16 %v188
      %v243 = vunpack.c.l.bf16 %v189
      %v244 = vunpack.c.l.bf16 %v190
      %v245 = vunpack.c.l.bf16 %v191
      %v246 = vunpack.c.l.bf16 %v192
      %v247 = vunpack.c.l.bf16 %v193
      %v248 = vunpack.c.l.bf16 %v194
      %v249 = vunpack.c.l.bf16 %v195
      %v250 = vunpack.c.l.bf16 %v196
      %v251 = vunpack.c.l.bf16 %v197
      %v252 = vunpack.c.l.bf16 %v198
      %v253 = vunpack.c.l.bf16 %v199
      %v254 = vunpack.c.l.bf16 %v200
      %v255 = vunpack.c.l.bf16 %v201
      %v256 = vunpack.c.l.bf16 %v202
      %v257 = vunpack.c.l.bf16 %v203
      %v258 = vunpack.c.l.bf16 %v204
      %v259 = vunpack.c.l.bf16 %v205
      %v260 = vunpack.c.l.bf16 %v206
      %v261 = vunpack.c.l.bf16 %v207
      %v262 = vunpack.c.l.bf16 %v208
      %v263 = vunpack.c.l.bf16 %v209
      %v264 = vunpack.c.l.bf16 %v210
      %v265 = vunpack.c.l.bf16 %v211
      %v266 = vunpack.c.l.bf16 %v212
      %v267 = vunpack.c.l.bf16 %v213
      %v268 = vunpack.c.l.bf16 %v214
      %v269 = vunpack.c.l.bf16 %v215
      %v270 = vunpack.c.l.bf16 %v216
      %v271 = vunpack.c.l.bf16 %v217
      %v272 = vunpack.c.l.bf16 %v218
      %v273 = vunpack.c.l.bf16 %v219
      %v274 = vunpack.c.l.bf16 %v220
      %v275 = vunpack.c.l.bf16 %v221
      %v276 = vunpack.c.l.bf16 %v222
      %v277 = vunpack.c.l.bf16 %v223
      %v278 = vunpack.c.l.bf16 %v224
      %v279 = vunpack.c.l.bf16 %v225
      %vm280 = vcmask 31744
      %281 = vst.msk [vmem:[#allocation3] sm:$0xff] %vm280, %v226
      %282 = vst.msk [vmem:[#allocation3 + $0x8] sm:$0xff] %vm280, %v227
      %vm283 = vcmask 25600
      %284 = vst.msk [vmem:[#allocation3 + $0x10] sm:$0x3] %vm283, %v228
      %285 = vst.msk [vmem:[#allocation3 + $0x18] sm:$0xff] %vm280, %v229
      %286 = vst.msk [vmem:[#allocation3 + $0x20] sm:$0xff] %vm280, %v230
      %287 = vst.msk [vmem:[#allocation3 + $0x28] sm:$0x3] %vm283, %v231
      %288 = vst.msk [vmem:[#allocation3 + $0x30] sm:$0xff] %vm280, %v232
      %289 = vst.msk [vmem:[#allocation3 + $0x38] sm:$0xff] %vm280, %v233
      %290 = vst.msk [vmem:[#allocation3 + $0x40] sm:$0x3] %vm283, %v234
      %291 = vst.msk [vmem:[#allocation3 + $0x48] sm:$0xff] %vm280, %v235
      %292 = vst.msk [vmem:[#allocation3 + $0x50] sm:$0xff] %vm280, %v236
      %293 = vst.msk [vmem:[#allocation3 + $0x58] sm:$0x3] %vm283, %v237
      %294 = vst.msk [vmem:[#allocation3 + $0x60] sm:$0xff] %vm280, %v238
      %295 = vst.msk [vmem:[#allocation3 + $0x68] sm:$0xff] %vm280, %v239
      %296 = vst.msk [vmem:[#allocation3 + $0x70] sm:$0x3] %vm283, %v240
      %297 = vst.msk [vmem:[#allocation3 + $0x78] sm:$0xff] %vm280, %v241
      %298 = vst.msk [vmem:[#allocation3 + $0x80] sm:$0xff] %vm280, %v242
      %299 = vst.msk [vmem:[#allocation3 + $0x88] sm:$0x3] %vm283, %v243
      %300 = vst.msk [vmem:[#allocation3 + $0x90] sm:$0xff] %vm280, %v244
      %301 = vst.msk [vmem:[#allocation3 + $0x98] sm:$0xff] %vm280, %v245
      %302 = vst.msk [vmem:[#allocation3 + $0xa0] sm:$0x3] %vm283, %v246
      %303 = vst.msk [vmem:[#allocation3 + $0xa8] sm:$0xff] %vm280, %v247
      %304 = vst.msk [vmem:[#allocation3 + $0xb0] sm:$0xff] %vm280, %v248
      %305 = vst.msk [vmem:[#allocation3 + $0xb8] sm:$0x3] %vm283, %v249
      %306 = vst.msk [vmem:[#allocation3 + $0xc0] sm:$0xff] %vm280, %v250
      %307 = vst.msk [vmem:[#allocation3 + $0xc8] sm:$0xff] %vm280, %v251
      %308 = vst.msk [vmem:[#allocation3 + $0xd0] sm:$0x3] %vm283, %v252
      %309 = vst.msk [vmem:[#allocation3 + $0xd8] sm:$0xff] %vm280, %v253
      %310 = vst.msk [vmem:[#allocation3 + $0xe0] sm:$0xff] %vm280, %v254
      %311 = vst.msk [vmem:[#allocation3 + $0xe8] sm:$0x3] %vm283, %v255
      %312 = vst.msk [vmem:[#allocation3 + $0xf0] sm:$0xff] %vm280, %v256
      %313 = vst.msk [vmem:[#allocation3 + $0xf8] sm:$0xff] %vm280, %v257
      %314 = vst.msk [vmem:[#allocation3 + $0x100] sm:$0x3] %vm283, %v258
      %315 = vst.msk [vmem:[#allocation3 + $0x108] sm:$0xff] %vm280, %v259
      %316 = vst.msk [vmem:[#allocation3 + $0x110] sm:$0xff] %vm280, %v260
      %317 = vst.msk [vmem:[#allocation3 + $0x118] sm:$0x3] %vm283, %v261
      %318 = vst.msk [vmem:[#allocation3 + $0x120] sm:$0xff] %vm280, %v262
      %319 = vst.msk [vmem:[#allocation3 + $0x128] sm:$0xff] %vm280, %v263
      %320 = vst.msk [vmem:[#allocation3 + $0x130] sm:$0x3] %vm283, %v264
      %321 = vst.msk [vmem:[#allocation3 + $0x138] sm:$0xff] %vm280, %v265
      %322 = vst.msk [vmem:[#allocation3 + $0x140] sm:$0xff] %vm280, %v266
      %323 = vst.msk [vmem:[#allocation3 + $0x148] sm:$0x3] %vm283, %v267
      %324 = vst.msk [vmem:[#allocation3 + $0x150] sm:$0xff] %vm280, %v268
      %325 = vst.msk [vmem:[#allocation3 + $0x158] sm:$0xff] %vm280, %v269
      %326 = vst.msk [vmem:[#allocation3 + $0x160] sm:$0x3] %vm283, %v270
      %327 = vst.msk [vmem:[#allocation3 + $0x168] sm:$0xff] %vm280, %v271
      %328 = vst.msk [vmem:[#allocation3 + $0x170] sm:$0xff] %vm280, %v272
      %329 = vst.msk [vmem:[#allocation3 + $0x178] sm:$0x3] %vm283, %v273
      %330 = vst.msk [vmem:[#allocation3 + $0x180] sm:$0xff] %vm280, %v274
      %331 = vst.msk [vmem:[#allocation3 + $0x188] sm:$0xff] %vm280, %v275
      %332 = vst.msk [vmem:[#allocation3 + $0x190] sm:$0x3] %vm283, %v276
      %333 = vst.msk [vmem:[#allocation3 + $0x198] sm:$0xff] %vm280, %v277
      %334 = vst.msk [vmem:[#allocation3 + $0x1a0] sm:$0xff] %vm280, %v278
      %335 = vst.msk [vmem:[#allocation3 + $0x1a8] sm:$0x3] %vm283, %v279
      %v336 = vld [vmem:[#allocation3] sm:$0xff]
      %v337 = vld [vmem:[#allocation3 + $0x8] sm:$0xff]
      %v338 = vld [vmem:[#allocation3 + $0x18] sm:$0xff]
      %v339 = vld [vmem:[#allocation3 + $0x20] sm:$0xff]
      %v340 = vld [vmem:[#allocation3 + $0x30] sm:$0xff]
      %v341 = vld [vmem:[#allocation3 + $0x38] sm:$0xff]
      %v342 = vld [vmem:[#allocation3 + $0x48] sm:$0xff]
      %v343 = vld [vmem:[#allocation3 + $0x50] sm:$0xff]
      %v344 = vld [vmem:[#allocation3 + $0x60] sm:$0xff]
      %v345 = vld [vmem:[#allocation3 + $0x68] sm:$0xff]
      %v346 = vld [vmem:[#allocation3 + $0x78] sm:$0xff]
      %v347 = vld [vmem:[#allocation3 + $0x80] sm:$0xff]
      %v348 = vld [vmem:[#allocation3 + $0x90] sm:$0xff]
      %v349 = vld [vmem:[#allocation3 + $0x98] sm:$0xff]
      %v350 = vld [vmem:[#allocation3 + $0xa8] sm:$0xff]
      %v351 = vld [vmem:[#allocation3 + $0xb0] sm:$0xff]
      %v352 = vld [vmem:[#allocation3 + $0xc0] sm:$0xff]
      %v353 = vld [vmem:[#allocation3 + $0xc8] sm:$0xff]
      %v354 = vld [vmem:[#allocation3 + $0xd8] sm:$0xff]
      %v355 = vld [vmem:[#allocation3 + $0xe0] sm:$0xff]
      %v356 = vld [vmem:[#allocation3 + $0xf0] sm:$0xff]
      %v357 = vld [vmem:[#allocation3 + $0xf8] sm:$0xff]
      %v358 = vld [vmem:[#allocation3 + $0x108] sm:$0xff]
      %v359 = vld [vmem:[#allocation3 + $0x110] sm:$0xff]
      %v360 = vld [vmem:[#allocation3 + $0x120] sm:$0xff]
      %v361 = vld [vmem:[#allocation3 + $0x128] sm:$0xff]
      %v362 = vld [vmem:[#allocation3 + $0x138] sm:$0xff]
      %v363 = vld [vmem:[#allocation3 + $0x140] sm:$0xff]
      %v364 = vld [vmem:[#allocation3 + $0x150] sm:$0xff]
      %v365 = vld [vmem:[#allocation3 + $0x158] sm:$0xff]
      %v366 = vld [vmem:[#allocation3 + $0x168] sm:$0xff]
      %v367 = vld [vmem:[#allocation3 + $0x170] sm:$0xff]
      %v368 = vpack.c.bf16 %v337, %v336
      %v369 = vpack.c.bf16 %v339, %v338
      %v370 = vpack.c.bf16 %v341, %v340
      %v371 = vpack.c.bf16 %v343, %v342
      %v372 = vpack.c.bf16 %v345, %v344
      %v373 = vpack.c.bf16 %v347, %v346
      %v374 = vpack.c.bf16 %v349, %v348
      %v375 = vpack.c.bf16 %v351, %v350
      %v376 = vpack.c.bf16 %v353, %v352
      %v377 = vpack.c.bf16 %v355, %v354
      %v378 = vpack.c.bf16 %v357, %v356
      %v379 = vpack.c.bf16 %v359, %v358
      %v380 = vpack.c.bf16 %v361, %v360
      %v381 = vpack.c.bf16 %v363, %v362
      %v382 = vpack.c.bf16 %v365, %v364
      %v383 = vpack.c.bf16 %v367, %v366
      %v384 = vld [vmem:[%s1] sm:$0x3]
      %v386 = vsel %vm280, %v368, 0
      %v389 = vsel %vm280, %v369, 0
      %v392 = vsel %vm280, %v370, 0
      %v395 = vsel %vm280, %v371, 0
      %v398 = vsel %vm280, %v372, 0
      %v401 = vsel %vm280, %v373, 0
      %v404 = vsel %vm280, %v374, 0
      %v407 = vsel %vm280, %v375, 0
      %v410 = vsel %vm280, %v376, 0
      %v413 = vsel %vm280, %v377, 0
      %v416 = vsel %vm280, %v378, 0
      %v419 = vsel %vm280, %v379, 0
      %v422 = vsel %vm280, %v380, 0
      %v425 = vsel %vm280, %v381, 0
      %v428 = vsel %vm280, %v382, 0
      %v431 = vsel %vm280, %v383, 0
      %vm433 = vcmask 1041408
      %v435 = vsel %vm433, %v384, 0
      %437 = vmatprep.subr.bf16.mxu0 0
      %438 = vmatpush1.bf16.msra.mxu0 0
      %439 = vmatprep.subr.bf16.mxu0 0
      %440 = vmatpush1.bf16.msra.mxu0 0
      %441 = vmatprep.subr.bf16.mxu0 0
      %442 = vmatpush1.bf16.msra.mxu0 0
      %443 = vmatprep.subr.bf16.mxu0 0
      %444 = vmatpush1.bf16.msra.mxu0 0
      %445 = vmatprep.subr.bf16.mxu0 0
      %446 = vmatpush1.bf16.msra.mxu0 0
      %447 = vmatprep.subr.bf16.mxu0 0
      %448 = vmatpush1.bf16.msra.mxu0 0
      %449 = vmatprep.subr.bf16.mxu0 0
      %450 = vmatpush1.bf16.msra.mxu0 0
      %451 = vmatprep.subr.bf16.mxu0 0
      %452 = vmatpush1.bf16.msra.mxu0 %v435
      %453 = vmatprep.subr.bf16.mxu0 0
      %454 = vmatpush2.bf16.msra.mxu0 0
      %455 = vmatprep.subr.bf16.mxu0 0
      %456 = vmatpush2.bf16.msra.mxu0 0
      %457 = vmatprep.subr.bf16.mxu0 0
      %458 = vmatpush2.bf16.msra.mxu0 0
      %459 = vmatprep.subr.bf16.mxu0 0
      %460 = vmatpush2.bf16.msra.mxu0 0
      %461 = vmatprep.subr.bf16.mxu0 0
      %462 = vmatpush2.bf16.msra.mxu0 0
      %463 = vmatprep.subr.bf16.mxu0 0
      %464 = vmatpush2.bf16.msra.mxu0 0
      %465 = vmatprep.subr.bf16.mxu0 0
      %466 = vmatpush2.bf16.msra.mxu0 0
      %467 = vmatprep.subr.bf16.mxu0 0
      %468 = vmatpush2.bf16.msra.mxu0 0
      %469 = vmatprep.mubr.bf16.mxu0 0
      %470 = vmatmul.mubr.bf16.gmra.mxu0 %v386
      %v471 = vpop.f32.mrf.mxu0
      %v472 = vadd.f32 0.0, %v471
      %v473 = vpop.f32.mrf.mxu0
      %v474 = vpop.f32.mrf.mxu0
      %v475 = vadd.f32 0.0, %v474
      %v476 = vpop.f32.mrf.mxu0
      %477 = vmatprep.mubr.bf16.mxu0 0
      %478 = vmatmul.mubr.bf16.gmra.mxu0 %v389
      %v479 = vpop.f32.mrf.mxu0
      %v480 = vadd.f32 0.0, %v479
      %v481 = vpop.f32.mrf.mxu0
      %v482 = vpop.f32.mrf.mxu0
      %v483 = vadd.f32 0.0, %v482
      %v484 = vpop.f32.mrf.mxu0
      %485 = vmatprep.mubr.bf16.mxu0 0
      %486 = vmatmul.mubr.bf16.gmra.mxu0 %v392
      %v487 = vpop.f32.mrf.mxu0
      %v488 = vadd.f32 0.0, %v487
      %v489 = vpop.f32.mrf.mxu0
      %v490 = vpop.f32.mrf.mxu0
      %v491 = vadd.f32 0.0, %v490
      %v492 = vpop.f32.mrf.mxu0
      %493 = vmatprep.mubr.bf16.mxu0 0
      %494 = vmatmul.mubr.bf16.gmra.mxu0 %v395
      %v495 = vpop.f32.mrf.mxu0
      %v496 = vadd.f32 0.0, %v495
      %v497 = vpop.f32.mrf.mxu0
      %v498 = vpop.f32.mrf.mxu0
      %v499 = vadd.f32 0.0, %v498
      %v500 = vpop.f32.mrf.mxu0
      %501 = vmatprep.mubr.bf16.mxu0 0
      %502 = vmatmul.mubr.bf16.gmra.mxu0 %v398
      %v503 = vpop.f32.mrf.mxu0
      %v504 = vadd.f32 0.0, %v503
      %v505 = vpop.f32.mrf.mxu0
      %v506 = vpop.f32.mrf.mxu0
      %v507 = vadd.f32 0.0, %v506
      %v508 = vpop.f32.mrf.mxu0
      %509 = vmatprep.mubr.bf16.mxu0 0
      %510 = vmatmul.mubr.bf16.gmra.mxu0 %v401
      %v511 = vpop.f32.mrf.mxu0
      %v512 = vadd.f32 0.0, %v511
      %v513 = vpop.f32.mrf.mxu0
      %v514 = vpop.f32.mrf.mxu0
      %v515 = vadd.f32 0.0, %v514
      %v516 = vpop.f32.mrf.mxu0
      %517 = vmatprep.mubr.bf16.mxu0 0
      %518 = vmatmul.mubr.bf16.gmra.mxu0 %v404
      %v519 = vpop.f32.mrf.mxu0
      %v520 = vadd.f32 0.0, %v519
      %v521 = vpop.f32.mrf.mxu0
      %v522 = vpop.f32.mrf.mxu0
      %v523 = vadd.f32 0.0, %v522
      %v524 = vpop.f32.mrf.mxu0
      %525 = vmatprep.mubr.bf16.mxu0 0
      %526 = vmatmul.mubr.bf16.gmra.mxu0 %v407
      %v527 = vpop.f32.mrf.mxu0
      %v528 = vadd.f32 0.0, %v527
      %v529 = vpop.f32.mrf.mxu0
      %v530 = vpop.f32.mrf.mxu0
      %v531 = vadd.f32 0.0, %v530
      %v532 = vpop.f32.mrf.mxu0
      %533 = vmatprep.mubr.bf16.mxu0 0
      %534 = vmatmul.mubr.bf16.gmra.mxu0 %v410
      %v535 = vpop.f32.mrf.mxu0
      %v536 = vadd.f32 0.0, %v535
      %v537 = vpop.f32.mrf.mxu0
      %v538 = vpop.f32.mrf.mxu0
      %v539 = vadd.f32 0.0, %v538
      %v540 = vpop.f32.mrf.mxu0
      %541 = vmatprep.mubr.bf16.mxu0 0
      %542 = vmatmul.mubr.bf16.gmra.mxu0 %v413
      %v543 = vpop.f32.mrf.mxu0
      %v544 = vadd.f32 0.0, %v543
      %v545 = vpop.f32.mrf.mxu0
      %v546 = vpop.f32.mrf.mxu0
      %v547 = vadd.f32 0.0, %v546
      %v548 = vpop.f32.mrf.mxu0
      %549 = vmatprep.mubr.bf16.mxu0 0
      %550 = vmatmul.mubr.bf16.gmra.mxu0 %v416
      %v551 = vpop.f32.mrf.mxu0
      %v552 = vadd.f32 0.0, %v551
      %v553 = vpop.f32.mrf.mxu0
      %v554 = vpop.f32.mrf.mxu0
      %v555 = vadd.f32 0.0, %v554
      %v556 = vpop.f32.mrf.mxu0
      %557 = vmatprep.mubr.bf16.mxu0 0
      %558 = vmatmul.mubr.bf16.gmra.mxu0 %v419
      %v559 = vpop.f32.mrf.mxu0
      %v560 = vadd.f32 0.0, %v559
      %v561 = vpop.f32.mrf.mxu0
      %v562 = vpop.f32.mrf.mxu0
      %v563 = vadd.f32 0.0, %v562
      %v564 = vpop.f32.mrf.mxu0
      %565 = vmatprep.mubr.bf16.mxu0 0
      %566 = vmatmul.mubr.bf16.gmra.mxu0 %v422
      %v567 = vpop.f32.mrf.mxu0
      %v568 = vadd.f32 0.0, %v567
      %v569 = vpop.f32.mrf.mxu0
      %v570 = vpop.f32.mrf.mxu0
      %v571 = vadd.f32 0.0, %v570
      %v572 = vpop.f32.mrf.mxu0
      %573 = vmatprep.mubr.bf16.mxu0 0
      %574 = vmatmul.mubr.bf16.gmra.mxu0 %v425
      %v575 = vpop.f32.mrf.mxu0
      %v576 = vadd.f32 0.0, %v575
      %v577 = vpop.f32.mrf.mxu0
      %v578 = vpop.f32.mrf.mxu0
      %v579 = vadd.f32 0.0, %v578
      %v580 = vpop.f32.mrf.mxu0
      %581 = vmatprep.mubr.bf16.mxu0 0
      %582 = vmatmul.mubr.bf16.gmra.mxu0 %v428
      %v583 = vpop.f32.mrf.mxu0
      %v584 = vadd.f32 0.0, %v583
      %v585 = vpop.f32.mrf.mxu0
      %v586 = vpop.f32.mrf.mxu0
      %v587 = vadd.f32 0.0, %v586
      %v588 = vpop.f32.mrf.mxu0
      %589 = vmatprep.mubr.bf16.mxu0 0
      %590 = vmatmul.mubr.bf16.gmra.mxu0 %v431
      %v591 = vpop.f32.mrf.mxu0
      %v592 = vadd.f32 0.0, %v591
      %v593 = vpop.f32.mrf.mxu0
      %v594 = vpop.f32.mrf.mxu0
      %v595 = vadd.f32 0.0, %v594
      %v596 = vpop.f32.mrf.mxu0
      %597 = vdwg.mxu0
      %598 = vst [vmem:[#allocation2] sm:$0xff] %v472
      %599 = vst [vmem:[#allocation2 + $0x8] sm:$0xff] %v475
      %600 = vst [vmem:[#allocation2 + $0x10] sm:$0xff] %v480
      %601 = vst [vmem:[#allocation2 + $0x18] sm:$0xff] %v483
      %602 = vst [vmem:[#allocation2 + $0x20] sm:$0xff] %v488
      %603 = vst [vmem:[#allocation2 + $0x28] sm:$0xff] %v491
      %604 = vst [vmem:[#allocation2 + $0x30] sm:$0xff] %v496
      %605 = vst [vmem:[#allocation2 + $0x38] sm:$0xff] %v499
      %606 = vst [vmem:[#allocation2 + $0x40] sm:$0xff] %v504
      %607 = vst [vmem:[#allocation2 + $0x48] sm:$0xff] %v507
      %608 = vst [vmem:[#allocation2 + $0x50] sm:$0xff] %v512
      %609 = vst [vmem:[#allocation2 + $0x58] sm:$0xff] %v515
      %610 = vst [vmem:[#allocation2 + $0x60] sm:$0xff] %v520
      %611 = vst [vmem:[#allocation2 + $0x68] sm:$0xff] %v523
      %612 = vst [vmem:[#allocation2 + $0x70] sm:$0xff] %v528
      %613 = vst [vmem:[#allocation2 + $0x78] sm:$0xff] %v531
      %614 = vst [vmem:[#allocation2 + $0x80] sm:$0xff] %v536
      %615 = vst [vmem:[#allocation2 + $0x88] sm:$0xff] %v539
      %616 = vst [vmem:[#allocation2 + $0x90] sm:$0xff] %v544
      %617 = vst [vmem:[#allocation2 + $0x98] sm:$0xff] %v547
      %618 = vst [vmem:[#allocation2 + $0xa0] sm:$0xff] %v552
      %619 = vst [vmem:[#allocation2 + $0xa8] sm:$0xff] %v555
      %620 = vst [vmem:[#allocation2 + $0xb0] sm:$0xff] %v560
      %621 = vst [vmem:[#allocation2 + $0xb8] sm:$0xff] %v563
      %622 = vst [vmem:[#allocation2 + $0xc0] sm:$0xff] %v568
      %623 = vst [vmem:[#allocation2 + $0xc8] sm:$0xff] %v571
      %624 = vst [vmem:[#allocation2 + $0xd0] sm:$0xff] %v576
      %625 = vst [vmem:[#allocation2 + $0xd8] sm:$0xff] %v579
      %626 = vst [vmem:[#allocation2 + $0xe0] sm:$0xff] %v584
      %627 = vst [vmem:[#allocation2 + $0xe8] sm:$0xff] %v587
      %628 = vst [vmem:[#allocation2 + $0xf0] sm:$0xff] %v592
      %629 = vst [vmem:[#allocation2 + $0xf8] sm:$0xff] %v595
      %v630 = vld [vmem:[#allocation3 + $0x1] sm:$0xff]
      %v631 = vld [vmem:[#allocation3 + $0x9] sm:$0xff]
      %v632 = vld [vmem:[#allocation3 + $0x19] sm:$0xff]
      %v633 = vld [vmem:[#allocation3 + $0x21] sm:$0xff]
      %v634 = vld [vmem:[#allocation3 + $0x31] sm:$0xff]
      %v635 = vld [vmem:[#allocation3 + $0x39] sm:$0xff]
      %v636 = vld [vmem:[#allocation3 + $0x49] sm:$0xff]
      %v637 = vld [vmem:[#allocation3 + $0x51] sm:$0xff]
      %v638 = vld [vmem:[#allocation3 + $0x61] sm:$0xff]
      %v639 = vld [vmem:[#allocation3 + $0x69] sm:$0xff]
      %v640 = vld [vmem:[#allocation3 + $0x79] sm:$0xff]
      %v641 = vld [vmem:[#allocation3 + $0x81] sm:$0xff]
      %v642 = vld [vmem:[#allocation3 + $0x91] sm:$0xff]
      %v643 = vld [vmem:[#allocation3 + $0x99] sm:$0xff]
      %v644 = vld [vmem:[#allocation3 + $0xa9] sm:$0xff]
      %v645 = vld [vmem:[#allocation3 + $0xb1] sm:$0xff]
      %v646 = vld [vmem:[#allocation3 + $0xc1] sm:$0xff]
      %v647 = vld [vmem:[#allocation3 + $0xc9] sm:$0xff]
      %v648 = vld [vmem:[#allocation3 + $0xd9] sm:$0xff]
      %v649 = vld [vmem:[#allocation3 + $0xe1] sm:$0xff]
      %v650 = vld [vmem:[#allocation3 + $0xf1] sm:$0xff]
      %v651 = vld [vmem:[#allocation3 + $0xf9] sm:$0xff]
      %v652 = vld [vmem:[#allocation3 + $0x109] sm:$0xff]
      %v653 = vld [vmem:[#allocation3 + $0x111] sm:$0xff]
      %v654 = vld [vmem:[#allocation3 + $0x121] sm:$0xff]
      %v655 = vld [vmem:[#allocation3 + $0x129] sm:$0xff]
      %v656 = vld [vmem:[#allocation3 + $0x139] sm:$0xff]
      %v657 = vld [vmem:[#allocation3 + $0x141] sm:$0xff]
      %v658 = vld [vmem:[#allocation3 + $0x151] sm:$0xff]
      %v659 = vld [vmem:[#allocation3 + $0x159] sm:$0xff]
      %v660 = vld [vmem:[#allocation3 + $0x169] sm:$0xff]
      %v661 = vld [vmem:[#allocation3 + $0x171] sm:$0xff]
      %v662 = vpack.c.bf16 %v631, %v630
      %v663 = vpack.c.bf16 %v633, %v632
      %v664 = vpack.c.bf16 %v635, %v634
      %v665 = vpack.c.bf16 %v637, %v636
      %v666 = vpack.c.bf16 %v639, %v638
      %v667 = vpack.c.bf16 %v641, %v640
      %v668 = vpack.c.bf16 %v643, %v642
      %v669 = vpack.c.bf16 %v645, %v644
      %v670 = vpack.c.bf16 %v647, %v646
      %v671 = vpack.c.bf16 %v649, %v648
      %v672 = vpack.c.bf16 %v651, %v650
      %v673 = vpack.c.bf16 %v653, %v652
      %v674 = vpack.c.bf16 %v655, %v654
      %v675 = vpack.c.bf16 %v657, %v656
      %v676 = vpack.c.bf16 %v659, %v658
      %v677 = vpack.c.bf16 %v661, %v660
      %s678 = scalar_lea.vmem %s1, 2
      %v679 = vld [vmem:[%s678] sm:$0x3]
      %v681 = vsel %vm280, %v662, 0
      %v684 = vsel %vm280, %v663, 0
      %v687 = vsel %vm280, %v664, 0
      %v690 = vsel %vm280, %v665, 0
      %v693 = vsel %vm280, %v666, 0
      %v696 = vsel %vm280, %v667, 0
      %v699 = vsel %vm280, %v668, 0
      %v702 = vsel %vm280, %v669, 0
      %v705 = vsel %vm280, %v670, 0
      %v708 = vsel %vm280, %v671, 0
      %v711 = vsel %vm280, %v672, 0
      %v714 = vsel %vm280, %v673, 0
      %v717 = vsel %vm280, %v674, 0
      %v720 = vsel %vm280, %v675, 0
      %v723 = vsel %vm280, %v676, 0
      %v726 = vsel %vm280, %v677, 0
      %v729 = vsel %vm433, %v679, 0
      %731 = vmatprep.subr.bf16.mxu0 0
      %732 = vmatpush1.bf16.msra.mxu0 0
      %733 = vmatprep.subr.bf16.mxu0 0
      %734 = vmatpush1.bf16.msra.mxu0 0
      %735 = vmatprep.subr.bf16.mxu0 0
      %736 = vmatpush1.bf16.msra.mxu0 0
      %737 = vmatprep.subr.bf16.mxu0 0
      %738 = vmatpush1.bf16.msra.mxu0 0
      %739 = vmatprep.subr.bf16.mxu0 0
      %740 = vmatpush1.bf16.msra.mxu0 0
      %741 = vmatprep.subr.bf16.mxu0 0
      %742 = vmatpush1.bf16.msra.mxu0 0
      %743 = vmatprep.subr.bf16.mxu0 0
      %744 = vmatpush1.bf16.msra.mxu0 0
      %745 = vmatprep.subr.bf16.mxu0 0
      %746 = vmatpush1.bf16.msra.mxu0 %v729
      %747 = vmatprep.subr.bf16.mxu0 0
      %748 = vmatpush2.bf16.msra.mxu0 0
      %749 = vmatprep.subr.bf16.mxu0 0
      %750 = vmatpush2.bf16.msra.mxu0 0
      %751 = vmatprep.subr.bf16.mxu0 0
      %752 = vmatpush2.bf16.msra.mxu0 0
      %753 = vmatprep.subr.bf16.mxu0 0
      %754 = vmatpush2.bf16.msra.mxu0 0
      %755 = vmatprep.subr.bf16.mxu0 0
      %756 = vmatpush2.bf16.msra.mxu0 0
      %757 = vmatprep.subr.bf16.mxu0 0
      %758 = vmatpush2.bf16.msra.mxu0 0
      %759 = vmatprep.subr.bf16.mxu0 0
      %760 = vmatpush2.bf16.msra.mxu0 0
      %761 = vmatprep.subr.bf16.mxu0 0
      %762 = vmatpush2.bf16.msra.mxu0 0
      %763 = vmatprep.mubr.bf16.mxu0 0
      %764 = vmatmul.mubr.bf16.gmra.mxu0 %v681
      %v765 = vpop.f32.mrf.mxu0
      %v766 = vadd.f32 0.0, %v765
      %v767 = vpop.f32.mrf.mxu0
      %v768 = vpop.f32.mrf.mxu0
      %v769 = vadd.f32 0.0, %v768
      %v770 = vpop.f32.mrf.mxu0
      %771 = vmatprep.mubr.bf16.mxu0 0
      %772 = vmatmul.mubr.bf16.gmra.mxu0 %v684
      %v773 = vpop.f32.mrf.mxu0
      %v774 = vadd.f32 0.0, %v773
      %v775 = vpop.f32.mrf.mxu0
      %v776 = vpop.f32.mrf.mxu0
      %v777 = vadd.f32 0.0, %v776
      %v778 = vpop.f32.mrf.mxu0
      %779 = vmatprep.mubr.bf16.mxu0 0
      %780 = vmatmul.mubr.bf16.gmra.mxu0 %v687
      %v781 = vpop.f32.mrf.mxu0
      %v782 = vadd.f32 0.0, %v781
      %v783 = vpop.f32.mrf.mxu0
      %v784 = vpop.f32.mrf.mxu0
      %v785 = vadd.f32 0.0, %v784
      %v786 = vpop.f32.mrf.mxu0
      %787 = vmatprep.mubr.bf16.mxu0 0
      %788 = vmatmul.mubr.bf16.gmra.mxu0 %v690
      %v789 = vpop.f32.mrf.mxu0
      %v790 = vadd.f32 0.0, %v789
      %v791 = vpop.f32.mrf.mxu0
      %v792 = vpop.f32.mrf.mxu0
      %v793 = vadd.f32 0.0, %v792
      %v794 = vpop.f32.mrf.mxu0
      %795 = vmatprep.mubr.bf16.mxu0 0
      %796 = vmatmul.mubr.bf16.gmra.mxu0 %v693
      %v797 = vpop.f32.mrf.mxu0
      %v798 = vadd.f32 0.0, %v797
      %v799 = vpop.f32.mrf.mxu0
      %v800 = vpop.f32.mrf.mxu0
      %v801 = vadd.f32 0.0, %v800
      %v802 = vpop.f32.mrf.mxu0
      %803 = vmatprep.mubr.bf16.mxu0 0
      %804 = vmatmul.mubr.bf16.gmra.mxu0 %v696
      %v805 = vpop.f32.mrf.mxu0
      %v806 = vadd.f32 0.0, %v805
      %v807 = vpop.f32.mrf.mxu0
      %v808 = vpop.f32.mrf.mxu0
      %v809 = vadd.f32 0.0, %v808
      %v810 = vpop.f32.mrf.mxu0
      %811 = vmatprep.mubr.bf16.mxu0 0
      %812 = vmatmul.mubr.bf16.gmra.mxu0 %v699
      %v813 = vpop.f32.mrf.mxu0
      %v814 = vadd.f32 0.0, %v813
      %v815 = vpop.f32.mrf.mxu0
      %v816 = vpop.f32.mrf.mxu0
      %v817 = vadd.f32 0.0, %v816
      %v818 = vpop.f32.mrf.mxu0
      %819 = vmatprep.mubr.bf16.mxu0 0
      %820 = vmatmul.mubr.bf16.gmra.mxu0 %v702
      %v821 = vpop.f32.mrf.mxu0
      %v822 = vadd.f32 0.0, %v821
      %v823 = vpop.f32.mrf.mxu0
      %v824 = vpop.f32.mrf.mxu0
      %v825 = vadd.f32 0.0, %v824
      %v826 = vpop.f32.mrf.mxu0
      %827 = vmatprep.mubr.bf16.mxu0 0
      %828 = vmatmul.mubr.bf16.gmra.mxu0 %v705
      %v829 = vpop.f32.mrf.mxu0
      %v830 = vadd.f32 0.0, %v829
      %v831 = vpop.f32.mrf.mxu0
      %v832 = vpop.f32.mrf.mxu0
      %v833 = vadd.f32 0.0, %v832
      %v834 = vpop.f32.mrf.mxu0
      %835 = vmatprep.mubr.bf16.mxu0 0
      %836 = vmatmul.mubr.bf16.gmra.mxu0 %v708
      %v837 = vpop.f32.mrf.mxu0
      %v838 = vadd.f32 0.0, %v837
      %v839 = vpop.f32.mrf.mxu0
      %v840 = vpop.f32.mrf.mxu0
      %v841 = vadd.f32 0.0, %v840
      %v842 = vpop.f32.mrf.mxu0
      %843 = vmatprep.mubr.bf16.mxu0 0
      %844 = vmatmul.mubr.bf16.gmra.mxu0 %v711
      %v845 = vpop.f32.mrf.mxu0
      %v846 = vadd.f32 0.0, %v845
      %v847 = vpop.f32.mrf.mxu0
      %v848 = vpop.f32.mrf.mxu0
      %v849 = vadd.f32 0.0, %v848
      %v850 = vpop.f32.mrf.mxu0
      %851 = vmatprep.mubr.bf16.mxu0 0
      %852 = vmatmul.mubr.bf16.gmra.mxu0 %v714
      %v853 = vpop.f32.mrf.mxu0
      %v854 = vadd.f32 0.0, %v853
      %v855 = vpop.f32.mrf.mxu0
      %v856 = vpop.f32.mrf.mxu0
      %v857 = vadd.f32 0.0, %v856
      %v858 = vpop.f32.mrf.mxu0
      %859 = vmatprep.mubr.bf16.mxu0 0
      %860 = vmatmul.mubr.bf16.gmra.mxu0 %v717
      %v861 = vpop.f32.mrf.mxu0
      %v862 = vadd.f32 0.0, %v861
      %v863 = vpop.f32.mrf.mxu0
      %v864 = vpop.f32.mrf.mxu0
      %v865 = vadd.f32 0.0, %v864
      %v866 = vpop.f32.mrf.mxu0
      %867 = vmatprep.mubr.bf16.mxu0 0
      %868 = vmatmul.mubr.bf16.gmra.mxu0 %v720
      %v869 = vpop.f32.mrf.mxu0
      %v870 = vadd.f32 0.0, %v869
      %v871 = vpop.f32.mrf.mxu0
      %v872 = vpop.f32.mrf.mxu0
      %v873 = vadd.f32 0.0, %v872
      %v874 = vpop.f32.mrf.mxu0
      %875 = vmatprep.mubr.bf16.mxu0 0
      %876 = vmatmul.mubr.bf16.gmra.mxu0 %v723
      %v877 = vpop.f32.mrf.mxu0
      %v878 = vadd.f32 0.0, %v877
      %v879 = vpop.f32.mrf.mxu0
      %v880 = vpop.f32.mrf.mxu0
      %v881 = vadd.f32 0.0, %v880
      %v882 = vpop.f32.mrf.mxu0
      %883 = vmatprep.mubr.bf16.mxu0 0
      %884 = vmatmul.mubr.bf16.gmra.mxu0 %v726
      %v885 = vpop.f32.mrf.mxu0
      %v886 = vadd.f32 0.0, %v885
      %v887 = vpop.f32.mrf.mxu0
      %v888 = vpop.f32.mrf.mxu0
      %v889 = vadd.f32 0.0, %v888
      %v890 = vpop.f32.mrf.mxu0
      %891 = vdwg.mxu0
      %v892 = vld [vmem:[#allocation2] sm:$0xff]
      %v893 = vld [vmem:[#allocation2 + $0x8] sm:$0xff]
      %v894 = vld [vmem:[#allocation2 + $0x10] sm:$0xff]
      %v895 = vld [vmem:[#allocation2 + $0x18] sm:$0xff]
      %v896 = vld [vmem:[#allocation2 + $0x20] sm:$0xff]
      %v897 = vld [vmem:[#allocation2 + $0x28] sm:$0xff]
      %v898 = vld [vmem:[#allocation2 + $0x30] sm:$0xff]
      %v899 = vld [vmem:[#allocation2 + $0x38] sm:$0xff]
      %v900 = vld [vmem:[#allocation2 + $0x40] sm:$0xff]
      %v901 = vld [vmem:[#allocation2 + $0x48] sm:$0xff]
      %v902 = vld [vmem:[#allocation2 + $0x50] sm:$0xff]
      %v903 = vld [vmem:[#allocation2 + $0x58] sm:$0xff]
      %v904 = vld [vmem:[#allocation2 + $0x60] sm:$0xff]
      %v905 = vld [vmem:[#allocation2 + $0x68] sm:$0xff]
      %v906 = vld [vmem:[#allocation2 + $0x70] sm:$0xff]
      %v907 = vld [vmem:[#allocation2 + $0x78] sm:$0xff]
      %v908 = vld [vmem:[#allocation2 + $0x80] sm:$0xff]
      %v909 = vld [vmem:[#allocation2 + $0x88] sm:$0xff]
      %v910 = vld [vmem:[#allocation2 + $0x90] sm:$0xff]
      %v911 = vld [vmem:[#allocation2 + $0x98] sm:$0xff]
      %v912 = vld [vmem:[#allocation2 + $0xa0] sm:$0xff]
      %v913 = vld [vmem:[#allocation2 + $0xa8] sm:$0xff]
      %v914 = vld [vmem:[#allocation2 + $0xb0] sm:$0xff]
      %v915 = vld [vmem:[#allocation2 + $0xb8] sm:$0xff]
      %v916 = vld [vmem:[#allocation2 + $0xc0] sm:$0xff]
      %v917 = vld [vmem:[#allocation2 + $0xc8] sm:$0xff]
      %v918 = vld [vmem:[#allocation2 + $0xd0] sm:$0xff]
      %v919 = vld [vmem:[#allocation2 + $0xd8] sm:$0xff]
      %v920 = vld [vmem:[#allocation2 + $0xe0] sm:$0xff]
      %v921 = vld [vmem:[#allocation2 + $0xe8] sm:$0xff]
      %v922 = vld [vmem:[#allocation2 + $0xf0] sm:$0xff]
      %v923 = vld [vmem:[#allocation2 + $0xf8] sm:$0xff]
      %v924 = vadd.f32 %v892, %v766
      %v925 = vadd.f32 %v893, %v769
      %v926 = vadd.f32 %v894, %v774
      %v927 = vadd.f32 %v895, %v777
      %v928 = vadd.f32 %v896, %v782
      %v929 = vadd.f32 %v897, %v785
      %v930 = vadd.f32 %v898, %v790
      %v931 = vadd.f32 %v899, %v793
      %v932 = vadd.f32 %v900, %v798
      %v933 = vadd.f32 %v901, %v801
      %v934 = vadd.f32 %v902, %v806
      %v935 = vadd.f32 %v903, %v809
      %v936 = vadd.f32 %v904, %v814
      %v937 = vadd.f32 %v905, %v817
      %v938 = vadd.f32 %v906, %v822
      %v939 = vadd.f32 %v907, %v825
      %v940 = vadd.f32 %v908, %v830
      %v941 = vadd.f32 %v909, %v833
      %v942 = vadd.f32 %v910, %v838
      %v943 = vadd.f32 %v911, %v841
      %v944 = vadd.f32 %v912, %v846
      %v945 = vadd.f32 %v913, %v849
      %v946 = vadd.f32 %v914, %v854
      %v947 = vadd.f32 %v915, %v857
      %v948 = vadd.f32 %v916, %v862
      %v949 = vadd.f32 %v917, %v865
      %v950 = vadd.f32 %v918, %v870
      %v951 = vadd.f32 %v919, %v873
      %v952 = vadd.f32 %v920, %v878
      %v953 = vadd.f32 %v921, %v881
      %v954 = vadd.f32 %v922, %v886
      %v955 = vadd.f32 %v923, %v889
      %956 = vst [vmem:[#allocation2] sm:$0xff] %v924
      %957 = vst [vmem:[#allocation2 + $0x8] sm:$0xff] %v925
      %958 = vst [vmem:[#allocation2 + $0x10] sm:$0xff] %v926
      %959 = vst [vmem:[#allocation2 + $0x18] sm:$0xff] %v927
      %960 = vst [vmem:[#allocation2 + $0x20] sm:$0xff] %v928
      %961 = vst [vmem:[#allocation2 + $0x28] sm:$0xff] %v929
      %962 = vst [vmem:[#allocation2 + $0x30] sm:$0xff] %v930
      %963 = vst [vmem:[#allocation2 + $0x38] sm:$0xff] %v931
      %964 = vst [vmem:[#allocation2 + $0x40] sm:$0xff] %v932
      %965 = vst [vmem:[#allocation2 + $0x48] sm:$0xff] %v933
      %966 = vst [vmem:[#allocation2 + $0x50] sm:$0xff] %v934
      %967 = vst [vmem:[#allocation2 + $0x58] sm:$0xff] %v935
      %968 = vst [vmem:[#allocation2 + $0x60] sm:$0xff] %v936
      %969 = vst [vmem:[#allocation2 + $0x68] sm:$0xff] %v937
      %970 = vst [vmem:[#allocation2 + $0x70] sm:$0xff] %v938
      %971 = vst [vmem:[#allocation2 + $0x78] sm:$0xff] %v939
      %972 = vst [vmem:[#allocation2 + $0x80] sm:$0xff] %v940
      %973 = vst [vmem:[#allocation2 + $0x88] sm:$0xff] %v941
      %974 = vst [vmem:[#allocation2 + $0x90] sm:$0xff] %v942
      %975 = vst [vmem:[#allocation2 + $0x98] sm:$0xff] %v943
      %976 = vst [vmem:[#allocation2 + $0xa0] sm:$0xff] %v944
      %977 = vst [vmem:[#allocation2 + $0xa8] sm:$0xff] %v945
      %978 = vst [vmem:[#allocation2 + $0xb0] sm:$0xff] %v946
      %979 = vst [vmem:[#allocation2 + $0xb8] sm:$0xff] %v947
      %980 = vst [vmem:[#allocation2 + $0xc0] sm:$0xff] %v948
      %981 = vst [vmem:[#allocation2 + $0xc8] sm:$0xff] %v949
      %982 = vst [vmem:[#allocation2 + $0xd0] sm:$0xff] %v950
      %983 = vst [vmem:[#allocation2 + $0xd8] sm:$0xff] %v951
      %984 = vst [vmem:[#allocation2 + $0xe0] sm:$0xff] %v952
      %985 = vst [vmem:[#allocation2 + $0xe8] sm:$0xff] %v953
      %986 = vst [vmem:[#allocation2 + $0xf0] sm:$0xff] %v954
      %987 = vst [vmem:[#allocation2 + $0xf8] sm:$0xff] %v955
      %v988 = vld [vmem:[#allocation3 + $0x2] sm:$0xff]
      %v989 = vld [vmem:[#allocation3 + $0xa] sm:$0xff]
      %v990 = vld [vmem:[#allocation3 + $0x1a] sm:$0xff]
      %v991 = vld [vmem:[#allocation3 + $0x22] sm:$0xff]
      %v992 = vld [vmem:[#allocation3 + $0x32] sm:$0xff]
      %v993 = vld [vmem:[#allocation3 + $0x3a] sm:$0xff]
      %v994 = vld [vmem:[#allocation3 + $0x4a] sm:$0xff]
      %v995 = vld [vmem:[#allocation3 + $0x52] sm:$0xff]
      %v996 = vld [vmem:[#allocation3 + $0x62] sm:$0xff]
      %v997 = vld [vmem:[#allocation3 + $0x6a] sm:$0xff]
      %v998 = vld [vmem:[#allocation3 + $0x7a] sm:$0xff]
      %v999 = vld [vmem:[#allocation3 + $0x82] sm:$0xff]
      %v1000 = vld [vmem:[#allocation3 + $0x92] sm:$0xff]
      %v1001 = vld [vmem:[#allocation3 + $0x9a] sm:$0xff]
      %v1002 = vld [vmem:[#allocation3 + $0xaa] sm:$0xff]
      %v1003 = vld [vmem:[#allocation3 + $0xb2] sm:$0xff]
      %v1004 = vld [vmem:[#allocation3 + $0xc2] sm:$0xff]
      %v1005 = vld [vmem:[#allocation3 + $0xca] sm:$0xff]
      %v1006 = vld [vmem:[#allocation3 + $0xda] sm:$0xff]
      %v1007 = vld [vmem:[#allocation3 + $0xe2] sm:$0xff]
      %v1008 = vld [vmem:[#allocation3 + $0xf2] sm:$0xff]
      %v1009 = vld [vmem:[#allocation3 + $0xfa] sm:$0xff]
      %v1010 = vld [vmem:[#allocation3 + $0x10a] sm:$0xff]
      %v1011 = vld [vmem:[#allocation3 + $0x112] sm:$0xff]
      %v1012 = vld [vmem:[#allocation3 + $0x122] sm:$0xff]
      %v1013 = vld [vmem:[#allocation3 + $0x12a] sm:$0xff]
      %v1014 = vld [vmem:[#allocation3 + $0x13a] sm:$0xff]
      %v1015 = vld [vmem:[#allocation3 + $0x142] sm:$0xff]
      %v1016 = vld [vmem:[#allocation3 + $0x152] sm:$0xff]
      %v1017 = vld [vmem:[#allocation3 + $0x15a] sm:$0xff]
      %v1018 = vld [vmem:[#allocation3 + $0x16a] sm:$0xff]
      %v1019 = vld [vmem:[#allocation3 + $0x172] sm:$0xff]
      %v1020 = vpack.c.bf16 %v989, %v988
      %v1021 = vpack.c.bf16 %v991, %v990
      %v1022 = vpack.c.bf16 %v993, %v992
      %v1023 = vpack.c.bf16 %v995, %v994
      %v1024 = vpack.c.bf16 %v997, %v996
      %v1025 = vpack.c.bf16 %v999, %v998
      %v1026 = vpack.c.bf16 %v1001, %v1000
      %v1027 = vpack.c.bf16 %v1003, %v1002
      %v1028 = vpack.c.bf16 %v1005, %v1004
      %v1029 = vpack.c.bf16 %v1007, %v1006
      %v1030 = vpack.c.bf16 %v1009, %v1008
      %v1031 = vpack.c.bf16 %v1011, %v1010
      %v1032 = vpack.c.bf16 %v1013, %v1012
      %v1033 = vpack.c.bf16 %v1015, %v1014
      %v1034 = vpack.c.bf16 %v1017, %v1016
      %v1035 = vpack.c.bf16 %v1019, %v1018
      %s1036 = scalar_lea.vmem %s1, 4
      %v1037 = vld [vmem:[%s1036] sm:$0x3]
      %v1039 = vsel %vm280, %v1020, 0
      %v1042 = vsel %vm280, %v1021, 0
      %v1045 = vsel %vm280, %v1022, 0
      %v1048 = vsel %vm280, %v1023, 0
      %v1051 = vsel %vm280, %v1024, 0
      %v1054 = vsel %vm280, %v1025, 0
      %v1057 = vsel %vm280, %v1026, 0
      %v1060 = vsel %vm280, %v1027, 0
      %v1063 = vsel %vm280, %v1028, 0
      %v1066 = vsel %vm280, %v1029, 0
      %v1069 = vsel %vm280, %v1030, 0
      %v1072 = vsel %vm280, %v1031, 0
      %v1075 = vsel %vm280, %v1032, 0
      %v1078 = vsel %vm280, %v1033, 0
      %v1081 = vsel %vm280, %v1034, 0
      %v1084 = vsel %vm280, %v1035, 0
      %v1087 = vsel %vm433, %v1037, 0
      %1089 = vmatprep.subr.bf16.mxu0 0
      %1090 = vmatpush1.bf16.msra.mxu0 0
      %1091 = vmatprep.subr.bf16.mxu0 0
      %1092 = vmatpush1.bf16.msra.mxu0 0
      %1093 = vmatprep.subr.bf16.mxu0 0
      %1094 = vmatpush1.bf16.msra.mxu0 0
      %1095 = vmatprep.subr.bf16.mxu0 0
      %1096 = vmatpush1.bf16.msra.mxu0 0
      %1097 = vmatprep.subr.bf16.mxu0 0
      %1098 = vmatpush1.bf16.msra.mxu0 0
      %1099 = vmatprep.subr.bf16.mxu0 0
      %1100 = vmatpush1.bf16.msra.mxu0 0
      %1101 = vmatprep.subr.bf16.mxu0 0
      %1102 = vmatpush1.bf16.msra.mxu0 0
      %1103 = vmatprep.subr.bf16.mxu0 0
      %1104 = vmatpush1.bf16.msra.mxu0 %v1087
      %1105 = vmatprep.subr.bf16.mxu0 0
      %1106 = vmatpush2.bf16.msra.mxu0 0
      %1107 = vmatprep.subr.bf16.mxu0 0
      %1108 = vmatpush2.bf16.msra.mxu0 0
      %1109 = vmatprep.subr.bf16.mxu0 0
      %1110 = vmatpush2.bf16.msra.mxu0 0
      %1111 = vmatprep.subr.bf16.mxu0 0
      %1112 = vmatpush2.bf16.msra.mxu0 0
      %1113 = vmatprep.subr.bf16.mxu0 0
      %1114 = vmatpush2.bf16.msra.mxu0 0
      %1115 = vmatprep.subr.bf16.mxu0 0
      %1116 = vmatpush2.bf16.msra.mxu0 0
      %1117 = vmatprep.subr.bf16.mxu0 0
      %1118 = vmatpush2.bf16.msra.mxu0 0
      %1119 = vmatprep.subr.bf16.mxu0 0
      %1120 = vmatpush2.bf16.msra.mxu0 0
      %1121 = vmatprep.mubr.bf16.mxu0 0
      %1122 = vmatmul.mubr.bf16.gmra.mxu0 %v1039
      %v1123 = vpop.f32.mrf.mxu0
      %v1124 = vadd.f32 0.0, %v1123
      %v1125 = vpop.f32.mrf.mxu0
      %v1126 = vpop.f32.mrf.mxu0
      %v1127 = vadd.f32 0.0, %v1126
      %v1128 = vpop.f32.mrf.mxu0
      %1129 = vmatprep.mubr.bf16.mxu0 0
      %1130 = vmatmul.mubr.bf16.gmra.mxu0 %v1042
      %v1131 = vpop.f32.mrf.mxu0
      %v1132 = vadd.f32 0.0, %v1131
      %v1133 = vpop.f32.mrf.mxu0
      %v1134 = vpop.f32.mrf.mxu0
      %v1135 = vadd.f32 0.0, %v1134
      %v1136 = vpop.f32.mrf.mxu0
      %1137 = vmatprep.mubr.bf16.mxu0 0
      %1138 = vmatmul.mubr.bf16.gmra.mxu0 %v1045
      %v1139 = vpop.f32.mrf.mxu0
      %v1140 = vadd.f32 0.0, %v1139
      %v1141 = vpop.f32.mrf.mxu0
      %v1142 = vpop.f32.mrf.mxu0
      %v1143 = vadd.f32 0.0, %v1142
      %v1144 = vpop.f32.mrf.mxu0
      %1145 = vmatprep.mubr.bf16.mxu0 0
      %1146 = vmatmul.mubr.bf16.gmra.mxu0 %v1048
      %v1147 = vpop.f32.mrf.mxu0
      %v1148 = vadd.f32 0.0, %v1147
      %v1149 = vpop.f32.mrf.mxu0
      %v1150 = vpop.f32.mrf.mxu0
      %v1151 = vadd.f32 0.0, %v1150
      %v1152 = vpop.f32.mrf.mxu0
      %1153 = vmatprep.mubr.bf16.mxu0 0
      %1154 = vmatmul.mubr.bf16.gmra.mxu0 %v1051
      %v1155 = vpop.f32.mrf.mxu0
      %v1156 = vadd.f32 0.0, %v1155
      %v1157 = vpop.f32.mrf.mxu0
      %v1158 = vpop.f32.mrf.mxu0
      %v1159 = vadd.f32 0.0, %v1158
      %v1160 = vpop.f32.mrf.mxu0
      %1161 = vmatprep.mubr.bf16.mxu0 0
      %1162 = vmatmul.mubr.bf16.gmra.mxu0 %v1054
      %v1163 = vpop.f32.mrf.mxu0
      %v1164 = vadd.f32 0.0, %v1163
      %v1165 = vpop.f32.mrf.mxu0
      %v1166 = vpop.f32.mrf.mxu0
      %v1167 = vadd.f32 0.0, %v1166
      %v1168 = vpop.f32.mrf.mxu0
      %1169 = vmatprep.mubr.bf16.mxu0 0
      %1170 = vmatmul.mubr.bf16.gmra.mxu0 %v1057
      %v1171 = vpop.f32.mrf.mxu0
      %v1172 = vadd.f32 0.0, %v1171
      %v1173 = vpop.f32.mrf.mxu0
      %v1174 = vpop.f32.mrf.mxu0
      %v1175 = vadd.f32 0.0, %v1174
      %v1176 = vpop.f32.mrf.mxu0
      %1177 = vmatprep.mubr.bf16.mxu0 0
      %1178 = vmatmul.mubr.bf16.gmra.mxu0 %v1060
      %v1179 = vpop.f32.mrf.mxu0
      %v1180 = vadd.f32 0.0, %v1179
      %v1181 = vpop.f32.mrf.mxu0
      %v1182 = vpop.f32.mrf.mxu0
      %v1183 = vadd.f32 0.0, %v1182
      %v1184 = vpop.f32.mrf.mxu0
      %1185 = vmatprep.mubr.bf16.mxu0 0
      %1186 = vmatmul.mubr.bf16.gmra.mxu0 %v1063
      %v1187 = vpop.f32.mrf.mxu0
      %v1188 = vadd.f32 0.0, %v1187
      %v1189 = vpop.f32.mrf.mxu0
      %v1190 = vpop.f32.mrf.mxu0
      %v1191 = vadd.f32 0.0, %v1190
      %v1192 = vpop.f32.mrf.mxu0
      %1193 = vmatprep.mubr.bf16.mxu0 0
      %1194 = vmatmul.mubr.bf16.gmra.mxu0 %v1066
      %v1195 = vpop.f32.mrf.mxu0
      %v1196 = vadd.f32 0.0, %v1195
      %v1197 = vpop.f32.mrf.mxu0
      %v1198 = vpop.f32.mrf.mxu0
      %v1199 = vadd.f32 0.0, %v1198
      %v1200 = vpop.f32.mrf.mxu0
      %1201 = vmatprep.mubr.bf16.mxu0 0
      %1202 = vmatmul.mubr.bf16.gmra.mxu0 %v1069
      %v1203 = vpop.f32.mrf.mxu0
      %v1204 = vadd.f32 0.0, %v1203
      %v1205 = vpop.f32.mrf.mxu0
      %v1206 = vpop.f32.mrf.mxu0
      %v1207 = vadd.f32 0.0, %v1206
      %v1208 = vpop.f32.mrf.mxu0
      %1209 = vmatprep.mubr.bf16.mxu0 0
      %1210 = vmatmul.mubr.bf16.gmra.mxu0 %v1072
      %v1211 = vpop.f32.mrf.mxu0
      %v1212 = vadd.f32 0.0, %v1211
      %v1213 = vpop.f32.mrf.mxu0
      %v1214 = vpop.f32.mrf.mxu0
      %v1215 = vadd.f32 0.0, %v1214
      %v1216 = vpop.f32.mrf.mxu0
      %1217 = vmatprep.mubr.bf16.mxu0 0
      %1218 = vmatmul.mubr.bf16.gmra.mxu0 %v1075
      %v1219 = vpop.f32.mrf.mxu0
      %v1220 = vadd.f32 0.0, %v1219
      %v1221 = vpop.f32.mrf.mxu0
      %v1222 = vpop.f32.mrf.mxu0
      %v1223 = vadd.f32 0.0, %v1222
      %v1224 = vpop.f32.mrf.mxu0
      %1225 = vmatprep.mubr.bf16.mxu0 0
      %1226 = vmatmul.mubr.bf16.gmra.mxu0 %v1078
      %v1227 = vpop.f32.mrf.mxu0
      %v1228 = vadd.f32 0.0, %v1227
      %v1229 = vpop.f32.mrf.mxu0
      %v1230 = vpop.f32.mrf.mxu0
      %v1231 = vadd.f32 0.0, %v1230
      %v1232 = vpop.f32.mrf.mxu0
      %1233 = vmatprep.mubr.bf16.mxu0 0
      %1234 = vmatmul.mubr.bf16.gmra.mxu0 %v1081
      %v1235 = vpop.f32.mrf.mxu0
      %v1236 = vadd.f32 0.0, %v1235
      %v1237 = vpop.f32.mrf.mxu0
      %v1238 = vpop.f32.mrf.mxu0
      %v1239 = vadd.f32 0.0, %v1238
      %v1240 = vpop.f32.mrf.mxu0
      %1241 = vmatprep.mubr.bf16.mxu0 0
      %1242 = vmatmul.mubr.bf16.gmra.mxu0 %v1084
      %v1243 = vpop.f32.mrf.mxu0
      %v1244 = vadd.f32 0.0, %v1243
      %v1245 = vpop.f32.mrf.mxu0
      %v1246 = vpop.f32.mrf.mxu0
      %v1247 = vadd.f32 0.0, %v1246
      %v1248 = vpop.f32.mrf.mxu0
      %1249 = vdwg.mxu0
      %v1250 = vld [vmem:[#allocation2] sm:$0xff]
      %v1251 = vld [vmem:[#allocation2 + $0x8] sm:$0xff]
      %v1252 = vld [vmem:[#allocation2 + $0x10] sm:$0xff]
      %v1253 = vld [vmem:[#allocation2 + $0x18] sm:$0xff]
      %v1254 = vld [vmem:[#allocation2 + $0x20] sm:$0xff]
      %v1255 = vld [vmem:[#allocation2 + $0x28] sm:$0xff]
      %v1256 = vld [vmem:[#allocation2 + $0x30] sm:$0xff]
      %v1257 = vld [vmem:[#allocation2 + $0x38] sm:$0xff]
      %v1258 = vld [vmem:[#allocation2 + $0x40] sm:$0xff]
      %v1259 = vld [vmem:[#allocation2 + $0x48] sm:$0xff]
      %v1260 = vld [vmem:[#allocation2 + $0x50] sm:$0xff]
      %v1261 = vld [vmem:[#allocation2 + $0x58] sm:$0xff]
      %v1262 = vld [vmem:[#allocation2 + $0x60] sm:$0xff]
      %v1263 = vld [vmem:[#allocation2 + $0x68] sm:$0xff]
      %v1264 = vld [vmem:[#allocation2 + $0x70] sm:$0xff]
      %v1265 = vld [vmem:[#allocation2 + $0x78] sm:$0xff]
      %v1266 = vld [vmem:[#allocation2 + $0x80] sm:$0xff]
      %v1267 = vld [vmem:[#allocation2 + $0x88] sm:$0xff]
      %v1268 = vld [vmem:[#allocation2 + $0x90] sm:$0xff]
      %v1269 = vld [vmem:[#allocation2 + $0x98] sm:$0xff]
      %v1270 = vld [vmem:[#allocation2 + $0xa0] sm:$0xff]
      %v1271 = vld [vmem:[#allocation2 + $0xa8] sm:$0xff]
      %v1272 = vld [vmem:[#allocation2 + $0xb0] sm:$0xff]
      %v1273 = vld [vmem:[#allocation2 + $0xb8] sm:$0xff]
      %v1274 = vld [vmem:[#allocation2 + $0xc0] sm:$0xff]
      %v1275 = vld [vmem:[#allocation2 + $0xc8] sm:$0xff]
      %v1276 = vld [vmem:[#allocation2 + $0xd0] sm:$0xff]
      %v1277 = vld [vmem:[#allocation2 + $0xd8] sm:$0xff]
      %v1278 = vld [vmem:[#allocation2 + $0xe0] sm:$0xff]
      %v1279 = vld [vmem:[#allocation2 + $0xe8] sm:$0xff]
      %v1280 = vld [vmem:[#allocation2 + $0xf0] sm:$0xff]
      %v1281 = vld [vmem:[#allocation2 + $0xf8] sm:$0xff]
      %v1282 = vadd.f32 %v1250, %v1124
      %v1283 = vadd.f32 %v1251, %v1127
      %v1284 = vadd.f32 %v1252, %v1132
      %v1285 = vadd.f32 %v1253, %v1135
      %v1286 = vadd.f32 %v1254, %v1140
      %v1287 = vadd.f32 %v1255, %v1143
      %v1288 = vadd.f32 %v1256, %v1148
      %v1289 = vadd.f32 %v1257, %v1151
      %v1290 = vadd.f32 %v1258, %v1156
      %v1291 = vadd.f32 %v1259, %v1159
      %v1292 = vadd.f32 %v1260, %v1164
      %v1293 = vadd.f32 %v1261, %v1167
      %v1294 = vadd.f32 %v1262, %v1172
      %v1295 = vadd.f32 %v1263, %v1175
      %v1296 = vadd.f32 %v1264, %v1180
      %v1297 = vadd.f32 %v1265, %v1183
      %v1298 = vadd.f32 %v1266, %v1188
      %v1299 = vadd.f32 %v1267, %v1191
      %v1300 = vadd.f32 %v1268, %v1196
      %v1301 = vadd.f32 %v1269, %v1199
      %v1302 = vadd.f32 %v1270, %v1204
      %v1303 = vadd.f32 %v1271, %v1207
      %v1304 = vadd.f32 %v1272, %v1212
      %v1305 = vadd.f32 %v1273, %v1215
      %v1306 = vadd.f32 %v1274, %v1220
      %v1307 = vadd.f32 %v1275, %v1223
      %v1308 = vadd.f32 %v1276, %v1228
      %v1309 = vadd.f32 %v1277, %v1231
      %v1310 = vadd.f32 %v1278, %v1236
      %v1311 = vadd.f32 %v1279, %v1239
      %v1312 = vadd.f32 %v1280, %v1244
      %v1313 = vadd.f32 %v1281, %v1247
      %1314 = vst [vmem:[#allocation2] sm:$0xff] %v1282
      %1315 = vst [vmem:[#allocation2 + $0x8] sm:$0xff] %v1283
      %1316 = vst [vmem:[#allocation2 + $0x10] sm:$0xff] %v1284
      %1317 = vst [vmem:[#allocation2 + $0x18] sm:$0xff] %v1285
      %1318 = vst [vmem:[#allocation2 + $0x20] sm:$0xff] %v1286
      %1319 = vst [vmem:[#allocation2 + $0x28] sm:$0xff] %v1287
      %1320 = vst [vmem:[#allocation2 + $0x30] sm:$0xff] %v1288
      %1321 = vst [vmem:[#allocation2 + $0x38] sm:$0xff] %v1289
      %1322 = vst [vmem:[#allocation2 + $0x40] sm:$0xff] %v1290
      %1323 = vst [vmem:[#allocation2 + $0x48] sm:$0xff] %v1291
      %1324 = vst [vmem:[#allocation2 + $0x50] sm:$0xff] %v1292
      %1325 = vst [vmem:[#allocation2 + $0x58] sm:$0xff] %v1293
      %1326 = vst [vmem:[#allocation2 + $0x60] sm:$0xff] %v1294
      %1327 = vst [vmem:[#allocation2 + $0x68] sm:$0xff] %v1295
      %1328 = vst [vmem:[#allocation2 + $0x70] sm:$0xff] %v1296
      %1329 = vst [vmem:[#allocation2 + $0x78] sm:$0xff] %v1297
      %1330 = vst [vmem:[#allocation2 + $0x80] sm:$0xff] %v1298
      %1331 = vst [vmem:[#allocation2 + $0x88] sm:$0xff] %v1299
      %1332 = vst [vmem:[#allocation2 + $0x90] sm:$0xff] %v1300
      %1333 = vst [vmem:[#allocation2 + $0x98] sm:$0xff] %v1301
      %1334 = vst [vmem:[#allocation2 + $0xa0] sm:$0xff] %v1302
      %1335 = vst [vmem:[#allocation2 + $0xa8] sm:$0xff] %v1303
      %1336 = vst [vmem:[#allocation2 + $0xb0] sm:$0xff] %v1304
      %1337 = vst [vmem:[#allocation2 + $0xb8] sm:$0xff] %v1305
      %1338 = vst [vmem:[#allocation2 + $0xc0] sm:$0xff] %v1306
      %1339 = vst [vmem:[#allocation2 + $0xc8] sm:$0xff] %v1307
      %1340 = vst [vmem:[#allocation2 + $0xd0] sm:$0xff] %v1308
      %1341 = vst [vmem:[#allocation2 + $0xd8] sm:$0xff] %v1309
      %1342 = vst [vmem:[#allocation2 + $0xe0] sm:$0xff] %v1310
      %1343 = vst [vmem:[#allocation2 + $0xe8] sm:$0xff] %v1311
      %1344 = vst [vmem:[#allocation2 + $0xf0] sm:$0xff] %v1312
      %1345 = vst [vmem:[#allocation2 + $0xf8] sm:$0xff] %v1313
      %s1346 = scalar_lea.vmem [#allocation3], 24
      %v1347 = vld [vmem:[%s1346] sm:$0xff]
      %v1348 = vld [vmem:[%s1346 + $0x8] sm:$0xff]
      %v1349 = vld [vmem:[%s1346 + $0x18] sm:$0xff]
      %v1350 = vld [vmem:[%s1346 + $0x20] sm:$0xff]
      %v1351 = vld [vmem:[%s1346 + $0x30] sm:$0xff]
      %v1352 = vld [vmem:[%s1346 + $0x38] sm:$0xff]
      %v1353 = vld [vmem:[%s1346 + $0x48] sm:$0xff]
      %v1354 = vld [vmem:[%s1346 + $0x50] sm:$0xff]
      %v1355 = vld [vmem:[%s1346 + $0x60] sm:$0xff]
      %v1356 = vld [vmem:[%s1346 + $0x68] sm:$0xff]
      %v1357 = vld [vmem:[%s1346 + $0x78] sm:$0xff]
      %v1358 = vld [vmem:[%s1346 + $0x80] sm:$0xff]
      %v1359 = vld [vmem:[%s1346 + $0x90] sm:$0xff]
      %v1360 = vld [vmem:[%s1346 + $0x98] sm:$0xff]
      %v1361 = vld [vmem:[%s1346 + $0xa8] sm:$0xff]
      %v1362 = vld [vmem:[%s1346 + $0xb0] sm:$0xff]
      %v1363 = vld [vmem:[%s1346 + $0xc0] sm:$0xff]
      %v1364 = vld [vmem:[%s1346 + $0xc8] sm:$0xff]
      %v1365 = vld [vmem:[%s1346 + $0xd8] sm:$0xff]
      %v1366 = vld [vmem:[%s1346 + $0xe0] sm:$0xff]
      %v1367 = vld [vmem:[%s1346 + $0xf0] sm:$0xff]
      %v1368 = vld [vmem:[%s1346 + $0xf8] sm:$0xff]
      %v1369 = vld [vmem:[%s1346 + $0x108] sm:$0xff]
      %v1370 = vld [vmem:[%s1346 + $0x110] sm:$0xff]
      %v1371 = vld [vmem:[%s1346 + $0x120] sm:$0xff]
      %v1372 = vld [vmem:[%s1346 + $0x128] sm:$0xff]
      %v1373 = vld [vmem:[%s1346 + $0x138] sm:$0xff]
      %v1374 = vld [vmem:[%s1346 + $0x140] sm:$0xff]
      %v1375 = vld [vmem:[%s1346 + $0x150] sm:$0xff]
      %v1376 = vld [vmem:[%s1346 + $0x158] sm:$0xff]
      %v1377 = vld [vmem:[%s1346 + $0x168] sm:$0xff]
      %v1378 = vld [vmem:[%s1346 + $0x170] sm:$0xff]
      %v1379 = vpack.c.bf16 %v1348, %v1347
      %v1380 = vpack.c.bf16 %v1350, %v1349
      %v1381 = vpack.c.bf16 %v1352, %v1351
      %v1382 = vpack.c.bf16 %v1354, %v1353
      %v1383 = vpack.c.bf16 %v1356, %v1355
      %v1384 = vpack.c.bf16 %v1358, %v1357
      %v1385 = vpack.c.bf16 %v1360, %v1359
      %v1386 = vpack.c.bf16 %v1362, %v1361
      %v1387 = vpack.c.bf16 %v1364, %v1363
      %v1388 = vpack.c.bf16 %v1366, %v1365
      %v1389 = vpack.c.bf16 %v1368, %v1367
      %v1390 = vpack.c.bf16 %v1370, %v1369
      %v1391 = vpack.c.bf16 %v1372, %v1371
      %v1392 = vpack.c.bf16 %v1374, %v1373
      %v1393 = vpack.c.bf16 %v1376, %v1375
      %v1394 = vpack.c.bf16 %v1378, %v1377
      %s1395 = scalar_lea.vmem %s1, 6
      %v1396 = vld [vmem:[%s1395] sm:$0x3]
      %v1398 = vsel %vm280, %v1379, 0
      %v1401 = vsel %vm280, %v1380, 0
      %v1404 = vsel %vm280, %v1381, 0
      %v1407 = vsel %vm280, %v1382, 0
      %v1410 = vsel %vm280, %v1383, 0
      %v1413 = vsel %vm280, %v1384, 0
      %v1416 = vsel %vm280, %v1385, 0
      %v1419 = vsel %vm280, %v1386, 0
      %v1422 = vsel %vm280, %v1387, 0
      %v1425 = vsel %vm280, %v1388, 0
      %v1428 = vsel %vm280, %v1389, 0
      %v1431 = vsel %vm280, %v1390, 0
      %v1434 = vsel %vm280, %v1391, 0
      %v1437 = vsel %vm280, %v1392, 0
      %v1440 = vsel %vm280, %v1393, 0
      %v1443 = vsel %vm280, %v1394, 0
      %v1446 = vsel %vm433, %v1396, 0
      %1448 = vmatprep.subr.bf16.mxu0 0
      %1449 = vmatpush1.bf16.msra.mxu0 0
      %1450 = vmatprep.subr.bf16.mxu0 0
      %1451 = vmatpush1.bf16.msra.mxu0 0
      %1452 = vmatprep.subr.bf16.mxu0 0
      %1453 = vmatpush1.bf16.msra.mxu0 0
      %1454 = vmatprep.subr.bf16.mxu0 0
      %1455 = vmatpush1.bf16.msra.mxu0 0
      %1456 = vmatprep.subr.bf16.mxu0 0
      %1457 = vmatpush1.bf16.msra.mxu0 0
      %1458 = vmatprep.subr.bf16.mxu0 0
      %1459 = vmatpush1.bf16.msra.mxu0 0
      %1460 = vmatprep.subr.bf16.mxu0 0
      %1461 = vmatpush1.bf16.msra.mxu0 0
      %1462 = vmatprep.subr.bf16.mxu0 0
      %1463 = vmatpush1.bf16.msra.mxu0 %v1446
      %1464 = vmatprep.subr.bf16.mxu0 0
      %1465 = vmatpush2.bf16.msra.mxu0 0
      %1466 = vmatprep.subr.bf16.mxu0 0
      %1467 = vmatpush2.bf16.msra.mxu0 0
      %1468 = vmatprep.subr.bf16.mxu0 0
      %1469 = vmatpush2.bf16.msra.mxu0 0
      %1470 = vmatprep.subr.bf16.mxu0 0
      %1471 = vmatpush2.bf16.msra.mxu0 0
      %1472 = vmatprep.subr.bf16.mxu0 0
      %1473 = vmatpush2.bf16.msra.mxu0 0
      %1474 = vmatprep.subr.bf16.mxu0 0
      %1475 = vmatpush2.bf16.msra.mxu0 0
      %1476 = vmatprep.subr.bf16.mxu0 0
      %1477 = vmatpush2.bf16.msra.mxu0 0
      %1478 = vmatprep.subr.bf16.mxu0 0
      %1479 = vmatpush2.bf16.msra.mxu0 0
      %1480 = vmatprep.mubr.bf16.mxu0 0
      %1481 = vmatmul.mubr.bf16.gmra.mxu0 %v1398
      %v1482 = vpop.f32.mrf.mxu0
      %v1483 = vadd.f32 0.0, %v1482
      %v1484 = vpop.f32.mrf.mxu0
      %v1485 = vpop.f32.mrf.mxu0
      %v1486 = vadd.f32 0.0, %v1485
      %v1487 = vpop.f32.mrf.mxu0
      %1488 = vmatprep.mubr.bf16.mxu0 0
      %1489 = vmatmul.mubr.bf16.gmra.mxu0 %v1401
      %v1490 = vpop.f32.mrf.mxu0
      %v1491 = vadd.f32 0.0, %v1490
      %v1492 = vpop.f32.mrf.mxu0
      %v1493 = vpop.f32.mrf.mxu0
      %v1494 = vadd.f32 0.0, %v1493
      %v1495 = vpop.f32.mrf.mxu0
      %1496 = vmatprep.mubr.bf16.mxu0 0
      %1497 = vmatmul.mubr.bf16.gmra.mxu0 %v1404
      %v1498 = vpop.f32.mrf.mxu0
      %v1499 = vadd.f32 0.0, %v1498
      %v1500 = vpop.f32.mrf.mxu0
      %v1501 = vpop.f32.mrf.mxu0
      %v1502 = vadd.f32 0.0, %v1501
      %v1503 = vpop.f32.mrf.mxu0
      %1504 = vmatprep.mubr.bf16.mxu0 0
      %1505 = vmatmul.mubr.bf16.gmra.mxu0 %v1407
      %v1506 = vpop.f32.mrf.mxu0
      %v1507 = vadd.f32 0.0, %v1506
      %v1508 = vpop.f32.mrf.mxu0
      %v1509 = vpop.f32.mrf.mxu0
      %v1510 = vadd.f32 0.0, %v1509
      %v1511 = vpop.f32.mrf.mxu0
      %1512 = vmatprep.mubr.bf16.mxu0 0
      %1513 = vmatmul.mubr.bf16.gmra.mxu0 %v1410
      %v1514 = vpop.f32.mrf.mxu0
      %v1515 = vadd.f32 0.0, %v1514
      %v1516 = vpop.f32.mrf.mxu0
      %v1517 = vpop.f32.mrf.mxu0
      %v1518 = vadd.f32 0.0, %v1517
      %v1519 = vpop.f32.mrf.mxu0
      %1520 = vmatprep.mubr.bf16.mxu0 0
      %1521 = vmatmul.mubr.bf16.gmra.mxu0 %v1413
      %v1522 = vpop.f32.mrf.mxu0
      %v1523 = vadd.f32 0.0, %v1522
      %v1524 = vpop.f32.mrf.mxu0
      %v1525 = vpop.f32.mrf.mxu0
      %v1526 = vadd.f32 0.0, %v1525
      %v1527 = vpop.f32.mrf.mxu0
      %1528 = vmatprep.mubr.bf16.mxu0 0
      %1529 = vmatmul.mubr.bf16.gmra.mxu0 %v1416
      %v1530 = vpop.f32.mrf.mxu0
      %v1531 = vadd.f32 0.0, %v1530
      %v1532 = vpop.f32.mrf.mxu0
      %v1533 = vpop.f32.mrf.mxu0
      %v1534 = vadd.f32 0.0, %v1533
      %v1535 = vpop.f32.mrf.mxu0
      %1536 = vmatprep.mubr.bf16.mxu0 0
      %1537 = vmatmul.mubr.bf16.gmra.mxu0 %v1419
      %v1538 = vpop.f32.mrf.mxu0
      %v1539 = vadd.f32 0.0, %v1538
      %v1540 = vpop.f32.mrf.mxu0
      %v1541 = vpop.f32.mrf.mxu0
      %v1542 = vadd.f32 0.0, %v1541
      %v1543 = vpop.f32.mrf.mxu0
      %1544 = vmatprep.mubr.bf16.mxu0 0
      %1545 = vmatmul.mubr.bf16.gmra.mxu0 %v1422
      %v1546 = vpop.f32.mrf.mxu0
      %v1547 = vadd.f32 0.0, %v1546
      %v1548 = vpop.f32.mrf.mxu0
      %v1549 = vpop.f32.mrf.mxu0
      %v1550 = vadd.f32 0.0, %v1549
      %v1551 = vpop.f32.mrf.mxu0
      %1552 = vmatprep.mubr.bf16.mxu0 0
      %1553 = vmatmul.mubr.bf16.gmra.mxu0 %v1425
      %v1554 = vpop.f32.mrf.mxu0
      %v1555 = vadd.f32 0.0, %v1554
      %v1556 = vpop.f32.mrf.mxu0
      %v1557 = vpop.f32.mrf.mxu0
      %v1558 = vadd.f32 0.0, %v1557
      %v1559 = vpop.f32.mrf.mxu0
      %1560 = vmatprep.mubr.bf16.mxu0 0
      %1561 = vmatmul.mubr.bf16.gmra.mxu0 %v1428
      %v1562 = vpop.f32.mrf.mxu0
      %v1563 = vadd.f32 0.0, %v1562
      %v1564 = vpop.f32.mrf.mxu0
      %v1565 = vpop.f32.mrf.mxu0
      %v1566 = vadd.f32 0.0, %v1565
      %v1567 = vpop.f32.mrf.mxu0
      %1568 = vmatprep.mubr.bf16.mxu0 0
      %1569 = vmatmul.mubr.bf16.gmra.mxu0 %v1431
      %v1570 = vpop.f32.mrf.mxu0
      %v1571 = vadd.f32 0.0, %v1570
      %v1572 = vpop.f32.mrf.mxu0
      %v1573 = vpop.f32.mrf.mxu0
      %v1574 = vadd.f32 0.0, %v1573
      %v1575 = vpop.f32.mrf.mxu0
      %1576 = vmatprep.mubr.bf16.mxu0 0
      %1577 = vmatmul.mubr.bf16.gmra.mxu0 %v1434
      %v1578 = vpop.f32.mrf.mxu0
      %v1579 = vadd.f32 0.0, %v1578
      %v1580 = vpop.f32.mrf.mxu0
      %v1581 = vpop.f32.mrf.mxu0
      %v1582 = vadd.f32 0.0, %v1581
      %v1583 = vpop.f32.mrf.mxu0
      %1584 = vmatprep.mubr.bf16.mxu0 0
      %1585 = vmatmul.mubr.bf16.gmra.mxu0 %v1437
      %v1586 = vpop.f32.mrf.mxu0
      %v1587 = vadd.f32 0.0, %v1586
      %v1588 = vpop.f32.mrf.mxu0
      %v1589 = vpop.f32.mrf.mxu0
      %v1590 = vadd.f32 0.0, %v1589
      %v1591 = vpop.f32.mrf.mxu0
      %1592 = vmatprep.mubr.bf16.mxu0 0
      %1593 = vmatmul.mubr.bf16.gmra.mxu0 %v1440
      %v1594 = vpop.f32.mrf.mxu0
      %v1595 = vadd.f32 0.0, %v1594
      %v1596 = vpop.f32.mrf.mxu0
      %v1597 = vpop.f32.mrf.mxu0
      %v1598 = vadd.f32 0.0, %v1597
      %v1599 = vpop.f32.mrf.mxu0
      %1600 = vmatprep.mubr.bf16.mxu0 0
      %1601 = vmatmul.mubr.bf16.gmra.mxu0 %v1443
      %v1602 = vpop.f32.mrf.mxu0
      %v1603 = vadd.f32 0.0, %v1602
      %v1604 = vpop.f32.mrf.mxu0
      %v1605 = vpop.f32.mrf.mxu0
      %v1606 = vadd.f32 0.0, %v1605
      %v1607 = vpop.f32.mrf.mxu0
      %1608 = vdwg.mxu0
      %v1609 = vld [vmem:[#allocation2] sm:$0xff]
      %v1610 = vld [vmem:[#allocation2 + $0x8] sm:$0xff]
      %v1611 = vld [vmem:[#allocation2 + $0x10] sm:$0xff]
      %v1612 = vld [vmem:[#allocation2 + $0x18] sm:$0xff]
      %v1613 = vld [vmem:[#allocation2 + $0x20] sm:$0xff]
      %v1614 = vld [vmem:[#allocation2 + $0x28] sm:$0xff]
      %v1615 = vld [vmem:[#allocation2 + $0x30] sm:$0xff]
      %v1616 = vld [vmem:[#allocation2 + $0x38] sm:$0xff]
      %v1617 = vld [vmem:[#allocation2 + $0x40] sm:$0xff]
      %v1618 = vld [vmem:[#allocation2 + $0x48] sm:$0xff]
      %v1619 = vld [vmem:[#allocation2 + $0x50] sm:$0xff]
      %v1620 = vld [vmem:[#allocation2 + $0x58] sm:$0xff]
      %v1621 = vld [vmem:[#allocation2 + $0x60] sm:$0xff]
      %v1622 = vld [vmem:[#allocation2 + $0x68] sm:$0xff]
      %v1623 = vld [vmem:[#allocation2 + $0x70] sm:$0xff]
      %v1624 = vld [vmem:[#allocation2 + $0x78] sm:$0xff]
      %v1625 = vld [vmem:[#allocation2 + $0x80] sm:$0xff]
      %v1626 = vld [vmem:[#allocation2 + $0x88] sm:$0xff]
      %v1627 = vld [vmem:[#allocation2 + $0x90] sm:$0xff]
      %v1628 = vld [vmem:[#allocation2 + $0x98] sm:$0xff]
      %v1629 = vld [vmem:[#allocation2 + $0xa0] sm:$0xff]
      %v1630 = vld [vmem:[#allocation2 + $0xa8] sm:$0xff]
      %v1631 = vld [vmem:[#allocation2 + $0xb0] sm:$0xff]
      %v1632 = vld [vmem:[#allocation2 + $0xb8] sm:$0xff]
      %v1633 = vld [vmem:[#allocation2 + $0xc0] sm:$0xff]
      %v1634 = vld [vmem:[#allocation2 + $0xc8] sm:$0xff]
      %v1635 = vld [vmem:[#allocation2 + $0xd0] sm:$0xff]
      %v1636 = vld [vmem:[#allocation2 + $0xd8] sm:$0xff]
      %v1637 = vld [vmem:[#allocation2 + $0xe0] sm:$0xff]
      %v1638 = vld [vmem:[#allocation2 + $0xe8] sm:$0xff]
      %v1639 = vld [vmem:[#allocation2 + $0xf0] sm:$0xff]
      %v1640 = vld [vmem:[#allocation2 + $0xf8] sm:$0xff]
      %v1641 = vadd.f32 %v1609, %v1483
      %v1642 = vadd.f32 %v1610, %v1486
      %v1643 = vadd.f32 %v1611, %v1491
      %v1644 = vadd.f32 %v1612, %v1494
      %v1645 = vadd.f32 %v1613, %v1499
      %v1646 = vadd.f32 %v1614, %v1502
      %v1647 = vadd.f32 %v1615, %v1507
      %v1648 = vadd.f32 %v1616, %v1510
      %v1649 = vadd.f32 %v1617, %v1515
      %v1650 = vadd.f32 %v1618, %v1518
      %v1651 = vadd.f32 %v1619, %v1523
      %v1652 = vadd.f32 %v1620, %v1526
      %v1653 = vadd.f32 %v1621, %v1531
      %v1654 = vadd.f32 %v1622, %v1534
      %v1655 = vadd.f32 %v1623, %v1539
      %v1656 = vadd.f32 %v1624, %v1542
      %v1657 = vadd.f32 %v1625, %v1547
      %v1658 = vadd.f32 %v1626, %v1550
      %v1659 = vadd.f32 %v1627, %v1555
      %v1660 = vadd.f32 %v1628, %v1558
      %v1661 = vadd.f32 %v1629, %v1563
      %v1662 = vadd.f32 %v1630, %v1566
      %v1663 = vadd.f32 %v1631, %v1571
      %v1664 = vadd.f32 %v1632, %v1574
      %v1665 = vadd.f32 %v1633, %v1579
      %v1666 = vadd.f32 %v1634, %v1582
      %v1667 = vadd.f32 %v1635, %v1587
      %v1668 = vadd.f32 %v1636, %v1590
      %v1669 = vadd.f32 %v1637, %v1595
      %v1670 = vadd.f32 %v1638, %v1598
      %v1671 = vadd.f32 %v1639, %v1603
      %v1672 = vadd.f32 %v1640, %v1606
      %1673 = vst [vmem:[#allocation2] sm:$0xff] %v1641
      %1674 = vst [vmem:[#allocation2 + $0x8] sm:$0xff] %v1642
      %1675 = vst [vmem:[#allocation2 + $0x10] sm:$0xff] %v1643
      %1676 = vst [vmem:[#allocation2 + $0x18] sm:$0xff] %v1644
      %1677 = vst [vmem:[#allocation2 + $0x20] sm:$0xff] %v1645
      %1678 = vst [vmem:[#allocation2 + $0x28] sm:$0xff] %v1646
      %1679 = vst [vmem:[#allocation2 + $0x30] sm:$0xff] %v1647
      %1680 = vst [vmem:[#allocation2 + $0x38] sm:$0xff] %v1648
      %1681 = vst [vmem:[#allocation2 + $0x40] sm:$0xff] %v1649
      %1682 = vst [vmem:[#allocation2 + $0x48] sm:$0xff] %v1650
      %1683 = vst [vmem:[#allocation2 + $0x50] sm:$0xff] %v1651
      %1684 = vst [vmem:[#allocation2 + $0x58] sm:$0xff] %v1652
      %1685 = vst [vmem:[#allocation2 + $0x60] sm:$0xff] %v1653
      %1686 = vst [vmem:[#allocation2 + $0x68] sm:$0xff] %v1654
      %1687 = vst [vmem:[#allocation2 + $0x70] sm:$0xff] %v1655
      %1688 = vst [vmem:[#allocation2 + $0x78] sm:$0xff] %v1656
      %1689 = vst [vmem:[#allocation2 + $0x80] sm:$0xff] %v1657
      %1690 = vst [vmem:[#allocation2 + $0x88] sm:$0xff] %v1658
      %1691 = vst [vmem:[#allocation2 + $0x90] sm:$0xff] %v1659
      %1692 = vst [vmem:[#allocation2 + $0x98] sm:$0xff] %v1660
      %1693 = vst [vmem:[#allocation2 + $0xa0] sm:$0xff] %v1661
      %1694 = vst [vmem:[#allocation2 + $0xa8] sm:$0xff] %v1662
      %1695 = vst [vmem:[#allocation2 + $0xb0] sm:$0xff] %v1663
      %1696 = vst [vmem:[#allocation2 + $0xb8] sm:$0xff] %v1664
      %1697 = vst [vmem:[#allocation2 + $0xc0] sm:$0xff] %v1665
      %1698 = vst [vmem:[#allocation2 + $0xc8] sm:$0xff] %v1666
      %1699 = vst [vmem:[#allocation2 + $0xd0] sm:$0xff] %v1667
      %1700 = vst [vmem:[#allocation2 + $0xd8] sm:$0xff] %v1668
      %1701 = vst [vmem:[#allocation2 + $0xe0] sm:$0xff] %v1669
      %1702 = vst [vmem:[#allocation2 + $0xe8] sm:$0xff] %v1670
      %1703 = vst [vmem:[#allocation2 + $0xf0] sm:$0xff] %v1671
      %1704 = vst [vmem:[#allocation2 + $0xf8] sm:$0xff] %v1672
      %v1705 = vld [vmem:[%s1346 + $0x1] sm:$0xff]
      %v1706 = vld [vmem:[%s1346 + $0x9] sm:$0xff]
      %v1707 = vld [vmem:[%s1346 + $0x19] sm:$0xff]
      %v1708 = vld [vmem:[%s1346 + $0x21] sm:$0xff]
      %v1709 = vld [vmem:[%s1346 + $0x31] sm:$0xff]
      %v1710 = vld [vmem:[%s1346 + $0x39] sm:$0xff]
      %v1711 = vld [vmem:[%s1346 + $0x49] sm:$0xff]
      %v1712 = vld [vmem:[%s1346 + $0x51] sm:$0xff]
      %v1713 = vld [vmem:[%s1346 + $0x61] sm:$0xff]
      %v1714 = vld [vmem:[%s1346 + $0x69] sm:$0xff]
      %v1715 = vld [vmem:[%s1346 + $0x79] sm:$0xff]
      %v1716 = vld [vmem:[%s1346 + $0x81] sm:$0xff]
      %v1717 = vld [vmem:[%s1346 + $0x91] sm:$0xff]
      %v1718 = vld [vmem:[%s1346 + $0x99] sm:$0xff]
      %v1719 = vld [vmem:[%s1346 + $0xa9] sm:$0xff]
      %v1720 = vld [vmem:[%s1346 + $0xb1] sm:$0xff]
      %v1721 = vld [vmem:[%s1346 + $0xc1] sm:$0xff]
      %v1722 = vld [vmem:[%s1346 + $0xc9] sm:$0xff]
      %v1723 = vld [vmem:[%s1346 + $0xd9] sm:$0xff]
      %v1724 = vld [vmem:[%s1346 + $0xe1] sm:$0xff]
      %v1725 = vld [vmem:[%s1346 + $0xf1] sm:$0xff]
      %v1726 = vld [vmem:[%s1346 + $0xf9] sm:$0xff]
      %v1727 = vld [vmem:[%s1346 + $0x109] sm:$0xff]
      %v1728 = vld [vmem:[%s1346 + $0x111] sm:$0xff]
      %v1729 = vld [vmem:[%s1346 + $0x121] sm:$0xff]
      %v1730 = vld [vmem:[%s1346 + $0x129] sm:$0xff]
      %v1731 = vld [vmem:[%s1346 + $0x139] sm:$0xff]
      %v1732 = vld [vmem:[%s1346 + $0x141] sm:$0xff]
      %v1733 = vld [vmem:[%s1346 + $0x151] sm:$0xff]
      %v1734 = vld [vmem:[%s1346 + $0x159] sm:$0xff]
      %v1735 = vld [vmem:[%s1346 + $0x169] sm:$0xff]
      %v1736 = vld [vmem:[%s1346 + $0x171] sm:$0xff]
      %v1737 = vpack.c.bf16 %v1706, %v1705
      %v1738 = vpack.c.bf16 %v1708, %v1707
      %v1739 = vpack.c.bf16 %v1710, %v1709
      %v1740 = vpack.c.bf16 %v1712, %v1711
      %v1741 = vpack.c.bf16 %v1714, %v1713
      %v1742 = vpack.c.bf16 %v1716, %v1715
      %v1743 = vpack.c.bf16 %v1718, %v1717
      %v1744 = vpack.c.bf16 %v1720, %v1719
      %v1745 = vpack.c.bf16 %v1722, %v1721
      %v1746 = vpack.c.bf16 %v1724, %v1723
      %v1747 = vpack.c.bf16 %v1726, %v1725
      %v1748 = vpack.c.bf16 %v1728, %v1727
      %v1749 = vpack.c.bf16 %v1730, %v1729
      %v1750 = vpack.c.bf16 %v1732, %v1731
      %v1751 = vpack.c.bf16 %v1734, %v1733
      %v1752 = vpack.c.bf16 %v1736, %v1735
      %s1753 = scalar_lea.vmem %s1, 8
      %v1754 = vld [vmem:[%s1753] sm:$0x3]
      %v1756 = vsel %vm280, %v1737, 0
      %v1759 = vsel %vm280, %v1738, 0
      %v1762 = vsel %vm280, %v1739, 0
      %v1765 = vsel %vm280, %v1740, 0
      %v1768 = vsel %vm280, %v1741, 0
      %v1771 = vsel %vm280, %v1742, 0
      %v1774 = vsel %vm280, %v1743, 0
      %v1777 = vsel %vm280, %v1744, 0
      %v1780 = vsel %vm280, %v1745, 0
      %v1783 = vsel %vm280, %v1746, 0
      %v1786 = vsel %vm280, %v1747, 0
      %v1789 = vsel %vm280, %v1748, 0
      %v1792 = vsel %vm280, %v1749, 0
      %v1795 = vsel %vm280, %v1750, 0
      %v1798 = vsel %vm280, %v1751, 0
      %v1801 = vsel %vm280, %v1752, 0
      %v1804 = vsel %vm433, %v1754, 0
      %1806 = vmatprep.subr.bf16.mxu0 0
      %1807 = vmatpush1.bf16.msra.mxu0 0
      %1808 = vmatprep.subr.bf16.mxu0 0
      %1809 = vmatpush1.bf16.msra.mxu0 0
      %1810 = vmatprep.subr.bf16.mxu0 0
      %1811 = vmatpush1.bf16.msra.mxu0 0
      %1812 = vmatprep.subr.bf16.mxu0 0
      %1813 = vmatpush1.bf16.msra.mxu0 0
      %1814 = vmatprep.subr.bf16.mxu0 0
      %1815 = vmatpush1.bf16.msra.mxu0 0
      %1816 = vmatprep.subr.bf16.mxu0 0
      %1817 = vmatpush1.bf16.msra.mxu0 0
      %1818 = vmatprep.subr.bf16.mxu0 0
      %1819 = vmatpush1.bf16.msra.mxu0 0
      %1820 = vmatprep.subr.bf16.mxu0 0
      %1821 = vmatpush1.bf16.msra.mxu0 %v1804
      %1822 = vmatprep.subr.bf16.mxu0 0
      %1823 = vmatpush2.bf16.msra.mxu0 0
      %1824 = vmatprep.subr.bf16.mxu0 0
      %1825 = vmatpush2.bf16.msra.mxu0 0
      %1826 = vmatprep.subr.bf16.mxu0 0
      %1827 = vmatpush2.bf16.msra.mxu0 0
      %1828 = vmatprep.subr.bf16.mxu0 0
      %1829 = vmatpush2.bf16.msra.mxu0 0
      %1830 = vmatprep.subr.bf16.mxu0 0
      %1831 = vmatpush2.bf16.msra.mxu0 0
      %1832 = vmatprep.subr.bf16.mxu0 0
      %1833 = vmatpush2.bf16.msra.mxu0 0
      %1834 = vmatprep.subr.bf16.mxu0 0
      %1835 = vmatpush2.bf16.msra.mxu0 0
      %1836 = vmatprep.subr.bf16.mxu0 0
      %1837 = vmatpush2.bf16.msra.mxu0 0
      %1838 = vmatprep.mubr.bf16.mxu0 0
      %1839 = vmatmul.mubr.bf16.gmra.mxu0 %v1756
      %v1840 = vpop.f32.mrf.mxu0
      %v1841 = vadd.f32 0.0, %v1840
      %v1842 = vpop.f32.mrf.mxu0
      %v1843 = vpop.f32.mrf.mxu0
      %v1844 = vadd.f32 0.0, %v1843
      %v1845 = vpop.f32.mrf.mxu0
      %1846 = vmatprep.mubr.bf16.mxu0 0
      %1847 = vmatmul.mubr.bf16.gmra.mxu0 %v1759
      %v1848 = vpop.f32.mrf.mxu0
      %v1849 = vadd.f32 0.0, %v1848
      %v1850 = vpop.f32.mrf.mxu0
      %v1851 = vpop.f32.mrf.mxu0
      %v1852 = vadd.f32 0.0, %v1851
      %v1853 = vpop.f32.mrf.mxu0
      %1854 = vmatprep.mubr.bf16.mxu0 0
      %1855 = vmatmul.mubr.bf16.gmra.mxu0 %v1762
      %v1856 = vpop.f32.mrf.mxu0
      %v1857 = vadd.f32 0.0, %v1856
      %v1858 = vpop.f32.mrf.mxu0
      %v1859 = vpop.f32.mrf.mxu0
      %v1860 = vadd.f32 0.0, %v1859
      %v1861 = vpop.f32.mrf.mxu0
      %1862 = vmatprep.mubr.bf16.mxu0 0
      %1863 = vmatmul.mubr.bf16.gmra.mxu0 %v1765
      %v1864 = vpop.f32.mrf.mxu0
      %v1865 = vadd.f32 0.0, %v1864
      %v1866 = vpop.f32.mrf.mxu0
      %v1867 = vpop.f32.mrf.mxu0
      %v1868 = vadd.f32 0.0, %v1867
      %v1869 = vpop.f32.mrf.mxu0
      %1870 = vmatprep.mubr.bf16.mxu0 0
      %1871 = vmatmul.mubr.bf16.gmra.mxu0 %v1768
      %v1872 = vpop.f32.mrf.mxu0
      %v1873 = vadd.f32 0.0, %v1872
      %v1874 = vpop.f32.mrf.mxu0
      %v1875 = vpop.f32.mrf.mxu0
      %v1876 = vadd.f32 0.0, %v1875
      %v1877 = vpop.f32.mrf.mxu0
      %1878 = vmatprep.mubr.bf16.mxu0 0
      %1879 = vmatmul.mubr.bf16.gmra.mxu0 %v1771
      %v1880 = vpop.f32.mrf.mxu0
      %v1881 = vadd.f32 0.0, %v1880
      %v1882 = vpop.f32.mrf.mxu0
      %v1883 = vpop.f32.mrf.mxu0
      %v1884 = vadd.f32 0.0, %v1883
      %v1885 = vpop.f32.mrf.mxu0
      %1886 = vmatprep.mubr.bf16.mxu0 0
      %1887 = vmatmul.mubr.bf16.gmra.mxu0 %v1774
      %v1888 = vpop.f32.mrf.mxu0
      %v1889 = vadd.f32 0.0, %v1888
      %v1890 = vpop.f32.mrf.mxu0
      %v1891 = vpop.f32.mrf.mxu0
      %v1892 = vadd.f32 0.0, %v1891
      %v1893 = vpop.f32.mrf.mxu0
      %1894 = vmatprep.mubr.bf16.mxu0 0
      %1895 = vmatmul.mubr.bf16.gmra.mxu0 %v1777
      %v1896 = vpop.f32.mrf.mxu0
      %v1897 = vadd.f32 0.0, %v1896
      %v1898 = vpop.f32.mrf.mxu0
      %v1899 = vpop.f32.mrf.mxu0
      %v1900 = vadd.f32 0.0, %v1899
      %v1901 = vpop.f32.mrf.mxu0
      %1902 = vmatprep.mubr.bf16.mxu0 0
      %1903 = vmatmul.mubr.bf16.gmra.mxu0 %v1780
      %v1904 = vpop.f32.mrf.mxu0
      %v1905 = vadd.f32 0.0, %v1904
      %v1906 = vpop.f32.mrf.mxu0
      %v1907 = vpop.f32.mrf.mxu0
      %v1908 = vadd.f32 0.0, %v1907
      %v1909 = vpop.f32.mrf.mxu0
      %1910 = vmatprep.mubr.bf16.mxu0 0
      %1911 = vmatmul.mubr.bf16.gmra.mxu0 %v1783
      %v1912 = vpop.f32.mrf.mxu0
      %v1913 = vadd.f32 0.0, %v1912
      %v1914 = vpop.f32.mrf.mxu0
      %v1915 = vpop.f32.mrf.mxu0
      %v1916 = vadd.f32 0.0, %v1915
      %v1917 = vpop.f32.mrf.mxu0
      %1918 = vmatprep.mubr.bf16.mxu0 0
      %1919 = vmatmul.mubr.bf16.gmra.mxu0 %v1786
      %v1920 = vpop.f32.mrf.mxu0
      %v1921 = vadd.f32 0.0, %v1920
      %v1922 = vpop.f32.mrf.mxu0
      %v1923 = vpop.f32.mrf.mxu0
      %v1924 = vadd.f32 0.0, %v1923
      %v1925 = vpop.f32.mrf.mxu0
      %1926 = vmatprep.mubr.bf16.mxu0 0
      %1927 = vmatmul.mubr.bf16.gmra.mxu0 %v1789
      %v1928 = vpop.f32.mrf.mxu0
      %v1929 = vadd.f32 0.0, %v1928
      %v1930 = vpop.f32.mrf.mxu0
      %v1931 = vpop.f32.mrf.mxu0
      %v1932 = vadd.f32 0.0, %v1931
      %v1933 = vpop.f32.mrf.mxu0
      %1934 = vmatprep.mubr.bf16.mxu0 0
      %1935 = vmatmul.mubr.bf16.gmra.mxu0 %v1792
      %v1936 = vpop.f32.mrf.mxu0
      %v1937 = vadd.f32 0.0, %v1936
      %v1938 = vpop.f32.mrf.mxu0
      %v1939 = vpop.f32.mrf.mxu0
      %v1940 = vadd.f32 0.0, %v1939
      %v1941 = vpop.f32.mrf.mxu0
      %1942 = vmatprep.mubr.bf16.mxu0 0
      %1943 = vmatmul.mubr.bf16.gmra.mxu0 %v1795
      %v1944 = vpop.f32.mrf.mxu0
      %v1945 = vadd.f32 0.0, %v1944
      %v1946 = vpop.f32.mrf.mxu0
      %v1947 = vpop.f32.mrf.mxu0
      %v1948 = vadd.f32 0.0, %v1947
      %v1949 = vpop.f32.mrf.mxu0
      %1950 = vmatprep.mubr.bf16.mxu0 0
      %1951 = vmatmul.mubr.bf16.gmra.mxu0 %v1798
      %v1952 = vpop.f32.mrf.mxu0
      %v1953 = vadd.f32 0.0, %v1952
      %v1954 = vpop.f32.mrf.mxu0
      %v1955 = vpop.f32.mrf.mxu0
      %v1956 = vadd.f32 0.0, %v1955
      %v1957 = vpop.f32.mrf.mxu0
      %1958 = vmatprep.mubr.bf16.mxu0 0
      %1959 = vmatmul.mubr.bf16.gmra.mxu0 %v1801
      %v1960 = vpop.f32.mrf.mxu0
      %v1961 = vadd.f32 0.0, %v1960
      %v1962 = vpop.f32.mrf.mxu0
      %v1963 = vpop.f32.mrf.mxu0
      %v1964 = vadd.f32 0.0, %v1963
      %v1965 = vpop.f32.mrf.mxu0
      %1966 = vdwg.mxu0
      %v1967 = vld [vmem:[#allocation2] sm:$0xff]
      %v1968 = vld [vmem:[#allocation2 + $0x8] sm:$0xff]
      %v1969 = vld [vmem:[#allocation2 + $0x10] sm:$0xff]
      %v1970 = vld [vmem:[#allocation2 + $0x18] sm:$0xff]
      %v1971 = vld [vmem:[#allocation2 + $0x20] sm:$0xff]
      %v1972 = vld [vmem:[#allocation2 + $0x28] sm:$0xff]
      %v1973 = vld [vmem:[#allocation2 + $0x30] sm:$0xff]
      %v1974 = vld [vmem:[#allocation2 + $0x38] sm:$0xff]
      %v1975 = vld [vmem:[#allocation2 + $0x40] sm:$0xff]
      %v1976 = vld [vmem:[#allocation2 + $0x48] sm:$0xff]
      %v1977 = vld [vmem:[#allocation2 + $0x50] sm:$0xff]
      %v1978 = vld [vmem:[#allocation2 + $0x58] sm:$0xff]
      %v1979 = vld [vmem:[#allocation2 + $0x60] sm:$0xff]
      %v1980 = vld [vmem:[#allocation2 + $0x68] sm:$0xff]
      %v1981 = vld [vmem:[#allocation2 + $0x70] sm:$0xff]
      %v1982 = vld [vmem:[#allocation2 + $0x78] sm:$0xff]
      %v1983 = vld [vmem:[#allocation2 + $0x80] sm:$0xff]
      %v1984 = vld [vmem:[#allocation2 + $0x88] sm:$0xff]
      %v1985 = vld [vmem:[#allocation2 + $0x90] sm:$0xff]
      %v1986 = vld [vmem:[#allocation2 + $0x98] sm:$0xff]
      %v1987 = vld [vmem:[#allocation2 + $0xa0] sm:$0xff]
      %v1988 = vld [vmem:[#allocation2 + $0xa8] sm:$0xff]
      %v1989 = vld [vmem:[#allocation2 + $0xb0] sm:$0xff]
      %v1990 = vld [vmem:[#allocation2 + $0xb8] sm:$0xff]
      %v1991 = vld [vmem:[#allocation2 + $0xc0] sm:$0xff]
      %v1992 = vld [vmem:[#allocation2 + $0xc8] sm:$0xff]
      %v1993 = vld [vmem:[#allocation2 + $0xd0] sm:$0xff]
      %v1994 = vld [vmem:[#allocation2 + $0xd8] sm:$0xff]
      %v1995 = vld [vmem:[#allocation2 + $0xe0] sm:$0xff]
      %v1996 = vld [vmem:[#allocation2 + $0xe8] sm:$0xff]
      %v1997 = vld [vmem:[#allocation2 + $0xf0] sm:$0xff]
      %v1998 = vld [vmem:[#allocation2 + $0xf8] sm:$0xff]
      %v1999 = vadd.f32 %v1967, %v1841
      %v2000 = vadd.f32 %v1968, %v1844
      %v2001 = vadd.f32 %v1969, %v1849
      %v2002 = vadd.f32 %v1970, %v1852
      %v2003 = vadd.f32 %v1971, %v1857
      %v2004 = vadd.f32 %v1972, %v1860
      %v2005 = vadd.f32 %v1973, %v1865
      %v2006 = vadd.f32 %v1974, %v1868
      %v2007 = vadd.f32 %v1975, %v1873
      %v2008 = vadd.f32 %v1976, %v1876
      %v2009 = vadd.f32 %v1977, %v1881
      %v2010 = vadd.f32 %v1978, %v1884
      %v2011 = vadd.f32 %v1979, %v1889
      %v2012 = vadd.f32 %v1980, %v1892
      %v2013 = vadd.f32 %v1981, %v1897
      %v2014 = vadd.f32 %v1982, %v1900
      %v2015 = vadd.f32 %v1983, %v1905
      %v2016 = vadd.f32 %v1984, %v1908
      %v2017 = vadd.f32 %v1985, %v1913
      %v2018 = vadd.f32 %v1986, %v1916
      %v2019 = vadd.f32 %v1987, %v1921
      %v2020 = vadd.f32 %v1988, %v1924
      %v2021 = vadd.f32 %v1989, %v1929
      %v2022 = vadd.f32 %v1990, %v1932
      %v2023 = vadd.f32 %v1991, %v1937
      %v2024 = vadd.f32 %v1992, %v1940
      %v2025 = vadd.f32 %v1993, %v1945
      %v2026 = vadd.f32 %v1994, %v1948
      %v2027 = vadd.f32 %v1995, %v1953
      %v2028 = vadd.f32 %v1996, %v1956
      %v2029 = vadd.f32 %v1997, %v1961
      %v2030 = vadd.f32 %v1998, %v1964
      %2031 = vst [vmem:[#allocation2] sm:$0xff] %v1999
      %2032 = vst [vmem:[#allocation2 + $0x8] sm:$0xff] %v2000
      %2033 = vst [vmem:[#allocation2 + $0x10] sm:$0xff] %v2001
      %2034 = vst [vmem:[#allocation2 + $0x18] sm:$0xff] %v2002
      %2035 = vst [vmem:[#allocation2 + $0x20] sm:$0xff] %v2003
      %2036 = vst [vmem:[#allocation2 + $0x28] sm:$0xff] %v2004
      %2037 = vst [vmem:[#allocation2 + $0x30] sm:$0xff] %v2005
      %2038 = vst [vmem:[#allocation2 + $0x38] sm:$0xff] %v2006
      %2039 = vst [vmem:[#allocation2 + $0x40] sm:$0xff] %v2007
      %2040 = vst [vmem:[#allocation2 + $0x48] sm:$0xff] %v2008
      %2041 = vst [vmem:[#allocation2 + $0x50] sm:$0xff] %v2009
      %2042 = vst [vmem:[#allocation2 + $0x58] sm:$0xff] %v2010
      %2043 = vst [vmem:[#allocation2 + $0x60] sm:$0xff] %v2011
      %2044 = vst [vmem:[#allocation2 + $0x68] sm:$0xff] %v2012
      %2045 = vst [vmem:[#allocation2 + $0x70] sm:$0xff] %v2013
      %2046 = vst [vmem:[#allocation2 + $0x78] sm:$0xff] %v2014
      %2047 = vst [vmem:[#allocation2 + $0x80] sm:$0xff] %v2015
      %2048 = vst [vmem:[#allocation2 + $0x88] sm:$0xff] %v2016
      %2049 = vst [vmem:[#allocation2 + $0x90] sm:$0xff] %v2017
      %2050 = vst [vmem:[#allocation2 + $0x98] sm:$0xff] %v2018
      %2051 = vst [vmem:[#allocation2 + $0xa0] sm:$0xff] %v2019
      %2052 = vst [vmem:[#allocation2 + $0xa8] sm:$0xff] %v2020
      %2053 = vst [vmem:[#allocation2 + $0xb0] sm:$0xff] %v2021
      %2054 = vst [vmem:[#allocation2 + $0xb8] sm:$0xff] %v2022
      %2055 = vst [vmem:[#allocation2 + $0xc0] sm:$0xff] %v2023
      %2056 = vst [vmem:[#allocation2 + $0xc8] sm:$0xff] %v2024
      %2057 = vst [vmem:[#allocation2 + $0xd0] sm:$0xff] %v2025
      %2058 = vst [vmem:[#allocation2 + $0xd8] sm:$0xff] %v2026
      %2059 = vst [vmem:[#allocation2 + $0xe0] sm:$0xff] %v2027
      %2060 = vst [vmem:[#allocation2 + $0xe8] sm:$0xff] %v2028
      %2061 = vst [vmem:[#allocation2 + $0xf0] sm:$0xff] %v2029
      %2062 = vst [vmem:[#allocation2 + $0xf8] sm:$0xff] %v2030
      %v2063 = vld [vmem:[%s1346 + $0x2] sm:$0xff]
      %v2064 = vld [vmem:[%s1346 + $0xa] sm:$0xff]
      %v2065 = vld [vmem:[%s1346 + $0x1a] sm:$0xff]
      %v2066 = vld [vmem:[%s1346 + $0x22] sm:$0xff]
      %v2067 = vld [vmem:[%s1346 + $0x32] sm:$0xff]
      %v2068 = vld [vmem:[%s1346 + $0x3a] sm:$0xff]
      %v2069 = vld [vmem:[%s1346 + $0x4a] sm:$0xff]
      %v2070 = vld [vmem:[%s1346 + $0x52] sm:$0xff]
      %v2071 = vld [vmem:[%s1346 + $0x62] sm:$0xff]
      %v2072 = vld [vmem:[%s1346 + $0x6a] sm:$0xff]
      %v2073 = vld [vmem:[%s1346 + $0x7a] sm:$0xff]
      %v2074 = vld [vmem:[%s1346 + $0x82] sm:$0xff]
      %v2075 = vld [vmem:[%s1346 + $0x92] sm:$0xff]
      %v2076 = vld [vmem:[%s1346 + $0x9a] sm:$0xff]
      %v2077 = vld [vmem:[%s1346 + $0xaa] sm:$0xff]
      %v2078 = vld [vmem:[%s1346 + $0xb2] sm:$0xff]
      %v2079 = vld [vmem:[%s1346 + $0xc2] sm:$0xff]
      %v2080 = vld [vmem:[%s1346 + $0xca] sm:$0xff]
      %v2081 = vld [vmem:[%s1346 + $0xda] sm:$0xff]
      %v2082 = vld [vmem:[%s1346 + $0xe2] sm:$0xff]
      %v2083 = vld [vmem:[%s1346 + $0xf2] sm:$0xff]
      %v2084 = vld [vmem:[%s1346 + $0xfa] sm:$0xff]
      %v2085 = vld [vmem:[%s1346 + $0x10a] sm:$0xff]
      %v2086 = vld [vmem:[%s1346 + $0x112] sm:$0xff]
      %v2087 = vld [vmem:[%s1346 + $0x122] sm:$0xff]
      %v2088 = vld [vmem:[%s1346 + $0x12a] sm:$0xff]
      %v2089 = vld [vmem:[%s1346 + $0x13a] sm:$0xff]
      %v2090 = vld [vmem:[%s1346 + $0x142] sm:$0xff]
      %v2091 = vld [vmem:[%s1346 + $0x152] sm:$0xff]
      %v2092 = vld [vmem:[%s1346 + $0x15a] sm:$0xff]
      %v2093 = vld [vmem:[%s1346 + $0x16a] sm:$0xff]
      %v2094 = vld [vmem:[%s1346 + $0x172] sm:$0xff]
      %v2095 = vpack.c.bf16 %v2064, %v2063
      %v2096 = vpack.c.bf16 %v2066, %v2065
      %v2097 = vpack.c.bf16 %v2068, %v2067
      %v2098 = vpack.c.bf16 %v2070, %v2069
      %v2099 = vpack.c.bf16 %v2072, %v2071
      %v2100 = vpack.c.bf16 %v2074, %v2073
      %v2101 = vpack.c.bf16 %v2076, %v2075
      %v2102 = vpack.c.bf16 %v2078, %v2077
      %v2103 = vpack.c.bf16 %v2080, %v2079
      %v2104 = vpack.c.bf16 %v2082, %v2081
      %v2105 = vpack.c.bf16 %v2084, %v2083
      %v2106 = vpack.c.bf16 %v2086, %v2085
      %v2107 = vpack.c.bf16 %v2088, %v2087
      %v2108 = vpack.c.bf16 %v2090, %v2089
      %v2109 = vpack.c.bf16 %v2092, %v2091
      %v2110 = vpack.c.bf16 %v2094, %v2093
      %s2111 = scalar_lea.vmem %s1, 10
      %v2112 = vld [vmem:[%s2111] sm:$0x3]
      %v2114 = vsel %vm280, %v2095, 0
      %v2117 = vsel %vm280, %v2096, 0
      %v2120 = vsel %vm280, %v2097, 0
      %v2123 = vsel %vm280, %v2098, 0
      %v2126 = vsel %vm280, %v2099, 0
      %v2129 = vsel %vm280, %v2100, 0
      %v2132 = vsel %vm280, %v2101, 0
      %v2135 = vsel %vm280, %v2102, 0
      %v2138 = vsel %vm280, %v2103, 0
      %v2141 = vsel %vm280, %v2104, 0
      %v2144 = vsel %vm280, %v2105, 0
      %v2147 = vsel %vm280, %v2106, 0
      %v2150 = vsel %vm280, %v2107, 0
      %v2153 = vsel %vm280, %v2108, 0
      %v2156 = vsel %vm280, %v2109, 0
      %v2159 = vsel %vm280, %v2110, 0
      %v2162 = vsel %vm433, %v2112, 0
      %2164 = vmatprep.subr.bf16.mxu0 0
      %2165 = vmatpush1.bf16.msra.mxu0 0
      %2166 = vmatprep.subr.bf16.mxu0 0
      %2167 = vmatpush1.bf16.msra.mxu0 0
      %2168 = vmatprep.subr.bf16.mxu0 0
      %2169 = vmatpush1.bf16.msra.mxu0 0
      %2170 = vmatprep.subr.bf16.mxu0 0
      %2171 = vmatpush1.bf16.msra.mxu0 0
      %2172 = vmatprep.subr.bf16.mxu0 0
      %2173 = vmatpush1.bf16.msra.mxu0 0
      %2174 = vmatprep.subr.bf16.mxu0 0
      %2175 = vmatpush1.bf16.msra.mxu0 0
      %2176 = vmatprep.subr.bf16.mxu0 0
      %2177 = vmatpush1.bf16.msra.mxu0 0
      %2178 = vmatprep.subr.bf16.mxu0 0
      %2179 = vmatpush1.bf16.msra.mxu0 %v2162
      %2180 = vmatprep.subr.bf16.mxu0 0
      %2181 = vmatpush2.bf16.msra.mxu0 0
      %2182 = vmatprep.subr.bf16.mxu0 0
      %2183 = vmatpush2.bf16.msra.mxu0 0
      %2184 = vmatprep.subr.bf16.mxu0 0
      %2185 = vmatpush2.bf16.msra.mxu0 0
      %2186 = vmatprep.subr.bf16.mxu0 0
      %2187 = vmatpush2.bf16.msra.mxu0 0
      %2188 = vmatprep.subr.bf16.mxu0 0
      %2189 = vmatpush2.bf16.msra.mxu0 0
      %2190 = vmatprep.subr.bf16.mxu0 0
      %2191 = vmatpush2.bf16.msra.mxu0 0
      %2192 = vmatprep.subr.bf16.mxu0 0
      %2193 = vmatpush2.bf16.msra.mxu0 0
      %2194 = vmatprep.subr.bf16.mxu0 0
      %2195 = vmatpush2.bf16.msra.mxu0 0
      %2196 = vmatprep.mubr.bf16.mxu0 0
      %2197 = vmatmul.mubr.bf16.gmra.mxu0 %v2114
      %v2198 = vpop.f32.mrf.mxu0
      %v2199 = vadd.f32 0.0, %v2198
      %v2200 = vpop.f32.mrf.mxu0
      %v2201 = vpop.f32.mrf.mxu0
      %v2202 = vadd.f32 0.0, %v2201
      %v2203 = vpop.f32.mrf.mxu0
      %2204 = vmatprep.mubr.bf16.mxu0 0
      %2205 = vmatmul.mubr.bf16.gmra.mxu0 %v2117
      %v2206 = vpop.f32.mrf.mxu0
      %v2207 = vadd.f32 0.0, %v2206
      %v2208 = vpop.f32.mrf.mxu0
      %v2209 = vpop.f32.mrf.mxu0
      %v2210 = vadd.f32 0.0, %v2209
      %v2211 = vpop.f32.mrf.mxu0
      %2212 = vmatprep.mubr.bf16.mxu0 0
      %2213 = vmatmul.mubr.bf16.gmra.mxu0 %v2120
      %v2214 = vpop.f32.mrf.mxu0
      %v2215 = vadd.f32 0.0, %v2214
      %v2216 = vpop.f32.mrf.mxu0
      %v2217 = vpop.f32.mrf.mxu0
      %v2218 = vadd.f32 0.0, %v2217
      %v2219 = vpop.f32.mrf.mxu0
      %2220 = vmatprep.mubr.bf16.mxu0 0
      %2221 = vmatmul.mubr.bf16.gmra.mxu0 %v2123
      %v2222 = vpop.f32.mrf.mxu0
      %v2223 = vadd.f32 0.0, %v2222
      %v2224 = vpop.f32.mrf.mxu0
      %v2225 = vpop.f32.mrf.mxu0
      %v2226 = vadd.f32 0.0, %v2225
      %v2227 = vpop.f32.mrf.mxu0
      %2228 = vmatprep.mubr.bf16.mxu0 0
      %2229 = vmatmul.mubr.bf16.gmra.mxu0 %v2126
      %v2230 = vpop.f32.mrf.mxu0
      %v2231 = vadd.f32 0.0, %v2230
      %v2232 = vpop.f32.mrf.mxu0
      %v2233 = vpop.f32.mrf.mxu0
      %v2234 = vadd.f32 0.0, %v2233
      %v2235 = vpop.f32.mrf.mxu0
      %2236 = vmatprep.mubr.bf16.mxu0 0
      %2237 = vmatmul.mubr.bf16.gmra.mxu0 %v2129
      %v2238 = vpop.f32.mrf.mxu0
      %v2239 = vadd.f32 0.0, %v2238
      %v2240 = vpop.f32.mrf.mxu0
      %v2241 = vpop.f32.mrf.mxu0
      %v2242 = vadd.f32 0.0, %v2241
      %v2243 = vpop.f32.mrf.mxu0
      %2244 = vmatprep.mubr.bf16.mxu0 0
      %2245 = vmatmul.mubr.bf16.gmra.mxu0 %v2132
      %v2246 = vpop.f32.mrf.mxu0
      %v2247 = vadd.f32 0.0, %v2246
      %v2248 = vpop.f32.mrf.mxu0
      %v2249 = vpop.f32.mrf.mxu0
      %v2250 = vadd.f32 0.0, %v2249
      %v2251 = vpop.f32.mrf.mxu0
      %2252 = vmatprep.mubr.bf16.mxu0 0
      %2253 = vmatmul.mubr.bf16.gmra.mxu0 %v2135
      %v2254 = vpop.f32.mrf.mxu0
      %v2255 = vadd.f32 0.0, %v2254
      %v2256 = vpop.f32.mrf.mxu0
      %v2257 = vpop.f32.mrf.mxu0
      %v2258 = vadd.f32 0.0, %v2257
      %v2259 = vpop.f32.mrf.mxu0
      %2260 = vmatprep.mubr.bf16.mxu0 0
      %2261 = vmatmul.mubr.bf16.gmra.mxu0 %v2138
      %v2262 = vpop.f32.mrf.mxu0
      %v2263 = vadd.f32 0.0, %v2262
      %v2264 = vpop.f32.mrf.mxu0
      %v2265 = vpop.f32.mrf.mxu0
      %v2266 = vadd.f32 0.0, %v2265
      %v2267 = vpop.f32.mrf.mxu0
      %2268 = vmatprep.mubr.bf16.mxu0 0
      %2269 = vmatmul.mubr.bf16.gmra.mxu0 %v2141
      %v2270 = vpop.f32.mrf.mxu0
      %v2271 = vadd.f32 0.0, %v2270
      %v2272 = vpop.f32.mrf.mxu0
      %v2273 = vpop.f32.mrf.mxu0
      %v2274 = vadd.f32 0.0, %v2273
      %v2275 = vpop.f32.mrf.mxu0
      %2276 = vmatprep.mubr.bf16.mxu0 0
      %2277 = vmatmul.mubr.bf16.gmra.mxu0 %v2144
      %v2278 = vpop.f32.mrf.mxu0
      %v2279 = vadd.f32 0.0, %v2278
      %v2280 = vpop.f32.mrf.mxu0
      %v2281 = vpop.f32.mrf.mxu0
      %v2282 = vadd.f32 0.0, %v2281
      %v2283 = vpop.f32.mrf.mxu0
      %2284 = vmatprep.mubr.bf16.mxu0 0
      %2285 = vmatmul.mubr.bf16.gmra.mxu0 %v2147
      %v2286 = vpop.f32.mrf.mxu0
      %v2287 = vadd.f32 0.0, %v2286
      %v2288 = vpop.f32.mrf.mxu0
      %v2289 = vpop.f32.mrf.mxu0
      %v2290 = vadd.f32 0.0, %v2289
      %v2291 = vpop.f32.mrf.mxu0
      %2292 = vmatprep.mubr.bf16.mxu0 0
      %2293 = vmatmul.mubr.bf16.gmra.mxu0 %v2150
      %v2294 = vpop.f32.mrf.mxu0
      %v2295 = vadd.f32 0.0, %v2294
      %v2296 = vpop.f32.mrf.mxu0
      %v2297 = vpop.f32.mrf.mxu0
      %v2298 = vadd.f32 0.0, %v2297
      %v2299 = vpop.f32.mrf.mxu0
      %2300 = vmatprep.mubr.bf16.mxu0 0
      %2301 = vmatmul.mubr.bf16.gmra.mxu0 %v2153
      %v2302 = vpop.f32.mrf.mxu0
      %v2303 = vadd.f32 0.0, %v2302
      %v2304 = vpop.f32.mrf.mxu0
      %v2305 = vpop.f32.mrf.mxu0
      %v2306 = vadd.f32 0.0, %v2305
      %v2307 = vpop.f32.mrf.mxu0
      %2308 = vmatprep.mubr.bf16.mxu0 0
      %2309 = vmatmul.mubr.bf16.gmra.mxu0 %v2156
      %v2310 = vpop.f32.mrf.mxu0
      %v2311 = vadd.f32 0.0, %v2310
      %v2312 = vpop.f32.mrf.mxu0
      %v2313 = vpop.f32.mrf.mxu0
      %v2314 = vadd.f32 0.0, %v2313
      %v2315 = vpop.f32.mrf.mxu0
      %2316 = vmatprep.mubr.bf16.mxu0 0
      %2317 = vmatmul.mubr.bf16.gmra.mxu0 %v2159
      %v2318 = vpop.f32.mrf.mxu0
      %v2319 = vadd.f32 0.0, %v2318
      %v2320 = vpop.f32.mrf.mxu0
      %v2321 = vpop.f32.mrf.mxu0
      %v2322 = vadd.f32 0.0, %v2321
      %v2323 = vpop.f32.mrf.mxu0
      %2324 = vdwg.mxu0
      %v2325 = vld [vmem:[#allocation2] sm:$0xff]
      %v2326 = vld [vmem:[#allocation2 + $0x8] sm:$0xff]
      %v2327 = vld [vmem:[#allocation2 + $0x10] sm:$0xff]
      %v2328 = vld [vmem:[#allocation2 + $0x18] sm:$0xff]
      %v2329 = vld [vmem:[#allocation2 + $0x20] sm:$0xff]
      %v2330 = vld [vmem:[#allocation2 + $0x28] sm:$0xff]
      %v2331 = vld [vmem:[#allocation2 + $0x30] sm:$0xff]
      %v2332 = vld [vmem:[#allocation2 + $0x38] sm:$0xff]
      %v2333 = vld [vmem:[#allocation2 + $0x40] sm:$0xff]
      %v2334 = vld [vmem:[#allocation2 + $0x48] sm:$0xff]
      %v2335 = vld [vmem:[#allocation2 + $0x50] sm:$0xff]
      %v2336 = vld [vmem:[#allocation2 + $0x58] sm:$0xff]
      %v2337 = vld [vmem:[#allocation2 + $0x60] sm:$0xff]
      %v2338 = vld [vmem:[#allocation2 + $0x68] sm:$0xff]
      %v2339 = vld [vmem:[#allocation2 + $0x70] sm:$0xff]
      %v2340 = vld [vmem:[#allocation2 + $0x78] sm:$0xff]
      %v2341 = vld [vmem:[#allocation2 + $0x80] sm:$0xff]
      %v2342 = vld [vmem:[#allocation2 + $0x88] sm:$0xff]
      %v2343 = vld [vmem:[#allocation2 + $0x90] sm:$0xff]
      %v2344 = vld [vmem:[#allocation2 + $0x98] sm:$0xff]
      %v2345 = vld [vmem:[#allocation2 + $0xa0] sm:$0xff]
      %v2346 = vld [vmem:[#allocation2 + $0xa8] sm:$0xff]
      %v2347 = vld [vmem:[#allocation2 + $0xb0] sm:$0xff]
      %v2348 = vld [vmem:[#allocation2 + $0xb8] sm:$0xff]
      %v2349 = vld [vmem:[#allocation2 + $0xc0] sm:$0xff]
      %v2350 = vld [vmem:[#allocation2 + $0xc8] sm:$0xff]
      %v2351 = vld [vmem:[#allocation2 + $0xd0] sm:$0xff]
      %v2352 = vld [vmem:[#allocation2 + $0xd8] sm:$0xff]
      %v2353 = vld [vmem:[#allocation2 + $0xe0] sm:$0xff]
      %v2354 = vld [vmem:[#allocation2 + $0xe8] sm:$0xff]
      %v2355 = vld [vmem:[#allocation2 + $0xf0] sm:$0xff]
      %v2356 = vld [vmem:[#allocation2 + $0xf8] sm:$0xff]
      %v2357 = vadd.f32 %v2325, %v2199
      %v2358 = vadd.f32 %v2326, %v2202
      %v2359 = vadd.f32 %v2327, %v2207
      %v2360 = vadd.f32 %v2328, %v2210
      %v2361 = vadd.f32 %v2329, %v2215
      %v2362 = vadd.f32 %v2330, %v2218
      %v2363 = vadd.f32 %v2331, %v2223
      %v2364 = vadd.f32 %v2332, %v2226
      %v2365 = vadd.f32 %v2333, %v2231
      %v2366 = vadd.f32 %v2334, %v2234
      %v2367 = vadd.f32 %v2335, %v2239
      %v2368 = vadd.f32 %v2336, %v2242
      %v2369 = vadd.f32 %v2337, %v2247
      %v2370 = vadd.f32 %v2338, %v2250
      %v2371 = vadd.f32 %v2339, %v2255
      %v2372 = vadd.f32 %v2340, %v2258
      %v2373 = vadd.f32 %v2341, %v2263
      %v2374 = vadd.f32 %v2342, %v2266
      %v2375 = vadd.f32 %v2343, %v2271
      %v2376 = vadd.f32 %v2344, %v2274
      %v2377 = vadd.f32 %v2345, %v2279
      %v2378 = vadd.f32 %v2346, %v2282
      %v2379 = vadd.f32 %v2347, %v2287
      %v2380 = vadd.f32 %v2348, %v2290
      %v2381 = vadd.f32 %v2349, %v2295
      %v2382 = vadd.f32 %v2350, %v2298
      %v2383 = vadd.f32 %v2351, %v2303
      %v2384 = vadd.f32 %v2352, %v2306
      %v2385 = vadd.f32 %v2353, %v2311
      %v2386 = vadd.f32 %v2354, %v2314
      %v2387 = vadd.f32 %v2355, %v2319
      %v2388 = vadd.f32 %v2356, %v2322
      %2389 = vst [vmem:[#allocation2] sm:$0xff] %v2357
      %2390 = vst [vmem:[#allocation2 + $0x8] sm:$0xff] %v2358
      %2391 = vst [vmem:[#allocation2 + $0x10] sm:$0xff] %v2359
      %2392 = vst [vmem:[#allocation2 + $0x18] sm:$0xff] %v2360
      %2393 = vst [vmem:[#allocation2 + $0x20] sm:$0xff] %v2361
      %2394 = vst [vmem:[#allocation2 + $0x28] sm:$0xff] %v2362
      %2395 = vst [vmem:[#allocation2 + $0x30] sm:$0xff] %v2363
      %2396 = vst [vmem:[#allocation2 + $0x38] sm:$0xff] %v2364
      %2397 = vst [vmem:[#allocation2 + $0x40] sm:$0xff] %v2365
      %2398 = vst [vmem:[#allocation2 + $0x48] sm:$0xff] %v2366
      %2399 = vst [vmem:[#allocation2 + $0x50] sm:$0xff] %v2367
      %2400 = vst [vmem:[#allocation2 + $0x58] sm:$0xff] %v2368
      %2401 = vst [vmem:[#allocation2 + $0x60] sm:$0xff] %v2369
      %2402 = vst [vmem:[#allocation2 + $0x68] sm:$0xff] %v2370
      %2403 = vst [vmem:[#allocation2 + $0x70] sm:$0xff] %v2371
      %2404 = vst [vmem:[#allocation2 + $0x78] sm:$0xff] %v2372
      %2405 = vst [vmem:[#allocation2 + $0x80] sm:$0xff] %v2373
      %2406 = vst [vmem:[#allocation2 + $0x88] sm:$0xff] %v2374
      %2407 = vst [vmem:[#allocation2 + $0x90] sm:$0xff] %v2375
      %2408 = vst [vmem:[#allocation2 + $0x98] sm:$0xff] %v2376
      %2409 = vst [vmem:[#allocation2 + $0xa0] sm:$0xff] %v2377
      %2410 = vst [vmem:[#allocation2 + $0xa8] sm:$0xff] %v2378
      %2411 = vst [vmem:[#allocation2 + $0xb0] sm:$0xff] %v2379
      %2412 = vst [vmem:[#allocation2 + $0xb8] sm:$0xff] %v2380
      %2413 = vst [vmem:[#allocation2 + $0xc0] sm:$0xff] %v2381
      %2414 = vst [vmem:[#allocation2 + $0xc8] sm:$0xff] %v2382
      %2415 = vst [vmem:[#allocation2 + $0xd0] sm:$0xff] %v2383
      %2416 = vst [vmem:[#allocation2 + $0xd8] sm:$0xff] %v2384
      %2417 = vst [vmem:[#allocation2 + $0xe0] sm:$0xff] %v2385
      %2418 = vst [vmem:[#allocation2 + $0xe8] sm:$0xff] %v2386
      %2419 = vst [vmem:[#allocation2 + $0xf0] sm:$0xff] %v2387
      %2420 = vst [vmem:[#allocation2 + $0xf8] sm:$0xff] %v2388
      %s2421 = scalar_lea.vmem [#allocation3], 48
      %v2422 = vld [vmem:[%s2421] sm:$0xff]
      %v2423 = vld [vmem:[%s2421 + $0x8] sm:$0xff]
      %v2424 = vld [vmem:[%s2421 + $0x18] sm:$0xff]
      %v2425 = vld [vmem:[%s2421 + $0x20] sm:$0xff]
      %v2426 = vld [vmem:[%s2421 + $0x30] sm:$0xff]
      %v2427 = vld [vmem:[%s2421 + $0x38] sm:$0xff]
      %v2428 = vld [vmem:[%s2421 + $0x48] sm:$0xff]
      %v2429 = vld [vmem:[%s2421 + $0x50] sm:$0xff]
      %v2430 = vld [vmem:[%s2421 + $0x60] sm:$0xff]
      %v2431 = vld [vmem:[%s2421 + $0x68] sm:$0xff]
      %v2432 = vld [vmem:[%s2421 + $0x78] sm:$0xff]
      %v2433 = vld [vmem:[%s2421 + $0x80] sm:$0xff]
      %v2434 = vld [vmem:[%s2421 + $0x90] sm:$0xff]
      %v2435 = vld [vmem:[%s2421 + $0x98] sm:$0xff]
      %v2436 = vld [vmem:[%s2421 + $0xa8] sm:$0xff]
      %v2437 = vld [vmem:[%s2421 + $0xb0] sm:$0xff]
      %v2438 = vld [vmem:[%s2421 + $0xc0] sm:$0xff]
      %v2439 = vld [vmem:[%s2421 + $0xc8] sm:$0xff]
      %v2440 = vld [vmem:[%s2421 + $0xd8] sm:$0xff]
      %v2441 = vld [vmem:[%s2421 + $0xe0] sm:$0xff]
      %v2442 = vld [vmem:[%s2421 + $0xf0] sm:$0xff]
      %v2443 = vld [vmem:[%s2421 + $0xf8] sm:$0xff]
      %v2444 = vld [vmem:[%s2421 + $0x108] sm:$0xff]
      %v2445 = vld [vmem:[%s2421 + $0x110] sm:$0xff]
      %v2446 = vld [vmem:[%s2421 + $0x120] sm:$0xff]
      %v2447 = vld [vmem:[%s2421 + $0x128] sm:$0xff]
      %v2448 = vld [vmem:[%s2421 + $0x138] sm:$0xff]
      %v2449 = vld [vmem:[%s2421 + $0x140] sm:$0xff]
      %v2450 = vld [vmem:[%s2421 + $0x150] sm:$0xff]
      %v2451 = vld [vmem:[%s2421 + $0x158] sm:$0xff]
      %v2452 = vld [vmem:[%s2421 + $0x168] sm:$0xff]
      %v2453 = vld [vmem:[%s2421 + $0x170] sm:$0xff]
      %v2454 = vpack.c.bf16 %v2423, %v2422
      %v2455 = vpack.c.bf16 %v2425, %v2424
      %v2456 = vpack.c.bf16 %v2427, %v2426
      %v2457 = vpack.c.bf16 %v2429, %v2428
      %v2458 = vpack.c.bf16 %v2431, %v2430
      %v2459 = vpack.c.bf16 %v2433, %v2432
      %v2460 = vpack.c.bf16 %v2435, %v2434
      %v2461 = vpack.c.bf16 %v2437, %v2436
      %v2462 = vpack.c.bf16 %v2439, %v2438
      %v2463 = vpack.c.bf16 %v2441, %v2440
      %v2464 = vpack.c.bf16 %v2443, %v2442
      %v2465 = vpack.c.bf16 %v2445, %v2444
      %v2466 = vpack.c.bf16 %v2447, %v2446
      %v2467 = vpack.c.bf16 %v2449, %v2448
      %v2468 = vpack.c.bf16 %v2451, %v2450
      %v2469 = vpack.c.bf16 %v2453, %v2452
      %s2470 = scalar_lea.vmem %s1, 12
      %v2471 = vld [vmem:[%s2470] sm:$0x3]
      %v2473 = vsel %vm280, %v2454, 0
      %v2476 = vsel %vm280, %v2455, 0
      %v2479 = vsel %vm280, %v2456, 0
      %v2482 = vsel %vm280, %v2457, 0
      %v2485 = vsel %vm280, %v2458, 0
      %v2488 = vsel %vm280, %v2459, 0
      %v2491 = vsel %vm280, %v2460, 0
      %v2494 = vsel %vm280, %v2461, 0
      %v2497 = vsel %vm280, %v2462, 0
      %v2500 = vsel %vm280, %v2463, 0
      %v2503 = vsel %vm280, %v2464, 0
      %v2506 = vsel %vm280, %v2465, 0
      %v2509 = vsel %vm280, %v2466, 0
      %v2512 = vsel %vm280, %v2467, 0
      %v2515 = vsel %vm280, %v2468, 0
      %v2518 = vsel %vm280, %v2469, 0
      %v2521 = vsel %vm433, %v2471, 0
      %2523 = vmatprep.subr.bf16.mxu0 0
      %2524 = vmatpush1.bf16.msra.mxu0 0
      %2525 = vmatprep.subr.bf16.mxu0 0
      %2526 = vmatpush1.bf16.msra.mxu0 0
      %2527 = vmatprep.subr.bf16.mxu0 0
      %2528 = vmatpush1.bf16.msra.mxu0 0
      %2529 = vmatprep.subr.bf16.mxu0 0
      %2530 = vmatpush1.bf16.msra.mxu0 0
      %2531 = vmatprep.subr.bf16.mxu0 0
      %2532 = vmatpush1.bf16.msra.mxu0 0
      %2533 = vmatprep.subr.bf16.mxu0 0
      %2534 = vmatpush1.bf16.msra.mxu0 0
      %2535 = vmatprep.subr.bf16.mxu0 0
      %2536 = vmatpush1.bf16.msra.mxu0 0
      %2537 = vmatprep.subr.bf16.mxu0 0
      %2538 = vmatpush1.bf16.msra.mxu0 %v2521
      %2539 = vmatprep.subr.bf16.mxu0 0
      %2540 = vmatpush2.bf16.msra.mxu0 0
      %2541 = vmatprep.subr.bf16.mxu0 0
      %2542 = vmatpush2.bf16.msra.mxu0 0
      %2543 = vmatprep.subr.bf16.mxu0 0
      %2544 = vmatpush2.bf16.msra.mxu0 0
      %2545 = vmatprep.subr.bf16.mxu0 0
      %2546 = vmatpush2.bf16.msra.mxu0 0
      %2547 = vmatprep.subr.bf16.mxu0 0
      %2548 = vmatpush2.bf16.msra.mxu0 0
      %2549 = vmatprep.subr.bf16.mxu0 0
      %2550 = vmatpush2.bf16.msra.mxu0 0
      %2551 = vmatprep.subr.bf16.mxu0 0
      %2552 = vmatpush2.bf16.msra.mxu0 0
      %2553 = vmatprep.subr.bf16.mxu0 0
      %2554 = vmatpush2.bf16.msra.mxu0 0
      %2555 = vmatprep.mubr.bf16.mxu0 0
      %2556 = vmatmul.mubr.bf16.gmra.mxu0 %v2473
      %v2557 = vpop.f32.mrf.mxu0
      %v2558 = vadd.f32 0.0, %v2557
      %v2559 = vpop.f32.mrf.mxu0
      %v2560 = vpop.f32.mrf.mxu0
      %v2561 = vadd.f32 0.0, %v2560
      %v2562 = vpop.f32.mrf.mxu0
      %2563 = vmatprep.mubr.bf16.mxu0 0
      %2564 = vmatmul.mubr.bf16.gmra.mxu0 %v2476
      %v2565 = vpop.f32.mrf.mxu0
      %v2566 = vadd.f32 0.0, %v2565
      %v2567 = vpop.f32.mrf.mxu0
      %v2568 = vpop.f32.mrf.mxu0
      %v2569 = vadd.f32 0.0, %v2568
      %v2570 = vpop.f32.mrf.mxu0
      %2571 = vmatprep.mubr.bf16.mxu0 0
      %2572 = vmatmul.mubr.bf16.gmra.mxu0 %v2479
      %v2573 = vpop.f32.mrf.mxu0
      %v2574 = vadd.f32 0.0, %v2573
      %v2575 = vpop.f32.mrf.mxu0
      %v2576 = vpop.f32.mrf.mxu0
      %v2577 = vadd.f32 0.0, %v2576
      %v2578 = vpop.f32.mrf.mxu0
      %2579 = vmatprep.mubr.bf16.mxu0 0
      %2580 = vmatmul.mubr.bf16.gmra.mxu0 %v2482
      %v2581 = vpop.f32.mrf.mxu0
      %v2582 = vadd.f32 0.0, %v2581
      %v2583 = vpop.f32.mrf.mxu0
      %v2584 = vpop.f32.mrf.mxu0
      %v2585 = vadd.f32 0.0, %v2584
      %v2586 = vpop.f32.mrf.mxu0
      %2587 = vmatprep.mubr.bf16.mxu0 0
      %2588 = vmatmul.mubr.bf16.gmra.mxu0 %v2485
      %v2589 = vpop.f32.mrf.mxu0
      %v2590 = vadd.f32 0.0, %v2589
      %v2591 = vpop.f32.mrf.mxu0
      %v2592 = vpop.f32.mrf.mxu0
      %v2593 = vadd.f32 0.0, %v2592
      %v2594 = vpop.f32.mrf.mxu0
      %2595 = vmatprep.mubr.bf16.mxu0 0
      %2596 = vmatmul.mubr.bf16.gmra.mxu0 %v2488
      %v2597 = vpop.f32.mrf.mxu0
      %v2598 = vadd.f32 0.0, %v2597
      %v2599 = vpop.f32.mrf.mxu0
      %v2600 = vpop.f32.mrf.mxu0
      %v2601 = vadd.f32 0.0, %v2600
      %v2602 = vpop.f32.mrf.mxu0
      %2603 = vmatprep.mubr.bf16.mxu0 0
      %2604 = vmatmul.mubr.bf16.gmra.mxu0 %v2491
      %v2605 = vpop.f32.mrf.mxu0
      %v2606 = vadd.f32 0.0, %v2605
      %v2607 = vpop.f32.mrf.mxu0
      %v2608 = vpop.f32.mrf.mxu0
      %v2609 = vadd.f32 0.0, %v2608
      %v2610 = vpop.f32.mrf.mxu0
      %2611 = vmatprep.mubr.bf16.mxu0 0
      %2612 = vmatmul.mubr.bf16.gmra.mxu0 %v2494
      %v2613 = vpop.f32.mrf.mxu0
      %v2614 = vadd.f32 0.0, %v2613
      %v2615 = vpop.f32.mrf.mxu0
      %v2616 = vpop.f32.mrf.mxu0
      %v2617 = vadd.f32 0.0, %v2616
      %v2618 = vpop.f32.mrf.mxu0
      %2619 = vmatprep.mubr.bf16.mxu0 0
      %2620 = vmatmul.mubr.bf16.gmra.mxu0 %v2497
      %v2621 = vpop.f32.mrf.mxu0
      %v2622 = vadd.f32 0.0, %v2621
      %v2623 = vpop.f32.mrf.mxu0
      %v2624 = vpop.f32.mrf.mxu0
      %v2625 = vadd.f32 0.0, %v2624
      %v2626 = vpop.f32.mrf.mxu0
      %2627 = vmatprep.mubr.bf16.mxu0 0
      %2628 = vmatmul.mubr.bf16.gmra.mxu0 %v2500
      %v2629 = vpop.f32.mrf.mxu0
      %v2630 = vadd.f32 0.0, %v2629
      %v2631 = vpop.f32.mrf.mxu0
      %v2632 = vpop.f32.mrf.mxu0
      %v2633 = vadd.f32 0.0, %v2632
      %v2634 = vpop.f32.mrf.mxu0
      %2635 = vmatprep.mubr.bf16.mxu0 0
      %2636 = vmatmul.mubr.bf16.gmra.mxu0 %v2503
      %v2637 = vpop.f32.mrf.mxu0
      %v2638 = vadd.f32 0.0, %v2637
      %v2639 = vpop.f32.mrf.mxu0
      %v2640 = vpop.f32.mrf.mxu0
      %v2641 = vadd.f32 0.0, %v2640
      %v2642 = vpop.f32.mrf.mxu0
      %2643 = vmatprep.mubr.bf16.mxu0 0
      %2644 = vmatmul.mubr.bf16.gmra.mxu0 %v2506
      %v2645 = vpop.f32.mrf.mxu0
      %v2646 = vadd.f32 0.0, %v2645
      %v2647 = vpop.f32.mrf.mxu0
      %v2648 = vpop.f32.mrf.mxu0
      %v2649 = vadd.f32 0.0, %v2648
      %v2650 = vpop.f32.mrf.mxu0
      %2651 = vmatprep.mubr.bf16.mxu0 0
      %2652 = vmatmul.mubr.bf16.gmra.mxu0 %v2509
      %v2653 = vpop.f32.mrf.mxu0
      %v2654 = vadd.f32 0.0, %v2653
      %v2655 = vpop.f32.mrf.mxu0
      %v2656 = vpop.f32.mrf.mxu0
      %v2657 = vadd.f32 0.0, %v2656
      %v2658 = vpop.f32.mrf.mxu0
      %2659 = vmatprep.mubr.bf16.mxu0 0
      %2660 = vmatmul.mubr.bf16.gmra.mxu0 %v2512
      %v2661 = vpop.f32.mrf.mxu0
      %v2662 = vadd.f32 0.0, %v2661
      %v2663 = vpop.f32.mrf.mxu0
      %v2664 = vpop.f32.mrf.mxu0
      %v2665 = vadd.f32 0.0, %v2664
      %v2666 = vpop.f32.mrf.mxu0
      %2667 = vmatprep.mubr.bf16.mxu0 0
      %2668 = vmatmul.mubr.bf16.gmra.mxu0 %v2515
      %v2669 = vpop.f32.mrf.mxu0
      %v2670 = vadd.f32 0.0, %v2669
      %v2671 = vpop.f32.mrf.mxu0
      %v2672 = vpop.f32.mrf.mxu0
      %v2673 = vadd.f32 0.0, %v2672
      %v2674 = vpop.f32.mrf.mxu0
      %2675 = vmatprep.mubr.bf16.mxu0 0
      %2676 = vmatmul.mubr.bf16.gmra.mxu0 %v2518
      %v2677 = vpop.f32.mrf.mxu0
      %v2678 = vadd.f32 0.0, %v2677
      %v2679 = vpop.f32.mrf.mxu0
      %v2680 = vpop.f32.mrf.mxu0
      %v2681 = vadd.f32 0.0, %v2680
      %v2682 = vpop.f32.mrf.mxu0
      %2683 = vdwg.mxu0
      %v2684 = vld [vmem:[#allocation2] sm:$0xff]
      %v2685 = vld [vmem:[#allocation2 + $0x8] sm:$0xff]
      %v2686 = vld [vmem:[#allocation2 + $0x10] sm:$0xff]
      %v2687 = vld [vmem:[#allocation2 + $0x18] sm:$0xff]
      %v2688 = vld [vmem:[#allocation2 + $0x20] sm:$0xff]
      %v2689 = vld [vmem:[#allocation2 + $0x28] sm:$0xff]
      %v2690 = vld [vmem:[#allocation2 + $0x30] sm:$0xff]
      %v2691 = vld [vmem:[#allocation2 + $0x38] sm:$0xff]
      %v2692 = vld [vmem:[#allocation2 + $0x40] sm:$0xff]
      %v2693 = vld [vmem:[#allocation2 + $0x48] sm:$0xff]
      %v2694 = vld [vmem:[#allocation2 + $0x50] sm:$0xff]
      %v2695 = vld [vmem:[#allocation2 + $0x58] sm:$0xff]
      %v2696 = vld [vmem:[#allocation2 + $0x60] sm:$0xff]
      %v2697 = vld [vmem:[#allocation2 + $0x68] sm:$0xff]
      %v2698 = vld [vmem:[#allocation2 + $0x70] sm:$0xff]
      %v2699 = vld [vmem:[#allocation2 + $0x78] sm:$0xff]
      %v2700 = vld [vmem:[#allocation2 + $0x80] sm:$0xff]
      %v2701 = vld [vmem:[#allocation2 + $0x88] sm:$0xff]
      %v2702 = vld [vmem:[#allocation2 + $0x90] sm:$0xff]
      %v2703 = vld [vmem:[#allocation2 + $0x98] sm:$0xff]
      %v2704 = vld [vmem:[#allocation2 + $0xa0] sm:$0xff]
      %v2705 = vld [vmem:[#allocation2 + $0xa8] sm:$0xff]
      %v2706 = vld [vmem:[#allocation2 + $0xb0] sm:$0xff]
      %v2707 = vld [vmem:[#allocation2 + $0xb8] sm:$0xff]
      %v2708 = vld [vmem:[#allocation2 + $0xc0] sm:$0xff]
      %v2709 = vld [vmem:[#allocation2 + $0xc8] sm:$0xff]
      %v2710 = vld [vmem:[#allocation2 + $0xd0] sm:$0xff]
      %v2711 = vld [vmem:[#allocation2 + $0xd8] sm:$0xff]
      %v2712 = vld [vmem:[#allocation2 + $0xe0] sm:$0xff]
      %v2713 = vld [vmem:[#allocation2 + $0xe8] sm:$0xff]
      %v2714 = vld [vmem:[#allocation2 + $0xf0] sm:$0xff]
      %v2715 = vld [vmem:[#allocation2 + $0xf8] sm:$0xff]
      %v2716 = vadd.f32 %v2684, %v2558
      %v2717 = vadd.f32 %v2685, %v2561
      %v2718 = vadd.f32 %v2686, %v2566
      %v2719 = vadd.f32 %v2687, %v2569
      %v2720 = vadd.f32 %v2688, %v2574
      %v2721 = vadd.f32 %v2689, %v2577
      %v2722 = vadd.f32 %v2690, %v2582
      %v2723 = vadd.f32 %v2691, %v2585
      %v2724 = vadd.f32 %v2692, %v2590
      %v2725 = vadd.f32 %v2693, %v2593
      %v2726 = vadd.f32 %v2694, %v2598
      %v2727 = vadd.f32 %v2695, %v2601
      %v2728 = vadd.f32 %v2696, %v2606
      %v2729 = vadd.f32 %v2697, %v2609
      %v2730 = vadd.f32 %v2698, %v2614
      %v2731 = vadd.f32 %v2699, %v2617
      %v2732 = vadd.f32 %v2700, %v2622
      %v2733 = vadd.f32 %v2701, %v2625
      %v2734 = vadd.f32 %v2702, %v2630
      %v2735 = vadd.f32 %v2703, %v2633
      %v2736 = vadd.f32 %v2704, %v2638
      %v2737 = vadd.f32 %v2705, %v2641
      %v2738 = vadd.f32 %v2706, %v2646
      %v2739 = vadd.f32 %v2707, %v2649
      %v2740 = vadd.f32 %v2708, %v2654
      %v2741 = vadd.f32 %v2709, %v2657
      %v2742 = vadd.f32 %v2710, %v2662
      %v2743 = vadd.f32 %v2711, %v2665
      %v2744 = vadd.f32 %v2712, %v2670
      %v2745 = vadd.f32 %v2713, %v2673
      %v2746 = vadd.f32 %v2714, %v2678
      %v2747 = vadd.f32 %v2715, %v2681
      %2748 = vst [vmem:[#allocation2] sm:$0xff] %v2716
      %2749 = vst [vmem:[#allocation2 + $0x8] sm:$0xff] %v2717
      %2750 = vst [vmem:[#allocation2 + $0x10] sm:$0xff] %v2718
      %2751 = vst [vmem:[#allocation2 + $0x18] sm:$0xff] %v2719
      %2752 = vst [vmem:[#allocation2 + $0x20] sm:$0xff] %v2720
      %2753 = vst [vmem:[#allocation2 + $0x28] sm:$0xff] %v2721
      %2754 = vst [vmem:[#allocation2 + $0x30] sm:$0xff] %v2722
      %2755 = vst [vmem:[#allocation2 + $0x38] sm:$0xff] %v2723
      %2756 = vst [vmem:[#allocation2 + $0x40] sm:$0xff] %v2724
      %2757 = vst [vmem:[#allocation2 + $0x48] sm:$0xff] %v2725
      %2758 = vst [vmem:[#allocation2 + $0x50] sm:$0xff] %v2726
      %2759 = vst [vmem:[#allocation2 + $0x58] sm:$0xff] %v2727
      %2760 = vst [vmem:[#allocation2 + $0x60] sm:$0xff] %v2728
      %2761 = vst [vmem:[#allocation2 + $0x68] sm:$0xff] %v2729
      %2762 = vst [vmem:[#allocation2 + $0x70] sm:$0xff] %v2730
      %2763 = vst [vmem:[#allocation2 + $0x78] sm:$0xff] %v2731
      %2764 = vst [vmem:[#allocation2 + $0x80] sm:$0xff] %v2732
      %2765 = vst [vmem:[#allocation2 + $0x88] sm:$0xff] %v2733
      %2766 = vst [vmem:[#allocation2 + $0x90] sm:$0xff] %v2734
      %2767 = vst [vmem:[#allocation2 + $0x98] sm:$0xff] %v2735
      %2768 = vst [vmem:[#allocation2 + $0xa0] sm:$0xff] %v2736
      %2769 = vst [vmem:[#allocation2 + $0xa8] sm:$0xff] %v2737
      %2770 = vst [vmem:[#allocation2 + $0xb0] sm:$0xff] %v2738
      %2771 = vst [vmem:[#allocation2 + $0xb8] sm:$0xff] %v2739
      %2772 = vst [vmem:[#allocation2 + $0xc0] sm:$0xff] %v2740
      %2773 = vst [vmem:[#allocation2 + $0xc8] sm:$0xff] %v2741
      %2774 = vst [vmem:[#allocation2 + $0xd0] sm:$0xff] %v2742
      %2775 = vst [vmem:[#allocation2 + $0xd8] sm:$0xff] %v2743
      %2776 = vst [vmem:[#allocation2 + $0xe0] sm:$0xff] %v2744
      %2777 = vst [vmem:[#allocation2 + $0xe8] sm:$0xff] %v2745
      %2778 = vst [vmem:[#allocation2 + $0xf0] sm:$0xff] %v2746
      %2779 = vst [vmem:[#allocation2 + $0xf8] sm:$0xff] %v2747
      %v2780 = vld [vmem:[%s2421 + $0x1] sm:$0xff]
      %v2781 = vld [vmem:[%s2421 + $0x9] sm:$0xff]
      %v2782 = vld [vmem:[%s2421 + $0x19] sm:$0xff]
      %v2783 = vld [vmem:[%s2421 + $0x21] sm:$0xff]
      %v2784 = vld [vmem:[%s2421 + $0x31] sm:$0xff]
      %v2785 = vld [vmem:[%s2421 + $0x39] sm:$0xff]
      %v2786 = vld [vmem:[%s2421 + $0x49] sm:$0xff]
      %v2787 = vld [vmem:[%s2421 + $0x51] sm:$0xff]
      %v2788 = vld [vmem:[%s2421 + $0x61] sm:$0xff]
      %v2789 = vld [vmem:[%s2421 + $0x69] sm:$0xff]
      %v2790 = vld [vmem:[%s2421 + $0x79] sm:$0xff]
      %v2791 = vld [vmem:[%s2421 + $0x81] sm:$0xff]
      %v2792 = vld [vmem:[%s2421 + $0x91] sm:$0xff]
      %v2793 = vld [vmem:[%s2421 + $0x99] sm:$0xff]
      %v2794 = vld [vmem:[%s2421 + $0xa9] sm:$0xff]
      %v2795 = vld [vmem:[%s2421 + $0xb1] sm:$0xff]
      %v2796 = vld [vmem:[%s2421 + $0xc1] sm:$0xff]
      %v2797 = vld [vmem:[%s2421 + $0xc9] sm:$0xff]
      %v2798 = vld [vmem:[%s2421 + $0xd9] sm:$0xff]
      %v2799 = vld [vmem:[%s2421 + $0xe1] sm:$0xff]
      %v2800 = vld [vmem:[%s2421 + $0xf1] sm:$0xff]
      %v2801 = vld [vmem:[%s2421 + $0xf9] sm:$0xff]
      %v2802 = vld [vmem:[%s2421 + $0x109] sm:$0xff]
      %v2803 = vld [vmem:[%s2421 + $0x111] sm:$0xff]
      %v2804 = vld [vmem:[%s2421 + $0x121] sm:$0xff]
      %v2805 = vld [vmem:[%s2421 + $0x129] sm:$0xff]
      %v2806 = vld [vmem:[%s2421 + $0x139] sm:$0xff]
      %v2807 = vld [vmem:[%s2421 + $0x141] sm:$0xff]
      %v2808 = vld [vmem:[%s2421 + $0x151] sm:$0xff]
      %v2809 = vld [vmem:[%s2421 + $0x159] sm:$0xff]
      %v2810 = vld [vmem:[%s2421 + $0x169] sm:$0xff]
      %v2811 = vld [vmem:[%s2421 + $0x171] sm:$0xff]
      %v2812 = vpack.c.bf16 %v2781, %v2780
      %v2813 = vpack.c.bf16 %v2783, %v2782
      %v2814 = vpack.c.bf16 %v2785, %v2784
      %v2815 = vpack.c.bf16 %v2787, %v2786
      %v2816 = vpack.c.bf16 %v2789, %v2788
      %v2817 = vpack.c.bf16 %v2791, %v2790
      %v2818 = vpack.c.bf16 %v2793, %v2792
      %v2819 = vpack.c.bf16 %v2795, %v2794
      %v2820 = vpack.c.bf16 %v2797, %v2796
      %v2821 = vpack.c.bf16 %v2799, %v2798
      %v2822 = vpack.c.bf16 %v2801, %v2800
      %v2823 = vpack.c.bf16 %v2803, %v2802
      %v2824 = vpack.c.bf16 %v2805, %v2804
      %v2825 = vpack.c.bf16 %v2807, %v2806
      %v2826 = vpack.c.bf16 %v2809, %v2808
      %v2827 = vpack.c.bf16 %v2811, %v2810
      %s2828 = scalar_lea.vmem %s1, 14
      %v2829 = vld [vmem:[%s2828] sm:$0x3]
      %v2831 = vsel %vm280, %v2812, 0
      %v2834 = vsel %vm280, %v2813, 0
      %v2837 = vsel %vm280, %v2814, 0
      %v2840 = vsel %vm280, %v2815, 0
      %v2843 = vsel %vm280, %v2816, 0
      %v2846 = vsel %vm280, %v2817, 0
      %v2849 = vsel %vm280, %v2818, 0
      %v2852 = vsel %vm280, %v2819, 0
      %v2855 = vsel %vm280, %v2820, 0
      %v2858 = vsel %vm280, %v2821, 0
      %v2861 = vsel %vm280, %v2822, 0
      %v2864 = vsel %vm280, %v2823, 0
      %v2867 = vsel %vm280, %v2824, 0
      %v2870 = vsel %vm280, %v2825, 0
      %v2873 = vsel %vm280, %v2826, 0
      %v2876 = vsel %vm280, %v2827, 0
      %v2879 = vsel %vm433, %v2829, 0
      %2881 = vmatprep.subr.bf16.mxu0 0
      %2882 = vmatpush1.bf16.msra.mxu0 0
      %2883 = vmatprep.subr.bf16.mxu0 0
      %2884 = vmatpush1.bf16.msra.mxu0 0
      %2885 = vmatprep.subr.bf16.mxu0 0
      %2886 = vmatpush1.bf16.msra.mxu0 0
      %2887 = vmatprep.subr.bf16.mxu0 0
      %2888 = vmatpush1.bf16.msra.mxu0 0
      %2889 = vmatprep.subr.bf16.mxu0 0
      %2890 = vmatpush1.bf16.msra.mxu0 0
      %2891 = vmatprep.subr.bf16.mxu0 0
      %2892 = vmatpush1.bf16.msra.mxu0 0
      %2893 = vmatprep.subr.bf16.mxu0 0
      %2894 = vmatpush1.bf16.msra.mxu0 0
      %2895 = vmatprep.subr.bf16.mxu0 0
      %2896 = vmatpush1.bf16.msra.mxu0 %v2879
      %2897 = vmatprep.subr.bf16.mxu0 0
      %2898 = vmatpush2.bf16.msra.mxu0 0
      %2899 = vmatprep.subr.bf16.mxu0 0
      %2900 = vmatpush2.bf16.msra.mxu0 0
      %2901 = vmatprep.subr.bf16.mxu0 0
      %2902 = vmatpush2.bf16.msra.mxu0 0
      %2903 = vmatprep.subr.bf16.mxu0 0
      %2904 = vmatpush2.bf16.msra.mxu0 0
      %2905 = vmatprep.subr.bf16.mxu0 0
      %2906 = vmatpush2.bf16.msra.mxu0 0
      %2907 = vmatprep.subr.bf16.mxu0 0
      %2908 = vmatpush2.bf16.msra.mxu0 0
      %2909 = vmatprep.subr.bf16.mxu0 0
      %2910 = vmatpush2.bf16.msra.mxu0 0
      %2911 = vmatprep.subr.bf16.mxu0 0
      %2912 = vmatpush2.bf16.msra.mxu0 0
      %2913 = vmatprep.mubr.bf16.mxu0 0
      %2914 = vmatmul.mubr.bf16.gmra.mxu0 %v2831
      %v2915 = vpop.f32.mrf.mxu0
      %v2916 = vadd.f32 0.0, %v2915
      %v2917 = vpop.f32.mrf.mxu0
      %v2918 = vpop.f32.mrf.mxu0
      %v2919 = vadd.f32 0.0, %v2918
      %v2920 = vpop.f32.mrf.mxu0
      %2921 = vmatprep.mubr.bf16.mxu0 0
      %2922 = vmatmul.mubr.bf16.gmra.mxu0 %v2834
      %v2923 = vpop.f32.mrf.mxu0
      %v2924 = vadd.f32 0.0, %v2923
      %v2925 = vpop.f32.mrf.mxu0
      %v2926 = vpop.f32.mrf.mxu0
      %v2927 = vadd.f32 0.0, %v2926
      %v2928 = vpop.f32.mrf.mxu0
      %2929 = vmatprep.mubr.bf16.mxu0 0
      %2930 = vmatmul.mubr.bf16.gmra.mxu0 %v2837
      %v2931 = vpop.f32.mrf.mxu0
      %v2932 = vadd.f32 0.0, %v2931
      %v2933 = vpop.f32.mrf.mxu0
      %v2934 = vpop.f32.mrf.mxu0
      %v2935 = vadd.f32 0.0, %v2934
      %v2936 = vpop.f32.mrf.mxu0
      %2937 = vmatprep.mubr.bf16.mxu0 0
      %2938 = vmatmul.mubr.bf16.gmra.mxu0 %v2840
      %v2939 = vpop.f32.mrf.mxu0
      %v2940 = vadd.f32 0.0, %v2939
      %v2941 = vpop.f32.mrf.mxu0
      %v2942 = vpop.f32.mrf.mxu0
      %v2943 = vadd.f32 0.0, %v2942
      %v2944 = vpop.f32.mrf.mxu0
      %2945 = vmatprep.mubr.bf16.mxu0 0
      %2946 = vmatmul.mubr.bf16.gmra.mxu0 %v2843
      %v2947 = vpop.f32.mrf.mxu0
      %v2948 = vadd.f32 0.0, %v2947
      %v2949 = vpop.f32.mrf.mxu0
      %v2950 = vpop.f32.mrf.mxu0
      %v2951 = vadd.f32 0.0, %v2950
      %v2952 = vpop.f32.mrf.mxu0
      %2953 = vmatprep.mubr.bf16.mxu0 0
      %2954 = vmatmul.mubr.bf16.gmra.mxu0 %v2846
      %v2955 = vpop.f32.mrf.mxu0
      %v2956 = vadd.f32 0.0, %v2955
      %v2957 = vpop.f32.mrf.mxu0
      %v2958 = vpop.f32.mrf.mxu0
      %v2959 = vadd.f32 0.0, %v2958
      %v2960 = vpop.f32.mrf.mxu0
      %2961 = vmatprep.mubr.bf16.mxu0 0
      %2962 = vmatmul.mubr.bf16.gmra.mxu0 %v2849
      %v2963 = vpop.f32.mrf.mxu0
      %v2964 = vadd.f32 0.0, %v2963
      %v2965 = vpop.f32.mrf.mxu0
      %v2966 = vpop.f32.mrf.mxu0
      %v2967 = vadd.f32 0.0, %v2966
      %v2968 = vpop.f32.mrf.mxu0
      %2969 = vmatprep.mubr.bf16.mxu0 0
      %2970 = vmatmul.mubr.bf16.gmra.mxu0 %v2852
      %v2971 = vpop.f32.mrf.mxu0
      %v2972 = vadd.f32 0.0, %v2971
      %v2973 = vpop.f32.mrf.mxu0
      %v2974 = vpop.f32.mrf.mxu0
      %v2975 = vadd.f32 0.0, %v2974
      %v2976 = vpop.f32.mrf.mxu0
      %2977 = vmatprep.mubr.bf16.mxu0 0
      %2978 = vmatmul.mubr.bf16.gmra.mxu0 %v2855
      %v2979 = vpop.f32.mrf.mxu0
      %v2980 = vadd.f32 0.0, %v2979
      %v2981 = vpop.f32.mrf.mxu0
      %v2982 = vpop.f32.mrf.mxu0
      %v2983 = vadd.f32 0.0, %v2982
      %v2984 = vpop.f32.mrf.mxu0
      %2985 = vmatprep.mubr.bf16.mxu0 0
      %2986 = vmatmul.mubr.bf16.gmra.mxu0 %v2858
      %v2987 = vpop.f32.mrf.mxu0
      %v2988 = vadd.f32 0.0, %v2987
      %v2989 = vpop.f32.mrf.mxu0
      %v2990 = vpop.f32.mrf.mxu0
      %v2991 = vadd.f32 0.0, %v2990
      %v2992 = vpop.f32.mrf.mxu0
      %2993 = vmatprep.mubr.bf16.mxu0 0
      %2994 = vmatmul.mubr.bf16.gmra.mxu0 %v2861
      %v2995 = vpop.f32.mrf.mxu0
      %v2996 = vadd.f32 0.0, %v2995
      %v2997 = vpop.f32.mrf.mxu0
      %v2998 = vpop.f32.mrf.mxu0
      %v2999 = vadd.f32 0.0, %v2998
      %v3000 = vpop.f32.mrf.mxu0
      %3001 = vmatprep.mubr.bf16.mxu0 0
      %3002 = vmatmul.mubr.bf16.gmra.mxu0 %v2864
      %v3003 = vpop.f32.mrf.mxu0
      %v3004 = vadd.f32 0.0, %v3003
      %v3005 = vpop.f32.mrf.mxu0
      %v3006 = vpop.f32.mrf.mxu0
      %v3007 = vadd.f32 0.0, %v3006
      %v3008 = vpop.f32.mrf.mxu0
      %3009 = vmatprep.mubr.bf16.mxu0 0
      %3010 = vmatmul.mubr.bf16.gmra.mxu0 %v2867
      %v3011 = vpop.f32.mrf.mxu0
      %v3012 = vadd.f32 0.0, %v3011
      %v3013 = vpop.f32.mrf.mxu0
      %v3014 = vpop.f32.mrf.mxu0
      %v3015 = vadd.f32 0.0, %v3014
      %v3016 = vpop.f32.mrf.mxu0
      %3017 = vmatprep.mubr.bf16.mxu0 0
      %3018 = vmatmul.mubr.bf16.gmra.mxu0 %v2870
      %v3019 = vpop.f32.mrf.mxu0
      %v3020 = vadd.f32 0.0, %v3019
      %v3021 = vpop.f32.mrf.mxu0
      %v3022 = vpop.f32.mrf.mxu0
      %v3023 = vadd.f32 0.0, %v3022
      %v3024 = vpop.f32.mrf.mxu0
      %3025 = vmatprep.mubr.bf16.mxu0 0
      %3026 = vmatmul.mubr.bf16.gmra.mxu0 %v2873
      %v3027 = vpop.f32.mrf.mxu0
      %v3028 = vadd.f32 0.0, %v3027
      %v3029 = vpop.f32.mrf.mxu0
      %v3030 = vpop.f32.mrf.mxu0
      %v3031 = vadd.f32 0.0, %v3030
      %v3032 = vpop.f32.mrf.mxu0
      %3033 = vmatprep.mubr.bf16.mxu0 0
      %3034 = vmatmul.mubr.bf16.gmra.mxu0 %v2876
      %v3035 = vpop.f32.mrf.mxu0
      %v3036 = vadd.f32 0.0, %v3035
      %v3037 = vpop.f32.mrf.mxu0
      %v3038 = vpop.f32.mrf.mxu0
      %v3039 = vadd.f32 0.0, %v3038
      %v3040 = vpop.f32.mrf.mxu0
      %3041 = vdwg.mxu0
      %v3042 = vld [vmem:[#allocation2] sm:$0xff]
      %v3043 = vld [vmem:[#allocation2 + $0x8] sm:$0xff]
      %v3044 = vld [vmem:[#allocation2 + $0x10] sm:$0xff]
      %v3045 = vld [vmem:[#allocation2 + $0x18] sm:$0xff]
      %v3046 = vld [vmem:[#allocation2 + $0x20] sm:$0xff]
      %v3047 = vld [vmem:[#allocation2 + $0x28] sm:$0xff]
      %v3048 = vld [vmem:[#allocation2 + $0x30] sm:$0xff]
      %v3049 = vld [vmem:[#allocation2 + $0x38] sm:$0xff]
      %v3050 = vld [vmem:[#allocation2 + $0x40] sm:$0xff]
      %v3051 = vld [vmem:[#allocation2 + $0x48] sm:$0xff]
      %v3052 = vld [vmem:[#allocation2 + $0x50] sm:$0xff]
      %v3053 = vld [vmem:[#allocation2 + $0x58] sm:$0xff]
      %v3054 = vld [vmem:[#allocation2 + $0x60] sm:$0xff]
      %v3055 = vld [vmem:[#allocation2 + $0x68] sm:$0xff]
      %v3056 = vld [vmem:[#allocation2 + $0x70] sm:$0xff]
      %v3057 = vld [vmem:[#allocation2 + $0x78] sm:$0xff]
      %v3058 = vld [vmem:[#allocation2 + $0x80] sm:$0xff]
      %v3059 = vld [vmem:[#allocation2 + $0x88] sm:$0xff]
      %v3060 = vld [vmem:[#allocation2 + $0x90] sm:$0xff]
      %v3061 = vld [vmem:[#allocation2 + $0x98] sm:$0xff]
      %v3062 = vld [vmem:[#allocation2 + $0xa0] sm:$0xff]
      %v3063 = vld [vmem:[#allocation2 + $0xa8] sm:$0xff]
      %v3064 = vld [vmem:[#allocation2 + $0xb0] sm:$0xff]
      %v3065 = vld [vmem:[#allocation2 + $0xb8] sm:$0xff]
      %v3066 = vld [vmem:[#allocation2 + $0xc0] sm:$0xff]
      %v3067 = vld [vmem:[#allocation2 + $0xc8] sm:$0xff]
      %v3068 = vld [vmem:[#allocation2 + $0xd0] sm:$0xff]
      %v3069 = vld [vmem:[#allocation2 + $0xd8] sm:$0xff]
      %v3070 = vld [vmem:[#allocation2 + $0xe0] sm:$0xff]
      %v3071 = vld [vmem:[#allocation2 + $0xe8] sm:$0xff]
      %v3072 = vld [vmem:[#allocation2 + $0xf0] sm:$0xff]
      %v3073 = vld [vmem:[#allocation2 + $0xf8] sm:$0xff]
      %v3074 = vadd.f32 %v3042, %v2916
      %v3075 = vadd.f32 %v3043, %v2919
      %v3076 = vadd.f32 %v3044, %v2924
      %v3077 = vadd.f32 %v3045, %v2927
      %v3078 = vadd.f32 %v3046, %v2932
      %v3079 = vadd.f32 %v3047, %v2935
      %v3080 = vadd.f32 %v3048, %v2940
      %v3081 = vadd.f32 %v3049, %v2943
      %v3082 = vadd.f32 %v3050, %v2948
      %v3083 = vadd.f32 %v3051, %v2951
      %v3084 = vadd.f32 %v3052, %v2956
      %v3085 = vadd.f32 %v3053, %v2959
      %v3086 = vadd.f32 %v3054, %v2964
      %v3087 = vadd.f32 %v3055, %v2967
      %v3088 = vadd.f32 %v3056, %v2972
      %v3089 = vadd.f32 %v3057, %v2975
      %v3090 = vadd.f32 %v3058, %v2980
      %v3091 = vadd.f32 %v3059, %v2983
      %v3092 = vadd.f32 %v3060, %v2988
      %v3093 = vadd.f32 %v3061, %v2991
      %v3094 = vadd.f32 %v3062, %v2996
      %v3095 = vadd.f32 %v3063, %v2999
      %v3096 = vadd.f32 %v3064, %v3004
      %v3097 = vadd.f32 %v3065, %v3007
      %v3098 = vadd.f32 %v3066, %v3012
      %v3099 = vadd.f32 %v3067, %v3015
      %v3100 = vadd.f32 %v3068, %v3020
      %v3101 = vadd.f32 %v3069, %v3023
      %v3102 = vadd.f32 %v3070, %v3028
      %v3103 = vadd.f32 %v3071, %v3031
      %v3104 = vadd.f32 %v3072, %v3036
      %v3105 = vadd.f32 %v3073, %v3039
      %3106 = vst [vmem:[#allocation2] sm:$0xff] %v3074
      %3107 = vst [vmem:[#allocation2 + $0x8] sm:$0xff] %v3075
      %3108 = vst [vmem:[#allocation2 + $0x10] sm:$0xff] %v3076
      %3109 = vst [vmem:[#allocation2 + $0x18] sm:$0xff] %v3077
      %3110 = vst [vmem:[#allocation2 + $0x20] sm:$0xff] %v3078
      %3111 = vst [vmem:[#allocation2 + $0x28] sm:$0xff] %v3079
      %3112 = vst [vmem:[#allocation2 + $0x30] sm:$0xff] %v3080
      %3113 = vst [vmem:[#allocation2 + $0x38] sm:$0xff] %v3081
      %3114 = vst [vmem:[#allocation2 + $0x40] sm:$0xff] %v3082
      %3115 = vst [vmem:[#allocation2 + $0x48] sm:$0xff] %v3083
      %3116 = vst [vmem:[#allocation2 + $0x50] sm:$0xff] %v3084
      %3117 = vst [vmem:[#allocation2 + $0x58] sm:$0xff] %v3085
      %3118 = vst [vmem:[#allocation2 + $0x60] sm:$0xff] %v3086
      %3119 = vst [vmem:[#allocation2 + $0x68] sm:$0xff] %v3087
      %3120 = vst [vmem:[#allocation2 + $0x70] sm:$0xff] %v3088
      %3121 = vst [vmem:[#allocation2 + $0x78] sm:$0xff] %v3089
      %3122 = vst [vmem:[#allocation2 + $0x80] sm:$0xff] %v3090
      %3123 = vst [vmem:[#allocation2 + $0x88] sm:$0xff] %v3091
      %3124 = vst [vmem:[#allocation2 + $0x90] sm:$0xff] %v3092
      %3125 = vst [vmem:[#allocation2 + $0x98] sm:$0xff] %v3093
      %3126 = vst [vmem:[#allocation2 + $0xa0] sm:$0xff] %v3094
      %3127 = vst [vmem:[#allocation2 + $0xa8] sm:$0xff] %v3095
      %3128 = vst [vmem:[#allocation2 + $0xb0] sm:$0xff] %v3096
      %3129 = vst [vmem:[#allocation2 + $0xb8] sm:$0xff] %v3097
      %3130 = vst [vmem:[#allocation2 + $0xc0] sm:$0xff] %v3098
      %3131 = vst [vmem:[#allocation2 + $0xc8] sm:$0xff] %v3099
      %3132 = vst [vmem:[#allocation2 + $0xd0] sm:$0xff] %v3100
      %3133 = vst [vmem:[#allocation2 + $0xd8] sm:$0xff] %v3101
      %3134 = vst [vmem:[#allocation2 + $0xe0] sm:$0xff] %v3102
      %3135 = vst [vmem:[#allocation2 + $0xe8] sm:$0xff] %v3103
      %3136 = vst [vmem:[#allocation2 + $0xf0] sm:$0xff] %v3104
      %3137 = vst [vmem:[#allocation2 + $0xf8] sm:$0xff] %v3105
      %v3138 = vld [vmem:[%s2421 + $0x2] sm:$0xff]
      %v3139 = vld [vmem:[%s2421 + $0xa] sm:$0xff]
      %v3140 = vld [vmem:[%s2421 + $0x1a] sm:$0xff]
      %v3141 = vld [vmem:[%s2421 + $0x22] sm:$0xff]
      %v3142 = vld [vmem:[%s2421 + $0x32] sm:$0xff]
      %v3143 = vld [vmem:[%s2421 + $0x3a] sm:$0xff]
      %v3144 = vld [vmem:[%s2421 + $0x4a] sm:$0xff]
      %v3145 = vld [vmem:[%s2421 + $0x52] sm:$0xff]
      %v3146 = vld [vmem:[%s2421 + $0x62] sm:$0xff]
      %v3147 = vld [vmem:[%s2421 + $0x6a] sm:$0xff]
      %v3148 = vld [vmem:[%s2421 + $0x7a] sm:$0xff]
      %v3149 = vld [vmem:[%s2421 + $0x82] sm:$0xff]
      %v3150 = vld [vmem:[%s2421 + $0x92] sm:$0xff]
      %v3151 = vld [vmem:[%s2421 + $0x9a] sm:$0xff]
      %v3152 = vld [vmem:[%s2421 + $0xaa] sm:$0xff]
      %v3153 = vld [vmem:[%s2421 + $0xb2] sm:$0xff]
      %v3154 = vld [vmem:[%s2421 + $0xc2] sm:$0xff]
      %v3155 = vld [vmem:[%s2421 + $0xca] sm:$0xff]
      %v3156 = vld [vmem:[%s2421 + $0xda] sm:$0xff]
      %v3157 = vld [vmem:[%s2421 + $0xe2] sm:$0xff]
      %v3158 = vld [vmem:[%s2421 + $0xf2] sm:$0xff]
      %v3159 = vld [vmem:[%s2421 + $0xfa] sm:$0xff]
      %v3160 = vld [vmem:[%s2421 + $0x10a] sm:$0xff]
      %v3161 = vld [vmem:[%s2421 + $0x112] sm:$0xff]
      %v3162 = vld [vmem:[%s2421 + $0x122] sm:$0xff]
      %v3163 = vld [vmem:[%s2421 + $0x12a] sm:$0xff]
      %v3164 = vld [vmem:[%s2421 + $0x13a] sm:$0xff]
      %v3165 = vld [vmem:[%s2421 + $0x142] sm:$0xff]
      %v3166 = vld [vmem:[%s2421 + $0x152] sm:$0xff]
      %v3167 = vld [vmem:[%s2421 + $0x15a] sm:$0xff]
      %v3168 = vld [vmem:[%s2421 + $0x16a] sm:$0xff]
      %v3169 = vld [vmem:[%s2421 + $0x172] sm:$0xff]
      %v3170 = vpack.c.bf16 %v3139, %v3138
      %v3171 = vpack.c.bf16 %v3141, %v3140
      %v3172 = vpack.c.bf16 %v3143, %v3142
      %v3173 = vpack.c.bf16 %v3145, %v3144
      %v3174 = vpack.c.bf16 %v3147, %v3146
      %v3175 = vpack.c.bf16 %v3149, %v3148
      %v3176 = vpack.c.bf16 %v3151, %v3150
      %v3177 = vpack.c.bf16 %v3153, %v3152
      %v3178 = vpack.c.bf16 %v3155, %v3154
      %v3179 = vpack.c.bf16 %v3157, %v3156
      %v3180 = vpack.c.bf16 %v3159, %v3158
      %v3181 = vpack.c.bf16 %v3161, %v3160
      %v3182 = vpack.c.bf16 %v3163, %v3162
      %v3183 = vpack.c.bf16 %v3165, %v3164
      %v3184 = vpack.c.bf16 %v3167, %v3166
      %v3185 = vpack.c.bf16 %v3169, %v3168
      %s3186 = scalar_lea.vmem %s1, 16
      %v3187 = vld [vmem:[%s3186] sm:$0x3]
      %v3189 = vsel %vm280, %v3170, 0
      %v3192 = vsel %vm280, %v3171, 0
      %v3195 = vsel %vm280, %v3172, 0
      %v3198 = vsel %vm280, %v3173, 0
      %v3201 = vsel %vm280, %v3174, 0
      %v3204 = vsel %vm280, %v3175, 0
      %v3207 = vsel %vm280, %v3176, 0
      %v3210 = vsel %vm280, %v3177, 0
      %v3213 = vsel %vm280, %v3178, 0
      %v3216 = vsel %vm280, %v3179, 0
      %v3219 = vsel %vm280, %v3180, 0
      %v3222 = vsel %vm280, %v3181, 0
      %v3225 = vsel %vm280, %v3182, 0
      %v3228 = vsel %vm280, %v3183, 0
      %v3231 = vsel %vm280, %v3184, 0
      %v3234 = vsel %vm280, %v3185, 0
      %v3237 = vsel %vm433, %v3187, 0
      %3239 = vmatprep.subr.bf16.mxu0 0
      %3240 = vmatpush1.bf16.msra.mxu0 0
      %3241 = vmatprep.subr.bf16.mxu0 0
      %3242 = vmatpush1.bf16.msra.mxu0 0
      %3243 = vmatprep.subr.bf16.mxu0 0
      %3244 = vmatpush1.bf16.msra.mxu0 0
      %3245 = vmatprep.subr.bf16.mxu0 0
      %3246 = vmatpush1.bf16.msra.mxu0 0
      %3247 = vmatprep.subr.bf16.mxu0 0
      %3248 = vmatpush1.bf16.msra.mxu0 0
      %3249 = vmatprep.subr.bf16.mxu0 0
      %3250 = vmatpush1.bf16.msra.mxu0 0
      %3251 = vmatprep.subr.bf16.mxu0 0
      %3252 = vmatpush1.bf16.msra.mxu0 0
      %3253 = vmatprep.subr.bf16.mxu0 0
      %3254 = vmatpush1.bf16.msra.mxu0 %v3237
      %3255 = vmatprep.subr.bf16.mxu0 0
      %3256 = vmatpush2.bf16.msra.mxu0 0
      %3257 = vmatprep.subr.bf16.mxu0 0
      %3258 = vmatpush2.bf16.msra.mxu0 0
      %3259 = vmatprep.subr.bf16.mxu0 0
      %3260 = vmatpush2.bf16.msra.mxu0 0
      %3261 = vmatprep.subr.bf16.mxu0 0
      %3262 = vmatpush2.bf16.msra.mxu0 0
      %3263 = vmatprep.subr.bf16.mxu0 0
      %3264 = vmatpush2.bf16.msra.mxu0 0
      %3265 = vmatprep.subr.bf16.mxu0 0
      %3266 = vmatpush2.bf16.msra.mxu0 0
      %3267 = vmatprep.subr.bf16.mxu0 0
      %3268 = vmatpush2.bf16.msra.mxu0 0
      %3269 = vmatprep.subr.bf16.mxu0 0
      %3270 = vmatpush2.bf16.msra.mxu0 0
      %3271 = vmatprep.mubr.bf16.mxu0 0
      %3272 = vmatmul.mubr.bf16.gmra.mxu0 %v3189
      %v3273 = vpop.f32.mrf.mxu0
      %v3274 = vadd.f32 0.0, %v3273
      %v3275 = vpop.f32.mrf.mxu0
      %v3276 = vpop.f32.mrf.mxu0
      %v3277 = vadd.f32 0.0, %v3276
      %v3278 = vpop.f32.mrf.mxu0
      %3279 = vmatprep.mubr.bf16.mxu0 0
      %3280 = vmatmul.mubr.bf16.gmra.mxu0 %v3192
      %v3281 = vpop.f32.mrf.mxu0
      %v3282 = vadd.f32 0.0, %v3281
      %v3283 = vpop.f32.mrf.mxu0
      %v3284 = vpop.f32.mrf.mxu0
      %v3285 = vadd.f32 0.0, %v3284
      %v3286 = vpop.f32.mrf.mxu0
      %3287 = vmatprep.mubr.bf16.mxu0 0
      %3288 = vmatmul.mubr.bf16.gmra.mxu0 %v3195
      %v3289 = vpop.f32.mrf.mxu0
      %v3290 = vadd.f32 0.0, %v3289
      %v3291 = vpop.f32.mrf.mxu0
      %v3292 = vpop.f32.mrf.mxu0
      %v3293 = vadd.f32 0.0, %v3292
      %v3294 = vpop.f32.mrf.mxu0
      %3295 = vmatprep.mubr.bf16.mxu0 0
      %3296 = vmatmul.mubr.bf16.gmra.mxu0 %v3198
      %v3297 = vpop.f32.mrf.mxu0
      %v3298 = vadd.f32 0.0, %v3297
      %v3299 = vpop.f32.mrf.mxu0
      %v3300 = vpop.f32.mrf.mxu0
      %v3301 = vadd.f32 0.0, %v3300
      %v3302 = vpop.f32.mrf.mxu0
      %3303 = vmatprep.mubr.bf16.mxu0 0
      %3304 = vmatmul.mubr.bf16.gmra.mxu0 %v3201
      %v3305 = vpop.f32.mrf.mxu0
      %v3306 = vadd.f32 0.0, %v3305
      %v3307 = vpop.f32.mrf.mxu0
      %v3308 = vpop.f32.mrf.mxu0
      %v3309 = vadd.f32 0.0, %v3308
      %v3310 = vpop.f32.mrf.mxu0
      %3311 = vmatprep.mubr.bf16.mxu0 0
      %3312 = vmatmul.mubr.bf16.gmra.mxu0 %v3204
      %v3313 = vpop.f32.mrf.mxu0
      %v3314 = vadd.f32 0.0, %v3313
      %v3315 = vpop.f32.mrf.mxu0
      %v3316 = vpop.f32.mrf.mxu0
      %v3317 = vadd.f32 0.0, %v3316
      %v3318 = vpop.f32.mrf.mxu0
      %3319 = vmatprep.mubr.bf16.mxu0 0
      %3320 = vmatmul.mubr.bf16.gmra.mxu0 %v3207
      %v3321 = vpop.f32.mrf.mxu0
      %v3322 = vadd.f32 0.0, %v3321
      %v3323 = vpop.f32.mrf.mxu0
      %v3324 = vpop.f32.mrf.mxu0
      %v3325 = vadd.f32 0.0, %v3324
      %v3326 = vpop.f32.mrf.mxu0
      %3327 = vmatprep.mubr.bf16.mxu0 0
      %3328 = vmatmul.mubr.bf16.gmra.mxu0 %v3210
      %v3329 = vpop.f32.mrf.mxu0
      %v3330 = vadd.f32 0.0, %v3329
      %v3331 = vpop.f32.mrf.mxu0
      %v3332 = vpop.f32.mrf.mxu0
      %v3333 = vadd.f32 0.0, %v3332
      %v3334 = vpop.f32.mrf.mxu0
      %3335 = vmatprep.mubr.bf16.mxu0 0
      %3336 = vmatmul.mubr.bf16.gmra.mxu0 %v3213
      %v3337 = vpop.f32.mrf.mxu0
      %v3338 = vadd.f32 0.0, %v3337
      %v3339 = vpop.f32.mrf.mxu0
      %v3340 = vpop.f32.mrf.mxu0
      %v3341 = vadd.f32 0.0, %v3340
      %v3342 = vpop.f32.mrf.mxu0
      %3343 = vmatprep.mubr.bf16.mxu0 0
      %3344 = vmatmul.mubr.bf16.gmra.mxu0 %v3216
      %v3345 = vpop.f32.mrf.mxu0
      %v3346 = vadd.f32 0.0, %v3345
      %v3347 = vpop.f32.mrf.mxu0
      %v3348 = vpop.f32.mrf.mxu0
      %v3349 = vadd.f32 0.0, %v3348
      %v3350 = vpop.f32.mrf.mxu0
      %3351 = vmatprep.mubr.bf16.mxu0 0
      %3352 = vmatmul.mubr.bf16.gmra.mxu0 %v3219
      %v3353 = vpop.f32.mrf.mxu0
      %v3354 = vadd.f32 0.0, %v3353
      %v3355 = vpop.f32.mrf.mxu0
      %v3356 = vpop.f32.mrf.mxu0
      %v3357 = vadd.f32 0.0, %v3356
      %v3358 = vpop.f32.mrf.mxu0
      %3359 = vmatprep.mubr.bf16.mxu0 0
      %3360 = vmatmul.mubr.bf16.gmra.mxu0 %v3222
      %v3361 = vpop.f32.mrf.mxu0
      %v3362 = vadd.f32 0.0, %v3361
      %v3363 = vpop.f32.mrf.mxu0
      %v3364 = vpop.f32.mrf.mxu0
      %v3365 = vadd.f32 0.0, %v3364
      %v3366 = vpop.f32.mrf.mxu0
      %3367 = vmatprep.mubr.bf16.mxu0 0
      %3368 = vmatmul.mubr.bf16.gmra.mxu0 %v3225
      %v3369 = vpop.f32.mrf.mxu0
      %v3370 = vadd.f32 0.0, %v3369
      %v3371 = vpop.f32.mrf.mxu0
      %v3372 = vpop.f32.mrf.mxu0
      %v3373 = vadd.f32 0.0, %v3372
      %v3374 = vpop.f32.mrf.mxu0
      %3375 = vmatprep.mubr.bf16.mxu0 0
      %3376 = vmatmul.mubr.bf16.gmra.mxu0 %v3228
      %v3377 = vpop.f32.mrf.mxu0
      %v3378 = vadd.f32 0.0, %v3377
      %v3379 = vpop.f32.mrf.mxu0
      %v3380 = vpop.f32.mrf.mxu0
      %v3381 = vadd.f32 0.0, %v3380
      %v3382 = vpop.f32.mrf.mxu0
      %3383 = vmatprep.mubr.bf16.mxu0 0
      %3384 = vmatmul.mubr.bf16.gmra.mxu0 %v3231
      %v3385 = vpop.f32.mrf.mxu0
      %v3386 = vadd.f32 0.0, %v3385
      %v3387 = vpop.f32.mrf.mxu0
      %v3388 = vpop.f32.mrf.mxu0
      %v3389 = vadd.f32 0.0, %v3388
      %v3390 = vpop.f32.mrf.mxu0
      %3391 = vmatprep.mubr.bf16.mxu0 0
      %3392 = vmatmul.mubr.bf16.gmra.mxu0 %v3234
      %v3393 = vpop.f32.mrf.mxu0
      %v3394 = vadd.f32 0.0, %v3393
      %v3395 = vpop.f32.mrf.mxu0
      %v3396 = vpop.f32.mrf.mxu0
      %v3397 = vadd.f32 0.0, %v3396
      %v3398 = vpop.f32.mrf.mxu0
      %3399 = vdwg.mxu0
      %v3400 = vld [vmem:[#allocation2] sm:$0xff]
      %v3401 = vld [vmem:[#allocation2 + $0x8] sm:$0xff]
      %v3402 = vld [vmem:[#allocation2 + $0x10] sm:$0xff]
      %v3403 = vld [vmem:[#allocation2 + $0x18] sm:$0xff]
      %v3404 = vld [vmem:[#allocation2 + $0x20] sm:$0xff]
      %v3405 = vld [vmem:[#allocation2 + $0x28] sm:$0xff]
      %v3406 = vld [vmem:[#allocation2 + $0x30] sm:$0xff]
      %v3407 = vld [vmem:[#allocation2 + $0x38] sm:$0xff]
      %v3408 = vld [vmem:[#allocation2 + $0x40] sm:$0xff]
      %v3409 = vld [vmem:[#allocation2 + $0x48] sm:$0xff]
      %v3410 = vld [vmem:[#allocation2 + $0x50] sm:$0xff]
      %v3411 = vld [vmem:[#allocation2 + $0x58] sm:$0xff]
      %v3412 = vld [vmem:[#allocation2 + $0x60] sm:$0xff]
      %v3413 = vld [vmem:[#allocation2 + $0x68] sm:$0xff]
      %v3414 = vld [vmem:[#allocation2 + $0x70] sm:$0xff]
      %v3415 = vld [vmem:[#allocation2 + $0x78] sm:$0xff]
      %v3416 = vld [vmem:[#allocation2 + $0x80] sm:$0xff]
      %v3417 = vld [vmem:[#allocation2 + $0x88] sm:$0xff]
      %v3418 = vld [vmem:[#allocation2 + $0x90] sm:$0xff]
      %v3419 = vld [vmem:[#allocation2 + $0x98] sm:$0xff]
      %v3420 = vld [vmem:[#allocation2 + $0xa0] sm:$0xff]
      %v3421 = vld [vmem:[#allocation2 + $0xa8] sm:$0xff]
      %v3422 = vld [vmem:[#allocation2 + $0xb0] sm:$0xff]
      %v3423 = vld [vmem:[#allocation2 + $0xb8] sm:$0xff]
      %v3424 = vld [vmem:[#allocation2 + $0xc0] sm:$0xff]
      %v3425 = vld [vmem:[#allocation2 + $0xc8] sm:$0xff]
      %v3426 = vld [vmem:[#allocation2 + $0xd0] sm:$0xff]
      %v3427 = vld [vmem:[#allocation2 + $0xd8] sm:$0xff]
      %v3428 = vld [vmem:[#allocation2 + $0xe0] sm:$0xff]
      %v3429 = vld [vmem:[#allocation2 + $0xe8] sm:$0xff]
      %v3430 = vld [vmem:[#allocation2 + $0xf0] sm:$0xff]
      %v3431 = vld [vmem:[#allocation2 + $0xf8] sm:$0xff]
      %v3432 = vadd.f32 %v3400, %v3274
      %v3433 = vadd.f32 %v3401, %v3277
      %v3434 = vadd.f32 %v3402, %v3282
      %v3435 = vadd.f32 %v3403, %v3285
      %v3436 = vadd.f32 %v3404, %v3290
      %v3437 = vadd.f32 %v3405, %v3293
      %v3438 = vadd.f32 %v3406, %v3298
      %v3439 = vadd.f32 %v3407, %v3301
      %v3440 = vadd.f32 %v3408, %v3306
      %v3441 = vadd.f32 %v3409, %v3309
      %v3442 = vadd.f32 %v3410, %v3314
      %v3443 = vadd.f32 %v3411, %v3317
      %v3444 = vadd.f32 %v3412, %v3322
      %v3445 = vadd.f32 %v3413, %v3325
      %v3446 = vadd.f32 %v3414, %v3330
      %v3447 = vadd.f32 %v3415, %v3333
      %v3448 = vadd.f32 %v3416, %v3338
      %v3449 = vadd.f32 %v3417, %v3341
      %v3450 = vadd.f32 %v3418, %v3346
      %v3451 = vadd.f32 %v3419, %v3349
      %v3452 = vadd.f32 %v3420, %v3354
      %v3453 = vadd.f32 %v3421, %v3357
      %v3454 = vadd.f32 %v3422, %v3362
      %v3455 = vadd.f32 %v3423, %v3365
      %v3456 = vadd.f32 %v3424, %v3370
      %v3457 = vadd.f32 %v3425, %v3373
      %v3458 = vadd.f32 %v3426, %v3378
      %v3459 = vadd.f32 %v3427, %v3381
      %v3460 = vadd.f32 %v3428, %v3386
      %v3461 = vadd.f32 %v3429, %v3389
      %v3462 = vadd.f32 %v3430, %v3394
      %v3463 = vadd.f32 %v3431, %v3397
      %3464 = vst [vmem:[#allocation2] sm:$0xff] %v3432
      %3465 = vst [vmem:[#allocation2 + $0x8] sm:$0xff] %v3433
      %3466 = vst [vmem:[#allocation2 + $0x10] sm:$0xff] %v3434
      %3467 = vst [vmem:[#allocation2 + $0x18] sm:$0xff] %v3435
      %3468 = vst [vmem:[#allocation2 + $0x20] sm:$0xff] %v3436
      %3469 = vst [vmem:[#allocation2 + $0x28] sm:$0xff] %v3437
      %3470 = vst [vmem:[#allocation2 + $0x30] sm:$0xff] %v3438
      %3471 = vst [vmem:[#allocation2 + $0x38] sm:$0xff] %v3439
      %3472 = vst [vmem:[#allocation2 + $0x40] sm:$0xff] %v3440
      %3473 = vst [vmem:[#allocation2 + $0x48] sm:$0xff] %v3441
      %3474 = vst [vmem:[#allocation2 + $0x50] sm:$0xff] %v3442
      %3475 = vst [vmem:[#allocation2 + $0x58] sm:$0xff] %v3443
      %3476 = vst [vmem:[#allocation2 + $0x60] sm:$0xff] %v3444
      %3477 = vst [vmem:[#allocation2 + $0x68] sm:$0xff] %v3445
      %3478 = vst [vmem:[#allocation2 + $0x70] sm:$0xff] %v3446
      %3479 = vst [vmem:[#allocation2 + $0x78] sm:$0xff] %v3447
      %3480 = vst [vmem:[#allocation2 + $0x80] sm:$0xff] %v3448
      %3481 = vst [vmem:[#allocation2 + $0x88] sm:$0xff] %v3449
      %3482 = vst [vmem:[#allocation2 + $0x90] sm:$0xff] %v3450
      %3483 = vst [vmem:[#allocation2 + $0x98] sm:$0xff] %v3451
      %3484 = vst [vmem:[#allocation2 + $0xa0] sm:$0xff] %v3452
      %3485 = vst [vmem:[#allocation2 + $0xa8] sm:$0xff] %v3453
      %3486 = vst [vmem:[#allocation2 + $0xb0] sm:$0xff] %v3454
      %3487 = vst [vmem:[#allocation2 + $0xb8] sm:$0xff] %v3455
      %3488 = vst [vmem:[#allocation2 + $0xc0] sm:$0xff] %v3456
      %3489 = vst [vmem:[#allocation2 + $0xc8] sm:$0xff] %v3457
      %3490 = vst [vmem:[#allocation2 + $0xd0] sm:$0xff] %v3458
      %3491 = vst [vmem:[#allocation2 + $0xd8] sm:$0xff] %v3459
      %3492 = vst [vmem:[#allocation2 + $0xe0] sm:$0xff] %v3460
      %3493 = vst [vmem:[#allocation2 + $0xe8] sm:$0xff] %v3461
      %3494 = vst [vmem:[#allocation2 + $0xf0] sm:$0xff] %v3462
      %3495 = vst [vmem:[#allocation2 + $0xf8] sm:$0xff] %v3463
      %v3496 = vld [vmem:[#allocation2] sm:$0xff]
      %v3497 = vld [vmem:[#allocation2 + $0x8] sm:$0xff]
      %v3498 = vld [vmem:[#allocation2 + $0x10] sm:$0xff]
      %v3499 = vld [vmem:[#allocation2 + $0x18] sm:$0xff]
      %v3500 = vld [vmem:[#allocation2 + $0x20] sm:$0xff]
      %v3501 = vld [vmem:[#allocation2 + $0x28] sm:$0xff]
      %v3502 = vld [vmem:[#allocation2 + $0x30] sm:$0xff]
      %v3503 = vld [vmem:[#allocation2 + $0x38] sm:$0xff]
      %v3504 = vld [vmem:[#allocation2 + $0x40] sm:$0xff]
      %v3505 = vld [vmem:[#allocation2 + $0x48] sm:$0xff]
      %v3506 = vld [vmem:[#allocation2 + $0x50] sm:$0xff]
      %v3507 = vld [vmem:[#allocation2 + $0x58] sm:$0xff]
      %v3508 = vld [vmem:[#allocation2 + $0x60] sm:$0xff]
      %v3509 = vld [vmem:[#allocation2 + $0x68] sm:$0xff]
      %v3510 = vld [vmem:[#allocation2 + $0x70] sm:$0xff]
      %v3511 = vld [vmem:[#allocation2 + $0x78] sm:$0xff]
      %v3512 = vld [vmem:[#allocation2 + $0x80] sm:$0xff]
      %v3513 = vld [vmem:[#allocation2 + $0x88] sm:$0xff]
      %v3514 = vld [vmem:[#allocation2 + $0x90] sm:$0xff]
      %v3515 = vld [vmem:[#allocation2 + $0x98] sm:$0xff]
      %v3516 = vld [vmem:[#allocation2 + $0xa0] sm:$0xff]
      %v3517 = vld [vmem:[#allocation2 + $0xa8] sm:$0xff]
      %v3518 = vld [vmem:[#allocation2 + $0xb0] sm:$0xff]
      %v3519 = vld [vmem:[#allocation2 + $0xb8] sm:$0xff]
      %v3520 = vld [vmem:[#allocation2 + $0xc0] sm:$0xff]
      %v3521 = vld [vmem:[#allocation2 + $0xc8] sm:$0xff]
      %v3522 = vld [vmem:[#allocation2 + $0xd0] sm:$0xff]
      %v3523 = vld [vmem:[#allocation2 + $0xd8] sm:$0xff]
      %v3524 = vld [vmem:[#allocation2 + $0xe0] sm:$0xff]
      %v3525 = vld [vmem:[#allocation2 + $0xe8] sm:$0xff]
      %v3526 = vld [vmem:[#allocation2 + $0xf0] sm:$0xff]
      %v3527 = vld [vmem:[#allocation2 + $0xf8] sm:$0xff]
      %v3528 = vld [vmem:[%s2] sm:$0x1]
      %v3530 = vlaneseq
      %v3531 = vshrl.u32 %v3530, 7
      %v3532 = vsub.s32 0, %v3531
      %v3533 = vrot.slane %v3528, %v3532
      %v3535 = vadd.f32 %v3496, %v3533
      %v3536 = vadd.f32 %v3497, %v3533
      %v3537 = vadd.f32 %v3498, %v3533
      %v3538 = vadd.f32 %v3499, %v3533
      %v3539 = vadd.f32 %v3500, %v3533
      %v3540 = vadd.f32 %v3501, %v3533
      %v3541 = vadd.f32 %v3502, %v3533
      %v3542 = vadd.f32 %v3503, %v3533
      %v3543 = vadd.f32 %v3504, %v3533
      %v3544 = vadd.f32 %v3505, %v3533
      %v3545 = vadd.f32 %v3506, %v3533
      %v3546 = vadd.f32 %v3507, %v3533
      %v3547 = vadd.f32 %v3508, %v3533
      %v3548 = vadd.f32 %v3509, %v3533
      %v3549 = vadd.f32 %v3510, %v3533
      %v3550 = vadd.f32 %v3511, %v3533
      %v3551 = vadd.f32 %v3512, %v3533
      %v3552 = vadd.f32 %v3513, %v3533
      %v3553 = vadd.f32 %v3514, %v3533
      %v3554 = vadd.f32 %v3515, %v3533
      %v3555 = vadd.f32 %v3516, %v3533
      %v3556 = vadd.f32 %v3517, %v3533
      %v3557 = vadd.f32 %v3518, %v3533
      %v3558 = vadd.f32 %v3519, %v3533
      %v3559 = vadd.f32 %v3520, %v3533
      %v3560 = vadd.f32 %v3521, %v3533
      %v3561 = vadd.f32 %v3522, %v3533
      %v3562 = vadd.f32 %v3523, %v3533
      %v3563 = vadd.f32 %v3524, %v3533
      %v3564 = vadd.f32 %v3525, %v3533
      %v3565 = vadd.f32 %v3526, %v3533
      %v3566 = vadd.f32 %v3527, %v3533
      %v3567 = vmax.f32 %v3535, 0.0
      %v3568 = vmax.f32 %v3536, 0.0
      %v3569 = vmax.f32 %v3537, 0.0
      %v3570 = vmax.f32 %v3538, 0.0
      %v3571 = vmax.f32 %v3539, 0.0
      %v3572 = vmax.f32 %v3540, 0.0
      %v3573 = vmax.f32 %v3541, 0.0
      %v3574 = vmax.f32 %v3542, 0.0
      %v3575 = vmax.f32 %v3543, 0.0
      %v3576 = vmax.f32 %v3544, 0.0
      %v3577 = vmax.f32 %v3545, 0.0
      %v3578 = vmax.f32 %v3546, 0.0
      %v3579 = vmax.f32 %v3547, 0.0
      %v3580 = vmax.f32 %v3548, 0.0
      %v3581 = vmax.f32 %v3549, 0.0
      %v3582 = vmax.f32 %v3550, 0.0
      %v3583 = vmax.f32 %v3551, 0.0
      %v3584 = vmax.f32 %v3552, 0.0
      %v3585 = vmax.f32 %v3553, 0.0
      %v3586 = vmax.f32 %v3554, 0.0
      %v3587 = vmax.f32 %v3555, 0.0
      %v3588 = vmax.f32 %v3556, 0.0
      %v3589 = vmax.f32 %v3557, 0.0
      %v3590 = vmax.f32 %v3558, 0.0
      %v3591 = vmax.f32 %v3559, 0.0
      %v3592 = vmax.f32 %v3560, 0.0
      %v3593 = vmax.f32 %v3561, 0.0
      %v3594 = vmax.f32 %v3562, 0.0
      %v3595 = vmax.f32 %v3563, 0.0
      %v3596 = vmax.f32 %v3564, 0.0
      %v3597 = vmax.f32 %v3565, 0.0
      %v3598 = vmax.f32 %v3566, 0.0
      %v3599 = vpack.c.bf16 %v3568, %v3567
      %v3600 = vpack.c.bf16 %v3570, %v3569
      %v3601 = vpack.c.bf16 %v3572, %v3571
      %v3602 = vpack.c.bf16 %v3574, %v3573
      %v3603 = vpack.c.bf16 %v3576, %v3575
      %v3604 = vpack.c.bf16 %v3578, %v3577
      %v3605 = vpack.c.bf16 %v3580, %v3579
      %v3606 = vpack.c.bf16 %v3582, %v3581
      %v3607 = vpack.c.bf16 %v3584, %v3583
      %v3608 = vpack.c.bf16 %v3586, %v3585
      %v3609 = vpack.c.bf16 %v3588, %v3587
      %v3610 = vpack.c.bf16 %v3590, %v3589
      %v3611 = vpack.c.bf16 %v3592, %v3591
      %v3612 = vpack.c.bf16 %v3594, %v3593
      %v3613 = vpack.c.bf16 %v3596, %v3595
      %v3614 = vpack.c.bf16 %v3598, %v3597
      %v3631 = vunpack.c.l.b16 %v3599
      %v3632 = vunpack.c.h.b16 %v3599
      %v3633 = vunpack.c.l.b16 %v3600
      %v3634 = vunpack.c.h.b16 %v3600
      %v3635 = vunpack.c.l.b16 %v3601
      %v3636 = vunpack.c.h.b16 %v3601
      %v3637 = vunpack.c.l.b16 %v3602
      %v3638 = vunpack.c.h.b16 %v3602
      %v3639 = vunpack.c.l.b16 %v3603
      %v3640 = vunpack.c.h.b16 %v3603
      %v3641 = vunpack.c.l.b16 %v3604
      %v3642 = vunpack.c.h.b16 %v3604
      %v3643 = vunpack.c.l.b16 %v3605
      %v3644 = vunpack.c.h.b16 %v3605
      %v3645 = vunpack.c.l.b16 %v3606
      %v3646 = vunpack.c.h.b16 %v3606
      %v3647 = vunpack.c.l.b16 %v3607
      %v3648 = vunpack.c.h.b16 %v3607
      %v3649 = vunpack.c.l.b16 %v3608
      %v3650 = vunpack.c.h.b16 %v3608
      %v3651 = vunpack.c.l.b16 %v3609
      %v3652 = vunpack.c.h.b16 %v3609
      %v3653 = vunpack.c.l.b16 %v3610
      %v3654 = vunpack.c.h.b16 %v3610
      %v3655 = vunpack.c.l.b16 %v3611
      %v3656 = vunpack.c.h.b16 %v3611
      %v3657 = vunpack.c.l.b16 %v3612
      %v3658 = vunpack.c.h.b16 %v3612
      %v3659 = vunpack.c.l.b16 %v3613
      %v3660 = vunpack.c.h.b16 %v3613
      %v3661 = vunpack.c.l.b16 %v3614
      %v3662 = vunpack.c.h.b16 %v3614
      %v3663 = vpack.c.b16 %v3631, %v3631
      %v3664 = vpack.c.b16 %v3632, %v3632
      %v3665 = vpack.c.b16 %v3633, %v3633
      %v3666 = vpack.c.b16 %v3634, %v3634
      %v3667 = vpack.c.b16 %v3635, %v3635
      %v3668 = vpack.c.b16 %v3636, %v3636
      %v3669 = vpack.c.b16 %v3637, %v3637
      %v3670 = vpack.c.b16 %v3638, %v3638
      %v3671 = vpack.c.b16 %v3639, %v3639
      %v3672 = vpack.c.b16 %v3640, %v3640
      %v3673 = vpack.c.b16 %v3641, %v3641
      %v3674 = vpack.c.b16 %v3642, %v3642
      %v3675 = vpack.c.b16 %v3643, %v3643
      %v3676 = vpack.c.b16 %v3644, %v3644
      %v3677 = vpack.c.b16 %v3645, %v3645
      %v3678 = vpack.c.b16 %v3646, %v3646
      %v3679 = vpack.c.b16 %v3647, %v3647
      %v3680 = vpack.c.b16 %v3648, %v3648
      %v3681 = vpack.c.b16 %v3649, %v3649
      %v3682 = vpack.c.b16 %v3650, %v3650
      %v3683 = vpack.c.b16 %v3651, %v3651
      %v3684 = vpack.c.b16 %v3652, %v3652
      %v3685 = vpack.c.b16 %v3653, %v3653
      %v3686 = vpack.c.b16 %v3654, %v3654
      %v3687 = vpack.c.b16 %v3655, %v3655
      %v3688 = vpack.c.b16 %v3656, %v3656
      %v3689 = vpack.c.b16 %v3657, %v3657
      %v3690 = vpack.c.b16 %v3658, %v3658
      %v3691 = vpack.c.b16 %v3659, %v3659
      %v3692 = vpack.c.b16 %v3660, %v3660
      %v3693 = vpack.c.b16 %v3661, %v3661
      %v3694 = vpack.c.b16 %v3662, %v3662
      %3727 = vst [vmem:[%s170] sm:$0xf] %v3663
      %3728 = vst [vmem:[%s170 + $0x4] sm:$0xf] %v3664
      %3729 = vst [vmem:[%s170 + $0x8] sm:$0xf] %v3665
      %3730 = vst [vmem:[%s170 + $0xc] sm:$0xf] %v3666
      %3731 = vst [vmem:[%s170 + $0x10] sm:$0xf] %v3667
      %3732 = vst [vmem:[%s170 + $0x14] sm:$0xf] %v3668
      %3733 = vst [vmem:[%s170 + $0x18] sm:$0xf] %v3669
      %3734 = vst [vmem:[%s170 + $0x1c] sm:$0xf] %v3670
      %3735 = vst [vmem:[%s170 + $0x20] sm:$0xf] %v3671
      %3736 = vst [vmem:[%s170 + $0x24] sm:$0xf] %v3672
      %3737 = vst [vmem:[%s170 + $0x28] sm:$0xf] %v3673
      %3738 = vst [vmem:[%s170 + $0x2c] sm:$0xf] %v3674
      %3739 = vst [vmem:[%s170 + $0x30] sm:$0xf] %v3675
      %3740 = vst [vmem:[%s170 + $0x34] sm:$0xf] %v3676
      %3741 = vst [vmem:[%s170 + $0x38] sm:$0xf] %v3677
      %3742 = vst [vmem:[%s170 + $0x3c] sm:$0xf] %v3678
      %3743 = vst [vmem:[%s170 + $0x40] sm:$0xf] %v3679
      %3744 = vst [vmem:[%s170 + $0x44] sm:$0xf] %v3680
      %3745 = vst [vmem:[%s170 + $0x48] sm:$0xf] %v3681
      %3746 = vst [vmem:[%s170 + $0x4c] sm:$0xf] %v3682
      %3747 = vst [vmem:[%s170 + $0x50] sm:$0xf] %v3683
      %3748 = vst [vmem:[%s170 + $0x54] sm:$0xf] %v3684
      %3749 = vst [vmem:[%s170 + $0x58] sm:$0xf] %v3685
      %3750 = vst [vmem:[%s170 + $0x5c] sm:$0xf] %v3686
      %3751 = vst [vmem:[%s170 + $0x60] sm:$0xf] %v3687
      %3752 = vst [vmem:[%s170 + $0x64] sm:$0xf] %v3688
      %3753 = vst [vmem:[%s170 + $0x68] sm:$0xf] %v3689
      %3754 = vst [vmem:[%s170 + $0x6c] sm:$0xf] %v3690
      %3755 = vst [vmem:[%s170 + $0x70] sm:$0xf] %v3691
      %3756 = vst [vmem:[%s170 + $0x74] sm:$0xf] %v3692
      %3757 = vst [vmem:[%s170 + $0x78] sm:$0xf] %v3693
      %3758 = vst [vmem:[%s170 + $0x7c] sm:$0xf] %v3694
      %p3759 = scmp.lt.s32.totalorder %s14, 1
      %s3760 = scalar_select %p3759, %s14, 1
      %s3761 = smul.addr %s3760, 32
      %s3762 = smul.addr %s3761, 4
      %s3763 = scalar_lea.vmem %s3, %s3762
      // Predicated region
      $region33: #{_lambda_.4} parent=31 // pred_check
        %p3764 = pneg %p100
      $region34: #{_lambda_.4} parent=31 // pred_check_branch
        %3766 = sbr.rel (%p3764) target = $region36
      $region35: #{_lambda_.4} parent=31 // pred_region
        _
      $region36: #{_lambda_.4} parent=31 // pred_fallthru
        _
    $region32: #{_lambda_.4} parent=5 // pred_fallthru
      _
    %p3767 = scmp.le.s32.totalorder 2, %s9
    // Predicated region
    $region37: #{_lambda_.4} parent=5 // pred_check
      %p3768 = pneg %p3767
    $region38: #{_lambda_.4} parent=5 // pred_check_branch
      %3770 = sbr.rel (%p3768) target = $region40
    $region39: #{_lambda_.4} parent=5 // pred_region
      %s3771 = ssub.s32 %s9, 2
      // Predicated region
      $region41: #{_lambda_.4} parent=39 // pred_check
        %p3772 = pneg %p106
      $region42: #{_lambda_.4} parent=39 // pred_check_branch
        %3774 = sbr.rel (%p3772) target = $region44
      $region43: #{_lambda_.4} parent=39 // pred_region
        %p3775 = scmp.lt.s32.totalorder %s15, 1
        %s3776 = scalar_select %p3775, %s15, 1
        %s3777 = smul.addr %s3776, 32
        %s3778 = smul.addr %s3777, 4
        %s3779 = scalar_lea.vmem %s3, %s3778
      $region44: #{_lambda_.4} parent=39 // pred_fallthru
        _
    $region40: #{_lambda_.4} parent=5 // pred_fallthru
      _
  $region6: #{_lambda_.4} parent=0 // loop_footer
    %s13 = sadd.s32 1, %s9
  $region7: #{_lambda_.4} parent=0 // loop_footer_branch
    %8 = sbr.rel target = $region3
  $region8: #{_lambda_.4} parent=0 // loop_exit
    _

</llo_original>
